<compile_context>
chip_gen: v6e
topology: v6e:2x2x1
jax: 0.10.0
libtpu: 0.0.40
codegen_flags: <defaults>
</compile_context>

<pallas_src>
import functools
import math

import jax
import jax.numpy as jnp
from jax import lax
from jax.experimental import pallas as pl
from jax.experimental.pallas import tpu as pltpu


# --------------------------- Tiled projection matmul ------------------------

def _matmul_nt_kernel(x_ref, w_ref, o_ref, acc_ref):
    # x block: (tm, tk); w block: (tn, tk)  (PyTorch (out,in) layout, trans_b)
    @pl.when(pl.program_id(2) == 0)
    def _():
        acc_ref[...] = jnp.zeros_like(acc_ref)

    acc_ref[...] += lax.dot_general(
        x_ref[...], w_ref[...],
        dimension_numbers=(((1,), (1,)), ((), ())),
        preferred_element_type=jnp.float32)

    @pl.when(pl.program_id(2) == pl.num_programs(2) - 1)
    def _():
        o_ref[...] = acc_ref[...].astype(o_ref.dtype)


def pallas_matmul_nt(x2d: jax.Array, w: jax.Array, *, tm=128, tn=128, tk=512):
    """x2d: (M, K) @ w(N, K)^T -> (M, N). Tiled, pipelined, f32 accumulation."""
    M, K = x2d.shape
    N, K2 = w.shape
    assert K == K2
    tm, tn, tk = min(tm, M), min(tn, N), min(tk, K)
    assert M % tm == 0 and N % tn == 0 and K % tk == 0
    return pl.pallas_call(
        _matmul_nt_kernel,
        out_shape=jax.ShapeDtypeStruct((M, N), x2d.dtype),
        grid=(M // tm, N // tn, K // tk),
        in_specs=[
            pl.BlockSpec((tm, tk), lambda i, j, k: (i, k)),
            pl.BlockSpec((tn, tk), lambda i, j, k: (j, k)),
        ],
        out_specs=pl.BlockSpec((tm, tn), lambda i, j, k: (i, j)),
        scratch_shapes=[pltpu.VMEM((tm, tn), jnp.float32)],
        compiler_params=pltpu.CompilerParams(
            dimension_semantics=("parallel", "parallel", "arbitrary"),
            vmem_limit_bytes=32 * 1024 * 1024,  # fits v5e/v6e/v7x budgets
        ),
    )(x2d, w)


# ----------------------- Flash attention with fused RoPE --------------------

def _rope_apply(x3, cos2, sin2, rp2):
    """Interleaved RoPE on x3: (H, T, Dh) f32; cos2/sin2: (T, Dh); rp2: (Dh, Dh).

    rp2 is the sign-permutation matrix: (x @ rp2)[2i] = -x[2i+1],
    (x @ rp2)[2i+1] = x[2i].  Using a tiny MXU matmul avoids lane-interleave
    reshapes inside the kernel.
    """
    H, T, D = x3.shape
    xsw = jnp.dot(x3.reshape(H * T, D), rp2,
                  preferred_element_type=jnp.float32).reshape(H, T, D)
    return x3 * cos2[None] + xsw * sin2[None]


def _flash_kernel(cos_q_ref, sin_q_ref, cos_k_ref, sin_k_ref, rp_ref,
                  q_ref, k_ref, v_ref, o_ref,
                  qrot_scr, m_scr, l_scr, acc_scr, *, scale):
    # blocks: q (1, H, tq, Dh), k/v (1, H, tkv, Dh), o (1, H, tq, Dh)
    qi = pl.program_id(1)
    kvi = pl.program_id(2)
    tq = q_ref.shape[2]
    tkv = k_ref.shape[2]
    q_start = qi * tq
    kv_start = kvi * tkv

    @pl.when(kvi == 0)
    def _init():
        # RoPE + scale on the q tile, cached across all KV steps of this q tile.
        qt = q_ref[0].astype(jnp.float32)                       # (H, tq, Dh)
        q_rot = _rope_apply(qt, cos_q_ref[...], sin_q_ref[...], rp_ref[...])
        qrot_scr[...] = (q_rot * scale).astype(qrot_scr.dtype)
        m_scr[...] = jnp.full_like(m_scr, -1e30)
        l_scr[...] = jnp.zeros_like(l_scr)
        acc_scr[...] = jnp.zeros_like(acc_scr)

    # Skip KV tiles that are entirely above the causal diagonal.
    @pl.when(kv_start <= q_start + tq - 1)
    def _compute():
        kt = k_ref[0].astype(jnp.float32)                       # (H, tkv, Dh)
        k_rot = _rope_apply(kt, cos_k_ref[...], sin_k_ref[...], rp_ref[...])
        k_rot = k_rot.astype(k_ref.dtype)   # keep MXU operands in native dtype
        v_t = v_ref[0]

        # scores: q . k^T without an explicit transpose (batch over heads).
        s = lax.dot_general(
            qrot_scr[...], k_rot,
            dimension_numbers=(((2,), (2,)), ((0,), (0,))),
            preferred_element_type=jnp.float32)                 # (H, tq, tkv)

        rows = lax.broadcasted_iota(jnp.int32, (tq, tkv), 0) + q_start
        cols = lax.broadcasted_iota(jnp.int32, (tq, tkv), 1) + kv_start
        s = jnp.where((cols <= rows)[None], s, -1e30)

        m_prev = m_scr[...]
        m_new = jnp.maximum(m_prev, jnp.max(s, axis=-1, keepdims=True))
        alpha = jnp.exp(m_prev - m_new)
        p = jnp.exp(s - m_new)
        l_scr[...] = alpha * l_scr[...] + jnp.sum(p, axis=-1, keepdims=True)
        acc_scr[...] = alpha * acc_scr[...] + lax.dot_general(
            p.astype(v_t.dtype), v_t,
            dimension_numbers=(((2,), (1,)), ((0,), (0,))),
            preferred_element_type=jnp.float32)                 # (H, tq, Dh)
        m_scr[...] = m_new

    @pl.when(kvi == pl.num_programs(2) - 1)
    def _finalize():
        inv_l = pl.reciprocal(l_scr[...], approx=True)
        o_ref[0] = (acc_scr[...] * inv_l).astype(o_ref.dtype)


def pallas_flash_attention(q, k, v, cos_full, sin_full, rope_perm,
                           *, tq=128, tkv=128):
    """q, k, v: (B, H, S, Dh) -> (B, H, S, Dh); causal; RoPE fused on q, k."""
    B, H, S, Dh = q.shape
    tq, tkv = min(tq, S), min(tkv, S)
    assert S % tq == 0 and S % tkv == 0
    scale = 1.0 / math.sqrt(Dh)
    kernel = functools.partial(_flash_kernel, scale=scale)

    q_spec = pl.BlockSpec((1, H, tq, Dh), lambda b, qi, kvi: (b, 0, qi, 0))
    kv_spec = pl.BlockSpec((1, H, tkv, Dh), lambda b, qi, kvi: (b, 0, kvi, 0))

    return pl.pallas_call(
        kernel,
        out_shape=jax.ShapeDtypeStruct((B, H, S, Dh), q.dtype),
        grid=(B, S // tq, S // tkv),
        in_specs=[
            pl.BlockSpec((tq, Dh), lambda b, qi, kvi: (qi, 0)),    # cos (q rows)
            pl.BlockSpec((tq, Dh), lambda b, qi, kvi: (qi, 0)),    # sin (q rows)
            pl.BlockSpec((tkv, Dh), lambda b, qi, kvi: (kvi, 0)),  # cos (k rows)
            pl.BlockSpec((tkv, Dh), lambda b, qi, kvi: (kvi, 0)),  # sin (k rows)
            pl.BlockSpec((Dh, Dh), lambda b, qi, kvi: (0, 0)),     # rope perm
            q_spec, kv_spec, kv_spec,
        ],
        out_specs=q_spec,
        scratch_shapes=[
            pltpu.VMEM((H, tq, Dh), q.dtype),      # cached rope(q) * scale
            pltpu.VMEM((H, tq, 1), jnp.float32),   # m (running max)
            pltpu.VMEM((H, tq, 1), jnp.float32),   # l (running denom)
            pltpu.VMEM((H, tq, Dh), jnp.float32),  # acc
        ],
        compiler_params=pltpu.CompilerParams(
            dimension_semantics=("parallel", "parallel", "arbitrary"),
            vmem_limit_bytes=32 * 1024 * 1024,
        ),
    )(cos_full, sin_full, cos_full, sin_full, rope_perm, q, k, v)


# ------------------------------- RoPE tables --------------------------------

def precompute_freqs_cis(end: int, dim: int, theta: float = 10000.0):
    freqs = 1.0 / (theta ** (jnp.arange(0, dim, 2)[: dim // 2].astype(jnp.float32) / dim))
    t = jnp.arange(end, dtype=jnp.float32)
    angles = jnp.outer(t, freqs)                 # (end, dim//2)
    return jnp.cos(angles), jnp.sin(angles)


def _rope_swap_matrix(dh: int) -> jax.Array:
    """P such that (x @ P)[2i] = -x[2i+1], (x @ P)[2i+1] = x[2i]."""
    p = jnp.zeros((dh, dh), jnp.float32)
    idx = jnp.arange(0, dh, 2)
    p = p.at[idx + 1, idx].set(-1.0)
    p = p.at[idx, idx + 1].set(1.0)
    return p


# ------------------------------ Module wrapper ------------------------------

@functools.partial(jax.jit, static_argnames=("num_heads",))
def multi_head_attention(x, w_qkv, w_proj, cos, sin, *, num_heads):
    """
    x:      (B, S, din)
    w_qkv:  (3*dout, din)   -- PyTorch Linear weight layout (out, in)
    w_proj: (dout, din)
    cos/sin: (block_size, head_dim//2)
    """
    B, S, din = x.shape
    dout = w_proj.shape[0]
    head_dim = din // num_heads

    # QKV projection (tiled Pallas matmul; weight kept in (out,in) layout)
    qkv = pallas_matmul_nt(x.reshape(B * S, din), w_qkv)       # (B*S, 3*dout)
    qkv = qkv.reshape(B, S, 3, num_heads, head_dim)

    # BHSD layout for the attention kernel (one fused XLA copy per tensor).
    # TODO(synk): could be removed entirely by writing BHSD directly from the
    # QKV matmul epilogue when head_dim is a multiple of 128.
    q = jnp.transpose(qkv[:, :, 0], (0, 2, 1, 3))
    k = jnp.transpose(qkv[:, :, 1], (0, 2, 1, 3))
    v = jnp.transpose(qkv[:, :, 2], (0, 2, 1, 3))

    # Expanded interleaved RoPE tables (cos/sin repeated per pair) + swap matrix.
    cos_full = jnp.repeat(cos[:S].astype(jnp.float32), 2, axis=-1)   # (S, Dh)
    sin_full = jnp.repeat(sin[:S].astype(jnp.float32), 2, axis=-1)
    rope_perm = _rope_swap_matrix(head_dim)

    # Causal flash attention with fused RoPE (dropout_p = 0.0, eval mode).
    y = pallas_flash_attention(q, k, v, cos_full, sin_full, rope_perm)

    y = jnp.transpose(y, (0, 2, 1, 3)).reshape(B * S, dout)
    out = pallas_matmul_nt(y, w_proj)                          # (B*S, dout)
    return out.reshape(B, S, dout)


# --------------------------- Pure-JAX reference -----------------------------

def apply_rotary_emb_ref(x, cos, sin):
    B, S, H, Dh = x.shape
    xr = x.astype(jnp.float32).reshape(B, S, H, Dh // 2, 2)
    x_even, x_odd = xr[..., 0], xr[..., 1]
    c = cos[None, :, None, :]
    s = sin[None, :, None, :]
    out = jnp.stack([x_even * c - x_odd * s, x_even * s + x_odd * c], axis=-1)
    return out.reshape(B, S, H, Dh).astype(x.dtype)


def reference(x, w_qkv, w_proj, cos, sin, num_heads):
    B, S, din = x.shape
    dout = w_proj.shape[0]
    head_dim = din // num_heads
    qkv = x @ w_qkv.T
    q, k, v = jnp.split(qkv, 3, axis=-1)
    q = apply_rotary_emb_ref(q.reshape(B, S, num_heads, head_dim), cos[:S], sin[:S])
    k = apply_rotary_emb_ref(k.reshape(B, S, num_heads, head_dim), cos[:S], sin[:S])
    v = v.reshape(B, S, num_heads, head_dim)
    q, k, v = (jnp.transpose(t, (0, 2, 1, 3)) for t in (q, k, v))
    s = jnp.einsum("bhqd,bhkd->bhqk", q, k) / math.sqrt(head_dim)
    mask = jnp.tril(jnp.ones((S, S), dtype=bool))
    s = jnp.where(mask, s, -jnp.inf)
    p = jax.nn.softmax(s, axis=-1)
    y = jnp.einsum("bhqk,bhkd->bhqd", p, v)
    y = jnp.transpose(y, (0, 2, 1, 3)).reshape(B, S, dout)
    return y @ w_proj.T


# ----------------------------------- Main -----------------------------------

if __name__ == "__main__":
    # Small but non-degenerate sizes: multiple q/kv/N tiles are exercised,
    # din == dout (required by the PyTorch module's .view()).
    B, S = 2, 256
    din = dout = 256
    num_heads = 4
    head_dim = din // num_heads      # 64
    block_size = S

    key = jax.random.PRNGKey(0)
    kx, kqkv, kproj = jax.random.split(key, 3)

    x = jax.random.normal(kx, (B, S, din), dtype=jnp.float32)
    # PyTorch Linear layout: (out_features, in_features)
    w_qkv = 0.02 * jax.random.normal(kqkv, (3 * dout, din), dtype=jnp.float32)
    w_proj = 0.02 * jax.random.normal(kproj, (dout, din), dtype=jnp.float32)

    cos, sin = precompute_freqs_cis(block_size, head_dim)

    out = multi_head_attention(x, w_qkv, w_proj, cos, sin, num_heads=num_heads)
    out = jax.block_until_ready(out)

    ref = reference(x, w_qkv, w_proj, cos, sin, num_heads)
    assert out.shape == (B, S, dout)
    max_err = float(jnp.max(jnp.abs(out - ref)))
    # tolerance covers flash-attention reordering + approx EUP reciprocal
    assert jnp.allclose(out, ref, atol=2e-3, rtol=2e-3), \
        f"mismatch vs reference (max abs err {max_err})"

    print("KERNEL_OK")
</pallas_src>

<mosaic_0001>
module attributes {stable_mosaic.version = 11 : i64} {
  func.func @_matmul_nt_kernel(%arg0: i32, %arg1: i32, %arg2: i32, %arg3: memref<128x256xf32, #tpu.memory_space<vmem>>, %arg4: memref<128x256xf32, #tpu.memory_space<vmem>>, %arg5: memref<128x128xf32, #tpu.memory_space<vmem>>, %arg6: memref<128x128xf32, #tpu.memory_space<vmem>>) attributes {dimension_semantics = [#tpu.dimension_semantics<parallel>, #tpu.dimension_semantics<parallel>, #tpu.dimension_semantics<arbitrary>], iteration_bounds = array<i64: 4, 6, 1>, scalar_prefetch = 0 : i64, scratch_operands = 1 : i64, tpu.core_type = #tpu.core_type<tc>, window_params = [{transform_indices = @transform_0, window_bounds = array<i64: 128, 256>}, {transform_indices = @transform_1, window_bounds = array<i64: 128, 256>}, {transform_indices = @transform_2, window_bounds = array<i64: 128, 128>}]} {
    %c0_i32 = arith.constant 0 : i32
    %0 = arith.cmpi eq, %arg2, %c0_i32 : i32
    %1 = arith.extui %0 : i1 to i32
    %c0_i32_0 = arith.constant 0 : i32
    %2 = arith.cmpi ne, %1, %c0_i32_0 : i32
    scf.if %2 {
      %cst_10 = arith.constant 0.000000e+00 : f32
      %12 = vector.broadcast %cst_10 : f32 to vector<128x128xf32>
      %c0_11 = arith.constant 0 : index
      %c0_12 = arith.constant 0 : index
      %13 = vector.load %arg6[%c0_11, %c0_12] : memref<128x128xf32, #tpu.memory_space<vmem>>, vector<128x128xf32>
      tpu.vector_store %arg6[%c0_11, %c0_12], %12 {strides = array<i32>} : memref<128x128xf32, #tpu.memory_space<vmem>>, vector<128x128xf32>,
    } else {
    }
    %c0 = arith.constant 0 : index
    %c0_1 = arith.constant 0 : index
    %3 = vector.load %arg6[%c0, %c0_1] : memref<128x128xf32, #tpu.memory_space<vmem>>, vector<128x128xf32>
    %c0_2 = arith.constant 0 : index
    %c0_3 = arith.constant 0 : index
    %4 = vector.load %arg3[%c0_2, %c0_3] : memref<128x256xf32, #tpu.memory_space<vmem>>, vector<128x256xf32>
    %c0_4 = arith.constant 0 : index
    %c0_5 = arith.constant 0 : index
    %5 = vector.load %arg4[%c0_4, %c0_5] : memref<128x256xf32, #tpu.memory_space<vmem>>, vector<128x256xf32>
    %cst = arith.constant dense<0.000000e+00> : vector<128x128xf32>
    %6 = tpu.matmul %4, %5, %cst {dimension_numbers = #tpu.dot_dimension_numbers<[1], [1], [0], [0], [0, 0, 1, 0], [], []>} : vector<128x256xf32>, vector<128x256xf32>, vector<128x128xf32> -> vector<128x128xf32>
    %7 = arith.addf %3, %6 : vector<128x128xf32>
    %c0_6 = arith.constant 0 : index
    %c0_7 = arith.constant 0 : index
    %8 = vector.load %arg6[%c0_6, %c0_7] : memref<128x128xf32, #tpu.memory_space<vmem>>, vector<128x128xf32>
    tpu.vector_store %arg6[%c0_6, %c0_7], %7 {strides = array<i32>} : memref<128x128xf32, #tpu.memory_space<vmem>>, vector<128x128xf32>,
    %c0_i32_8 = arith.constant 0 : i32
    %9 = arith.cmpi eq, %arg2, %c0_i32_8 : i32
    %10 = arith.extui %9 : i1 to i32
    %c0_i32_9 = arith.constant 0 : i32
    %11 = arith.cmpi ne, %10, %c0_i32_9 : i32
    scf.if %11 {
      %c0_10 = arith.constant 0 : index
      %c0_11 = arith.constant 0 : index
      %12 = vector.load %arg6[%c0_10, %c0_11] : memref<128x128xf32, #tpu.memory_space<vmem>>, vector<128x128xf32>
      %c0_12 = arith.constant 0 : index
      %c0_13 = arith.constant 0 : index
      %13 = vector.load %arg5[%c0_12, %c0_13] : memref<128x128xf32, #tpu.memory_space<vmem>>, vector<128x128xf32>
      tpu.vector_store %arg5[%c0_12, %c0_13], %12 {strides = array<i32>} : memref<128x128xf32, #tpu.memory_space<vmem>>, vector<128x128xf32>,
    } else {
    }
    return
  }
  func.func @transform_0(%arg0: i32, %arg1: i32, %arg2: i32) -> (i32, i32) {
    %c0_i32 = arith.constant 0 : i32
    return %arg0, %arg2 : i32, i32
  }
  func.func @transform_1(%arg0: i32, %arg1: i32, %arg2: i32) -> (i32, i32) {
    %c0_i32 = arith.constant 0 : i32
    return %arg1, %arg2 : i32, i32
  }
  func.func @transform_2(%arg0: i32, %arg1: i32, %arg2: i32) -> (i32, i32) {
    %c0_i32 = arith.constant 0 : i32
    return %arg0, %arg1 : i32, i32
  }
}

module attributes {stable_mosaic.version = 11 : i64} {
  func.func @_flash_kernel(%arg0: i32, %arg1: i32, %arg2: i32, %arg3: memref<128x64xf32, #tpu.memory_space<vmem>>, %arg4: memref<128x64xf32, #tpu.memory_space<vmem>>, %arg5: memref<128x64xf32, #tpu.memory_space<vmem>>, %arg6: memref<128x64xf32, #tpu.memory_space<vmem>>, %arg7: memref<64x64xf32, #tpu.memory_space<vmem>>, %arg8: memref<1x4x128x64xf32, #tpu.memory_space<vmem>>, %arg9: memref<1x4x128x64xf32, #tpu.memory_space<vmem>>, %arg10: memref<1x4x128x64xf32, #tpu.memory_space<vmem>>, %arg11: memref<1x4x128x64xf32, #tpu.memory_space<vmem>>, %arg12: memref<4x128x64xf32, #tpu.memory_space<vmem>>, %arg13: memref<4x128x1xf32, #tpu.memory_space<vmem>>, %arg14: memref<4x128x1xf32, #tpu.memory_space<vmem>>, %arg15: memref<4x128x64xf32, #tpu.memory_space<vmem>>) attributes {dimension_semantics = [#tpu.dimension_semantics<parallel>, #tpu.dimension_semantics<parallel>, #tpu.dimension_semantics<arbitrary>], iteration_bounds = array<i64: 2, 2, 2>, scalar_prefetch = 0 : i64, scratch_operands = 4 : i64, tpu.core_type = #tpu.core_type<tc>, window_params = [{transform_indices = @transform_0, window_bounds = array<i64: 128, 64>}, {transform_indices = @transform_1, window_bounds = array<i64: 128, 64>}, {transform_indices = @transform_2, window_bounds = array<i64: 128, 64>}, {transform_indices = @transform_3, window_bounds = array<i64: 128, 64>}, {pipeline_mode = #tpu.pipeline_mode<synchronous>, transform_indices = @transform_4, window_bounds = array<i64: 64, 64>}, {transform_indices = @transform_5, window_bounds = array<i64: 1, 4, 128, 64>}, {transform_indices = @transform_6, window_bounds = array<i64: 1, 4, 128, 64>}, {transform_indices = @transform_7, window_bounds = array<i64: 1, 4, 128, 64>}, {transform_indices = @transform_8, window_bounds = array<i64: 1, 4, 128, 64>}]} {
    %c128_i32 = arith.constant 128 : i32
    %0 = arith.muli %arg1, %c128_i32 : i32
    %c128_i32_0 = arith.constant 128 : i32
    %1 = arith.muli %arg2, %c128_i32_0 : i32
    %c0_i32 = arith.constant 0 : i32
    %2 = arith.cmpi eq, %arg2, %c0_i32 : i32
    %3 = arith.extui %2 : i1 to i32
    %c0_i32_1 = arith.constant 0 : i32
    %4 = arith.cmpi ne, %3, %c0_i32_1 : i32
    scf.if %4 {
      %c0 = arith.constant 0 : index
      %c0_6 = arith.constant 0 : index
      %c0_7 = arith.constant 0 : index
      %c0_8 = arith.constant 0 : index
      %13 = vector.load %arg8[%c0, %c0_6, %c0_7, %c0_8] : memref<1x4x128x64xf32, #tpu.memory_space<vmem>>, vector<1x4x128x64xf32>
      %14 = vector.shape_cast %13 : vector<1x4x128x64xf32> to vector<4x128x64xf32>
      %c0_9 = arith.constant 0 : index
      %c0_10 = arith.constant 0 : index
      %15 = vector.load %arg3[%c0_9, %c0_10] : memref<128x64xf32, #tpu.memory_space<vmem>>, vector<128x64xf32>
      %c0_11 = arith.constant 0 : index
      %c0_12 = arith.constant 0 : index
      %16 = vector.load %arg4[%c0_11, %c0_12] : memref<128x64xf32, #tpu.memory_space<vmem>>, vector<128x64xf32>
      %c0_13 = arith.constant 0 : index
      %c0_14 = arith.constant 0 : index
      %17 = vector.load %arg7[%c0_13, %c0_14] : memref<64x64xf32, #tpu.memory_space<vmem>>, vector<64x64xf32>
      %18 = vector.shape_cast %14 : vector<4x128x64xf32> to vector<512x64xf32>
      %cst = arith.constant dense<0.000000e+00> : vector<512x64xf32>
      %19 = tpu.matmul %18, %17, %cst {dimension_numbers = #tpu.dot_dimension_numbers<[1], [0], [0], [1], [0, 0, 1, 1], [], []>} : vector<512x64xf32>, vector<64x64xf32>, vector<512x64xf32> -> vector<512x64xf32>
      %20 = vector.shape_cast %19 : vector<512x64xf32> to vector<4x128x64xf32>
      %21 = vector.shape_cast %15 : vector<128x64xf32> to vector<1x128x64xf32>
      %22 = vector.broadcast %21 : vector<1x128x64xf32> to vector<4x128x64xf32>
      %23 = arith.mulf %14, %22 : vector<4x128x64xf32>
      %24 = vector.shape_cast %16 : vector<128x64xf32> to vector<1x128x64xf32>
      %25 = vector.broadcast %24 : vector<1x128x64xf32> to vector<4x128x64xf32>
      %26 = arith.mulf %20, %25 : vector<4x128x64xf32>
      %27 = arith.addf %23, %26 : vector<4x128x64xf32>
      %cst_15 = arith.constant 1.250000e-01 : f32
      %28 = vector.broadcast %cst_15 : f32 to vector<4x128x64xf32>
      %29 = arith.mulf %27, %28 : vector<4x128x64xf32>
      %c0_16 = arith.constant 0 : index
      %c0_17 = arith.constant 0 : index
      %c0_18 = arith.constant 0 : index
      %30 = vector.load %arg12[%c0_16, %c0_17, %c0_18] : memref<4x128x64xf32, #tpu.memory_space<vmem>>, vector<4x128x64xf32>
      tpu.vector_store %arg12[%c0_16, %c0_17, %c0_18], %29 {strides = array<i32>} : memref<4x128x64xf32, #tpu.memory_space<vmem>>, vector<4x128x64xf32>,
      %cst_19 = arith.constant -1.000000e+30 : f32
      %31 = vector.broadcast %cst_19 : f32 to vector<4x128x1xf32>
      %c0_20 = arith.constant 0 : index
      %c0_21 = arith.constant 0 : index
      %c0_22 = arith.constant 0 : index
      %32 = vector.load %arg13[%c0_20, %c0_21, %c0_22] : memref<4x128x1xf32, #tpu.memory_space<vmem>>, vector<4x128x1xf32>
      tpu.vector_store %arg13[%c0_20, %c0_21, %c0_22], %31 {strides = array<i32>} : memref<4x128x1xf32, #tpu.memory_space<vmem>>, vector<4x128x1xf32>,
      %cst_23 = arith.constant 0.000000e+00 : f32
      %33 = vector.broadcast %cst_23 : f32 to vector<4x128x1xf32>
      %c0_24 = arith.constant 0 : index
      %c0_25 = arith.constant 0 : index
      %c0_26 = arith.constant 0 : index
      %34 = vector.load %arg14[%c0_24, %c0_25, %c0_26] : memref<4x128x1xf32, #tpu.memory_space<vmem>>, vector<4x128x1xf32>
      tpu.vector_store %arg14[%c0_24, %c0_25, %c0_26], %33 {strides = array<i32>} : memref<4x128x1xf32, #tpu.memory_space<vmem>>, vector<4x128x1xf32>,
      %cst_27 = arith.constant 0.000000e+00 : f32
      %35 = vector.broadcast %cst_27 : f32 to vector<4x128x64xf32>
      %c0_28 = arith.constant 0 : index
      %c0_29 = arith.constant 0 : index
      %c0_30 = arith.constant 0 : index
      %36 = vector.load %arg15[%c0_28, %c0_29, %c0_30] : memref<4x128x64xf32, #tpu.memory_space<vmem>>, vector<4x128x64xf32>
      tpu.vector_store %arg15[%c0_28, %c0_29, %c0_30], %35 {strides = array<i32>} : memref<4x128x64xf32, #tpu.memory_space<vmem>>, vector<4x128x64xf32>,
    } else {
    }
    %c128_i32_2 = arith.constant 128 : i32
    %5 = arith.addi %0, %c128_i32_2 : i32
    %c1_i32 = arith.constant 1 : i32
    %6 = arith.subi %5, %c1_i32 : i32
    %7 = arith.cmpi sle, %1, %6 : i32
    %8 = arith.extui %7 : i1 to i32
    %c0_i32_3 = arith.constant 0 : i32
    %9 = arith.cmpi ne, %8, %c0_i32_3 : i32
    scf.if %9 {
      %c0 = arith.constant 0 : index
      %c0_6 = arith.constant 0 : index
      %c0_7 = arith.constant 0 : index
      %c0_8 = arith.constant 0 : index
      %13 = vector.load %arg9[%c0, %c0_6, %c0_7, %c0_8] : memref<1x4x128x64xf32, #tpu.memory_space<vmem>>, vector<1x4x128x64xf32>
      %14 = vector.shape_cast %13 : vector<1x4x128x64xf32> to vector<4x128x64xf32>
      %c0_9 = arith.constant 0 : index
      %c0_10 = arith.constant 0 : index
      %15 = vector.load %arg5[%c0_9, %c0_10] : memref<128x64xf32, #tpu.memory_space<vmem>>, vector<128x64xf32>
      %c0_11 = arith.constant 0 : index
      %c0_12 = arith.constant 0 : index
      %16 = vector.load %arg6[%c0_11, %c0_12] : memref<128x64xf32, #tpu.memory_space<vmem>>, vector<128x64xf32>
      %c0_13 = arith.constant 0 : index
      %c0_14 = arith.constant 0 : index
      %17 = vector.load %arg7[%c0_13, %c0_14] : memref<64x64xf32, #tpu.memory_space<vmem>>, vector<64x64xf32>
      %18 = vector.shape_cast %14 : vector<4x128x64xf32> to vector<512x64xf32>
      %cst = arith.constant dense<0.000000e+00> : vector<512x64xf32>
      %19 = tpu.matmul %18, %17, %cst {dimension_numbers = #tpu.dot_dimension_numbers<[1], [0], [0], [1], [0, 0, 1, 1], [], []>} : vector<512x64xf32>, vector<64x64xf32>, vector<512x64xf32> -> vector<512x64xf32>
      %20 = vector.shape_cast %19 : vector<512x64xf32> to vector<4x128x64xf32>
      %21 = vector.shape_cast %15 : vector<128x64xf32> to vector<1x128x64xf32>
      %22 = vector.broadcast %21 : vector<1x128x64xf32> to vector<4x128x64xf32>
      %23 = arith.mulf %14, %22 : vector<4x128x64xf32>
      %24 = vector.shape_cast %16 : vector<128x64xf32> to vector<1x128x64xf32>
      %25 = vector.broadcast %24 : vector<1x128x64xf32> to vector<4x128x64xf32>
      %26 = arith.mulf %20, %25 : vector<4x128x64xf32>
      %27 = arith.addf %23, %26 : vector<4x128x64xf32>
      %c0_15 = arith.constant 0 : index
      %c0_16 = arith.constant 0 : index
      %c0_17 = arith.constant 0 : index
      %c0_18 = arith.constant 0 : index
      %28 = vector.load %arg10[%c0_15, %c0_16, %c0_17, %c0_18] : memref<1x4x128x64xf32, #tpu.memory_space<vmem>>, vector<1x4x128x64xf32>
      %29 = vector.shape_cast %28 : vector<1x4x128x64xf32> to vector<4x128x64xf32>
      %c0_19 = arith.constant 0 : index
      %c0_20 = arith.constant 0 : index
      %c0_21 = arith.constant 0 : index
      %30 = vector.load %arg12[%c0_19, %c0_20, %c0_21] : memref<4x128x64xf32, #tpu.memory_space<vmem>>, vector<4x128x64xf32>
      %cst_22 = arith.constant dense<0.000000e+00> : vector<4x128x128xf32>
      %31 = tpu.matmul %30, %27, %cst_22 {dimension_numbers = #tpu.dot_dimension_numbers<[2], [2], [1], [1], [0, 0, 0, 1, 1, 1], [0], [0]>} : vector<4x128x64xf32>, vector<4x128x64xf32>, vector<4x128x128xf32> -> vector<4x128x128xf32>
      %32 = tpu.iota {dimensions = array<i32: 0>} : vector<128x128xi32>
      %33 = vector.broadcast %0 : i32 to vector<128x128xi32>
      %34 = arith.addi %32, %33 : vector<128x128xi32>
      %35 = tpu.iota {dimensions = array<i32: 1>} : vector<128x128xi32>
      %36 = vector.broadcast %1 : i32 to vector<128x128xi32>
      %37 = arith.addi %35, %36 : vector<128x128xi32>
      %38 = arith.cmpi sle, %37, %34 : vector<128x128xi32>
      %39 = vector.shape_cast %38 : vector<128x128xi1> to vector<1x128x128xi1>
      %cst_23 = arith.constant -1.000000e+30 : f32
      %40 = vector.shape_cast %39 : vector<1x128x128xi1> to vector<1x128x128xi1>
      %41 = vector.broadcast %40 : vector<1x128x128xi1> to vector<4x128x128xi1>
      %42 = vector.broadcast %cst_23 : f32 to vector<4x128x128xf32>
      %43 = arith.select %41, %31, %42 : vector<4x128x128xi1>, vector<4x128x128xf32>
      %c0_24 = arith.constant 0 : index
      %c0_25 = arith.constant 0 : index
      %c0_26 = arith.constant 0 : index
      %44 = vector.load %arg13[%c0_24, %c0_25, %c0_26] : memref<4x128x1xf32, #tpu.memory_space<vmem>>, vector<4x128x1xf32>
      %cst_27 = arith.constant dense<0xFF800000> : vector<4x128xf32>
      %45 = vector.multi_reduction <maximumf>, %43, %cst_27 [2] : vector<4x128x128xf32> to vector<4x128xf32>
      %46 = vector.shape_cast %45 : vector<4x128xf32> to vector<4x128x1xf32>
      %47 = arith.maximumf %44, %46 : vector<4x128x1xf32>
      %48 = arith.subf %44, %47 : vector<4x128x1xf32>
      %49 = math.exp %48 : vector<4x128x1xf32>
      %50 = vector.broadcast %47 : vector<4x128x1xf32> to vector<4x128x128xf32>
      %51 = arith.subf %43, %50 : vector<4x128x128xf32>
      %52 = math.exp %51 : vector<4x128x128xf32>
      %c0_28 = arith.constant 0 : index
      %c0_29 = arith.constant 0 : index
      %c0_30 = arith.constant 0 : index
      %53 = vector.load %arg14[%c0_28, %c0_29, %c0_30] : memref<4x128x1xf32, #tpu.memory_space<vmem>>, vector<4x128x1xf32>
      %54 = arith.mulf %49, %53 : vector<4x128x1xf32>
      %cst_31 = arith.constant dense<0.000000e+00> : vector<4x128xf32>
      %55 = vector.multi_reduction <add>, %52, %cst_31 [2] : vector<4x128x128xf32> to vector<4x128xf32>
      %56 = vector.shape_cast %55 : vector<4x128xf32> to vector<4x128x1xf32>
      %57 = arith.addf %54, %56 : vector<4x128x1xf32>
      %c0_32 = arith.constant 0 : index
      %c0_33 = arith.constant 0 : index
      %c0_34 = arith.constant 0 : index
      %58 = vector.load %arg14[%c0_32, %c0_33, %c0_34] : memref<4x128x1xf32, #tpu.memory_space<vmem>>, vector<4x128x1xf32>
      tpu.vector_store %arg14[%c0_32, %c0_33, %c0_34], %57 {strides = array<i32>} : memref<4x128x1xf32, #tpu.memory_space<vmem>>, vector<4x128x1xf32>,
      %c0_35 = arith.constant 0 : index
      %c0_36 = arith.constant 0 : index
      %c0_37 = arith.constant 0 : index
      %59 = vector.load %arg15[%c0_35, %c0_36, %c0_37] : memref<4x128x64xf32, #tpu.memory_space<vmem>>, vector<4x128x64xf32>
      %60 = vector.broadcast %49 : vector<4x128x1xf32> to vector<4x128x64xf32>
      %61 = arith.mulf %60, %59 : vector<4x128x64xf32>
      %cst_38 = arith.constant dense<0.000000e+00> : vector<4x128x64xf32>
      %62 = tpu.matmul %52, %29, %cst_38 {dimension_numbers = #tpu.dot_dimension_numbers<[2], [1], [1], [2], [0, 0, 0, 1, 1, 2], [0], [0]>} : vector<4x128x128xf32>, vector<4x128x64xf32>, vector<4x128x64xf32> -> vector<4x128x64xf32>
      %63 = arith.addf %61, %62 : vector<4x128x64xf32>
      %c0_39 = arith.constant 0 : index
      %c0_40 = arith.constant 0 : index
      %c0_41 = arith.constant 0 : index
      %64 = vector.load %arg15[%c0_39, %c0_40, %c0_41] : memref<4x128x64xf32, #tpu.memory_space<vmem>>, vector<4x128x64xf32>
      tpu.vector_store %arg15[%c0_39, %c0_40, %c0_41], %63 {strides = array<i32>} : memref<4x128x64xf32, #tpu.memory_space<vmem>>, vector<4x128x64xf32>,
      %c0_42 = arith.constant 0 : index
      %c0_43 = arith.constant 0 : index
      %c0_44 = arith.constant 0 : index
      %65 = vector.load %arg13[%c0_42, %c0_43, %c0_44] : memref<4x128x1xf32, #tpu.memory_space<vmem>>, vector<4x128x1xf32>
      tpu.vector_store %arg13[%c0_42, %c0_43, %c0_44], %47 {strides = array<i32>} : memref<4x128x1xf32, #tpu.memory_space<vmem>>, vector<4x128x1xf32>,
    } else {
    }
    %c1_i32_4 = arith.constant 1 : i32
    %10 = arith.cmpi eq, %arg2, %c1_i32_4 : i32
    %11 = arith.extui %10 : i1 to i32
    %c0_i32_5 = arith.constant 0 : i32
    %12 = arith.cmpi ne, %11, %c0_i32_5 : i32
    scf.if %12 {
      %c0 = arith.constant 0 : index
      %c0_6 = arith.constant 0 : index
      %c0_7 = arith.constant 0 : index
      %13 = vector.load %arg14[%c0, %c0_6, %c0_7] : memref<4x128x1xf32, #tpu.memory_space<vmem>>, vector<4x128x1xf32>
      %14 = tpu.reciprocal %13 {approx = true} : vector<4x128x1xf32> -> vector<4x128x1xf32>
      %c0_8 = arith.constant 0 : index
      %c0_9 = arith.constant 0 : index
      %c0_10 = arith.constant 0 : index
      %15 = vector.load %arg15[%c0_8, %c0_9, %c0_10] : memref<4x128x64xf32, #tpu.memory_space<vmem>>, vector<4x128x64xf32>
      %16 = vector.broadcast %14 : vector<4x128x1xf32> to vector<4x128x64xf32>
      %17 = arith.mulf %15, %16 : vector<4x128x64xf32>
      %c0_11 = arith.constant 0 : index
      %c0_12 = arith.constant 0 : index
      %c0_13 = arith.constant 0 : index
      %c0_14 = arith.constant 0 : index
      %18 = vector.load %arg11[%c0_11, %c0_12, %c0_13, %c0_14] : memref<1x4x128x64xf32, #tpu.memory_space<vmem>>, vector<1x4x128x64xf32>
      %19 = vector.shape_cast %18 : vector<1x4x128x64xf32> to vector<4x128x64xf32>
      %20 = vector.shape_cast %17 : vector<4x128x64xf32> to vector<1x4x128x64xf32>
      tpu.vector_store %arg11[%c0_11, %c0_12, %c0_13, %c0_14], %20 {strides = array<i32>} : memref<1x4x128x64xf32, #tpu.memory_space<vmem>>, vector<1x4x128x64xf32>,
    } else {
    }
    return
  }
  func.func @transform_0(%arg0: i32, %arg1: i32, %arg2: i32) -> (i32, i32) {
    %c0_i32 = arith.constant 0 : i32
    %c0_i32_0 = arith.constant 0 : i32
    return %arg1, %c0_i32 : i32, i32
  }
  func.func @transform_1(%arg0: i32, %arg1: i32, %arg2: i32) -> (i32, i32) {
    %c0_i32 = arith.constant 0 : i32
    %c0_i32_0 = arith.constant 0 : i32
    return %arg1, %c0_i32 : i32, i32
  }
  func.func @transform_2(%arg0: i32, %arg1: i32, %arg2: i32) -> (i32, i32) {
    %c0_i32 = arith.constant 0 : i32
    %c0_i32_0 = arith.constant 0 : i32
    return %arg2, %c0_i32 : i32, i32
  }
  func.func @transform_3(%arg0: i32, %arg1: i32, %arg2: i32) -> (i32, i32) {
    %c0_i32 = arith.constant 0 : i32
    %c0_i32_0 = arith.constant 0 : i32
    return %arg2, %c0_i32 : i32, i32
  }
  func.func @transform_4(%arg0: i32, %arg1: i32, %arg2: i32) -> (i32, i32) {
    %c0_i32 = arith.constant 0 : i32
    %c0_i32_0 = arith.constant 0 : i32
    %c0_i32_1 = arith.constant 0 : i32
    return %c0_i32, %c0_i32_0 : i32, i32
  }
  func.func @transform_5(%arg0: i32, %arg1: i32, %arg2: i32) -> (i32, i32, i32, i32) {
    %c0_i32 = arith.constant 0 : i32
    %c0_i32_0 = arith.constant 0 : i32
    %c0_i32_1 = arith.constant 0 : i32
    return %arg0, %c0_i32, %arg1, %c0_i32_0 : i32, i32, i32, i32
  }
  func.func @transform_6(%arg0: i32, %arg1: i32, %arg2: i32) -> (i32, i32, i32, i32) {
    %c0_i32 = arith.constant 0 : i32
    %c0_i32_0 = arith.constant 0 : i32
    %c0_i32_1 = arith.constant 0 : i32
    return %arg0, %c0_i32, %arg2, %c0_i32_0 : i32, i32, i32, i32
  }
  func.func @transform_7(%arg0: i32, %arg1: i32, %arg2: i32) -> (i32, i32, i32, i32) {
    %c0_i32 = arith.constant 0 : i32
    %c0_i32_0 = arith.constant 0 : i32
    %c0_i32_1 = arith.constant 0 : i32
    return %arg0, %c0_i32, %arg2, %c0_i32_0 : i32, i32, i32, i32
  }
  func.func @transform_8(%arg0: i32, %arg1: i32, %arg2: i32) -> (i32, i32, i32, i32) {
    %c0_i32 = arith.constant 0 : i32
    %c0_i32_0 = arith.constant 0 : i32
    %c0_i32_1 = arith.constant 0 : i32
    return %arg0, %c0_i32, %arg1, %c0_i32_0 : i32, i32, i32, i32
  }
}

module attributes {stable_mosaic.version = 11 : i64} {
  func.func @_matmul_nt_kernel(%arg0: i32, %arg1: i32, %arg2: i32, %arg3: memref<128x256xf32, #tpu.memory_space<vmem>>, %arg4: memref<128x256xf32, #tpu.memory_space<vmem>>, %arg5: memref<128x128xf32, #tpu.memory_space<vmem>>, %arg6: memref<128x128xf32, #tpu.memory_space<vmem>>) attributes {dimension_semantics = [#tpu.dimension_semantics<parallel>, #tpu.dimension_semantics<parallel>, #tpu.dimension_semantics<arbitrary>], iteration_bounds = array<i64: 4, 2, 1>, scalar_prefetch = 0 : i64, scratch_operands = 1 : i64, tpu.core_type = #tpu.core_type<tc>, window_params = [{transform_indices = @transform_0, window_bounds = array<i64: 128, 256>}, {transform_indices = @transform_1, window_bounds = array<i64: 128, 256>}, {transform_indices = @transform_2, window_bounds = array<i64: 128, 128>}]} {
    %c0_i32 = arith.constant 0 : i32
    %0 = arith.cmpi eq, %arg2, %c0_i32 : i32
    %1 = arith.extui %0 : i1 to i32
    %c0_i32_0 = arith.constant 0 : i32
    %2 = arith.cmpi ne, %1, %c0_i32_0 : i32
    scf.if %2 {
      %cst_10 = arith.constant 0.000000e+00 : f32
      %12 = vector.broadcast %cst_10 : f32 to vector<128x128xf32>
      %c0_11 = arith.constant 0 : index
      %c0_12 = arith.constant 0 : index
      %13 = vector.load %arg6[%c0_11, %c0_12] : memref<128x128xf32, #tpu.memory_space<vmem>>, vector<128x128xf32>
      tpu.vector_store %arg6[%c0_11, %c0_12], %12 {strides = array<i32>} : memref<128x128xf32, #tpu.memory_space<vmem>>, vector<128x128xf32>,
    } else {
    }
    %c0 = arith.constant 0 : index
    %c0_1 = arith.constant 0 : index
    %3 = vector.load %arg6[%c0, %c0_1] : memref<128x128xf32, #tpu.memory_space<vmem>>, vector<128x128xf32>
    %c0_2 = arith.constant 0 : index
    %c0_3 = arith.constant 0 : index
    %4 = vector.load %arg3[%c0_2, %c0_3] : memref<128x256xf32, #tpu.memory_space<vmem>>, vector<128x256xf32>
    %c0_4 = arith.constant 0 : index
    %c0_5 = arith.constant 0 : index
    %5 = vector.load %arg4[%c0_4, %c0_5] : memref<128x256xf32, #tpu.memory_space<vmem>>, vector<128x256xf32>
    %cst = arith.constant dense<0.000000e+00> : vector<128x128xf32>
    %6 = tpu.matmul %4, %5, %cst {dimension_numbers = #tpu.dot_dimension_numbers<[1], [1], [0], [0], [0, 0, 1, 0], [], []>} : vector<128x256xf32>, vector<128x256xf32>, vector<128x128xf32> -> vector<128x128xf32>
    %7 = arith.addf %3, %6 : vector<128x128xf32>
    %c0_6 = arith.constant 0 : index
    %c0_7 = arith.constant 0 : index
    %8 = vector.load %arg6[%c0_6, %c0_7] : memref<128x128xf32, #tpu.memory_space<vmem>>, vector<128x128xf32>
    tpu.vector_store %arg6[%c0_6, %c0_7], %7 {strides = array<i32>} : memref<128x128xf32, #tpu.memory_space<vmem>>, vector<128x128xf32>,
    %c0_i32_8 = arith.constant 0 : i32
    %9 = arith.cmpi eq, %arg2, %c0_i32_8 : i32
    %10 = arith.extui %9 : i1 to i32
    %c0_i32_9 = arith.constant 0 : i32
    %11 = arith.cmpi ne, %10, %c0_i32_9 : i32
    scf.if %11 {
      %c0_10 = arith.constant 0 : index
      %c0_11 = arith.constant 0 : index
      %12 = vector.load %arg6[%c0_10, %c0_11] : memref<128x128xf32, #tpu.memory_space<vmem>>, vector<128x128xf32>
      %c0_12 = arith.constant 0 : index
      %c0_13 = arith.constant 0 : index
      %13 = vector.load %arg5[%c0_12, %c0_13] : memref<128x128xf32, #tpu.memory_space<vmem>>, vector<128x128xf32>
      tpu.vector_store %arg5[%c0_12, %c0_13], %12 {strides = array<i32>} : memref<128x128xf32, #tpu.memory_space<vmem>>, vector<128x128xf32>,
    } else {
    }
    return
  }
  func.func @transform_0(%arg0: i32, %arg1: i32, %arg2: i32) -> (i32, i32) {
    %c0_i32 = arith.constant 0 : i32
    return %arg0, %arg2 : i32, i32
  }
  func.func @transform_1(%arg0: i32, %arg1: i32, %arg2: i32) -> (i32, i32) {
    %c0_i32 = arith.constant 0 : i32
    return %arg1, %arg2 : i32, i32
  }
  func.func @transform_2(%arg0: i32, %arg1: i32, %arg2: i32) -> (i32, i32) {
    %c0_i32 = arith.constant 0 : i32
    return %arg0, %arg1 : i32, i32
  }
}

</mosaic_0001>

<llo_original>
// kernel: multi_head_attention.3
$region0: #{multi_head_attention.3}
  #allocation0 [shape = 'u32[]', space=smem, size = 0x4, offset = 0x4, fixed_abs, tag = 'smem constant byte address 0x4 - core index']
  #allocation1 [shape = 'u32[144,128]{1,0:T(1,128)}', space=vmem, size = 0x12000, scoped, tag = 'internal scratch']
  #allocation2 [shape = 'f32[128,128]{1,0:T(8,128)}', space=vmem, size = 0x10000, scoped, tag = 'scratch operand']
  %s0 = inlined_call_operand.hbm [shape: f32[512,256], index: 0, kind: input, shape index: {}]
  %s1 = inlined_call_operand.hbm [shape: f32[768,256], index: 1, kind: input, shape index: {}]
  %s2 = inlined_call_operand.vmem [shape: f32[512,768], index: 2, kind: output, shape index: {}]
  %s3 = sld [smem:[#allocation0]]
  $region91: #{multi_head_attention.3} parent=0
    _
  %s5 = ssub.s32 1, %s3
  %s6 = scalar_select 0, %s5, %s3
  $region1: #{multi_head_attention.3} parent=0
    #allocation3 [shape = 'u8[262144]{0}', space=vmem, size = 0x40000, scoped, tag = 'input window, operand 0']
    #allocation4 [shape = 's32[2]{0}', space=sflag, size = 0x8, scoped, tag = 'scoped memory for multi_head_attention.3']
    #allocation5 [shape = 'u8[262144]{0}', space=vmem, size = 0x40000, scoped, tag = 'input window, operand 1']
    #allocation6 [shape = 's32[2]{0}', space=sflag, size = 0x8, scoped, tag = 'scoped memory for multi_head_attention.3']
    #allocation7 [shape = 'u8[131072]{0}', space=vmem, size = 0x20000, scoped, tag = 'output window, operand 0']
    %7 = vsyncpa [#allocation4], 0
    %s8 = scalar_lea.sflag [#allocation4], 1
    %9 = vsyncpa %s8, 0
    %10 = vsyncpa [#allocation6], 0
    %s11 = scalar_lea.sflag [#allocation6], 1
    %12 = vsyncpa %s11, 0
    loop: start=0, step=1, limit=26
    $region2: #{multi_head_attention.3} parent=1 // loop_pre_header
      _
    $region3: #{multi_head_attention.3} parent=1 // loop_header
      %s14 = sphi 0, %s18
      %p15 = scmp.ge.s32.totalorder %s14, 26
      %s21 = sphi 0, %s40
      %s22 = sphi 0, %s36
      %s23 = sphi 0, %s32
      %s24 = sphi 0, %s21
      %s25 = sphi 0, %s22
      %s26 = sphi 0, %s23
      %s27 = sphi 0, %s24
      %s28 = sphi 0, %s25
      %s29 = sphi 0, %s26
      %s45 = sphi 0, %s47
      %s48 = sphi 0, %s45
      %s49 = sphi 0, %s48
      %s65 = sphi 0, %s49
      %s73 = sphi 0, %s75
      %s76 = sphi 0, %s73
      %s77 = sphi 0, %s76
      %s93 = sphi 0, %s77
      %s101 = sphi 0, %s103
      %s104 = sphi 0, %s101
      %s105 = sphi 0, %s104
      %s121 = sphi 0, %s105
    $region4: #{multi_head_attention.3} parent=1 // loop_header_branch
      %17 = sbr.rel (%p15) target = $region8
    $region5: #{multi_head_attention.3} parent=1 // loop_body
      %s19 = ssub.s32 %s14, 1
      %s20 = ssub.s32 %s14, 2
      %s30 = sadd.s32 1, %s23
      %p31 = scmp.ge.s32.totalorder %s30, 1
      %s32 = scalar_select %p31, 0, %s30
      %s33 = sadd.s32 1, %s22
      %s34 = scalar_select %p31, %s33, %s22
      %p35 = scmp.ge.s32.totalorder %s34, 6
      %s36 = scalar_select %p35, 0, %s34
      %s37 = sadd.s32 1, %s21
      %s38 = scalar_select %p35, %s37, %s21
      %p39 = scmp.ge.s32.totalorder %s38, 4
      %s40 = scalar_select %p39, 0, %s38
      %s41 = ssub.s32 %s21, %s40
      %s42 = ssub.s32 %s23, %s32
      %s43 = sor.u32 %s41, %s42
      %p44 = scmp.eq.s32.totalorder %s43, 0
      %s46 = sadd.s32 %s45, 1
      %s47 = scalar_select %p44, %s45, %s46
      %p50 = pneg %p44
      %p51 = scmp.eq.s32.totalorder %s14, 23
      %p52 = por %p50, %p51
      %p53 = scmp.ne.s32.totalorder %s45, %s48
      %p54 = scmp.eq.s32.totalorder %s14, 0
      %p55 = por %p53, %p54
      %p56 = scmp.ne.s32.totalorder %s45, %s48
      %p57 = scmp.eq.s32.totalorder %s19, 23
      %p58 = por %p56, %p57
      %p59 = scmp.ne.s32.totalorder %s48, %s49
      %p60 = scmp.eq.s32.totalorder %s19, 0
      %p61 = por %p59, %p60
      %p62 = scmp.ne.s32.totalorder %s48, %s49
      %p63 = scmp.eq.s32.totalorder %s20, 23
      %p64 = por %p62, %p63
      %p66 = scmp.ne.s32.totalorder %s49, %s65
      %p67 = scmp.eq.s32.totalorder %s20, 0
      %p68 = por %p66, %p67
      %s69 = ssub.s32 %s22, %s36
      %s70 = ssub.s32 %s23, %s32
      %s71 = sor.u32 %s69, %s70
      %p72 = scmp.eq.s32.totalorder %s71, 0
      %s74 = sadd.s32 %s73, 1
      %s75 = scalar_select %p72, %s73, %s74
      %p78 = pneg %p72
      %p79 = scmp.eq.s32.totalorder %s14, 23
      %p80 = por %p78, %p79
      %p81 = scmp.ne.s32.totalorder %s73, %s76
      %p82 = scmp.eq.s32.totalorder %s14, 0
      %p83 = por %p81, %p82
      %p84 = scmp.ne.s32.totalorder %s73, %s76
      %p85 = scmp.eq.s32.totalorder %s19, 23
      %p86 = por %p84, %p85
      %p87 = scmp.ne.s32.totalorder %s76, %s77
      %p88 = scmp.eq.s32.totalorder %s19, 0
      %p89 = por %p87, %p88
      %p90 = scmp.ne.s32.totalorder %s76, %s77
      %p91 = scmp.eq.s32.totalorder %s20, 23
      %p92 = por %p90, %p91
      %p94 = scmp.ne.s32.totalorder %s77, %s93
      %p95 = scmp.eq.s32.totalorder %s20, 0
      %p96 = por %p94, %p95
      %s97 = ssub.s32 %s21, %s40
      %s98 = ssub.s32 %s22, %s36
      %s99 = sor.u32 %s97, %s98
      %p100 = scmp.eq.s32.totalorder %s99, 0
      %s102 = sadd.s32 %s101, 1
      %s103 = scalar_select %p100, %s101, %s102
      %p106 = pneg %p100
      %p107 = scmp.eq.s32.totalorder %s14, 23
      %p108 = por %p106, %p107
      %p109 = scmp.ne.s32.totalorder %s101, %s104
      %p110 = scmp.eq.s32.totalorder %s14, 0
      %p111 = por %p109, %p110
      %p112 = scmp.ne.s32.totalorder %s101, %s104
      %p113 = scmp.eq.s32.totalorder %s19, 23
      %p114 = por %p112, %p113
      %p115 = scmp.ne.s32.totalorder %s104, %s105
      %p116 = scmp.eq.s32.totalorder %s19, 0
      %p117 = por %p115, %p116
      %p118 = scmp.ne.s32.totalorder %s104, %s105
      %p119 = scmp.eq.s32.totalorder %s20, 23
      %p120 = por %p118, %p119
      %p122 = scmp.ne.s32.totalorder %s105, %s121
      %p123 = scmp.eq.s32.totalorder %s20, 0
      %p124 = por %p122, %p123
      %p125 = scmp.le.s32.totalorder 1, %s14
      %p126 = scmp.lt.s32.totalorder %s14, 25
      %p127 = pnand %p125, %p126
      %p128 = pneg %p127
      // Predicated region
      $region9: #{multi_head_attention.3} parent=5 // pred_check
        _
      $region10: #{multi_head_attention.3} parent=5 // pred_check_branch
        %130 = sbr.rel (%p127) target = $region12
      $region11: #{multi_head_attention.3} parent=5 // pred_region
        %s131 = ssub.s32 %s14, 1
      $region12: #{multi_head_attention.3} parent=5 // pred_fallthru
        _
      %p132 = scmp.lt.s32.totalorder %s14, 24
      // Predicated region
      $region13: #{multi_head_attention.3} parent=5 // pred_check
        %p133 = pneg %p132
      $region14: #{multi_head_attention.3} parent=5 // pred_check_branch
        %135 = sbr.rel (%p133) target = $region16
      $region15: #{multi_head_attention.3} parent=5 // pred_region
        // Predicated region
        $region17: #{multi_head_attention.3} parent=15 // pred_check
          %p136 = pneg %p55
        $region18: #{multi_head_attention.3} parent=15 // pred_check_branch
          %138 = sbr.rel (%p136) target = $region20
        $region19: #{multi_head_attention.3} parent=15 // pred_region
          %s139 = sand.u32 %s45, 1
          %s140 = scalar_lea.sflag [#allocation4], %s139
          %s141 = sand.u32 %s45, 1
          %s142 = smul.addr %s141, 256
          %s143 = scalar_lea.vmem [#allocation3], %s142
          %s144 = smul.u32 16, %s21
          %s145 = smul.u32 2, %s23
          %s147 = ssub.s32 4096, 4096
          %148 = vsyncadd %s140, %s147
          %s149 = smul.addr %s144, 2
          %s150 = sadd.s32 %s145, %s149
          %s151 = smul.addr %s150, 128
          %s152 = scalar_lea.hbm %s0, %s151
          %s153 = sshll.u32 %s143, 4
          %s154 = int_to_ptr.vmem [resolvable:$true] %s153
          %159 = dma.hbm_to_vmem [thread:$0]  %s152, 4096, %s154, %s140, 256, 256, 16
        $region20: #{multi_head_attention.3} parent=15 // pred_fallthru
          _
        // Predicated region
        $region21: #{multi_head_attention.3} parent=15 // pred_check
          %p160 = pneg %p83
        $region22: #{multi_head_attention.3} parent=15 // pred_check_branch
          %162 = sbr.rel (%p160) target = $region24
        $region23: #{multi_head_attention.3} parent=15 // pred_region
          %s163 = sand.u32 %s73, 1
          %s164 = scalar_lea.sflag [#allocation6], %s163
          %s165 = sand.u32 %s73, 1
          %s166 = smul.addr %s165, 256
          %s167 = scalar_lea.vmem [#allocation5], %s166
          %s168 = smul.u32 16, %s22
          %s169 = smul.u32 2, %s23
          %s171 = ssub.s32 4096, 4096
          %172 = vsyncadd %s164, %s171
          %s173 = smul.addr %s168, 2
          %s174 = sadd.s32 %s169, %s173
          %s175 = smul.addr %s174, 128
          %s176 = scalar_lea.hbm %s1, %s175
          %s177 = sshll.u32 %s167, 4
          %s178 = int_to_ptr.vmem [resolvable:$true] %s177
          %183 = dma.hbm_to_vmem [thread:$0]  %s176, 4096, %s178, %s164, 256, 256, 16
        $region24: #{multi_head_attention.3} parent=15 // pred_fallthru
          _
      $region16: #{multi_head_attention.3} parent=5 // pred_fallthru
        _
      %p184 = scmp.le.s32.totalorder 1, %s14
      %p185 = scmp.lt.s32.totalorder %s14, 25
      %p186 = pnand %p184, %p185
      %p187 = pneg %p186
      // Predicated region
      $region25: #{multi_head_attention.3} parent=5 // pred_check
        _
      $region26: #{multi_head_attention.3} parent=5 // pred_check_branch
        %189 = sbr.rel (%p186) target = $region28
      $region27: #{multi_head_attention.3} parent=5 // pred_region
        %s190 = ssub.s32 %s14, 1
        %s191 = sand.u32 %s48, 1
        %s192 = scalar_lea.sflag [#allocation4], %s191
        %s193 = sand.u32 %s48, 1
        %s194 = smul.addr %s193, 256
        %s195 = scalar_lea.vmem [#allocation3], %s194
        // Predicated region
        $region29: #{multi_head_attention.3} parent=27 // pred_check
          %p196 = pneg %p61
        $region30: #{multi_head_attention.3} parent=27 // pred_check_branch
          %198 = sbr.rel (%p196) target = $region32
        $region31: #{multi_head_attention.3} parent=27 // pred_region
          %199 = dma.done %s192, 4096
        $region32: #{multi_head_attention.3} parent=27 // pred_fallthru
          _
        %s200 = sand.u32 %s76, 1
        %s201 = scalar_lea.sflag [#allocation6], %s200
        %s202 = sand.u32 %s76, 1
        %s203 = smul.addr %s202, 256
        %s204 = scalar_lea.vmem [#allocation5], %s203
        // Predicated region
        $region33: #{multi_head_attention.3} parent=27 // pred_check
          %p205 = pneg %p89
        $region34: #{multi_head_attention.3} parent=27 // pred_check_branch
          %207 = sbr.rel (%p205) target = $region36
        $region35: #{multi_head_attention.3} parent=27 // pred_region
          %208 = dma.done %s201, 4096
        $region36: #{multi_head_attention.3} parent=27 // pred_fallthru
          _
        %s209 = sand.u32 %s48, 1
        %s210 = scalar_lea.sflag [#allocation4], %s209
        %s211 = sand.u32 %s48, 1
        %s212 = smul.addr %s211, 256
        %s213 = scalar_lea.vmem [#allocation3], %s212
        %p214 = pneg %p61
        %p215 = pneg %p58
        %s216 = sand.u32 %s76, 1
        %s217 = scalar_lea.sflag [#allocation6], %s216
        %s218 = sand.u32 %s76, 1
        %s219 = smul.addr %s218, 256
        %s220 = scalar_lea.vmem [#allocation5], %s219
        %p221 = pneg %p89
        %p222 = pneg %p86
        %p223 = pneg %p117
        %p224 = pneg %p114
        %s225 = sand.u32 %s104, 1
        %s226 = sand.u32 %s104, 1
        %s227 = smul.addr %s226, 128
        %s228 = scalar_lea.vmem [#allocation7], %s227
        %s229 = smul.u32 16, %s24
        %s230 = smul.u32 2, %s26
        %s231 = smul.u32 16, %s25
        %s232 = smul.u32 2, %s26
        %s233 = smul.u32 16, %s24
        %p234 = scmp.eq.s32.totalorder %s26, 0
        // Predicated region
        $region37: #{multi_head_attention.3} parent=27 // pred_check
          %p235 = pneg %p234
        $region38: #{multi_head_attention.3} parent=27 // pred_check_branch
          %237 = sbr.rel (%p235) target = $region40
        $region39: #{multi_head_attention.3} parent=27 // pred_region
          %238 = vst [vmem:[#allocation2] sm:$0xff] 0.0
          %239 = vst [vmem:[#allocation2 + $0x8] sm:$0xff] 0.0
          %240 = vst [vmem:[#allocation2 + $0x10] sm:$0xff] 0.0
          %241 = vst [vmem:[#allocation2 + $0x18] sm:$0xff] 0.0
          %242 = vst [vmem:[#allocation2 + $0x20] sm:$0xff] 0.0
          %243 = vst [vmem:[#allocation2 + $0x28] sm:$0xff] 0.0
          %244 = vst [vmem:[#allocation2 + $0x30] sm:$0xff] 0.0
          %245 = vst [vmem:[#allocation2 + $0x38] sm:$0xff] 0.0
          %246 = vst [vmem:[#allocation2 + $0x40] sm:$0xff] 0.0
          %247 = vst [vmem:[#allocation2 + $0x48] sm:$0xff] 0.0
          %248 = vst [vmem:[#allocation2 + $0x50] sm:$0xff] 0.0
          %249 = vst [vmem:[#allocation2 + $0x58] sm:$0xff] 0.0
          %250 = vst [vmem:[#allocation2 + $0x60] sm:$0xff] 0.0
          %251 = vst [vmem:[#allocation2 + $0x68] sm:$0xff] 0.0
          %252 = vst [vmem:[#allocation2 + $0x70] sm:$0xff] 0.0
          %253 = vst [vmem:[#allocation2 + $0x78] sm:$0xff] 0.0
        $region40: #{multi_head_attention.3} parent=27 // pred_fallthru
          _
        %v254 = vld [vmem:[#allocation2] sm:$0xff]
        %v255 = vld [vmem:[#allocation2 + $0x8] sm:$0xff]
        %v256 = vld [vmem:[#allocation2 + $0x10] sm:$0xff]
        %v257 = vld [vmem:[#allocation2 + $0x18] sm:$0xff]
        %v258 = vld [vmem:[#allocation2 + $0x20] sm:$0xff]
        %v259 = vld [vmem:[#allocation2 + $0x28] sm:$0xff]
        %v260 = vld [vmem:[#allocation2 + $0x30] sm:$0xff]
        %v261 = vld [vmem:[#allocation2 + $0x38] sm:$0xff]
        %v262 = vld [vmem:[#allocation2 + $0x40] sm:$0xff]
        %v263 = vld [vmem:[#allocation2 + $0x48] sm:$0xff]
        %v264 = vld [vmem:[#allocation2 + $0x50] sm:$0xff]
        %v265 = vld [vmem:[#allocation2 + $0x58] sm:$0xff]
        %v266 = vld [vmem:[#allocation2 + $0x60] sm:$0xff]
        %v267 = vld [vmem:[#allocation2 + $0x68] sm:$0xff]
        %v268 = vld [vmem:[#allocation2 + $0x70] sm:$0xff]
        %v269 = vld [vmem:[#allocation2 + $0x78] sm:$0xff]
        %v270 = vld [vmem:[%s195] sm:$0xff]
        %v271 = vld [vmem:[%s195 + $0x8] sm:$0xff]
        %v272 = vld [vmem:[%s195 + $0x10] sm:$0xff]
        %v273 = vld [vmem:[%s195 + $0x18] sm:$0xff]
        %v274 = vld [vmem:[%s195 + $0x20] sm:$0xff]
        %v275 = vld [vmem:[%s195 + $0x28] sm:$0xff]
        %v276 = vld [vmem:[%s195 + $0x30] sm:$0xff]
        %v277 = vld [vmem:[%s195 + $0x38] sm:$0xff]
        %v278 = vld [vmem:[%s195 + $0x40] sm:$0xff]
        %v279 = vld [vmem:[%s195 + $0x48] sm:$0xff]
        %v280 = vld [vmem:[%s195 + $0x50] sm:$0xff]
        %v281 = vld [vmem:[%s195 + $0x58] sm:$0xff]
        %v282 = vld [vmem:[%s195 + $0x60] sm:$0xff]
        %v283 = vld [vmem:[%s195 + $0x68] sm:$0xff]
        %v284 = vld [vmem:[%s195 + $0x70] sm:$0xff]
        %v285 = vld [vmem:[%s195 + $0x78] sm:$0xff]
        %v286 = vld [vmem:[%s195 + $0x80] sm:$0xff]
        %v287 = vld [vmem:[%s195 + $0x88] sm:$0xff]
        %v288 = vld [vmem:[%s195 + $0x90] sm:$0xff]
        %v289 = vld [vmem:[%s195 + $0x98] sm:$0xff]
        %v290 = vld [vmem:[%s195 + $0xa0] sm:$0xff]
        %v291 = vld [vmem:[%s195 + $0xa8] sm:$0xff]
        %v292 = vld [vmem:[%s195 + $0xb0] sm:$0xff]
        %v293 = vld [vmem:[%s195 + $0xb8] sm:$0xff]
        %v294 = vld [vmem:[%s195 + $0xc0] sm:$0xff]
        %v295 = vld [vmem:[%s195 + $0xc8] sm:$0xff]
        %v296 = vld [vmem:[%s195 + $0xd0] sm:$0xff]
        %v297 = vld [vmem:[%s195 + $0xd8] sm:$0xff]
        %v298 = vld [vmem:[%s195 + $0xe0] sm:$0xff]
        %v299 = vld [vmem:[%s195 + $0xe8] sm:$0xff]
        %v300 = vld [vmem:[%s195 + $0xf0] sm:$0xff]
        %v301 = vld [vmem:[%s195 + $0xf8] sm:$0xff]
        %v302 = vld [vmem:[%s204] sm:$0xff]
        %v303 = vld [vmem:[%s204 + $0x8] sm:$0xff]
        %v304 = vld [vmem:[%s204 + $0x10] sm:$0xff]
        %v305 = vld [vmem:[%s204 + $0x18] sm:$0xff]
        %v306 = vld [vmem:[%s204 + $0x20] sm:$0xff]
        %v307 = vld [vmem:[%s204 + $0x28] sm:$0xff]
        %v308 = vld [vmem:[%s204 + $0x30] sm:$0xff]
        %v309 = vld [vmem:[%s204 + $0x38] sm:$0xff]
        %v310 = vld [vmem:[%s204 + $0x40] sm:$0xff]
        %v311 = vld [vmem:[%s204 + $0x48] sm:$0xff]
        %v312 = vld [vmem:[%s204 + $0x50] sm:$0xff]
        %v313 = vld [vmem:[%s204 + $0x58] sm:$0xff]
        %v314 = vld [vmem:[%s204 + $0x60] sm:$0xff]
        %v315 = vld [vmem:[%s204 + $0x68] sm:$0xff]
        %v316 = vld [vmem:[%s204 + $0x70] sm:$0xff]
        %v317 = vld [vmem:[%s204 + $0x78] sm:$0xff]
        %v318 = vld [vmem:[%s204 + $0x80] sm:$0xff]
        %v319 = vld [vmem:[%s204 + $0x88] sm:$0xff]
        %v320 = vld [vmem:[%s204 + $0x90] sm:$0xff]
        %v321 = vld [vmem:[%s204 + $0x98] sm:$0xff]
        %v322 = vld [vmem:[%s204 + $0xa0] sm:$0xff]
        %v323 = vld [vmem:[%s204 + $0xa8] sm:$0xff]
        %v324 = vld [vmem:[%s204 + $0xb0] sm:$0xff]
        %v325 = vld [vmem:[%s204 + $0xb8] sm:$0xff]
        %v326 = vld [vmem:[%s204 + $0xc0] sm:$0xff]
        %v327 = vld [vmem:[%s204 + $0xc8] sm:$0xff]
        %v328 = vld [vmem:[%s204 + $0xd0] sm:$0xff]
        %v329 = vld [vmem:[%s204 + $0xd8] sm:$0xff]
        %v330 = vld [vmem:[%s204 + $0xe0] sm:$0xff]
        %v331 = vld [vmem:[%s204 + $0xe8] sm:$0xff]
        %v332 = vld [vmem:[%s204 + $0xf0] sm:$0xff]
        %v333 = vld [vmem:[%s204 + $0xf8] sm:$0xff]
        %334 = vmatprep.subr.mxu0 %v333
        %335 = vmatpush1.xpose.msra.mxu0 %v332
        %336 = vmatprep.subr.mxu0 %v331
        %337 = vmatpush1.xpose.msra.mxu0 %v330
        %338 = vmatprep.subr.mxu0 %v329
        %339 = vmatpush1.xpose.msra.mxu0 %v328
        %340 = vmatprep.subr.mxu0 %v327
        %341 = vmatpush1.xpose.msra.mxu0 %v326
        %342 = vmatprep.subr.mxu0 %v325
        %343 = vmatpush1.xpose.msra.mxu0 %v324
        %344 = vmatprep.subr.mxu0 %v323
        %345 = vmatpush1.xpose.msra.mxu0 %v322
        %346 = vmatprep.subr.mxu0 %v321
        %347 = vmatpush1.xpose.msra.mxu0 %v320
        %348 = vmatprep.subr.mxu0 %v319
        %349 = vmatpush1.xpose.msra.mxu0 %v318
        %350 = vmatprep.subr.mxu0 %v317
        %351 = vmatpush1.xpose.msra.mxu0 %v316
        %352 = vmatprep.subr.mxu0 %v315
        %353 = vmatpush1.xpose.msra.mxu0 %v314
        %354 = vmatprep.subr.mxu0 %v313
        %355 = vmatpush1.xpose.msra.mxu0 %v312
        %356 = vmatprep.subr.mxu0 %v311
        %357 = vmatpush1.xpose.msra.mxu0 %v310
        %358 = vmatprep.subr.mxu0 %v309
        %359 = vmatpush1.xpose.msra.mxu0 %v308
        %360 = vmatprep.subr.mxu0 %v307
        %361 = vmatpush1.xpose.msra.mxu0 %v306
        %362 = vmatprep.subr.mxu0 %v305
        %363 = vmatpush1.xpose.msra.mxu0 %v304
        %364 = vmatprep.subr.mxu0 %v303
        %365 = vmatpush1.xpose.msra.mxu0 %v302
        %366 = vmatprep.subr.mxu0 0.0
        %367 = vmatpush2.xpose.msra.mxu0 0.0
        %368 = vmatprep.subr.mxu0 0.0
        %369 = vmatpush2.xpose.msra.mxu0 0.0
        %370 = vmatprep.subr.mxu0 0.0
        %371 = vmatpush2.xpose.msra.mxu0 0.0
        %372 = vmatprep.subr.mxu0 0.0
        %373 = vmatpush2.xpose.msra.mxu0 0.0
        %374 = vmatprep.subr.mxu0 0.0
        %375 = vmatpush2.xpose.msra.mxu0 0.0
        %376 = vmatprep.subr.mxu0 0.0
        %377 = vmatpush2.xpose.msra.mxu0 0.0
        %378 = vmatprep.subr.mxu0 0.0
        %379 = vmatpush2.xpose.msra.mxu0 0.0
        %380 = vmatprep.subr.mxu0 0.0
        %381 = vmatpush2.xpose.msra.mxu0 0.0
        %382 = vmatprep.subr.mxu0 0.0
        %383 = vmatpush2.xpose.msra.mxu0 0.0
        %384 = vmatprep.subr.mxu0 0.0
        %385 = vmatpush2.xpose.msra.mxu0 0.0
        %386 = vmatprep.subr.mxu0 0.0
        %387 = vmatpush2.xpose.msra.mxu0 0.0
        %388 = vmatprep.subr.mxu0 0.0
        %389 = vmatpush2.xpose.msra.mxu0 0.0
        %390 = vmatprep.subr.mxu0 0.0
        %391 = vmatpush2.xpose.msra.mxu0 0.0
        %392 = vmatprep.subr.mxu0 0.0
        %393 = vmatpush2.xpose.msra.mxu0 0.0
        %394 = vmatprep.subr.mxu0 0.0
        %395 = vmatpush2.xpose.msra.mxu0 0.0
        %396 = vmatprep.subr.mxu0 0.0
        %397 = vmatpush2.xpose.msra.mxu0 0.0
        %398 = vmatprep.mubr.f32.mxu0 %v271
        %399 = vmatmul.mubr.f32.gmra.mxu0 %v270
        %v400 = vpop.f32.mrf.mxu0
        %v401 = vadd.f32 0.0, %v400
        %v402 = vpop.f32.mrf.mxu0
        %403 = vmatprep.mubr.f32.mxu0 %v273
        %404 = vmatmul.mubr.f32.gmra.mxu0 %v272
        %v405 = vpop.f32.mrf.mxu0
        %v406 = vadd.f32 0.0, %v405
        %v407 = vpop.f32.mrf.mxu0
        %408 = vmatprep.mubr.f32.mxu0 %v275
        %409 = vmatmul.mubr.f32.gmra.mxu0 %v274
        %v410 = vpop.f32.mrf.mxu0
        %v411 = vadd.f32 0.0, %v410
        %v412 = vpop.f32.mrf.mxu0
        %413 = vmatprep.mubr.f32.mxu0 %v277
        %414 = vmatmul.mubr.f32.gmra.mxu0 %v276
        %v415 = vpop.f32.mrf.mxu0
        %v416 = vadd.f32 0.0, %v415
        %v417 = vpop.f32.mrf.mxu0
        %418 = vmatprep.mubr.f32.mxu0 %v279
        %419 = vmatmul.mubr.f32.gmra.mxu0 %v278
        %v420 = vpop.f32.mrf.mxu0
        %v421 = vadd.f32 0.0, %v420
        %v422 = vpop.f32.mrf.mxu0
        %423 = vmatprep.mubr.f32.mxu0 %v281
        %424 = vmatmul.mubr.f32.gmra.mxu0 %v280
        %v425 = vpop.f32.mrf.mxu0
        %v426 = vadd.f32 0.0, %v425
        %v427 = vpop.f32.mrf.mxu0
        %428 = vmatprep.mubr.f32.mxu0 %v283
        %429 = vmatmul.mubr.f32.gmra.mxu0 %v282
        %v430 = vpop.f32.mrf.mxu0
        %v431 = vadd.f32 0.0, %v430
        %v432 = vpop.f32.mrf.mxu0
        %433 = vmatprep.mubr.f32.mxu0 %v285
        %434 = vmatmul.mubr.f32.gmra.mxu0 %v284
        %v435 = vpop.f32.mrf.mxu0
        %v436 = vadd.f32 0.0, %v435
        %v437 = vpop.f32.mrf.mxu0
        %438 = vmatprep.mubr.f32.mxu0 %v287
        %439 = vmatmul.mubr.f32.gmra.mxu0 %v286
        %v440 = vpop.f32.mrf.mxu0
        %v441 = vadd.f32 0.0, %v440
        %v442 = vpop.f32.mrf.mxu0
        %443 = vmatprep.mubr.f32.mxu0 %v289
        %444 = vmatmul.mubr.f32.gmra.mxu0 %v288
        %v445 = vpop.f32.mrf.mxu0
        %v446 = vadd.f32 0.0, %v445
        %v447 = vpop.f32.mrf.mxu0
        %448 = vmatprep.mubr.f32.mxu0 %v291
        %449 = vmatmul.mubr.f32.gmra.mxu0 %v290
        %v450 = vpop.f32.mrf.mxu0
        %v451 = vadd.f32 0.0, %v450
        %v452 = vpop.f32.mrf.mxu0
        %453 = vmatprep.mubr.f32.mxu0 %v293
        %454 = vmatmul.mubr.f32.gmra.mxu0 %v292
        %v455 = vpop.f32.mrf.mxu0
        %v456 = vadd.f32 0.0, %v455
        %v457 = vpop.f32.mrf.mxu0
        %458 = vmatprep.mubr.f32.mxu0 %v295
        %459 = vmatmul.mubr.f32.gmra.mxu0 %v294
        %v460 = vpop.f32.mrf.mxu0
        %v461 = vadd.f32 0.0, %v460
        %v462 = vpop.f32.mrf.mxu0
        %463 = vmatprep.mubr.f32.mxu0 %v297
        %464 = vmatmul.mubr.f32.gmra.mxu0 %v296
        %v465 = vpop.f32.mrf.mxu0
        %v466 = vadd.f32 0.0, %v465
        %v467 = vpop.f32.mrf.mxu0
        %468 = vmatprep.mubr.f32.mxu0 %v299
        %469 = vmatmul.mubr.f32.gmra.mxu0 %v298
        %v470 = vpop.f32.mrf.mxu0
        %v471 = vadd.f32 0.0, %v470
        %v472 = vpop.f32.mrf.mxu0
        %473 = vmatprep.mubr.f32.mxu0 %v301
        %474 = vmatmul.mubr.f32.gmra.mxu0 %v300
        %v475 = vpop.f32.mrf.mxu0
        %v476 = vadd.f32 0.0, %v475
        %v477 = vpop.f32.mrf.mxu0
        %478 = vdwg.mxu0
        %v479 = vadd.f32 %v254, %v401
        %v480 = vadd.f32 %v255, %v406
        %v481 = vadd.f32 %v256, %v411
        %v482 = vadd.f32 %v257, %v416
        %v483 = vadd.f32 %v258, %v421
        %v484 = vadd.f32 %v259, %v426
        %v485 = vadd.f32 %v260, %v431
        %v486 = vadd.f32 %v261, %v436
        %v487 = vadd.f32 %v262, %v441
        %v488 = vadd.f32 %v263, %v446
        %v489 = vadd.f32 %v264, %v451
        %v490 = vadd.f32 %v265, %v456
        %v491 = vadd.f32 %v266, %v461
        %v492 = vadd.f32 %v267, %v466
        %v493 = vadd.f32 %v268, %v471
        %v494 = vadd.f32 %v269, %v476
        %495 = vst [vmem:[#allocation2] sm:$0xff] %v479
        %496 = vst [vmem:[#allocation2 + $0x8] sm:$0xff] %v480
        %497 = vst [vmem:[#allocation2 + $0x10] sm:$0xff] %v481
        %498 = vst [vmem:[#allocation2 + $0x18] sm:$0xff] %v482
        %499 = vst [vmem:[#allocation2 + $0x20] sm:$0xff] %v483
        %500 = vst [vmem:[#allocation2 + $0x28] sm:$0xff] %v484
        %501 = vst [vmem:[#allocation2 + $0x30] sm:$0xff] %v485
        %502 = vst [vmem:[#allocation2 + $0x38] sm:$0xff] %v486
        %503 = vst [vmem:[#allocation2 + $0x40] sm:$0xff] %v487
        %504 = vst [vmem:[#allocation2 + $0x48] sm:$0xff] %v488
        %505 = vst [vmem:[#allocation2 + $0x50] sm:$0xff] %v489
        %506 = vst [vmem:[#allocation2 + $0x58] sm:$0xff] %v490
        %507 = vst [vmem:[#allocation2 + $0x60] sm:$0xff] %v491
        %508 = vst [vmem:[#allocation2 + $0x68] sm:$0xff] %v492
        %509 = vst [vmem:[#allocation2 + $0x70] sm:$0xff] %v493
        %510 = vst [vmem:[#allocation2 + $0x78] sm:$0xff] %v494
        // Predicated region
        $region41: #{multi_head_attention.3} parent=27 // pred_check
          %p511 = pneg %p234
        $region42: #{multi_head_attention.3} parent=27 // pred_check_branch
          %513 = sbr.rel (%p511) target = $region44
        $region43: #{multi_head_attention.3} parent=27 // pred_region
          %v514 = vld [vmem:[#allocation2] sm:$0xff]
          %v515 = vld [vmem:[#allocation2 + $0x8] sm:$0xff]
          %v516 = vld [vmem:[#allocation2 + $0x10] sm:$0xff]
          %v517 = vld [vmem:[#allocation2 + $0x18] sm:$0xff]
          %v518 = vld [vmem:[#allocation2 + $0x20] sm:$0xff]
          %v519 = vld [vmem:[#allocation2 + $0x28] sm:$0xff]
          %v520 = vld [vmem:[#allocation2 + $0x30] sm:$0xff]
          %v521 = vld [vmem:[#allocation2 + $0x38] sm:$0xff]
          %v522 = vld [vmem:[#allocation2 + $0x40] sm:$0xff]
          %v523 = vld [vmem:[#allocation2 + $0x48] sm:$0xff]
          %v524 = vld [vmem:[#allocation2 + $0x50] sm:$0xff]
          %v525 = vld [vmem:[#allocation2 + $0x58] sm:$0xff]
          %v526 = vld [vmem:[#allocation2 + $0x60] sm:$0xff]
          %v527 = vld [vmem:[#allocation2 + $0x68] sm:$0xff]
          %v528 = vld [vmem:[#allocation2 + $0x70] sm:$0xff]
          %v529 = vld [vmem:[#allocation2 + $0x78] sm:$0xff]
          %530 = vst [vmem:[%s228] sm:$0xff] %v514
          %531 = vst [vmem:[%s228 + $0x8] sm:$0xff] %v515
          %532 = vst [vmem:[%s228 + $0x10] sm:$0xff] %v516
          %533 = vst [vmem:[%s228 + $0x18] sm:$0xff] %v517
          %534 = vst [vmem:[%s228 + $0x20] sm:$0xff] %v518
          %535 = vst [vmem:[%s228 + $0x28] sm:$0xff] %v519
          %536 = vst [vmem:[%s228 + $0x30] sm:$0xff] %v520
          %537 = vst [vmem:[%s228 + $0x38] sm:$0xff] %v521
          %538 = vst [vmem:[%s228 + $0x40] sm:$0xff] %v522
          %539 = vst [vmem:[%s228 + $0x48] sm:$0xff] %v523
          %540 = vst [vmem:[%s228 + $0x50] sm:$0xff] %v524
          %541 = vst [vmem:[%s228 + $0x58] sm:$0xff] %v525
          %542 = vst [vmem:[%s228 + $0x60] sm:$0xff] %v526
          %543 = vst [vmem:[%s228 + $0x68] sm:$0xff] %v527
          %544 = vst [vmem:[%s228 + $0x70] sm:$0xff] %v528
          %545 = vst [vmem:[%s228 + $0x78] sm:$0xff] %v529
        $region44: #{multi_head_attention.3} parent=27 // pred_fallthru
          _
        %s546 = sand.u32 %s104, 1
        %s547 = sand.u32 %s104, 1
        %s548 = smul.addr %s547, 128
        %s549 = scalar_lea.vmem [#allocation7], %s548
        // Predicated region
        $region45: #{multi_head_attention.3} parent=27 // pred_check
          %p550 = pneg %p114
        $region46: #{multi_head_attention.3} parent=27 // pred_check_branch
          %552 = sbr.rel (%p550) target = $region48
        $region47: #{multi_head_attention.3} parent=27 // pred_region
          %s553 = smul.u32 16, %s24
          %s554 = smul.addr %s553, 6
          %s555 = sadd.s32 %s25, %s554
          %s556 = smul.addr %s555, 8
          %s557 = scalar_lea.vmem %s2, %s556
          // Predicated region
          $region49: #{multi_head_attention.3} parent=47 // pred_check
            _
          $region50: #{multi_head_attention.3} parent=47 // pred_check_branch
            %559 = sbr.rel (0) target = $region52
          $region51: #{multi_head_attention.3} parent=47 // pred_region
            // Predicated region
            $region53: #{multi_head_attention.3} parent=51 // pred_check
              _
            $region54: #{multi_head_attention.3} parent=51 // pred_check_branch
              %561 = sbr.rel (0) target = $region56
            $region55: #{multi_head_attention.3} parent=51 // pred_region
              // Predicated region
              $region68: #{multi_head_attention.3} parent=55 // pred_check
                _
              $region69: #{multi_head_attention.3} parent=55 // pred_check_branch
                %607 = sbr.rel (0) target = $region71
              $region70: #{multi_head_attention.3} parent=55 // pred_region
                loop: start=0, step=1, limit=1
                $region72: #{multi_head_attention.3} parent=70 // loop_pre_header
                  _
                $region73: #{multi_head_attention.3} parent=70 // loop_header
                  %s609 = sphi 0, %s613
                  %p610 = scmp.ge.s32.totalorder %s609, 1
                  %s614 = sphi %s549, %s549
                  %s615 = sphi %s557, %s557
                $region74: #{multi_head_attention.3} parent=70 // loop_header_branch
                  %612 = sbr.rel (%p610) target = $region78
                $region75: #{multi_head_attention.3} parent=70 // loop_body
                  %v616 = vld [vmem:[%s614] sm:$0xff]
                  %617 = vst [vmem:[%s615] sm:$0xff] %v616
                  %v618 = vld [vmem:[%s614 + $0x8] sm:$0xff]
                  %619 = vst [vmem:[%s615 + $0x30] sm:$0xff] %v618
                  %v620 = vld [vmem:[%s614 + $0x10] sm:$0xff]
                  %621 = vst [vmem:[%s615 + $0x60] sm:$0xff] %v620
                  %v622 = vld [vmem:[%s614 + $0x18] sm:$0xff]
                  %623 = vst [vmem:[%s615 + $0x90] sm:$0xff] %v622
                  %v624 = vld [vmem:[%s614 + $0x20] sm:$0xff]
                  %625 = vst [vmem:[%s615 + $0xc0] sm:$0xff] %v624
                  %v626 = vld [vmem:[%s614 + $0x28] sm:$0xff]
                  %627 = vst [vmem:[%s615 + $0xf0] sm:$0xff] %v626
                  %v628 = vld [vmem:[%s614 + $0x30] sm:$0xff]
                  %629 = vst [vmem:[%s615 + $0x120] sm:$0xff] %v628
                  %v630 = vld [vmem:[%s614 + $0x38] sm:$0xff]
                  %631 = vst [vmem:[%s615 + $0x150] sm:$0xff] %v630
                  %v632 = vld [vmem:[%s614 + $0x40] sm:$0xff]
                  %633 = vst [vmem:[%s615 + $0x180] sm:$0xff] %v632
                  %v634 = vld [vmem:[%s614 + $0x48] sm:$0xff]
                  %635 = vst [vmem:[%s615 + $0x1b0] sm:$0xff] %v634
                  %v636 = vld [vmem:[%s614 + $0x50] sm:$0xff]
                  %637 = vst [vmem:[%s615 + $0x1e0] sm:$0xff] %v636
                  %v638 = vld [vmem:[%s614 + $0x58] sm:$0xff]
                  %639 = vst [vmem:[%s615 + $0x210] sm:$0xff] %v638
                  %v640 = vld [vmem:[%s614 + $0x60] sm:$0xff]
                  %641 = vst [vmem:[%s615 + $0x240] sm:$0xff] %v640
                  %v642 = vld [vmem:[%s614 + $0x68] sm:$0xff]
                  %643 = vst [vmem:[%s615 + $0x270] sm:$0xff] %v642
                  %v644 = vld [vmem:[%s614 + $0x70] sm:$0xff]
                  %645 = vst [vmem:[%s615 + $0x2a0] sm:$0xff] %v644
                  %v646 = vld [vmem:[%s614 + $0x78] sm:$0xff]
                  %647 = vst [vmem:[%s615 + $0x2d0] sm:$0xff] %v646
                $region76: #{multi_head_attention.3} parent=70 // loop_footer
                  %s613 = sadd.s32 1, %s609
                $region77: #{multi_head_attention.3} parent=70 // loop_footer_branch
                  %608 = sbr.rel target = $region73
                $region78: #{multi_head_attention.3} parent=70 // loop_exit
                  _
              $region71: #{multi_head_attention.3} parent=55 // pred_fallthru
                _
              // Predicated region
              $region79: #{multi_head_attention.3} parent=55 // pred_check
                _
              $region80: #{multi_head_attention.3} parent=55 // pred_check_branch
                %649 = sbr.rel target = $region82
              $region81: #{multi_head_attention.3} parent=55 // pred_region
                _
              $region82: #{multi_head_attention.3} parent=55 // pred_fallthru
                _
            $region56: #{multi_head_attention.3} parent=51 // pred_fallthru
              _
            // Predicated region
            $region57: #{multi_head_attention.3} parent=51 // pred_check
              _
            $region58: #{multi_head_attention.3} parent=51 // pred_check_branch
              %563 = sbr.rel target = $region60
            $region59: #{multi_head_attention.3} parent=51 // pred_region
              %s565 = ssub.s32 256, 1
              loop: start=0, step=1, limit=1
              $region61: #{multi_head_attention.3} parent=59 // loop_pre_header
                _
              $region62: #{multi_head_attention.3} parent=59 // loop_header
                %s567 = sphi 0, %s571
                %p568 = scmp.ge.s32.totalorder %s567, 1
                %s572 = sphi %s549, %s549
                %s573 = sphi %s557, %s557
              $region63: #{multi_head_attention.3} parent=59 // loop_header_branch
                %570 = sbr.rel (%p568) target = $region67
              $region64: #{multi_head_attention.3} parent=59 // loop_body
                %v574 = vld [vmem:[%s572] sm:%s565]
                %575 = vst [vmem:[%s573] sm:%s565] %v574
                %v576 = vld [vmem:[%s572 + $0x8] sm:%s565]
                %577 = vst [vmem:[%s573 + $0x30] sm:%s565] %v576
                %v578 = vld [vmem:[%s572 + $0x10] sm:%s565]
                %579 = vst [vmem:[%s573 + $0x60] sm:%s565] %v578
                %v580 = vld [vmem:[%s572 + $0x18] sm:%s565]
                %581 = vst [vmem:[%s573 + $0x90] sm:%s565] %v580
                %v582 = vld [vmem:[%s572 + $0x20] sm:%s565]
                %583 = vst [vmem:[%s573 + $0xc0] sm:%s565] %v582
                %v584 = vld [vmem:[%s572 + $0x28] sm:%s565]
                %585 = vst [vmem:[%s573 + $0xf0] sm:%s565] %v584
                %v586 = vld [vmem:[%s572 + $0x30] sm:%s565]
                %587 = vst [vmem:[%s573 + $0x120] sm:%s565] %v586
                %v588 = vld [vmem:[%s572 + $0x38] sm:%s565]
                %589 = vst [vmem:[%s573 + $0x150] sm:%s565] %v588
                %v590 = vld [vmem:[%s572 + $0x40] sm:%s565]
                %591 = vst [vmem:[%s573 + $0x180] sm:%s565] %v590
                %v592 = vld [vmem:[%s572 + $0x48] sm:%s565]
                %593 = vst [vmem:[%s573 + $0x1b0] sm:%s565] %v592
                %v594 = vld [vmem:[%s572 + $0x50] sm:%s565]
                %595 = vst [vmem:[%s573 + $0x1e0] sm:%s565] %v594
                %v596 = vld [vmem:[%s572 + $0x58] sm:%s565]
                %597 = vst [vmem:[%s573 + $0x210] sm:%s565] %v596
                %v598 = vld [vmem:[%s572 + $0x60] sm:%s565]
                %599 = vst [vmem:[%s573 + $0x240] sm:%s565] %v598
                %v600 = vld [vmem:[%s572 + $0x68] sm:%s565]
                %601 = vst [vmem:[%s573 + $0x270] sm:%s565] %v600
                %v602 = vld [vmem:[%s572 + $0x70] sm:%s565]
                %603 = vst [vmem:[%s573 + $0x2a0] sm:%s565] %v602
                %v604 = vld [vmem:[%s572 + $0x78] sm:%s565]
                %605 = vst [vmem:[%s573 + $0x2d0] sm:%s565] %v604
              $region65: #{multi_head_attention.3} parent=59 // loop_footer
                %s571 = sadd.s32 1, %s567
              $region66: #{multi_head_attention.3} parent=59 // loop_footer_branch
                %566 = sbr.rel target = $region62
              $region67: #{multi_head_attention.3} parent=59 // loop_exit
                _
            $region60: #{multi_head_attention.3} parent=51 // pred_fallthru
              _
          $region52: #{multi_head_attention.3} parent=47 // pred_fallthru
            _
          %650 = vnop
        $region48: #{multi_head_attention.3} parent=27 // pred_fallthru
          _
      $region28: #{multi_head_attention.3} parent=5 // pred_fallthru
        _
      %p651 = scmp.le.s32.totalorder 2, %s14
      // Predicated region
      $region83: #{multi_head_attention.3} parent=5 // pred_check
        %p652 = pneg %p651
      $region84: #{multi_head_attention.3} parent=5 // pred_check_branch
        %654 = sbr.rel (%p652) target = $region86
      $region85: #{multi_head_attention.3} parent=5 // pred_region
        %s655 = ssub.s32 %s14, 2
        // Predicated region
        $region87: #{multi_head_attention.3} parent=85 // pred_check
          %p656 = pneg %p120
        $region88: #{multi_head_attention.3} parent=85 // pred_check_branch
          %658 = sbr.rel (%p656) target = $region90
        $region89: #{multi_head_attention.3} parent=85 // pred_region
          %s659 = sand.u32 %s105, 1
          %s660 = sand.u32 %s105, 1
          %s661 = smul.addr %s660, 128
          %s662 = scalar_lea.vmem [#allocation7], %s661
        $region90: #{multi_head_attention.3} parent=85 // pred_fallthru
          _
      $region86: #{multi_head_attention.3} parent=5 // pred_fallthru
        _
    $region6: #{multi_head_attention.3} parent=1 // loop_footer
      %s18 = sadd.s32 1, %s14
    $region7: #{multi_head_attention.3} parent=1 // loop_footer_branch
      %13 = sbr.rel target = $region3
    $region8: #{multi_head_attention.3} parent=1 // loop_exit
      _
    %663 = vsyncpa [#allocation4], 1
    %s664 = scalar_lea.sflag [#allocation4], 1
    %665 = vsyncpa %s664, 1
    %666 = vsyncpa [#allocation6], 1
    %s667 = scalar_lea.sflag [#allocation6], 1
    %668 = vsyncpa %s667, 1

// kernel: multi_head_attention.5
$region0: #{multi_head_attention.5}
  #allocation0 [shape = 'u32[]', space=smem, size = 0x4, offset = 0x4, fixed_abs, tag = 'smem constant byte address 0x4 - core index']
  #allocation1 [shape = 'u32[144,128]{1,0:T(1,128)}', space=vmem, size = 0x12000, scoped, tag = 'internal scratch']
  #allocation2 [shape = 'f32[128,128]{1,0:T(8,128)}', space=vmem, size = 0x10000, scoped, tag = 'scratch operand']
  %s0 = inlined_call_operand.vmem [shape: f32[512,256], index: 0, kind: input, shape index: {}]
  %s1 = inlined_call_operand.vmem [shape: f32[256,256], index: 1, kind: input, shape index: {}]
  %s2 = inlined_call_operand.hbm [shape: f32[512,256], index: 2, kind: output, shape index: {}]
  %s3 = sld [smem:[#allocation0]]
  $region49: #{multi_head_attention.5} parent=0
    _
  %s5 = ssub.s32 1, %s3
  %s6 = scalar_select 0, %s5, %s3
  $region1: #{multi_head_attention.5} parent=0
    #allocation3 [shape = 'u8[131072]{0}', space=vmem, size = 0x20000, scoped, tag = 'output window, operand 0']
    #allocation4 [shape = 's32[2]{0}', space=sflag, size = 0x8, scoped, tag = 'scoped memory for multi_head_attention.5']
    %7 = vsyncpa [#allocation4], 0
    %s8 = scalar_lea.sflag [#allocation4], 1
    %9 = vsyncpa %s8, 0
    loop: start=0, step=1, limit=10
    $region2: #{multi_head_attention.5} parent=1 // loop_pre_header
      _
    $region3: #{multi_head_attention.5} parent=1 // loop_header
      %s11 = sphi 0, %s15
      %p12 = scmp.ge.s32.totalorder %s11, 10
      %s18 = sphi 0, %s37
      %s19 = sphi 0, %s33
      %s20 = sphi 0, %s29
      %s21 = sphi 0, %s18
      %s22 = sphi 0, %s19
      %s23 = sphi 0, %s20
      %s24 = sphi 0, %s21
      %s25 = sphi 0, %s22
      %s26 = sphi 0, %s23
      %s42 = sphi 0, %s44
      %s45 = sphi 0, %s42
      %s46 = sphi 0, %s45
      %s62 = sphi 0, %s46
      %s70 = sphi 0, %s72
      %s73 = sphi 0, %s70
      %s74 = sphi 0, %s73
      %s90 = sphi 0, %s74
      %s98 = sphi 0, %s100
      %s101 = sphi 0, %s98
      %s102 = sphi 0, %s101
      %s118 = sphi 0, %s102
    $region4: #{multi_head_attention.5} parent=1 // loop_header_branch
      %14 = sbr.rel (%p12) target = $region8
    $region5: #{multi_head_attention.5} parent=1 // loop_body
      %s16 = ssub.s32 %s11, 1
      %s17 = ssub.s32 %s11, 2
      %s27 = sadd.s32 1, %s20
      %p28 = scmp.ge.s32.totalorder %s27, 1
      %s29 = scalar_select %p28, 0, %s27
      %s30 = sadd.s32 1, %s19
      %s31 = scalar_select %p28, %s30, %s19
      %p32 = scmp.ge.s32.totalorder %s31, 2
      %s33 = scalar_select %p32, 0, %s31
      %s34 = sadd.s32 1, %s18
      %s35 = scalar_select %p32, %s34, %s18
      %p36 = scmp.ge.s32.totalorder %s35, 4
      %s37 = scalar_select %p36, 0, %s35
      %s38 = ssub.s32 %s18, %s37
      %s39 = ssub.s32 %s20, %s29
      %s40 = sor.u32 %s38, %s39
      %p41 = scmp.eq.s32.totalorder %s40, 0
      %s43 = sadd.s32 %s42, 1
      %s44 = scalar_select %p41, %s42, %s43
      %p47 = pneg %p41
      %p48 = scmp.eq.s32.totalorder %s11, 7
      %p49 = por %p47, %p48
      %p50 = scmp.ne.s32.totalorder %s42, %s45
      %p51 = scmp.eq.s32.totalorder %s11, 0
      %p52 = por %p50, %p51
      %p53 = scmp.ne.s32.totalorder %s42, %s45
      %p54 = scmp.eq.s32.totalorder %s16, 7
      %p55 = por %p53, %p54
      %p56 = scmp.ne.s32.totalorder %s45, %s46
      %p57 = scmp.eq.s32.totalorder %s16, 0
      %p58 = por %p56, %p57
      %p59 = scmp.ne.s32.totalorder %s45, %s46
      %p60 = scmp.eq.s32.totalorder %s17, 7
      %p61 = por %p59, %p60
      %p63 = scmp.ne.s32.totalorder %s46, %s62
      %p64 = scmp.eq.s32.totalorder %s17, 0
      %p65 = por %p63, %p64
      %s66 = ssub.s32 %s19, %s33
      %s67 = ssub.s32 %s20, %s29
      %s68 = sor.u32 %s66, %s67
      %p69 = scmp.eq.s32.totalorder %s68, 0
      %s71 = sadd.s32 %s70, 1
      %s72 = scalar_select %p69, %s70, %s71
      %p75 = pneg %p69
      %p76 = scmp.eq.s32.totalorder %s11, 7
      %p77 = por %p75, %p76
      %p78 = scmp.ne.s32.totalorder %s70, %s73
      %p79 = scmp.eq.s32.totalorder %s11, 0
      %p80 = por %p78, %p79
      %p81 = scmp.ne.s32.totalorder %s70, %s73
      %p82 = scmp.eq.s32.totalorder %s16, 7
      %p83 = por %p81, %p82
      %p84 = scmp.ne.s32.totalorder %s73, %s74
      %p85 = scmp.eq.s32.totalorder %s16, 0
      %p86 = por %p84, %p85
      %p87 = scmp.ne.s32.totalorder %s73, %s74
      %p88 = scmp.eq.s32.totalorder %s17, 7
      %p89 = por %p87, %p88
      %p91 = scmp.ne.s32.totalorder %s74, %s90
      %p92 = scmp.eq.s32.totalorder %s17, 0
      %p93 = por %p91, %p92
      %s94 = ssub.s32 %s18, %s37
      %s95 = ssub.s32 %s19, %s33
      %s96 = sor.u32 %s94, %s95
      %p97 = scmp.eq.s32.totalorder %s96, 0
      %s99 = sadd.s32 %s98, 1
      %s100 = scalar_select %p97, %s98, %s99
      %p103 = pneg %p97
      %p104 = scmp.eq.s32.totalorder %s11, 7
      %p105 = por %p103, %p104
      %p106 = scmp.ne.s32.totalorder %s98, %s101
      %p107 = scmp.eq.s32.totalorder %s11, 0
      %p108 = por %p106, %p107
      %p109 = scmp.ne.s32.totalorder %s98, %s101
      %p110 = scmp.eq.s32.totalorder %s16, 7
      %p111 = por %p109, %p110
      %p112 = scmp.ne.s32.totalorder %s101, %s102
      %p113 = scmp.eq.s32.totalorder %s16, 0
      %p114 = por %p112, %p113
      %p115 = scmp.ne.s32.totalorder %s101, %s102
      %p116 = scmp.eq.s32.totalorder %s17, 7
      %p117 = por %p115, %p116
      %p119 = scmp.ne.s32.totalorder %s102, %s118
      %p120 = scmp.eq.s32.totalorder %s17, 0
      %p121 = por %p119, %p120
      %p122 = scmp.le.s32.totalorder 1, %s11
      %p123 = scmp.lt.s32.totalorder %s11, 9
      %p124 = pnand %p122, %p123
      %p125 = pneg %p124
      // Predicated region
      $region9: #{multi_head_attention.5} parent=5 // pred_check
        _
      $region10: #{multi_head_attention.5} parent=5 // pred_check_branch
        %127 = sbr.rel (%p124) target = $region12
      $region11: #{multi_head_attention.5} parent=5 // pred_region
        %s128 = ssub.s32 %s11, 1
      $region12: #{multi_head_attention.5} parent=5 // pred_fallthru
        _
      %p129 = scmp.lt.s32.totalorder %s11, 8
      // Predicated region
      $region13: #{multi_head_attention.5} parent=5 // pred_check
        %p130 = pneg %p129
      $region14: #{multi_head_attention.5} parent=5 // pred_check_branch
        %132 = sbr.rel (%p130) target = $region16
      $region15: #{multi_head_attention.5} parent=5 // pred_region
        // Predicated region
        $region17: #{multi_head_attention.5} parent=15 // pred_check
          %p133 = pneg %p52
        $region18: #{multi_head_attention.5} parent=15 // pred_check_branch
          %135 = sbr.rel (%p133) target = $region20
        $region19: #{multi_head_attention.5} parent=15 // pred_region
          %s136 = smul.u32 16, %s18
          %s137 = smul.u32 2, %s20
          %p138 = scmp.lt.s32.totalorder %s136, 63
          %s139 = scalar_select %p138, %s136, 63
          %p140 = scmp.lt.s32.totalorder %s137, 1
          %s141 = scalar_select %p140, %s137, 1
          %s142 = smul.addr %s139, 2
          %s143 = sadd.s32 %s141, %s142
          %s144 = smul.addr %s143, 8
          %s145 = scalar_lea.vmem %s0, %s144
          %s146 = smul.u32 16, %s18
          %s147 = smul.u32 2, %s20
        $region20: #{multi_head_attention.5} parent=15 // pred_fallthru
          _
        // Predicated region
        $region21: #{multi_head_attention.5} parent=15 // pred_check
          %p148 = pneg %p80
        $region22: #{multi_head_attention.5} parent=15 // pred_check_branch
          %150 = sbr.rel (%p148) target = $region24
        $region23: #{multi_head_attention.5} parent=15 // pred_region
          %s151 = smul.u32 16, %s19
          %s152 = smul.u32 2, %s20
          %p153 = scmp.lt.s32.totalorder %s151, 31
          %s154 = scalar_select %p153, %s151, 31
          %p155 = scmp.lt.s32.totalorder %s152, 1
          %s156 = scalar_select %p155, %s152, 1
          %s157 = smul.addr %s154, 2
          %s158 = sadd.s32 %s156, %s157
          %s159 = smul.addr %s158, 8
          %s160 = scalar_lea.vmem %s1, %s159
          %s161 = smul.u32 16, %s19
          %s162 = smul.u32 2, %s20
        $region24: #{multi_head_attention.5} parent=15 // pred_fallthru
          _
      $region16: #{multi_head_attention.5} parent=5 // pred_fallthru
        _
      %p163 = scmp.le.s32.totalorder 1, %s11
      %p164 = scmp.lt.s32.totalorder %s11, 9
      %p165 = pnand %p163, %p164
      %p166 = pneg %p165
      // Predicated region
      $region25: #{multi_head_attention.5} parent=5 // pred_check
        _
      $region26: #{multi_head_attention.5} parent=5 // pred_check_branch
        %168 = sbr.rel (%p165) target = $region28
      $region27: #{multi_head_attention.5} parent=5 // pred_region
        %s169 = ssub.s32 %s11, 1
        %s170 = smul.u32 16, %s21
        %s171 = smul.u32 2, %s23
        %p172 = scmp.lt.s32.totalorder %s170, 63
        %s173 = scalar_select %p172, %s170, 63
        %p174 = scmp.lt.s32.totalorder %s171, 1
        %s175 = scalar_select %p174, %s171, 1
        %s176 = smul.addr %s173, 2
        %s177 = sadd.s32 %s175, %s176
        %s178 = smul.addr %s177, 8
        %s179 = scalar_lea.vmem %s0, %s178
        %p180 = pneg %p58
        %p181 = pneg %p55
        %s182 = smul.u32 16, %s22
        %s183 = smul.u32 2, %s23
        %p184 = scmp.lt.s32.totalorder %s182, 31
        %s185 = scalar_select %p184, %s182, 31
        %p186 = scmp.lt.s32.totalorder %s183, 1
        %s187 = scalar_select %p186, %s183, 1
        %s188 = smul.addr %s185, 2
        %s189 = sadd.s32 %s187, %s188
        %s190 = smul.addr %s189, 8
        %s191 = scalar_lea.vmem %s1, %s190
        %p192 = pneg %p86
        %p193 = pneg %p83
        %p194 = pneg %p114
        %p195 = pneg %p111
        %s196 = sand.u32 %s101, 1
        %s197 = scalar_lea.sflag [#allocation4], %s196
        %s198 = sand.u32 %s101, 1
        %s199 = smul.addr %s198, 128
        %s200 = scalar_lea.vmem [#allocation3], %s199
        %s201 = smul.u32 16, %s21
        %s202 = smul.u32 2, %s23
        %p203 = scmp.lt.s32.totalorder %s201, 63
        %s204 = scalar_select %p203, %s201, 63
        %p205 = scmp.lt.s32.totalorder %s202, 1
        %s206 = scalar_select %p205, %s202, 1
        %s207 = smul.addr %s204, 2
        %s208 = sadd.s32 %s206, %s207
        %s209 = smul.addr %s208, 8
        %s210 = scalar_lea.vmem %s0, %s209
        %s211 = smul.u32 16, %s21
        %s212 = smul.u32 2, %s23
        %s213 = smul.u32 16, %s22
        %s214 = smul.u32 2, %s23
        %p215 = scmp.lt.s32.totalorder %s213, 31
        %s216 = scalar_select %p215, %s213, 31
        %p217 = scmp.lt.s32.totalorder %s214, 1
        %s218 = scalar_select %p217, %s214, 1
        %s219 = smul.addr %s216, 2
        %s220 = sadd.s32 %s218, %s219
        %s221 = smul.addr %s220, 8
        %s222 = scalar_lea.vmem %s1, %s221
        %s223 = smul.u32 16, %s22
        %s224 = smul.u32 2, %s23
        %s225 = smul.u32 16, %s21
        %p226 = scmp.eq.s32.totalorder %s23, 0
        // Predicated region
        $region29: #{multi_head_attention.5} parent=27 // pred_check
          %p227 = pneg %p226
        $region30: #{multi_head_attention.5} parent=27 // pred_check_branch
          %229 = sbr.rel (%p227) target = $region32
        $region31: #{multi_head_attention.5} parent=27 // pred_region
          %230 = vst [vmem:[#allocation2] sm:$0xff] 0.0
          %231 = vst [vmem:[#allocation2 + $0x8] sm:$0xff] 0.0
          %232 = vst [vmem:[#allocation2 + $0x10] sm:$0xff] 0.0
          %233 = vst [vmem:[#allocation2 + $0x18] sm:$0xff] 0.0
          %234 = vst [vmem:[#allocation2 + $0x20] sm:$0xff] 0.0
          %235 = vst [vmem:[#allocation2 + $0x28] sm:$0xff] 0.0
          %236 = vst [vmem:[#allocation2 + $0x30] sm:$0xff] 0.0
          %237 = vst [vmem:[#allocation2 + $0x38] sm:$0xff] 0.0
          %238 = vst [vmem:[#allocation2 + $0x40] sm:$0xff] 0.0
          %239 = vst [vmem:[#allocation2 + $0x48] sm:$0xff] 0.0
          %240 = vst [vmem:[#allocation2 + $0x50] sm:$0xff] 0.0
          %241 = vst [vmem:[#allocation2 + $0x58] sm:$0xff] 0.0
          %242 = vst [vmem:[#allocation2 + $0x60] sm:$0xff] 0.0
          %243 = vst [vmem:[#allocation2 + $0x68] sm:$0xff] 0.0
          %244 = vst [vmem:[#allocation2 + $0x70] sm:$0xff] 0.0
          %245 = vst [vmem:[#allocation2 + $0x78] sm:$0xff] 0.0
        $region32: #{multi_head_attention.5} parent=27 // pred_fallthru
          _
        %v246 = vld [vmem:[#allocation2] sm:$0xff]
        %v247 = vld [vmem:[#allocation2 + $0x8] sm:$0xff]
        %v248 = vld [vmem:[#allocation2 + $0x10] sm:$0xff]
        %v249 = vld [vmem:[#allocation2 + $0x18] sm:$0xff]
        %v250 = vld [vmem:[#allocation2 + $0x20] sm:$0xff]
        %v251 = vld [vmem:[#allocation2 + $0x28] sm:$0xff]
        %v252 = vld [vmem:[#allocation2 + $0x30] sm:$0xff]
        %v253 = vld [vmem:[#allocation2 + $0x38] sm:$0xff]
        %v254 = vld [vmem:[#allocation2 + $0x40] sm:$0xff]
        %v255 = vld [vmem:[#allocation2 + $0x48] sm:$0xff]
        %v256 = vld [vmem:[#allocation2 + $0x50] sm:$0xff]
        %v257 = vld [vmem:[#allocation2 + $0x58] sm:$0xff]
        %v258 = vld [vmem:[#allocation2 + $0x60] sm:$0xff]
        %v259 = vld [vmem:[#allocation2 + $0x68] sm:$0xff]
        %v260 = vld [vmem:[#allocation2 + $0x70] sm:$0xff]
        %v261 = vld [vmem:[#allocation2 + $0x78] sm:$0xff]
        %v262 = vld [vmem:[%s210] sm:$0xff]
        %v263 = vld [vmem:[%s210 + $0x8] sm:$0xff]
        %v264 = vld [vmem:[%s210 + $0x10] sm:$0xff]
        %v265 = vld [vmem:[%s210 + $0x18] sm:$0xff]
        %v266 = vld [vmem:[%s210 + $0x20] sm:$0xff]
        %v267 = vld [vmem:[%s210 + $0x28] sm:$0xff]
        %v268 = vld [vmem:[%s210 + $0x30] sm:$0xff]
        %v269 = vld [vmem:[%s210 + $0x38] sm:$0xff]
        %v270 = vld [vmem:[%s210 + $0x40] sm:$0xff]
        %v271 = vld [vmem:[%s210 + $0x48] sm:$0xff]
        %v272 = vld [vmem:[%s210 + $0x50] sm:$0xff]
        %v273 = vld [vmem:[%s210 + $0x58] sm:$0xff]
        %v274 = vld [vmem:[%s210 + $0x60] sm:$0xff]
        %v275 = vld [vmem:[%s210 + $0x68] sm:$0xff]
        %v276 = vld [vmem:[%s210 + $0x70] sm:$0xff]
        %v277 = vld [vmem:[%s210 + $0x78] sm:$0xff]
        %v278 = vld [vmem:[%s210 + $0x80] sm:$0xff]
        %v279 = vld [vmem:[%s210 + $0x88] sm:$0xff]
        %v280 = vld [vmem:[%s210 + $0x90] sm:$0xff]
        %v281 = vld [vmem:[%s210 + $0x98] sm:$0xff]
        %v282 = vld [vmem:[%s210 + $0xa0] sm:$0xff]
        %v283 = vld [vmem:[%s210 + $0xa8] sm:$0xff]
        %v284 = vld [vmem:[%s210 + $0xb0] sm:$0xff]
        %v285 = vld [vmem:[%s210 + $0xb8] sm:$0xff]
        %v286 = vld [vmem:[%s210 + $0xc0] sm:$0xff]
        %v287 = vld [vmem:[%s210 + $0xc8] sm:$0xff]
        %v288 = vld [vmem:[%s210 + $0xd0] sm:$0xff]
        %v289 = vld [vmem:[%s210 + $0xd8] sm:$0xff]
        %v290 = vld [vmem:[%s210 + $0xe0] sm:$0xff]
        %v291 = vld [vmem:[%s210 + $0xe8] sm:$0xff]
        %v292 = vld [vmem:[%s210 + $0xf0] sm:$0xff]
        %v293 = vld [vmem:[%s210 + $0xf8] sm:$0xff]
        %v294 = vld [vmem:[%s222] sm:$0xff]
        %v295 = vld [vmem:[%s222 + $0x8] sm:$0xff]
        %v296 = vld [vmem:[%s222 + $0x10] sm:$0xff]
        %v297 = vld [vmem:[%s222 + $0x18] sm:$0xff]
        %v298 = vld [vmem:[%s222 + $0x20] sm:$0xff]
        %v299 = vld [vmem:[%s222 + $0x28] sm:$0xff]
        %v300 = vld [vmem:[%s222 + $0x30] sm:$0xff]
        %v301 = vld [vmem:[%s222 + $0x38] sm:$0xff]
        %v302 = vld [vmem:[%s222 + $0x40] sm:$0xff]
        %v303 = vld [vmem:[%s222 + $0x48] sm:$0xff]
        %v304 = vld [vmem:[%s222 + $0x50] sm:$0xff]
        %v305 = vld [vmem:[%s222 + $0x58] sm:$0xff]
        %v306 = vld [vmem:[%s222 + $0x60] sm:$0xff]
        %v307 = vld [vmem:[%s222 + $0x68] sm:$0xff]
        %v308 = vld [vmem:[%s222 + $0x70] sm:$0xff]
        %v309 = vld [vmem:[%s222 + $0x78] sm:$0xff]
        %v310 = vld [vmem:[%s222 + $0x80] sm:$0xff]
        %v311 = vld [vmem:[%s222 + $0x88] sm:$0xff]
        %v312 = vld [vmem:[%s222 + $0x90] sm:$0xff]
        %v313 = vld [vmem:[%s222 + $0x98] sm:$0xff]
        %v314 = vld [vmem:[%s222 + $0xa0] sm:$0xff]
        %v315 = vld [vmem:[%s222 + $0xa8] sm:$0xff]
        %v316 = vld [vmem:[%s222 + $0xb0] sm:$0xff]
        %v317 = vld [vmem:[%s222 + $0xb8] sm:$0xff]
        %v318 = vld [vmem:[%s222 + $0xc0] sm:$0xff]
        %v319 = vld [vmem:[%s222 + $0xc8] sm:$0xff]
        %v320 = vld [vmem:[%s222 + $0xd0] sm:$0xff]
        %v321 = vld [vmem:[%s222 + $0xd8] sm:$0xff]
        %v322 = vld [vmem:[%s222 + $0xe0] sm:$0xff]
        %v323 = vld [vmem:[%s222 + $0xe8] sm:$0xff]
        %v324 = vld [vmem:[%s222 + $0xf0] sm:$0xff]
        %v325 = vld [vmem:[%s222 + $0xf8] sm:$0xff]
        %326 = vmatprep.subr.mxu0 %v325
        %327 = vmatpush1.xpose.msra.mxu0 %v324
        %328 = vmatprep.subr.mxu0 %v323
        %329 = vmatpush1.xpose.msra.mxu0 %v322
        %330 = vmatprep.subr.mxu0 %v321
        %331 = vmatpush1.xpose.msra.mxu0 %v320
        %332 = vmatprep.subr.mxu0 %v319
        %333 = vmatpush1.xpose.msra.mxu0 %v318
        %334 = vmatprep.subr.mxu0 %v317
        %335 = vmatpush1.xpose.msra.mxu0 %v316
        %336 = vmatprep.subr.mxu0 %v315
        %337 = vmatpush1.xpose.msra.mxu0 %v314
        %338 = vmatprep.subr.mxu0 %v313
        %339 = vmatpush1.xpose.msra.mxu0 %v312
        %340 = vmatprep.subr.mxu0 %v311
        %341 = vmatpush1.xpose.msra.mxu0 %v310
        %342 = vmatprep.subr.mxu0 %v309
        %343 = vmatpush1.xpose.msra.mxu0 %v308
        %344 = vmatprep.subr.mxu0 %v307
        %345 = vmatpush1.xpose.msra.mxu0 %v306
        %346 = vmatprep.subr.mxu0 %v305
        %347 = vmatpush1.xpose.msra.mxu0 %v304
        %348 = vmatprep.subr.mxu0 %v303
        %349 = vmatpush1.xpose.msra.mxu0 %v302
        %350 = vmatprep.subr.mxu0 %v301
        %351 = vmatpush1.xpose.msra.mxu0 %v300
        %352 = vmatprep.subr.mxu0 %v299
        %353 = vmatpush1.xpose.msra.mxu0 %v298
        %354 = vmatprep.subr.mxu0 %v297
        %355 = vmatpush1.xpose.msra.mxu0 %v296
        %356 = vmatprep.subr.mxu0 %v295
        %357 = vmatpush1.xpose.msra.mxu0 %v294
        %358 = vmatprep.subr.mxu0 0.0
        %359 = vmatpush2.xpose.msra.mxu0 0.0
        %360 = vmatprep.subr.mxu0 0.0
        %361 = vmatpush2.xpose.msra.mxu0 0.0
        %362 = vmatprep.subr.mxu0 0.0
        %363 = vmatpush2.xpose.msra.mxu0 0.0
        %364 = vmatprep.subr.mxu0 0.0
        %365 = vmatpush2.xpose.msra.mxu0 0.0
        %366 = vmatprep.subr.mxu0 0.0
        %367 = vmatpush2.xpose.msra.mxu0 0.0
        %368 = vmatprep.subr.mxu0 0.0
        %369 = vmatpush2.xpose.msra.mxu0 0.0
        %370 = vmatprep.subr.mxu0 0.0
        %371 = vmatpush2.xpose.msra.mxu0 0.0
        %372 = vmatprep.subr.mxu0 0.0
        %373 = vmatpush2.xpose.msra.mxu0 0.0
        %374 = vmatprep.subr.mxu0 0.0
        %375 = vmatpush2.xpose.msra.mxu0 0.0
        %376 = vmatprep.subr.mxu0 0.0
        %377 = vmatpush2.xpose.msra.mxu0 0.0
        %378 = vmatprep.subr.mxu0 0.0
        %379 = vmatpush2.xpose.msra.mxu0 0.0
        %380 = vmatprep.subr.mxu0 0.0
        %381 = vmatpush2.xpose.msra.mxu0 0.0
        %382 = vmatprep.subr.mxu0 0.0
        %383 = vmatpush2.xpose.msra.mxu0 0.0
        %384 = vmatprep.subr.mxu0 0.0
        %385 = vmatpush2.xpose.msra.mxu0 0.0
        %386 = vmatprep.subr.mxu0 0.0
        %387 = vmatpush2.xpose.msra.mxu0 0.0
        %388 = vmatprep.subr.mxu0 0.0
        %389 = vmatpush2.xpose.msra.mxu0 0.0
        %390 = vmatprep.mubr.f32.mxu0 %v263
        %391 = vmatmul.mubr.f32.gmra.mxu0 %v262
        %v392 = vpop.f32.mrf.mxu0
        %v393 = vadd.f32 0.0, %v392
        %v394 = vpop.f32.mrf.mxu0
        %395 = vmatprep.mubr.f32.mxu0 %v265
        %396 = vmatmul.mubr.f32.gmra.mxu0 %v264
        %v397 = vpop.f32.mrf.mxu0
        %v398 = vadd.f32 0.0, %v397
        %v399 = vpop.f32.mrf.mxu0
        %400 = vmatprep.mubr.f32.mxu0 %v267
        %401 = vmatmul.mubr.f32.gmra.mxu0 %v266
        %v402 = vpop.f32.mrf.mxu0
        %v403 = vadd.f32 0.0, %v402
        %v404 = vpop.f32.mrf.mxu0
        %405 = vmatprep.mubr.f32.mxu0 %v269
        %406 = vmatmul.mubr.f32.gmra.mxu0 %v268
        %v407 = vpop.f32.mrf.mxu0
        %v408 = vadd.f32 0.0, %v407
        %v409 = vpop.f32.mrf.mxu0
        %410 = vmatprep.mubr.f32.mxu0 %v271
        %411 = vmatmul.mubr.f32.gmra.mxu0 %v270
        %v412 = vpop.f32.mrf.mxu0
        %v413 = vadd.f32 0.0, %v412
        %v414 = vpop.f32.mrf.mxu0
        %415 = vmatprep.mubr.f32.mxu0 %v273
        %416 = vmatmul.mubr.f32.gmra.mxu0 %v272
        %v417 = vpop.f32.mrf.mxu0
        %v418 = vadd.f32 0.0, %v417
        %v419 = vpop.f32.mrf.mxu0
        %420 = vmatprep.mubr.f32.mxu0 %v275
        %421 = vmatmul.mubr.f32.gmra.mxu0 %v274
        %v422 = vpop.f32.mrf.mxu0
        %v423 = vadd.f32 0.0, %v422
        %v424 = vpop.f32.mrf.mxu0
        %425 = vmatprep.mubr.f32.mxu0 %v277
        %426 = vmatmul.mubr.f32.gmra.mxu0 %v276
        %v427 = vpop.f32.mrf.mxu0
        %v428 = vadd.f32 0.0, %v427
        %v429 = vpop.f32.mrf.mxu0
        %430 = vmatprep.mubr.f32.mxu0 %v279
        %431 = vmatmul.mubr.f32.gmra.mxu0 %v278
        %v432 = vpop.f32.mrf.mxu0
        %v433 = vadd.f32 0.0, %v432
        %v434 = vpop.f32.mrf.mxu0
        %435 = vmatprep.mubr.f32.mxu0 %v281
        %436 = vmatmul.mubr.f32.gmra.mxu0 %v280
        %v437 = vpop.f32.mrf.mxu0
        %v438 = vadd.f32 0.0, %v437
        %v439 = vpop.f32.mrf.mxu0
        %440 = vmatprep.mubr.f32.mxu0 %v283
        %441 = vmatmul.mubr.f32.gmra.mxu0 %v282
        %v442 = vpop.f32.mrf.mxu0
        %v443 = vadd.f32 0.0, %v442
        %v444 = vpop.f32.mrf.mxu0
        %445 = vmatprep.mubr.f32.mxu0 %v285
        %446 = vmatmul.mubr.f32.gmra.mxu0 %v284
        %v447 = vpop.f32.mrf.mxu0
        %v448 = vadd.f32 0.0, %v447
        %v449 = vpop.f32.mrf.mxu0
        %450 = vmatprep.mubr.f32.mxu0 %v287
        %451 = vmatmul.mubr.f32.gmra.mxu0 %v286
        %v452 = vpop.f32.mrf.mxu0
        %v453 = vadd.f32 0.0, %v452
        %v454 = vpop.f32.mrf.mxu0
        %455 = vmatprep.mubr.f32.mxu0 %v289
        %456 = vmatmul.mubr.f32.gmra.mxu0 %v288
        %v457 = vpop.f32.mrf.mxu0
        %v458 = vadd.f32 0.0, %v457
        %v459 = vpop.f32.mrf.mxu0
        %460 = vmatprep.mubr.f32.mxu0 %v291
        %461 = vmatmul.mubr.f32.gmra.mxu0 %v290
        %v462 = vpop.f32.mrf.mxu0
        %v463 = vadd.f32 0.0, %v462
        %v464 = vpop.f32.mrf.mxu0
        %465 = vmatprep.mubr.f32.mxu0 %v293
        %466 = vmatmul.mubr.f32.gmra.mxu0 %v292
        %v467 = vpop.f32.mrf.mxu0
        %v468 = vadd.f32 0.0, %v467
        %v469 = vpop.f32.mrf.mxu0
        %470 = vdwg.mxu0
        %v471 = vadd.f32 %v246, %v393
        %v472 = vadd.f32 %v247, %v398
        %v473 = vadd.f32 %v248, %v403
        %v474 = vadd.f32 %v249, %v408
        %v475 = vadd.f32 %v250, %v413
        %v476 = vadd.f32 %v251, %v418
        %v477 = vadd.f32 %v252, %v423
        %v478 = vadd.f32 %v253, %v428
        %v479 = vadd.f32 %v254, %v433
        %v480 = vadd.f32 %v255, %v438
        %v481 = vadd.f32 %v256, %v443
        %v482 = vadd.f32 %v257, %v448
        %v483 = vadd.f32 %v258, %v453
        %v484 = vadd.f32 %v259, %v458
        %v485 = vadd.f32 %v260, %v463
        %v486 = vadd.f32 %v261, %v468
        %487 = vst [vmem:[#allocation2] sm:$0xff] %v471
        %488 = vst [vmem:[#allocation2 + $0x8] sm:$0xff] %v472
        %489 = vst [vmem:[#allocation2 + $0x10] sm:$0xff] %v473
        %490 = vst [vmem:[#allocation2 + $0x18] sm:$0xff] %v474
        %491 = vst [vmem:[#allocation2 + $0x20] sm:$0xff] %v475
        %492 = vst [vmem:[#allocation2 + $0x28] sm:$0xff] %v476
        %493 = vst [vmem:[#allocation2 + $0x30] sm:$0xff] %v477
        %494 = vst [vmem:[#allocation2 + $0x38] sm:$0xff] %v478
        %495 = vst [vmem:[#allocation2 + $0x40] sm:$0xff] %v479
        %496 = vst [vmem:[#allocation2 + $0x48] sm:$0xff] %v480
        %497 = vst [vmem:[#allocation2 + $0x50] sm:$0xff] %v481
        %498 = vst [vmem:[#allocation2 + $0x58] sm:$0xff] %v482
        %499 = vst [vmem:[#allocation2 + $0x60] sm:$0xff] %v483
        %500 = vst [vmem:[#allocation2 + $0x68] sm:$0xff] %v484
        %501 = vst [vmem:[#allocation2 + $0x70] sm:$0xff] %v485
        %502 = vst [vmem:[#allocation2 + $0x78] sm:$0xff] %v486
        // Predicated region
        $region33: #{multi_head_attention.5} parent=27 // pred_check
          %p503 = pneg %p226
        $region34: #{multi_head_attention.5} parent=27 // pred_check_branch
          %505 = sbr.rel (%p503) target = $region36
        $region35: #{multi_head_attention.5} parent=27 // pred_region
          %v506 = vld [vmem:[#allocation2] sm:$0xff]
          %v507 = vld [vmem:[#allocation2 + $0x8] sm:$0xff]
          %v508 = vld [vmem:[#allocation2 + $0x10] sm:$0xff]
          %v509 = vld [vmem:[#allocation2 + $0x18] sm:$0xff]
          %v510 = vld [vmem:[#allocation2 + $0x20] sm:$0xff]
          %v511 = vld [vmem:[#allocation2 + $0x28] sm:$0xff]
          %v512 = vld [vmem:[#allocation2 + $0x30] sm:$0xff]
          %v513 = vld [vmem:[#allocation2 + $0x38] sm:$0xff]
          %v514 = vld [vmem:[#allocation2 + $0x40] sm:$0xff]
          %v515 = vld [vmem:[#allocation2 + $0x48] sm:$0xff]
          %v516 = vld [vmem:[#allocation2 + $0x50] sm:$0xff]
          %v517 = vld [vmem:[#allocation2 + $0x58] sm:$0xff]
          %v518 = vld [vmem:[#allocation2 + $0x60] sm:$0xff]
          %v519 = vld [vmem:[#allocation2 + $0x68] sm:$0xff]
          %v520 = vld [vmem:[#allocation2 + $0x70] sm:$0xff]
          %v521 = vld [vmem:[#allocation2 + $0x78] sm:$0xff]
          %522 = vst [vmem:[%s200] sm:$0xff] %v506
          %523 = vst [vmem:[%s200 + $0x8] sm:$0xff] %v507
          %524 = vst [vmem:[%s200 + $0x10] sm:$0xff] %v508
          %525 = vst [vmem:[%s200 + $0x18] sm:$0xff] %v509
          %526 = vst [vmem:[%s200 + $0x20] sm:$0xff] %v510
          %527 = vst [vmem:[%s200 + $0x28] sm:$0xff] %v511
          %528 = vst [vmem:[%s200 + $0x30] sm:$0xff] %v512
          %529 = vst [vmem:[%s200 + $0x38] sm:$0xff] %v513
          %530 = vst [vmem:[%s200 + $0x40] sm:$0xff] %v514
          %531 = vst [vmem:[%s200 + $0x48] sm:$0xff] %v515
          %532 = vst [vmem:[%s200 + $0x50] sm:$0xff] %v516
          %533 = vst [vmem:[%s200 + $0x58] sm:$0xff] %v517
          %534 = vst [vmem:[%s200 + $0x60] sm:$0xff] %v518
          %535 = vst [vmem:[%s200 + $0x68] sm:$0xff] %v519
          %536 = vst [vmem:[%s200 + $0x70] sm:$0xff] %v520
          %537 = vst [vmem:[%s200 + $0x78] sm:$0xff] %v521
        $region36: #{multi_head_attention.5} parent=27 // pred_fallthru
          _
        %s538 = sand.u32 %s101, 1
        %s539 = scalar_lea.sflag [#allocation4], %s538
        %s540 = sand.u32 %s101, 1
        %s541 = smul.addr %s540, 128
        %s542 = scalar_lea.vmem [#allocation3], %s541
        // Predicated region
        $region37: #{multi_head_attention.5} parent=27 // pred_check
          %p543 = pneg %p111
        $region38: #{multi_head_attention.5} parent=27 // pred_check_branch
          %545 = sbr.rel (%p543) target = $region40
        $region39: #{multi_head_attention.5} parent=27 // pred_region
          %s546 = smul.u32 16, %s21
          %s548 = ssub.s32 2048, 2048
          %549 = vsyncadd %s539, %s548
          %s550 = smul.addr %s546, 2
          %s551 = sadd.s32 %s22, %s550
          %s552 = smul.addr %s551, 128
          %s553 = scalar_lea.hbm %s2, %s552
          %s554 = sshll.u32 %s542, 4
          %s555 = int_to_ptr.vmem [resolvable:$true] %s554
          %560 = dma.vmem_to_hbm [thread:$0]  %s555, 2048, %s553, %s539, 128, 256, 8
        $region40: #{multi_head_attention.5} parent=27 // pred_fallthru
          _
      $region28: #{multi_head_attention.5} parent=5 // pred_fallthru
        _
      %p561 = scmp.le.s32.totalorder 2, %s11
      // Predicated region
      $region41: #{multi_head_attention.5} parent=5 // pred_check
        %p562 = pneg %p561
      $region42: #{multi_head_attention.5} parent=5 // pred_check_branch
        %564 = sbr.rel (%p562) target = $region44
      $region43: #{multi_head_attention.5} parent=5 // pred_region
        %s565 = ssub.s32 %s11, 2
        // Predicated region
        $region45: #{multi_head_attention.5} parent=43 // pred_check
          %p566 = pneg %p117
        $region46: #{multi_head_attention.5} parent=43 // pred_check_branch
          %568 = sbr.rel (%p566) target = $region48
        $region47: #{multi_head_attention.5} parent=43 // pred_region
          %s569 = sand.u32 %s102, 1
          %s570 = scalar_lea.sflag [#allocation4], %s569
          %s571 = sand.u32 %s102, 1
          %s572 = smul.addr %s571, 128
          %s573 = scalar_lea.vmem [#allocation3], %s572
          %574 = dma.done %s570, 2048
        $region48: #{multi_head_attention.5} parent=43 // pred_fallthru
          _
      $region44: #{multi_head_attention.5} parent=5 // pred_fallthru
        _
    $region6: #{multi_head_attention.5} parent=1 // loop_footer
      %s15 = sadd.s32 1, %s11
    $region7: #{multi_head_attention.5} parent=1 // loop_footer_branch
      %10 = sbr.rel target = $region3
    $region8: #{multi_head_attention.5} parent=1 // loop_exit
      _
    %575 = vsyncpa [#allocation4], 1
    %s576 = scalar_lea.sflag [#allocation4], 1
    %577 = vsyncpa %s576, 1

// kernel: multi_head_attention.4
$region0: #{multi_head_attention.4}
  #allocation0 [shape = 'u32[]', space=smem, size = 0x4, offset = 0x4, fixed_abs, tag = 'smem constant byte address 0x4 - core index']
  #allocation1 [shape = 'u32[144,128]{1,0:T(1,128)}', space=vmem, size = 0x12000, scoped, tag = 'internal scratch']
  #allocation2 [shape = 'f32[4,128,64]{2,1,0:T(8,128)}', space=vmem, size = 0x40000, scoped, tag = 'scratch operand']
  #allocation3 [shape = 'f32[4,128,1]{2,1,0:T(8,128)}', space=vmem, size = 0x40000, scoped, tag = 'scratch operand']
  #allocation4 [shape = 'f32[4,128,1]{2,1,0:T(8,128)}', space=vmem, size = 0x40000, scoped, tag = 'scratch operand']
  #allocation5 [shape = 'f32[4,128,64]{2,1,0:T(8,128)}', space=vmem, size = 0x40000, scoped, tag = 'scratch operand']
  %s0 = inlined_call_operand.vmem [shape: f32[256,64], index: 0, kind: input, shape index: {}, may-alias: {0,2}]
  %s1 = inlined_call_operand.vmem [shape: f32[256,64], index: 1, kind: input, shape index: {}, may-alias: {1,3}]
  %s2 = inlined_call_operand.vmem [shape: f32[256,64], index: 2, kind: input, shape index: {}, may-alias: {0,2}]
  %s3 = inlined_call_operand.vmem [shape: f32[256,64], index: 3, kind: input, shape index: {}, may-alias: {1,3}]
  %s4 = inlined_call_operand.vmem [shape: f32[64,64], index: 4, kind: input, shape index: {}]
  %s5 = inlined_call_operand.vmem [shape: f32[2,4,256,64], index: 5, kind: input, shape index: {}]
  %s6 = inlined_call_operand.vmem [shape: f32[2,4,256,64], index: 6, kind: input, shape index: {}]
  %s7 = inlined_call_operand.vmem [shape: f32[2,4,256,64], index: 7, kind: input, shape index: {}]
  %s8 = inlined_call_operand.vmem [shape: f32[2,4,256,64], index: 8, kind: output, shape index: {}]
  %s9 = sld [smem:[#allocation0]]
  $region225: #{multi_head_attention.4} parent=0
    _
  %s11 = ssub.s32 1, %s9
  %s12 = scalar_select 0, %s11, %s9
  $region1: #{multi_head_attention.4} parent=0
    #allocation6 [shape = 'u8[524288]{0}', space=vmem, size = 0x80000, scoped, tag = 'input window, operand 5']
    #allocation7 [shape = 'u8[524288]{0}', space=vmem, size = 0x80000, scoped, tag = 'input window, operand 6']
    #allocation8 [shape = 'u8[524288]{0}', space=vmem, size = 0x80000, scoped, tag = 'input window, operand 7']
    #allocation9 [shape = 'u8[524288]{0}', space=vmem, size = 0x80000, scoped, tag = 'output window, operand 0']
    loop: start=0, step=1, limit=10
    $region2: #{multi_head_attention.4} parent=1 // loop_pre_header
      _
    $region3: #{multi_head_attention.4} parent=1 // loop_header
      %s14 = sphi 0, %s18
      %p15 = scmp.ge.s32.totalorder %s14, 10
      %s21 = sphi 0, %s40
      %s22 = sphi 0, %s36
      %s23 = sphi 0, %s32
      %s24 = sphi 0, %s21
      %s25 = sphi 0, %s22
      %s26 = sphi 0, %s23
      %s27 = sphi 0, %s24
      %s28 = sphi 0, %s25
      %s29 = sphi 0, %s26
      %s43 = sphi 0, %s45
      %s46 = sphi 0, %s43
      %s47 = sphi 0, %s46
      %s63 = sphi 0, %s47
      %s69 = sphi 0, %s71
      %s72 = sphi 0, %s69
      %s73 = sphi 0, %s72
      %s89 = sphi 0, %s73
      %s95 = sphi 0, %s97
      %s98 = sphi 0, %s95
      %s99 = sphi 0, %s98
      %s115 = sphi 0, %s99
      %s121 = sphi 0, %s123
      %s124 = sphi 0, %s121
      %s125 = sphi 0, %s124
      %s141 = sphi 0, %s125
      %s145 = sphi 0, %s145
      %s147 = sphi 0, %s145
      %s148 = sphi 0, %s147
      %s162 = sphi 0, %s148
      %s170 = sphi 0, %s172
      %s173 = sphi 0, %s170
      %s174 = sphi 0, %s173
      %s190 = sphi 0, %s174
      %s198 = sphi 0, %s200
      %s201 = sphi 0, %s198
      %s202 = sphi 0, %s201
      %s218 = sphi 0, %s202
      %s226 = sphi 0, %s228
      %s229 = sphi 0, %s226
      %s230 = sphi 0, %s229
      %s246 = sphi 0, %s230
      %s254 = sphi 0, %s256
      %s257 = sphi 0, %s254
      %s258 = sphi 0, %s257
      %s274 = sphi 0, %s258
    $region4: #{multi_head_attention.4} parent=1 // loop_header_branch
      %17 = sbr.rel (%p15) target = $region8
    $region5: #{multi_head_attention.4} parent=1 // loop_body
      %s19 = ssub.s32 %s14, 1
      %s20 = ssub.s32 %s14, 2
      %s30 = sadd.s32 1, %s23
      %p31 = scmp.ge.s32.totalorder %s30, 2
      %s32 = scalar_select %p31, 0, %s30
      %s33 = sadd.s32 1, %s22
      %s34 = scalar_select %p31, %s33, %s22
      %p35 = scmp.ge.s32.totalorder %s34, 2
      %s36 = scalar_select %p35, 0, %s34
      %s37 = sadd.s32 1, %s21
      %s38 = scalar_select %p35, %s37, %s21
      %p39 = scmp.ge.s32.totalorder %s38, 2
      %s40 = scalar_select %p39, 0, %s38
      %s41 = ssub.s32 %s22, %s36
      %p42 = scmp.eq.s32.totalorder %s41, 0
      %s44 = sadd.s32 %s43, 1
      %s45 = scalar_select %p42, %s43, %s44
      %p48 = pneg %p42
      %p49 = scmp.eq.s32.totalorder %s14, 7
      %p50 = por %p48, %p49
      %p51 = scmp.ne.s32.totalorder %s43, %s46
      %p52 = scmp.eq.s32.totalorder %s14, 0
      %p53 = por %p51, %p52
      %p54 = scmp.ne.s32.totalorder %s43, %s46
      %p55 = scmp.eq.s32.totalorder %s19, 7
      %p56 = por %p54, %p55
      %p57 = scmp.ne.s32.totalorder %s46, %s47
      %p58 = scmp.eq.s32.totalorder %s19, 0
      %p59 = por %p57, %p58
      %p60 = scmp.ne.s32.totalorder %s46, %s47
      %p61 = scmp.eq.s32.totalorder %s20, 7
      %p62 = por %p60, %p61
      %p64 = scmp.ne.s32.totalorder %s47, %s63
      %p65 = scmp.eq.s32.totalorder %s20, 0
      %p66 = por %p64, %p65
      %s67 = ssub.s32 %s22, %s36
      %p68 = scmp.eq.s32.totalorder %s67, 0
      %s70 = sadd.s32 %s69, 1
      %s71 = scalar_select %p68, %s69, %s70
      %p74 = pneg %p68
      %p75 = scmp.eq.s32.totalorder %s14, 7
      %p76 = por %p74, %p75
      %p77 = scmp.ne.s32.totalorder %s69, %s72
      %p78 = scmp.eq.s32.totalorder %s14, 0
      %p79 = por %p77, %p78
      %p80 = scmp.ne.s32.totalorder %s69, %s72
      %p81 = scmp.eq.s32.totalorder %s19, 7
      %p82 = por %p80, %p81
      %p83 = scmp.ne.s32.totalorder %s72, %s73
      %p84 = scmp.eq.s32.totalorder %s19, 0
      %p85 = por %p83, %p84
      %p86 = scmp.ne.s32.totalorder %s72, %s73
      %p87 = scmp.eq.s32.totalorder %s20, 7
      %p88 = por %p86, %p87
      %p90 = scmp.ne.s32.totalorder %s73, %s89
      %p91 = scmp.eq.s32.totalorder %s20, 0
      %p92 = por %p90, %p91
      %s93 = ssub.s32 %s23, %s32
      %p94 = scmp.eq.s32.totalorder %s93, 0
      %s96 = sadd.s32 %s95, 1
      %s97 = scalar_select %p94, %s95, %s96
      %p100 = pneg %p94
      %p101 = scmp.eq.s32.totalorder %s14, 7
      %p102 = por %p100, %p101
      %p103 = scmp.ne.s32.totalorder %s95, %s98
      %p104 = scmp.eq.s32.totalorder %s14, 0
      %p105 = por %p103, %p104
      %p106 = scmp.ne.s32.totalorder %s95, %s98
      %p107 = scmp.eq.s32.totalorder %s19, 7
      %p108 = por %p106, %p107
      %p109 = scmp.ne.s32.totalorder %s98, %s99
      %p110 = scmp.eq.s32.totalorder %s19, 0
      %p111 = por %p109, %p110
      %p112 = scmp.ne.s32.totalorder %s98, %s99
      %p113 = scmp.eq.s32.totalorder %s20, 7
      %p114 = por %p112, %p113
      %p116 = scmp.ne.s32.totalorder %s99, %s115
      %p117 = scmp.eq.s32.totalorder %s20, 0
      %p118 = por %p116, %p117
      %s119 = ssub.s32 %s23, %s32
      %p120 = scmp.eq.s32.totalorder %s119, 0
      %s122 = sadd.s32 %s121, 1
      %s123 = scalar_select %p120, %s121, %s122
      %p126 = pneg %p120
      %p127 = scmp.eq.s32.totalorder %s14, 7
      %p128 = por %p126, %p127
      %p129 = scmp.ne.s32.totalorder %s121, %s124
      %p130 = scmp.eq.s32.totalorder %s14, 0
      %p131 = por %p129, %p130
      %p132 = scmp.ne.s32.totalorder %s121, %s124
      %p133 = scmp.eq.s32.totalorder %s19, 7
      %p134 = por %p132, %p133
      %p135 = scmp.ne.s32.totalorder %s124, %s125
      %p136 = scmp.eq.s32.totalorder %s19, 0
      %p137 = por %p135, %p136
      %p138 = scmp.ne.s32.totalorder %s124, %s125
      %p139 = scmp.eq.s32.totalorder %s20, 7
      %p140 = por %p138, %p139
      %p142 = scmp.ne.s32.totalorder %s125, %s141
      %p143 = scmp.eq.s32.totalorder %s20, 0
      %p144 = por %p142, %p143
      %s146 = sadd.s32 %s145, 1
      %p149 = scmp.eq.s32.totalorder %s14, 7
      %p150 = scmp.ne.s32.totalorder %s145, %s147
      %p151 = scmp.eq.s32.totalorder %s14, 0
      %p152 = por %p150, %p151
      %p153 = scmp.ne.s32.totalorder %s145, %s147
      %p154 = scmp.eq.s32.totalorder %s19, 7
      %p155 = por %p153, %p154
      %p156 = scmp.ne.s32.totalorder %s147, %s148
      %p157 = scmp.eq.s32.totalorder %s19, 0
      %p158 = por %p156, %p157
      %p159 = scmp.ne.s32.totalorder %s147, %s148
      %p160 = scmp.eq.s32.totalorder %s20, 7
      %p161 = por %p159, %p160
      %p163 = scmp.ne.s32.totalorder %s148, %s162
      %p164 = scmp.eq.s32.totalorder %s20, 0
      %p165 = por %p163, %p164
      %s166 = ssub.s32 %s21, %s40
      %s167 = ssub.s32 %s22, %s36
      %s168 = sor.u32 %s166, %s167
      %p169 = scmp.eq.s32.totalorder %s168, 0
      %s171 = sadd.s32 %s170, 1
      %s172 = scalar_select %p169, %s170, %s171
      %p175 = pneg %p169
      %p176 = scmp.eq.s32.totalorder %s14, 7
      %p177 = por %p175, %p176
      %p178 = scmp.ne.s32.totalorder %s170, %s173
      %p179 = scmp.eq.s32.totalorder %s14, 0
      %p180 = por %p178, %p179
      %p181 = scmp.ne.s32.totalorder %s170, %s173
      %p182 = scmp.eq.s32.totalorder %s19, 7
      %p183 = por %p181, %p182
      %p184 = scmp.ne.s32.totalorder %s173, %s174
      %p185 = scmp.eq.s32.totalorder %s19, 0
      %p186 = por %p184, %p185
      %p187 = scmp.ne.s32.totalorder %s173, %s174
      %p188 = scmp.eq.s32.totalorder %s20, 7
      %p189 = por %p187, %p188
      %p191 = scmp.ne.s32.totalorder %s174, %s190
      %p192 = scmp.eq.s32.totalorder %s20, 0
      %p193 = por %p191, %p192
      %s194 = ssub.s32 %s21, %s40
      %s195 = ssub.s32 %s23, %s32
      %s196 = sor.u32 %s194, %s195
      %p197 = scmp.eq.s32.totalorder %s196, 0
      %s199 = sadd.s32 %s198, 1
      %s200 = scalar_select %p197, %s198, %s199
      %p203 = pneg %p197
      %p204 = scmp.eq.s32.totalorder %s14, 7
      %p205 = por %p203, %p204
      %p206 = scmp.ne.s32.totalorder %s198, %s201
      %p207 = scmp.eq.s32.totalorder %s14, 0
      %p208 = por %p206, %p207
      %p209 = scmp.ne.s32.totalorder %s198, %s201
      %p210 = scmp.eq.s32.totalorder %s19, 7
      %p211 = por %p209, %p210
      %p212 = scmp.ne.s32.totalorder %s201, %s202
      %p213 = scmp.eq.s32.totalorder %s19, 0
      %p214 = por %p212, %p213
      %p215 = scmp.ne.s32.totalorder %s201, %s202
      %p216 = scmp.eq.s32.totalorder %s20, 7
      %p217 = por %p215, %p216
      %p219 = scmp.ne.s32.totalorder %s202, %s218
      %p220 = scmp.eq.s32.totalorder %s20, 0
      %p221 = por %p219, %p220
      %s222 = ssub.s32 %s21, %s40
      %s223 = ssub.s32 %s23, %s32
      %s224 = sor.u32 %s222, %s223
      %p225 = scmp.eq.s32.totalorder %s224, 0
      %s227 = sadd.s32 %s226, 1
      %s228 = scalar_select %p225, %s226, %s227
      %p231 = pneg %p225
      %p232 = scmp.eq.s32.totalorder %s14, 7
      %p233 = por %p231, %p232
      %p234 = scmp.ne.s32.totalorder %s226, %s229
      %p235 = scmp.eq.s32.totalorder %s14, 0
      %p236 = por %p234, %p235
      %p237 = scmp.ne.s32.totalorder %s226, %s229
      %p238 = scmp.eq.s32.totalorder %s19, 7
      %p239 = por %p237, %p238
      %p240 = scmp.ne.s32.totalorder %s229, %s230
      %p241 = scmp.eq.s32.totalorder %s19, 0
      %p242 = por %p240, %p241
      %p243 = scmp.ne.s32.totalorder %s229, %s230
      %p244 = scmp.eq.s32.totalorder %s20, 7
      %p245 = por %p243, %p244
      %p247 = scmp.ne.s32.totalorder %s230, %s246
      %p248 = scmp.eq.s32.totalorder %s20, 0
      %p249 = por %p247, %p248
      %s250 = ssub.s32 %s21, %s40
      %s251 = ssub.s32 %s22, %s36
      %s252 = sor.u32 %s250, %s251
      %p253 = scmp.eq.s32.totalorder %s252, 0
      %s255 = sadd.s32 %s254, 1
      %s256 = scalar_select %p253, %s254, %s255
      %p259 = pneg %p253
      %p260 = scmp.eq.s32.totalorder %s14, 7
      %p261 = por %p259, %p260
      %p262 = scmp.ne.s32.totalorder %s254, %s257
      %p263 = scmp.eq.s32.totalorder %s14, 0
      %p264 = por %p262, %p263
      %p265 = scmp.ne.s32.totalorder %s254, %s257
      %p266 = scmp.eq.s32.totalorder %s19, 7
      %p267 = por %p265, %p266
      %p268 = scmp.ne.s32.totalorder %s257, %s258
      %p269 = scmp.eq.s32.totalorder %s19, 0
      %p270 = por %p268, %p269
      %p271 = scmp.ne.s32.totalorder %s257, %s258
      %p272 = scmp.eq.s32.totalorder %s20, 7
      %p273 = por %p271, %p272
      %p275 = scmp.ne.s32.totalorder %s258, %s274
      %p276 = scmp.eq.s32.totalorder %s20, 0
      %p277 = por %p275, %p276
      %p278 = scmp.le.s32.totalorder 1, %s14
      %p279 = scmp.lt.s32.totalorder %s14, 9
      %p280 = pnand %p278, %p279
      %p281 = pneg %p280
      // Predicated region
      $region9: #{multi_head_attention.4} parent=5 // pred_check
        _
      $region10: #{multi_head_attention.4} parent=5 // pred_check_branch
        %283 = sbr.rel (%p280) target = $region12
      $region11: #{multi_head_attention.4} parent=5 // pred_region
        %s284 = ssub.s32 %s14, 1
        // Predicated region
        $region13: #{multi_head_attention.4} parent=11 // pred_check
          %p285 = pneg %p158
        $region14: #{multi_head_attention.4} parent=11 // pred_check_branch
          %287 = sbr.rel (%p285) target = $region16
        $region15: #{multi_head_attention.4} parent=11 // pred_region
          _
        $region16: #{multi_head_attention.4} parent=11 // pred_fallthru
          _
      $region12: #{multi_head_attention.4} parent=5 // pred_fallthru
        _
      %p288 = scmp.lt.s32.totalorder %s14, 8
      // Predicated region
      $region17: #{multi_head_attention.4} parent=5 // pred_check
        %p289 = pneg %p288
      $region18: #{multi_head_attention.4} parent=5 // pred_check_branch
        %291 = sbr.rel (%p289) target = $region20
      $region19: #{multi_head_attention.4} parent=5 // pred_region
        // Predicated region
        $region21: #{multi_head_attention.4} parent=19 // pred_check
          %p292 = pneg %p53
        $region22: #{multi_head_attention.4} parent=19 // pred_check_branch
          %294 = sbr.rel (%p292) target = $region24
        $region23: #{multi_head_attention.4} parent=19 // pred_region
          %s295 = smul.u32 16, %s22
          %p296 = scmp.lt.s32.totalorder %s295, 31
          %s297 = scalar_select %p296, %s295, 31
          %s298 = smul.addr %s297, 8
          %s299 = scalar_lea.vmem %s0, %s298
          %s300 = smul.u32 16, %s22
        $region24: #{multi_head_attention.4} parent=19 // pred_fallthru
          _
        // Predicated region
        $region25: #{multi_head_attention.4} parent=19 // pred_check
          %p301 = pneg %p79
        $region26: #{multi_head_attention.4} parent=19 // pred_check_branch
          %303 = sbr.rel (%p301) target = $region28
        $region27: #{multi_head_attention.4} parent=19 // pred_region
          %s304 = smul.u32 16, %s22
          %p305 = scmp.lt.s32.totalorder %s304, 31
          %s306 = scalar_select %p305, %s304, 31
          %s307 = smul.addr %s306, 8
          %s308 = scalar_lea.vmem %s1, %s307
          %s309 = smul.u32 16, %s22
        $region28: #{multi_head_attention.4} parent=19 // pred_fallthru
          _
        // Predicated region
        $region29: #{multi_head_attention.4} parent=19 // pred_check
          %p310 = pneg %p105
        $region30: #{multi_head_attention.4} parent=19 // pred_check_branch
          %312 = sbr.rel (%p310) target = $region32
        $region31: #{multi_head_attention.4} parent=19 // pred_region
          %s313 = smul.u32 16, %s23
          %p314 = scmp.lt.s32.totalorder %s313, 31
          %s315 = scalar_select %p314, %s313, 31
          %s316 = smul.addr %s315, 8
          %s317 = scalar_lea.vmem %s2, %s316
          %s318 = smul.u32 16, %s23
        $region32: #{multi_head_attention.4} parent=19 // pred_fallthru
          _
        // Predicated region
        $region33: #{multi_head_attention.4} parent=19 // pred_check
          %p319 = pneg %p131
        $region34: #{multi_head_attention.4} parent=19 // pred_check_branch
          %321 = sbr.rel (%p319) target = $region36
        $region35: #{multi_head_attention.4} parent=19 // pred_region
          %s322 = smul.u32 16, %s23
          %p323 = scmp.lt.s32.totalorder %s322, 31
          %s324 = scalar_select %p323, %s322, 31
          %s325 = smul.addr %s324, 8
          %s326 = scalar_lea.vmem %s3, %s325
          %s327 = smul.u32 16, %s23
        $region36: #{multi_head_attention.4} parent=19 // pred_fallthru
          _
        // Predicated region
        $region37: #{multi_head_attention.4} parent=19 // pred_check
          %p328 = pneg %p180
        $region38: #{multi_head_attention.4} parent=19 // pred_check_branch
          %330 = sbr.rel (%p328) target = $region40
        $region39: #{multi_head_attention.4} parent=19 // pred_region
          %s331 = sand.u32 %s170, 1
          %s332 = sand.u32 %s170, 1
          %s333 = smul.addr %s332, 512
          %s334 = scalar_lea.vmem [#allocation6], %s333
          %s335 = smul.u32 16, %s22
          %s336 = smul.addr %s21, 128
          %s337 = sadd.s32 %s335, %s336
          %s338 = smul.addr %s337, 8
          %s339 = scalar_lea.vmem %s5, %s338
          // Predicated region
          $region41: #{multi_head_attention.4} parent=39 // pred_check
            _
          $region42: #{multi_head_attention.4} parent=39 // pred_check_branch
            %341 = sbr.rel (0) target = $region44
          $region43: #{multi_head_attention.4} parent=39 // pred_region
            // Predicated region
            $region45: #{multi_head_attention.4} parent=43 // pred_check
              _
            $region46: #{multi_head_attention.4} parent=43 // pred_check_branch
              %343 = sbr.rel (0) target = $region48
            $region47: #{multi_head_attention.4} parent=43 // pred_region
              // Predicated region
              $region60: #{multi_head_attention.4} parent=47 // pred_check
                _
              $region61: #{multi_head_attention.4} parent=47 // pred_check_branch
                %485 = sbr.rel (0) target = $region63
              $region62: #{multi_head_attention.4} parent=47 // pred_region
                loop: start=0, step=1, limit=1
                $region64: #{multi_head_attention.4} parent=62 // loop_pre_header
                  _
                $region65: #{multi_head_attention.4} parent=62 // loop_header
                  %s487 = sphi 0, %s491
                  %p488 = scmp.ge.s32.totalorder %s487, 1
                  %s492 = sphi %s339, %s339
                  %s493 = sphi %s334, %s334
                $region66: #{multi_head_attention.4} parent=62 // loop_header_branch
                  %490 = sbr.rel (%p488) target = $region70
                $region67: #{multi_head_attention.4} parent=62 // loop_body
                  %v494 = vld [vmem:[%s492] sm:$0xff]
                  %495 = vst [vmem:[%s493] sm:$0xff] %v494
                  %v496 = vld [vmem:[%s492 + $0x8] sm:$0xff]
                  %497 = vst [vmem:[%s493 + $0x8] sm:$0xff] %v496
                  %v498 = vld [vmem:[%s492 + $0x10] sm:$0xff]
                  %499 = vst [vmem:[%s493 + $0x10] sm:$0xff] %v498
                  %v500 = vld [vmem:[%s492 + $0x18] sm:$0xff]
                  %501 = vst [vmem:[%s493 + $0x18] sm:$0xff] %v500
                  %v502 = vld [vmem:[%s492 + $0x20] sm:$0xff]
                  %503 = vst [vmem:[%s493 + $0x20] sm:$0xff] %v502
                  %v504 = vld [vmem:[%s492 + $0x28] sm:$0xff]
                  %505 = vst [vmem:[%s493 + $0x28] sm:$0xff] %v504
                  %v506 = vld [vmem:[%s492 + $0x30] sm:$0xff]
                  %507 = vst [vmem:[%s493 + $0x30] sm:$0xff] %v506
                  %v508 = vld [vmem:[%s492 + $0x38] sm:$0xff]
                  %509 = vst [vmem:[%s493 + $0x38] sm:$0xff] %v508
                  %v510 = vld [vmem:[%s492 + $0x40] sm:$0xff]
                  %511 = vst [vmem:[%s493 + $0x40] sm:$0xff] %v510
                  %v512 = vld [vmem:[%s492 + $0x48] sm:$0xff]
                  %513 = vst [vmem:[%s493 + $0x48] sm:$0xff] %v512
                  %v514 = vld [vmem:[%s492 + $0x50] sm:$0xff]
                  %515 = vst [vmem:[%s493 + $0x50] sm:$0xff] %v514
                  %v516 = vld [vmem:[%s492 + $0x58] sm:$0xff]
                  %517 = vst [vmem:[%s493 + $0x58] sm:$0xff] %v516
                  %v518 = vld [vmem:[%s492 + $0x60] sm:$0xff]
                  %519 = vst [vmem:[%s493 + $0x60] sm:$0xff] %v518
                  %v520 = vld [vmem:[%s492 + $0x68] sm:$0xff]
                  %521 = vst [vmem:[%s493 + $0x68] sm:$0xff] %v520
                  %v522 = vld [vmem:[%s492 + $0x70] sm:$0xff]
                  %523 = vst [vmem:[%s493 + $0x70] sm:$0xff] %v522
                  %v524 = vld [vmem:[%s492 + $0x78] sm:$0xff]
                  %525 = vst [vmem:[%s493 + $0x78] sm:$0xff] %v524
                  %v526 = vld [vmem:[%s492 + $0x100] sm:$0xff]
                  %527 = vst [vmem:[%s493 + $0x80] sm:$0xff] %v526
                  %v528 = vld [vmem:[%s492 + $0x108] sm:$0xff]
                  %529 = vst [vmem:[%s493 + $0x88] sm:$0xff] %v528
                  %v530 = vld [vmem:[%s492 + $0x110] sm:$0xff]
                  %531 = vst [vmem:[%s493 + $0x90] sm:$0xff] %v530
                  %v532 = vld [vmem:[%s492 + $0x118] sm:$0xff]
                  %533 = vst [vmem:[%s493 + $0x98] sm:$0xff] %v532
                  %v534 = vld [vmem:[%s492 + $0x120] sm:$0xff]
                  %535 = vst [vmem:[%s493 + $0xa0] sm:$0xff] %v534
                  %v536 = vld [vmem:[%s492 + $0x128] sm:$0xff]
                  %537 = vst [vmem:[%s493 + $0xa8] sm:$0xff] %v536
                  %v538 = vld [vmem:[%s492 + $0x130] sm:$0xff]
                  %539 = vst [vmem:[%s493 + $0xb0] sm:$0xff] %v538
                  %v540 = vld [vmem:[%s492 + $0x138] sm:$0xff]
                  %541 = vst [vmem:[%s493 + $0xb8] sm:$0xff] %v540
                  %v542 = vld [vmem:[%s492 + $0x140] sm:$0xff]
                  %543 = vst [vmem:[%s493 + $0xc0] sm:$0xff] %v542
                  %v544 = vld [vmem:[%s492 + $0x148] sm:$0xff]
                  %545 = vst [vmem:[%s493 + $0xc8] sm:$0xff] %v544
                  %v546 = vld [vmem:[%s492 + $0x150] sm:$0xff]
                  %547 = vst [vmem:[%s493 + $0xd0] sm:$0xff] %v546
                  %v548 = vld [vmem:[%s492 + $0x158] sm:$0xff]
                  %549 = vst [vmem:[%s493 + $0xd8] sm:$0xff] %v548
                  %v550 = vld [vmem:[%s492 + $0x160] sm:$0xff]
                  %551 = vst [vmem:[%s493 + $0xe0] sm:$0xff] %v550
                  %v552 = vld [vmem:[%s492 + $0x168] sm:$0xff]
                  %553 = vst [vmem:[%s493 + $0xe8] sm:$0xff] %v552
                  %v554 = vld [vmem:[%s492 + $0x170] sm:$0xff]
                  %555 = vst [vmem:[%s493 + $0xf0] sm:$0xff] %v554
                  %v556 = vld [vmem:[%s492 + $0x178] sm:$0xff]
                  %557 = vst [vmem:[%s493 + $0xf8] sm:$0xff] %v556
                  %v558 = vld [vmem:[%s492 + $0x200] sm:$0xff]
                  %559 = vst [vmem:[%s493 + $0x100] sm:$0xff] %v558
                  %v560 = vld [vmem:[%s492 + $0x208] sm:$0xff]
                  %561 = vst [vmem:[%s493 + $0x108] sm:$0xff] %v560
                  %v562 = vld [vmem:[%s492 + $0x210] sm:$0xff]
                  %563 = vst [vmem:[%s493 + $0x110] sm:$0xff] %v562
                  %v564 = vld [vmem:[%s492 + $0x218] sm:$0xff]
                  %565 = vst [vmem:[%s493 + $0x118] sm:$0xff] %v564
                  %v566 = vld [vmem:[%s492 + $0x220] sm:$0xff]
                  %567 = vst [vmem:[%s493 + $0x120] sm:$0xff] %v566
                  %v568 = vld [vmem:[%s492 + $0x228] sm:$0xff]
                  %569 = vst [vmem:[%s493 + $0x128] sm:$0xff] %v568
                  %v570 = vld [vmem:[%s492 + $0x230] sm:$0xff]
                  %571 = vst [vmem:[%s493 + $0x130] sm:$0xff] %v570
                  %v572 = vld [vmem:[%s492 + $0x238] sm:$0xff]
                  %573 = vst [vmem:[%s493 + $0x138] sm:$0xff] %v572
                  %v574 = vld [vmem:[%s492 + $0x240] sm:$0xff]
                  %575 = vst [vmem:[%s493 + $0x140] sm:$0xff] %v574
                  %v576 = vld [vmem:[%s492 + $0x248] sm:$0xff]
                  %577 = vst [vmem:[%s493 + $0x148] sm:$0xff] %v576
                  %v578 = vld [vmem:[%s492 + $0x250] sm:$0xff]
                  %579 = vst [vmem:[%s493 + $0x150] sm:$0xff] %v578
                  %v580 = vld [vmem:[%s492 + $0x258] sm:$0xff]
                  %581 = vst [vmem:[%s493 + $0x158] sm:$0xff] %v580
                  %v582 = vld [vmem:[%s492 + $0x260] sm:$0xff]
                  %583 = vst [vmem:[%s493 + $0x160] sm:$0xff] %v582
                  %v584 = vld [vmem:[%s492 + $0x268] sm:$0xff]
                  %585 = vst [vmem:[%s493 + $0x168] sm:$0xff] %v584
                  %v586 = vld [vmem:[%s492 + $0x270] sm:$0xff]
                  %587 = vst [vmem:[%s493 + $0x170] sm:$0xff] %v586
                  %v588 = vld [vmem:[%s492 + $0x278] sm:$0xff]
                  %589 = vst [vmem:[%s493 + $0x178] sm:$0xff] %v588
                  %v590 = vld [vmem:[%s492 + $0x300] sm:$0xff]
                  %591 = vst [vmem:[%s493 + $0x180] sm:$0xff] %v590
                  %v592 = vld [vmem:[%s492 + $0x308] sm:$0xff]
                  %593 = vst [vmem:[%s493 + $0x188] sm:$0xff] %v592
                  %v594 = vld [vmem:[%s492 + $0x310] sm:$0xff]
                  %595 = vst [vmem:[%s493 + $0x190] sm:$0xff] %v594
                  %v596 = vld [vmem:[%s492 + $0x318] sm:$0xff]
                  %597 = vst [vmem:[%s493 + $0x198] sm:$0xff] %v596
                  %v598 = vld [vmem:[%s492 + $0x320] sm:$0xff]
                  %599 = vst [vmem:[%s493 + $0x1a0] sm:$0xff] %v598
                  %v600 = vld [vmem:[%s492 + $0x328] sm:$0xff]
                  %601 = vst [vmem:[%s493 + $0x1a8] sm:$0xff] %v600
                  %v602 = vld [vmem:[%s492 + $0x330] sm:$0xff]
                  %603 = vst [vmem:[%s493 + $0x1b0] sm:$0xff] %v602
                  %v604 = vld [vmem:[%s492 + $0x338] sm:$0xff]
                  %605 = vst [vmem:[%s493 + $0x1b8] sm:$0xff] %v604
                  %v606 = vld [vmem:[%s492 + $0x340] sm:$0xff]
                  %607 = vst [vmem:[%s493 + $0x1c0] sm:$0xff] %v606
                  %v608 = vld [vmem:[%s492 + $0x348] sm:$0xff]
                  %609 = vst [vmem:[%s493 + $0x1c8] sm:$0xff] %v608
                  %v610 = vld [vmem:[%s492 + $0x350] sm:$0xff]
                  %611 = vst [vmem:[%s493 + $0x1d0] sm:$0xff] %v610
                  %v612 = vld [vmem:[%s492 + $0x358] sm:$0xff]
                  %613 = vst [vmem:[%s493 + $0x1d8] sm:$0xff] %v612
                  %v614 = vld [vmem:[%s492 + $0x360] sm:$0xff]
                  %615 = vst [vmem:[%s493 + $0x1e0] sm:$0xff] %v614
                  %v616 = vld [vmem:[%s492 + $0x368] sm:$0xff]
                  %617 = vst [vmem:[%s493 + $0x1e8] sm:$0xff] %v616
                  %v618 = vld [vmem:[%s492 + $0x370] sm:$0xff]
                  %619 = vst [vmem:[%s493 + $0x1f0] sm:$0xff] %v618
                  %v620 = vld [vmem:[%s492 + $0x378] sm:$0xff]
                  %621 = vst [vmem:[%s493 + $0x1f8] sm:$0xff] %v620
                $region68: #{multi_head_attention.4} parent=62 // loop_footer
                  %s491 = sadd.s32 1, %s487
                $region69: #{multi_head_attention.4} parent=62 // loop_footer_branch
                  %486 = sbr.rel target = $region65
                $region70: #{multi_head_attention.4} parent=62 // loop_exit
                  _
              $region63: #{multi_head_attention.4} parent=47 // pred_fallthru
                _
              // Predicated region
              $region71: #{multi_head_attention.4} parent=47 // pred_check
                _
              $region72: #{multi_head_attention.4} parent=47 // pred_check_branch
                %623 = sbr.rel target = $region74
              $region73: #{multi_head_attention.4} parent=47 // pred_region
                _
              $region74: #{multi_head_attention.4} parent=47 // pred_fallthru
                _
            $region48: #{multi_head_attention.4} parent=43 // pred_fallthru
              _
            // Predicated region
            $region49: #{multi_head_attention.4} parent=43 // pred_check
              _
            $region50: #{multi_head_attention.4} parent=43 // pred_check_branch
              %345 = sbr.rel target = $region52
            $region51: #{multi_head_attention.4} parent=43 // pred_region
              %s347 = ssub.s32 256, 1
              loop: start=0, step=1, limit=1
              $region53: #{multi_head_attention.4} parent=51 // loop_pre_header
                _
              $region54: #{multi_head_attention.4} parent=51 // loop_header
                %s349 = sphi 0, %s353
                %p350 = scmp.ge.s32.totalorder %s349, 1
                %s354 = sphi %s339, %s339
                %s355 = sphi %s334, %s334
              $region55: #{multi_head_attention.4} parent=51 // loop_header_branch
                %352 = sbr.rel (%p350) target = $region59
              $region56: #{multi_head_attention.4} parent=51 // loop_body
                %v356 = vld [vmem:[%s354] sm:%s347]
                %357 = vst [vmem:[%s355] sm:%s347] %v356
                %v358 = vld [vmem:[%s354 + $0x8] sm:%s347]
                %359 = vst [vmem:[%s355 + $0x8] sm:%s347] %v358
                %v360 = vld [vmem:[%s354 + $0x10] sm:%s347]
                %361 = vst [vmem:[%s355 + $0x10] sm:%s347] %v360
                %v362 = vld [vmem:[%s354 + $0x18] sm:%s347]
                %363 = vst [vmem:[%s355 + $0x18] sm:%s347] %v362
                %v364 = vld [vmem:[%s354 + $0x20] sm:%s347]
                %365 = vst [vmem:[%s355 + $0x20] sm:%s347] %v364
                %v366 = vld [vmem:[%s354 + $0x28] sm:%s347]
                %367 = vst [vmem:[%s355 + $0x28] sm:%s347] %v366
                %v368 = vld [vmem:[%s354 + $0x30] sm:%s347]
                %369 = vst [vmem:[%s355 + $0x30] sm:%s347] %v368
                %v370 = vld [vmem:[%s354 + $0x38] sm:%s347]
                %371 = vst [vmem:[%s355 + $0x38] sm:%s347] %v370
                %v372 = vld [vmem:[%s354 + $0x40] sm:%s347]
                %373 = vst [vmem:[%s355 + $0x40] sm:%s347] %v372
                %v374 = vld [vmem:[%s354 + $0x48] sm:%s347]
                %375 = vst [vmem:[%s355 + $0x48] sm:%s347] %v374
                %v376 = vld [vmem:[%s354 + $0x50] sm:%s347]
                %377 = vst [vmem:[%s355 + $0x50] sm:%s347] %v376
                %v378 = vld [vmem:[%s354 + $0x58] sm:%s347]
                %379 = vst [vmem:[%s355 + $0x58] sm:%s347] %v378
                %v380 = vld [vmem:[%s354 + $0x60] sm:%s347]
                %381 = vst [vmem:[%s355 + $0x60] sm:%s347] %v380
                %v382 = vld [vmem:[%s354 + $0x68] sm:%s347]
                %383 = vst [vmem:[%s355 + $0x68] sm:%s347] %v382
                %v384 = vld [vmem:[%s354 + $0x70] sm:%s347]
                %385 = vst [vmem:[%s355 + $0x70] sm:%s347] %v384
                %v386 = vld [vmem:[%s354 + $0x78] sm:%s347]
                %387 = vst [vmem:[%s355 + $0x78] sm:%s347] %v386
                %v388 = vld [vmem:[%s354 + $0x100] sm:%s347]
                %389 = vst [vmem:[%s355 + $0x80] sm:%s347] %v388
                %v390 = vld [vmem:[%s354 + $0x108] sm:%s347]
                %391 = vst [vmem:[%s355 + $0x88] sm:%s347] %v390
                %v392 = vld [vmem:[%s354 + $0x110] sm:%s347]
                %393 = vst [vmem:[%s355 + $0x90] sm:%s347] %v392
                %v394 = vld [vmem:[%s354 + $0x118] sm:%s347]
                %395 = vst [vmem:[%s355 + $0x98] sm:%s347] %v394
                %v396 = vld [vmem:[%s354 + $0x120] sm:%s347]
                %397 = vst [vmem:[%s355 + $0xa0] sm:%s347] %v396
                %v398 = vld [vmem:[%s354 + $0x128] sm:%s347]
                %399 = vst [vmem:[%s355 + $0xa8] sm:%s347] %v398
                %v400 = vld [vmem:[%s354 + $0x130] sm:%s347]
                %401 = vst [vmem:[%s355 + $0xb0] sm:%s347] %v400
                %v402 = vld [vmem:[%s354 + $0x138] sm:%s347]
                %403 = vst [vmem:[%s355 + $0xb8] sm:%s347] %v402
                %v404 = vld [vmem:[%s354 + $0x140] sm:%s347]
                %405 = vst [vmem:[%s355 + $0xc0] sm:%s347] %v404
                %v406 = vld [vmem:[%s354 + $0x148] sm:%s347]
                %407 = vst [vmem:[%s355 + $0xc8] sm:%s347] %v406
                %v408 = vld [vmem:[%s354 + $0x150] sm:%s347]
                %409 = vst [vmem:[%s355 + $0xd0] sm:%s347] %v408
                %v410 = vld [vmem:[%s354 + $0x158] sm:%s347]
                %411 = vst [vmem:[%s355 + $0xd8] sm:%s347] %v410
                %v412 = vld [vmem:[%s354 + $0x160] sm:%s347]
                %413 = vst [vmem:[%s355 + $0xe0] sm:%s347] %v412
                %v414 = vld [vmem:[%s354 + $0x168] sm:%s347]
                %415 = vst [vmem:[%s355 + $0xe8] sm:%s347] %v414
                %v416 = vld [vmem:[%s354 + $0x170] sm:%s347]
                %417 = vst [vmem:[%s355 + $0xf0] sm:%s347] %v416
                %v418 = vld [vmem:[%s354 + $0x178] sm:%s347]
                %419 = vst [vmem:[%s355 + $0xf8] sm:%s347] %v418
                %v420 = vld [vmem:[%s354 + $0x200] sm:%s347]
                %421 = vst [vmem:[%s355 + $0x100] sm:%s347] %v420
                %v422 = vld [vmem:[%s354 + $0x208] sm:%s347]
                %423 = vst [vmem:[%s355 + $0x108] sm:%s347] %v422
                %v424 = vld [vmem:[%s354 + $0x210] sm:%s347]
                %425 = vst [vmem:[%s355 + $0x110] sm:%s347] %v424
                %v426 = vld [vmem:[%s354 + $0x218] sm:%s347]
                %427 = vst [vmem:[%s355 + $0x118] sm:%s347] %v426
                %v428 = vld [vmem:[%s354 + $0x220] sm:%s347]
                %429 = vst [vmem:[%s355 + $0x120] sm:%s347] %v428
                %v430 = vld [vmem:[%s354 + $0x228] sm:%s347]
                %431 = vst [vmem:[%s355 + $0x128] sm:%s347] %v430
                %v432 = vld [vmem:[%s354 + $0x230] sm:%s347]
                %433 = vst [vmem:[%s355 + $0x130] sm:%s347] %v432
                %v434 = vld [vmem:[%s354 + $0x238] sm:%s347]
                %435 = vst [vmem:[%s355 + $0x138] sm:%s347] %v434
                %v436 = vld [vmem:[%s354 + $0x240] sm:%s347]
                %437 = vst [vmem:[%s355 + $0x140] sm:%s347] %v436
                %v438 = vld [vmem:[%s354 + $0x248] sm:%s347]
                %439 = vst [vmem:[%s355 + $0x148] sm:%s347] %v438
                %v440 = vld [vmem:[%s354 + $0x250] sm:%s347]
                %441 = vst [vmem:[%s355 + $0x150] sm:%s347] %v440
                %v442 = vld [vmem:[%s354 + $0x258] sm:%s347]
                %443 = vst [vmem:[%s355 + $0x158] sm:%s347] %v442
                %v444 = vld [vmem:[%s354 + $0x260] sm:%s347]
                %445 = vst [vmem:[%s355 + $0x160] sm:%s347] %v444
                %v446 = vld [vmem:[%s354 + $0x268] sm:%s347]
                %447 = vst [vmem:[%s355 + $0x168] sm:%s347] %v446
                %v448 = vld [vmem:[%s354 + $0x270] sm:%s347]
                %449 = vst [vmem:[%s355 + $0x170] sm:%s347] %v448
                %v450 = vld [vmem:[%s354 + $0x278] sm:%s347]
                %451 = vst [vmem:[%s355 + $0x178] sm:%s347] %v450
                %v452 = vld [vmem:[%s354 + $0x300] sm:%s347]
                %453 = vst [vmem:[%s355 + $0x180] sm:%s347] %v452
                %v454 = vld [vmem:[%s354 + $0x308] sm:%s347]
                %455 = vst [vmem:[%s355 + $0x188] sm:%s347] %v454
                %v456 = vld [vmem:[%s354 + $0x310] sm:%s347]
                %457 = vst [vmem:[%s355 + $0x190] sm:%s347] %v456
                %v458 = vld [vmem:[%s354 + $0x318] sm:%s347]
                %459 = vst [vmem:[%s355 + $0x198] sm:%s347] %v458
                %v460 = vld [vmem:[%s354 + $0x320] sm:%s347]
                %461 = vst [vmem:[%s355 + $0x1a0] sm:%s347] %v460
                %v462 = vld [vmem:[%s354 + $0x328] sm:%s347]
                %463 = vst [vmem:[%s355 + $0x1a8] sm:%s347] %v462
                %v464 = vld [vmem:[%s354 + $0x330] sm:%s347]
                %465 = vst [vmem:[%s355 + $0x1b0] sm:%s347] %v464
                %v466 = vld [vmem:[%s354 + $0x338] sm:%s347]
                %467 = vst [vmem:[%s355 + $0x1b8] sm:%s347] %v466
                %v468 = vld [vmem:[%s354 + $0x340] sm:%s347]
                %469 = vst [vmem:[%s355 + $0x1c0] sm:%s347] %v468
                %v470 = vld [vmem:[%s354 + $0x348] sm:%s347]
                %471 = vst [vmem:[%s355 + $0x1c8] sm:%s347] %v470
                %v472 = vld [vmem:[%s354 + $0x350] sm:%s347]
                %473 = vst [vmem:[%s355 + $0x1d0] sm:%s347] %v472
                %v474 = vld [vmem:[%s354 + $0x358] sm:%s347]
                %475 = vst [vmem:[%s355 + $0x1d8] sm:%s347] %v474
                %v476 = vld [vmem:[%s354 + $0x360] sm:%s347]
                %477 = vst [vmem:[%s355 + $0x1e0] sm:%s347] %v476
                %v478 = vld [vmem:[%s354 + $0x368] sm:%s347]
                %479 = vst [vmem:[%s355 + $0x1e8] sm:%s347] %v478
                %v480 = vld [vmem:[%s354 + $0x370] sm:%s347]
                %481 = vst [vmem:[%s355 + $0x1f0] sm:%s347] %v480
                %v482 = vld [vmem:[%s354 + $0x378] sm:%s347]
                %483 = vst [vmem:[%s355 + $0x1f8] sm:%s347] %v482
              $region57: #{multi_head_attention.4} parent=51 // loop_footer
                %s353 = sadd.s32 1, %s349
              $region58: #{multi_head_attention.4} parent=51 // loop_footer_branch
                %348 = sbr.rel target = $region54
              $region59: #{multi_head_attention.4} parent=51 // loop_exit
                _
            $region52: #{multi_head_attention.4} parent=43 // pred_fallthru
              _
          $region44: #{multi_head_attention.4} parent=39 // pred_fallthru
            _
          %624 = vnop
        $region40: #{multi_head_attention.4} parent=19 // pred_fallthru
          _
        // Predicated region
        $region75: #{multi_head_attention.4} parent=19 // pred_check
          %p625 = pneg %p208
        $region76: #{multi_head_attention.4} parent=19 // pred_check_branch
          %627 = sbr.rel (%p625) target = $region78
        $region77: #{multi_head_attention.4} parent=19 // pred_region
          %s628 = sand.u32 %s198, 1
          %s629 = sand.u32 %s198, 1
          %s630 = smul.addr %s629, 512
          %s631 = scalar_lea.vmem [#allocation7], %s630
          %s632 = smul.u32 16, %s23
          %s633 = smul.addr %s21, 128
          %s634 = sadd.s32 %s632, %s633
          %s635 = smul.addr %s634, 8
          %s636 = scalar_lea.vmem %s6, %s635
          // Predicated region
          $region79: #{multi_head_attention.4} parent=77 // pred_check
            _
          $region80: #{multi_head_attention.4} parent=77 // pred_check_branch
            %638 = sbr.rel (0) target = $region82
          $region81: #{multi_head_attention.4} parent=77 // pred_region
            // Predicated region
            $region83: #{multi_head_attention.4} parent=81 // pred_check
              _
            $region84: #{multi_head_attention.4} parent=81 // pred_check_branch
              %640 = sbr.rel (0) target = $region86
            $region85: #{multi_head_attention.4} parent=81 // pred_region
              // Predicated region
              $region98: #{multi_head_attention.4} parent=85 // pred_check
                _
              $region99: #{multi_head_attention.4} parent=85 // pred_check_branch
                %782 = sbr.rel (0) target = $region101
              $region100: #{multi_head_attention.4} parent=85 // pred_region
                loop: start=0, step=1, limit=1
                $region102: #{multi_head_attention.4} parent=100 // loop_pre_header
                  _
                $region103: #{multi_head_attention.4} parent=100 // loop_header
                  %s784 = sphi 0, %s788
                  %p785 = scmp.ge.s32.totalorder %s784, 1
                  %s789 = sphi %s636, %s636
                  %s790 = sphi %s631, %s631
                $region104: #{multi_head_attention.4} parent=100 // loop_header_branch
                  %787 = sbr.rel (%p785) target = $region108
                $region105: #{multi_head_attention.4} parent=100 // loop_body
                  %v791 = vld [vmem:[%s789] sm:$0xff]
                  %792 = vst [vmem:[%s790] sm:$0xff] %v791
                  %v793 = vld [vmem:[%s789 + $0x8] sm:$0xff]
                  %794 = vst [vmem:[%s790 + $0x8] sm:$0xff] %v793
                  %v795 = vld [vmem:[%s789 + $0x10] sm:$0xff]
                  %796 = vst [vmem:[%s790 + $0x10] sm:$0xff] %v795
                  %v797 = vld [vmem:[%s789 + $0x18] sm:$0xff]
                  %798 = vst [vmem:[%s790 + $0x18] sm:$0xff] %v797
                  %v799 = vld [vmem:[%s789 + $0x20] sm:$0xff]
                  %800 = vst [vmem:[%s790 + $0x20] sm:$0xff] %v799
                  %v801 = vld [vmem:[%s789 + $0x28] sm:$0xff]
                  %802 = vst [vmem:[%s790 + $0x28] sm:$0xff] %v801
                  %v803 = vld [vmem:[%s789 + $0x30] sm:$0xff]
                  %804 = vst [vmem:[%s790 + $0x30] sm:$0xff] %v803
                  %v805 = vld [vmem:[%s789 + $0x38] sm:$0xff]
                  %806 = vst [vmem:[%s790 + $0x38] sm:$0xff] %v805
                  %v807 = vld [vmem:[%s789 + $0x40] sm:$0xff]
                  %808 = vst [vmem:[%s790 + $0x40] sm:$0xff] %v807
                  %v809 = vld [vmem:[%s789 + $0x48] sm:$0xff]
                  %810 = vst [vmem:[%s790 + $0x48] sm:$0xff] %v809
                  %v811 = vld [vmem:[%s789 + $0x50] sm:$0xff]
                  %812 = vst [vmem:[%s790 + $0x50] sm:$0xff] %v811
                  %v813 = vld [vmem:[%s789 + $0x58] sm:$0xff]
                  %814 = vst [vmem:[%s790 + $0x58] sm:$0xff] %v813
                  %v815 = vld [vmem:[%s789 + $0x60] sm:$0xff]
                  %816 = vst [vmem:[%s790 + $0x60] sm:$0xff] %v815
                  %v817 = vld [vmem:[%s789 + $0x68] sm:$0xff]
                  %818 = vst [vmem:[%s790 + $0x68] sm:$0xff] %v817
                  %v819 = vld [vmem:[%s789 + $0x70] sm:$0xff]
                  %820 = vst [vmem:[%s790 + $0x70] sm:$0xff] %v819
                  %v821 = vld [vmem:[%s789 + $0x78] sm:$0xff]
                  %822 = vst [vmem:[%s790 + $0x78] sm:$0xff] %v821
                  %v823 = vld [vmem:[%s789 + $0x100] sm:$0xff]
                  %824 = vst [vmem:[%s790 + $0x80] sm:$0xff] %v823
                  %v825 = vld [vmem:[%s789 + $0x108] sm:$0xff]
                  %826 = vst [vmem:[%s790 + $0x88] sm:$0xff] %v825
                  %v827 = vld [vmem:[%s789 + $0x110] sm:$0xff]
                  %828 = vst [vmem:[%s790 + $0x90] sm:$0xff] %v827
                  %v829 = vld [vmem:[%s789 + $0x118] sm:$0xff]
                  %830 = vst [vmem:[%s790 + $0x98] sm:$0xff] %v829
                  %v831 = vld [vmem:[%s789 + $0x120] sm:$0xff]
                  %832 = vst [vmem:[%s790 + $0xa0] sm:$0xff] %v831
                  %v833 = vld [vmem:[%s789 + $0x128] sm:$0xff]
                  %834 = vst [vmem:[%s790 + $0xa8] sm:$0xff] %v833
                  %v835 = vld [vmem:[%s789 + $0x130] sm:$0xff]
                  %836 = vst [vmem:[%s790 + $0xb0] sm:$0xff] %v835
                  %v837 = vld [vmem:[%s789 + $0x138] sm:$0xff]
                  %838 = vst [vmem:[%s790 + $0xb8] sm:$0xff] %v837
                  %v839 = vld [vmem:[%s789 + $0x140] sm:$0xff]
                  %840 = vst [vmem:[%s790 + $0xc0] sm:$0xff] %v839
                  %v841 = vld [vmem:[%s789 + $0x148] sm:$0xff]
                  %842 = vst [vmem:[%s790 + $0xc8] sm:$0xff] %v841
                  %v843 = vld [vmem:[%s789 + $0x150] sm:$0xff]
                  %844 = vst [vmem:[%s790 + $0xd0] sm:$0xff] %v843
                  %v845 = vld [vmem:[%s789 + $0x158] sm:$0xff]
                  %846 = vst [vmem:[%s790 + $0xd8] sm:$0xff] %v845
                  %v847 = vld [vmem:[%s789 + $0x160] sm:$0xff]
                  %848 = vst [vmem:[%s790 + $0xe0] sm:$0xff] %v847
                  %v849 = vld [vmem:[%s789 + $0x168] sm:$0xff]
                  %850 = vst [vmem:[%s790 + $0xe8] sm:$0xff] %v849
                  %v851 = vld [vmem:[%s789 + $0x170] sm:$0xff]
                  %852 = vst [vmem:[%s790 + $0xf0] sm:$0xff] %v851
                  %v853 = vld [vmem:[%s789 + $0x178] sm:$0xff]
                  %854 = vst [vmem:[%s790 + $0xf8] sm:$0xff] %v853
                  %v855 = vld [vmem:[%s789 + $0x200] sm:$0xff]
                  %856 = vst [vmem:[%s790 + $0x100] sm:$0xff] %v855
                  %v857 = vld [vmem:[%s789 + $0x208] sm:$0xff]
                  %858 = vst [vmem:[%s790 + $0x108] sm:$0xff] %v857
                  %v859 = vld [vmem:[%s789 + $0x210] sm:$0xff]
                  %860 = vst [vmem:[%s790 + $0x110] sm:$0xff] %v859
                  %v861 = vld [vmem:[%s789 + $0x218] sm:$0xff]
                  %862 = vst [vmem:[%s790 + $0x118] sm:$0xff] %v861
                  %v863 = vld [vmem:[%s789 + $0x220] sm:$0xff]
                  %864 = vst [vmem:[%s790 + $0x120] sm:$0xff] %v863
                  %v865 = vld [vmem:[%s789 + $0x228] sm:$0xff]
                  %866 = vst [vmem:[%s790 + $0x128] sm:$0xff] %v865
                  %v867 = vld [vmem:[%s789 + $0x230] sm:$0xff]
                  %868 = vst [vmem:[%s790 + $0x130] sm:$0xff] %v867
                  %v869 = vld [vmem:[%s789 + $0x238] sm:$0xff]
                  %870 = vst [vmem:[%s790 + $0x138] sm:$0xff] %v869
                  %v871 = vld [vmem:[%s789 + $0x240] sm:$0xff]
                  %872 = vst [vmem:[%s790 + $0x140] sm:$0xff] %v871
                  %v873 = vld [vmem:[%s789 + $0x248] sm:$0xff]
                  %874 = vst [vmem:[%s790 + $0x148] sm:$0xff] %v873
                  %v875 = vld [vmem:[%s789 + $0x250] sm:$0xff]
                  %876 = vst [vmem:[%s790 + $0x150] sm:$0xff] %v875
                  %v877 = vld [vmem:[%s789 + $0x258] sm:$0xff]
                  %878 = vst [vmem:[%s790 + $0x158] sm:$0xff] %v877
                  %v879 = vld [vmem:[%s789 + $0x260] sm:$0xff]
                  %880 = vst [vmem:[%s790 + $0x160] sm:$0xff] %v879
                  %v881 = vld [vmem:[%s789 + $0x268] sm:$0xff]
                  %882 = vst [vmem:[%s790 + $0x168] sm:$0xff] %v881
                  %v883 = vld [vmem:[%s789 + $0x270] sm:$0xff]
                  %884 = vst [vmem:[%s790 + $0x170] sm:$0xff] %v883
                  %v885 = vld [vmem:[%s789 + $0x278] sm:$0xff]
                  %886 = vst [vmem:[%s790 + $0x178] sm:$0xff] %v885
                  %v887 = vld [vmem:[%s789 + $0x300] sm:$0xff]
                  %888 = vst [vmem:[%s790 + $0x180] sm:$0xff] %v887
                  %v889 = vld [vmem:[%s789 + $0x308] sm:$0xff]
                  %890 = vst [vmem:[%s790 + $0x188] sm:$0xff] %v889
                  %v891 = vld [vmem:[%s789 + $0x310] sm:$0xff]
                  %892 = vst [vmem:[%s790 + $0x190] sm:$0xff] %v891
                  %v893 = vld [vmem:[%s789 + $0x318] sm:$0xff]
                  %894 = vst [vmem:[%s790 + $0x198] sm:$0xff] %v893
                  %v895 = vld [vmem:[%s789 + $0x320] sm:$0xff]
                  %896 = vst [vmem:[%s790 + $0x1a0] sm:$0xff] %v895
                  %v897 = vld [vmem:[%s789 + $0x328] sm:$0xff]
                  %898 = vst [vmem:[%s790 + $0x1a8] sm:$0xff] %v897
                  %v899 = vld [vmem:[%s789 + $0x330] sm:$0xff]
                  %900 = vst [vmem:[%s790 + $0x1b0] sm:$0xff] %v899
                  %v901 = vld [vmem:[%s789 + $0x338] sm:$0xff]
                  %902 = vst [vmem:[%s790 + $0x1b8] sm:$0xff] %v901
                  %v903 = vld [vmem:[%s789 + $0x340] sm:$0xff]
                  %904 = vst [vmem:[%s790 + $0x1c0] sm:$0xff] %v903
                  %v905 = vld [vmem:[%s789 + $0x348] sm:$0xff]
                  %906 = vst [vmem:[%s790 + $0x1c8] sm:$0xff] %v905
                  %v907 = vld [vmem:[%s789 + $0x350] sm:$0xff]
                  %908 = vst [vmem:[%s790 + $0x1d0] sm:$0xff] %v907
                  %v909 = vld [vmem:[%s789 + $0x358] sm:$0xff]
                  %910 = vst [vmem:[%s790 + $0x1d8] sm:$0xff] %v909
                  %v911 = vld [vmem:[%s789 + $0x360] sm:$0xff]
                  %912 = vst [vmem:[%s790 + $0x1e0] sm:$0xff] %v911
                  %v913 = vld [vmem:[%s789 + $0x368] sm:$0xff]
                  %914 = vst [vmem:[%s790 + $0x1e8] sm:$0xff] %v913
                  %v915 = vld [vmem:[%s789 + $0x370] sm:$0xff]
                  %916 = vst [vmem:[%s790 + $0x1f0] sm:$0xff] %v915
                  %v917 = vld [vmem:[%s789 + $0x378] sm:$0xff]
                  %918 = vst [vmem:[%s790 + $0x1f8] sm:$0xff] %v917
                $region106: #{multi_head_attention.4} parent=100 // loop_footer
                  %s788 = sadd.s32 1, %s784
                $region107: #{multi_head_attention.4} parent=100 // loop_footer_branch
                  %783 = sbr.rel target = $region103
                $region108: #{multi_head_attention.4} parent=100 // loop_exit
                  _
              $region101: #{multi_head_attention.4} parent=85 // pred_fallthru
                _
              // Predicated region
              $region109: #{multi_head_attention.4} parent=85 // pred_check
                _
              $region110: #{multi_head_attention.4} parent=85 // pred_check_branch
                %920 = sbr.rel target = $region112
              $region111: #{multi_head_attention.4} parent=85 // pred_region
                _
              $region112: #{multi_head_attention.4} parent=85 // pred_fallthru
                _
            $region86: #{multi_head_attention.4} parent=81 // pred_fallthru
              _
            // Predicated region
            $region87: #{multi_head_attention.4} parent=81 // pred_check
              _
            $region88: #{multi_head_attention.4} parent=81 // pred_check_branch
              %642 = sbr.rel target = $region90
            $region89: #{multi_head_attention.4} parent=81 // pred_region
              %s644 = ssub.s32 256, 1
              loop: start=0, step=1, limit=1
              $region91: #{multi_head_attention.4} parent=89 // loop_pre_header
                _
              $region92: #{multi_head_attention.4} parent=89 // loop_header
                %s646 = sphi 0, %s650
                %p647 = scmp.ge.s32.totalorder %s646, 1
                %s651 = sphi %s636, %s636
                %s652 = sphi %s631, %s631
              $region93: #{multi_head_attention.4} parent=89 // loop_header_branch
                %649 = sbr.rel (%p647) target = $region97
              $region94: #{multi_head_attention.4} parent=89 // loop_body
                %v653 = vld [vmem:[%s651] sm:%s644]
                %654 = vst [vmem:[%s652] sm:%s644] %v653
                %v655 = vld [vmem:[%s651 + $0x8] sm:%s644]
                %656 = vst [vmem:[%s652 + $0x8] sm:%s644] %v655
                %v657 = vld [vmem:[%s651 + $0x10] sm:%s644]
                %658 = vst [vmem:[%s652 + $0x10] sm:%s644] %v657
                %v659 = vld [vmem:[%s651 + $0x18] sm:%s644]
                %660 = vst [vmem:[%s652 + $0x18] sm:%s644] %v659
                %v661 = vld [vmem:[%s651 + $0x20] sm:%s644]
                %662 = vst [vmem:[%s652 + $0x20] sm:%s644] %v661
                %v663 = vld [vmem:[%s651 + $0x28] sm:%s644]
                %664 = vst [vmem:[%s652 + $0x28] sm:%s644] %v663
                %v665 = vld [vmem:[%s651 + $0x30] sm:%s644]
                %666 = vst [vmem:[%s652 + $0x30] sm:%s644] %v665
                %v667 = vld [vmem:[%s651 + $0x38] sm:%s644]
                %668 = vst [vmem:[%s652 + $0x38] sm:%s644] %v667
                %v669 = vld [vmem:[%s651 + $0x40] sm:%s644]
                %670 = vst [vmem:[%s652 + $0x40] sm:%s644] %v669
                %v671 = vld [vmem:[%s651 + $0x48] sm:%s644]
                %672 = vst [vmem:[%s652 + $0x48] sm:%s644] %v671
                %v673 = vld [vmem:[%s651 + $0x50] sm:%s644]
                %674 = vst [vmem:[%s652 + $0x50] sm:%s644] %v673
                %v675 = vld [vmem:[%s651 + $0x58] sm:%s644]
                %676 = vst [vmem:[%s652 + $0x58] sm:%s644] %v675
                %v677 = vld [vmem:[%s651 + $0x60] sm:%s644]
                %678 = vst [vmem:[%s652 + $0x60] sm:%s644] %v677
                %v679 = vld [vmem:[%s651 + $0x68] sm:%s644]
                %680 = vst [vmem:[%s652 + $0x68] sm:%s644] %v679
                %v681 = vld [vmem:[%s651 + $0x70] sm:%s644]
                %682 = vst [vmem:[%s652 + $0x70] sm:%s644] %v681
                %v683 = vld [vmem:[%s651 + $0x78] sm:%s644]
                %684 = vst [vmem:[%s652 + $0x78] sm:%s644] %v683
                %v685 = vld [vmem:[%s651 + $0x100] sm:%s644]
                %686 = vst [vmem:[%s652 + $0x80] sm:%s644] %v685
                %v687 = vld [vmem:[%s651 + $0x108] sm:%s644]
                %688 = vst [vmem:[%s652 + $0x88] sm:%s644] %v687
                %v689 = vld [vmem:[%s651 + $0x110] sm:%s644]
                %690 = vst [vmem:[%s652 + $0x90] sm:%s644] %v689
                %v691 = vld [vmem:[%s651 + $0x118] sm:%s644]
                %692 = vst [vmem:[%s652 + $0x98] sm:%s644] %v691
                %v693 = vld [vmem:[%s651 + $0x120] sm:%s644]
                %694 = vst [vmem:[%s652 + $0xa0] sm:%s644] %v693
                %v695 = vld [vmem:[%s651 + $0x128] sm:%s644]
                %696 = vst [vmem:[%s652 + $0xa8] sm:%s644] %v695
                %v697 = vld [vmem:[%s651 + $0x130] sm:%s644]
                %698 = vst [vmem:[%s652 + $0xb0] sm:%s644] %v697
                %v699 = vld [vmem:[%s651 + $0x138] sm:%s644]
                %700 = vst [vmem:[%s652 + $0xb8] sm:%s644] %v699
                %v701 = vld [vmem:[%s651 + $0x140] sm:%s644]
                %702 = vst [vmem:[%s652 + $0xc0] sm:%s644] %v701
                %v703 = vld [vmem:[%s651 + $0x148] sm:%s644]
                %704 = vst [vmem:[%s652 + $0xc8] sm:%s644] %v703
                %v705 = vld [vmem:[%s651 + $0x150] sm:%s644]
                %706 = vst [vmem:[%s652 + $0xd0] sm:%s644] %v705
                %v707 = vld [vmem:[%s651 + $0x158] sm:%s644]
                %708 = vst [vmem:[%s652 + $0xd8] sm:%s644] %v707
                %v709 = vld [vmem:[%s651 + $0x160] sm:%s644]
                %710 = vst [vmem:[%s652 + $0xe0] sm:%s644] %v709
                %v711 = vld [vmem:[%s651 + $0x168] sm:%s644]
                %712 = vst [vmem:[%s652 + $0xe8] sm:%s644] %v711
                %v713 = vld [vmem:[%s651 + $0x170] sm:%s644]
                %714 = vst [vmem:[%s652 + $0xf0] sm:%s644] %v713
                %v715 = vld [vmem:[%s651 + $0x178] sm:%s644]
                %716 = vst [vmem:[%s652 + $0xf8] sm:%s644] %v715
                %v717 = vld [vmem:[%s651 + $0x200] sm:%s644]
                %718 = vst [vmem:[%s652 + $0x100] sm:%s644] %v717
                %v719 = vld [vmem:[%s651 + $0x208] sm:%s644]
                %720 = vst [vmem:[%s652 + $0x108] sm:%s644] %v719
                %v721 = vld [vmem:[%s651 + $0x210] sm:%s644]
                %722 = vst [vmem:[%s652 + $0x110] sm:%s644] %v721
                %v723 = vld [vmem:[%s651 + $0x218] sm:%s644]
                %724 = vst [vmem:[%s652 + $0x118] sm:%s644] %v723
                %v725 = vld [vmem:[%s651 + $0x220] sm:%s644]
                %726 = vst [vmem:[%s652 + $0x120] sm:%s644] %v725
                %v727 = vld [vmem:[%s651 + $0x228] sm:%s644]
                %728 = vst [vmem:[%s652 + $0x128] sm:%s644] %v727
                %v729 = vld [vmem:[%s651 + $0x230] sm:%s644]
                %730 = vst [vmem:[%s652 + $0x130] sm:%s644] %v729
                %v731 = vld [vmem:[%s651 + $0x238] sm:%s644]
                %732 = vst [vmem:[%s652 + $0x138] sm:%s644] %v731
                %v733 = vld [vmem:[%s651 + $0x240] sm:%s644]
                %734 = vst [vmem:[%s652 + $0x140] sm:%s644] %v733
                %v735 = vld [vmem:[%s651 + $0x248] sm:%s644]
                %736 = vst [vmem:[%s652 + $0x148] sm:%s644] %v735
                %v737 = vld [vmem:[%s651 + $0x250] sm:%s644]
                %738 = vst [vmem:[%s652 + $0x150] sm:%s644] %v737
                %v739 = vld [vmem:[%s651 + $0x258] sm:%s644]
                %740 = vst [vmem:[%s652 + $0x158] sm:%s644] %v739
                %v741 = vld [vmem:[%s651 + $0x260] sm:%s644]
                %742 = vst [vmem:[%s652 + $0x160] sm:%s644] %v741
                %v743 = vld [vmem:[%s651 + $0x268] sm:%s644]
                %744 = vst [vmem:[%s652 + $0x168] sm:%s644] %v743
                %v745 = vld [vmem:[%s651 + $0x270] sm:%s644]
                %746 = vst [vmem:[%s652 + $0x170] sm:%s644] %v745
                %v747 = vld [vmem:[%s651 + $0x278] sm:%s644]
                %748 = vst [vmem:[%s652 + $0x178] sm:%s644] %v747
                %v749 = vld [vmem:[%s651 + $0x300] sm:%s644]
                %750 = vst [vmem:[%s652 + $0x180] sm:%s644] %v749
                %v751 = vld [vmem:[%s651 + $0x308] sm:%s644]
                %752 = vst [vmem:[%s652 + $0x188] sm:%s644] %v751
                %v753 = vld [vmem:[%s651 + $0x310] sm:%s644]
                %754 = vst [vmem:[%s652 + $0x190] sm:%s644] %v753
                %v755 = vld [vmem:[%s651 + $0x318] sm:%s644]
                %756 = vst [vmem:[%s652 + $0x198] sm:%s644] %v755
                %v757 = vld [vmem:[%s651 + $0x320] sm:%s644]
                %758 = vst [vmem:[%s652 + $0x1a0] sm:%s644] %v757
                %v759 = vld [vmem:[%s651 + $0x328] sm:%s644]
                %760 = vst [vmem:[%s652 + $0x1a8] sm:%s644] %v759
                %v761 = vld [vmem:[%s651 + $0x330] sm:%s644]
                %762 = vst [vmem:[%s652 + $0x1b0] sm:%s644] %v761
                %v763 = vld [vmem:[%s651 + $0x338] sm:%s644]
                %764 = vst [vmem:[%s652 + $0x1b8] sm:%s644] %v763
                %v765 = vld [vmem:[%s651 + $0x340] sm:%s644]
                %766 = vst [vmem:[%s652 + $0x1c0] sm:%s644] %v765
                %v767 = vld [vmem:[%s651 + $0x348] sm:%s644]
                %768 = vst [vmem:[%s652 + $0x1c8] sm:%s644] %v767
                %v769 = vld [vmem:[%s651 + $0x350] sm:%s644]
                %770 = vst [vmem:[%s652 + $0x1d0] sm:%s644] %v769
                %v771 = vld [vmem:[%s651 + $0x358] sm:%s644]
                %772 = vst [vmem:[%s652 + $0x1d8] sm:%s644] %v771
                %v773 = vld [vmem:[%s651 + $0x360] sm:%s644]
                %774 = vst [vmem:[%s652 + $0x1e0] sm:%s644] %v773
                %v775 = vld [vmem:[%s651 + $0x368] sm:%s644]
                %776 = vst [vmem:[%s652 + $0x1e8] sm:%s644] %v775
                %v777 = vld [vmem:[%s651 + $0x370] sm:%s644]
                %778 = vst [vmem:[%s652 + $0x1f0] sm:%s644] %v777
                %v779 = vld [vmem:[%s651 + $0x378] sm:%s644]
                %780 = vst [vmem:[%s652 + $0x1f8] sm:%s644] %v779
              $region95: #{multi_head_attention.4} parent=89 // loop_footer
                %s650 = sadd.s32 1, %s646
              $region96: #{multi_head_attention.4} parent=89 // loop_footer_branch
                %645 = sbr.rel target = $region92
              $region97: #{multi_head_attention.4} parent=89 // loop_exit
                _
            $region90: #{multi_head_attention.4} parent=81 // pred_fallthru
              _
          $region82: #{multi_head_attention.4} parent=77 // pred_fallthru
            _
          %921 = vnop
        $region78: #{multi_head_attention.4} parent=19 // pred_fallthru
          _
        // Predicated region
        $region113: #{multi_head_attention.4} parent=19 // pred_check
          %p922 = pneg %p236
        $region114: #{multi_head_attention.4} parent=19 // pred_check_branch
          %924 = sbr.rel (%p922) target = $region116
        $region115: #{multi_head_attention.4} parent=19 // pred_region
          %s925 = sand.u32 %s226, 1
          %s926 = sand.u32 %s226, 1
          %s927 = smul.addr %s926, 512
          %s928 = scalar_lea.vmem [#allocation8], %s927
          %s929 = smul.u32 16, %s23
          %s930 = smul.addr %s21, 128
          %s931 = sadd.s32 %s929, %s930
          %s932 = smul.addr %s931, 8
          %s933 = scalar_lea.vmem %s7, %s932
          // Predicated region
          $region117: #{multi_head_attention.4} parent=115 // pred_check
            _
          $region118: #{multi_head_attention.4} parent=115 // pred_check_branch
            %935 = sbr.rel (0) target = $region120
          $region119: #{multi_head_attention.4} parent=115 // pred_region
            // Predicated region
            $region121: #{multi_head_attention.4} parent=119 // pred_check
              _
            $region122: #{multi_head_attention.4} parent=119 // pred_check_branch
              %937 = sbr.rel (0) target = $region124
            $region123: #{multi_head_attention.4} parent=119 // pred_region
              // Predicated region
              $region136: #{multi_head_attention.4} parent=123 // pred_check
                _
              $region137: #{multi_head_attention.4} parent=123 // pred_check_branch
                %1079 = sbr.rel (0) target = $region139
              $region138: #{multi_head_attention.4} parent=123 // pred_region
                loop: start=0, step=1, limit=1
                $region140: #{multi_head_attention.4} parent=138 // loop_pre_header
                  _
                $region141: #{multi_head_attention.4} parent=138 // loop_header
                  %s1081 = sphi 0, %s1085
                  %p1082 = scmp.ge.s32.totalorder %s1081, 1
                  %s1086 = sphi %s933, %s933
                  %s1087 = sphi %s928, %s928
                $region142: #{multi_head_attention.4} parent=138 // loop_header_branch
                  %1084 = sbr.rel (%p1082) target = $region146
                $region143: #{multi_head_attention.4} parent=138 // loop_body
                  %v1088 = vld [vmem:[%s1086] sm:$0xff]
                  %1089 = vst [vmem:[%s1087] sm:$0xff] %v1088
                  %v1090 = vld [vmem:[%s1086 + $0x8] sm:$0xff]
                  %1091 = vst [vmem:[%s1087 + $0x8] sm:$0xff] %v1090
                  %v1092 = vld [vmem:[%s1086 + $0x10] sm:$0xff]
                  %1093 = vst [vmem:[%s1087 + $0x10] sm:$0xff] %v1092
                  %v1094 = vld [vmem:[%s1086 + $0x18] sm:$0xff]
                  %1095 = vst [vmem:[%s1087 + $0x18] sm:$0xff] %v1094
                  %v1096 = vld [vmem:[%s1086 + $0x20] sm:$0xff]
                  %1097 = vst [vmem:[%s1087 + $0x20] sm:$0xff] %v1096
                  %v1098 = vld [vmem:[%s1086 + $0x28] sm:$0xff]
                  %1099 = vst [vmem:[%s1087 + $0x28] sm:$0xff] %v1098
                  %v1100 = vld [vmem:[%s1086 + $0x30] sm:$0xff]
                  %1101 = vst [vmem:[%s1087 + $0x30] sm:$0xff] %v1100
                  %v1102 = vld [vmem:[%s1086 + $0x38] sm:$0xff]
                  %1103 = vst [vmem:[%s1087 + $0x38] sm:$0xff] %v1102
                  %v1104 = vld [vmem:[%s1086 + $0x40] sm:$0xff]
                  %1105 = vst [vmem:[%s1087 + $0x40] sm:$0xff] %v1104
                  %v1106 = vld [vmem:[%s1086 + $0x48] sm:$0xff]
                  %1107 = vst [vmem:[%s1087 + $0x48] sm:$0xff] %v1106
                  %v1108 = vld [vmem:[%s1086 + $0x50] sm:$0xff]
                  %1109 = vst [vmem:[%s1087 + $0x50] sm:$0xff] %v1108
                  %v1110 = vld [vmem:[%s1086 + $0x58] sm:$0xff]
                  %1111 = vst [vmem:[%s1087 + $0x58] sm:$0xff] %v1110
                  %v1112 = vld [vmem:[%s1086 + $0x60] sm:$0xff]
                  %1113 = vst [vmem:[%s1087 + $0x60] sm:$0xff] %v1112
                  %v1114 = vld [vmem:[%s1086 + $0x68] sm:$0xff]
                  %1115 = vst [vmem:[%s1087 + $0x68] sm:$0xff] %v1114
                  %v1116 = vld [vmem:[%s1086 + $0x70] sm:$0xff]
                  %1117 = vst [vmem:[%s1087 + $0x70] sm:$0xff] %v1116
                  %v1118 = vld [vmem:[%s1086 + $0x78] sm:$0xff]
                  %1119 = vst [vmem:[%s1087 + $0x78] sm:$0xff] %v1118
                  %v1120 = vld [vmem:[%s1086 + $0x100] sm:$0xff]
                  %1121 = vst [vmem:[%s1087 + $0x80] sm:$0xff] %v1120
                  %v1122 = vld [vmem:[%s1086 + $0x108] sm:$0xff]
                  %1123 = vst [vmem:[%s1087 + $0x88] sm:$0xff] %v1122
                  %v1124 = vld [vmem:[%s1086 + $0x110] sm:$0xff]
                  %1125 = vst [vmem:[%s1087 + $0x90] sm:$0xff] %v1124
                  %v1126 = vld [vmem:[%s1086 + $0x118] sm:$0xff]
                  %1127 = vst [vmem:[%s1087 + $0x98] sm:$0xff] %v1126
                  %v1128 = vld [vmem:[%s1086 + $0x120] sm:$0xff]
                  %1129 = vst [vmem:[%s1087 + $0xa0] sm:$0xff] %v1128
                  %v1130 = vld [vmem:[%s1086 + $0x128] sm:$0xff]
                  %1131 = vst [vmem:[%s1087 + $0xa8] sm:$0xff] %v1130
                  %v1132 = vld [vmem:[%s1086 + $0x130] sm:$0xff]
                  %1133 = vst [vmem:[%s1087 + $0xb0] sm:$0xff] %v1132
                  %v1134 = vld [vmem:[%s1086 + $0x138] sm:$0xff]
                  %1135 = vst [vmem:[%s1087 + $0xb8] sm:$0xff] %v1134
                  %v1136 = vld [vmem:[%s1086 + $0x140] sm:$0xff]
                  %1137 = vst [vmem:[%s1087 + $0xc0] sm:$0xff] %v1136
                  %v1138 = vld [vmem:[%s1086 + $0x148] sm:$0xff]
                  %1139 = vst [vmem:[%s1087 + $0xc8] sm:$0xff] %v1138
                  %v1140 = vld [vmem:[%s1086 + $0x150] sm:$0xff]
                  %1141 = vst [vmem:[%s1087 + $0xd0] sm:$0xff] %v1140
                  %v1142 = vld [vmem:[%s1086 + $0x158] sm:$0xff]
                  %1143 = vst [vmem:[%s1087 + $0xd8] sm:$0xff] %v1142
                  %v1144 = vld [vmem:[%s1086 + $0x160] sm:$0xff]
                  %1145 = vst [vmem:[%s1087 + $0xe0] sm:$0xff] %v1144
                  %v1146 = vld [vmem:[%s1086 + $0x168] sm:$0xff]
                  %1147 = vst [vmem:[%s1087 + $0xe8] sm:$0xff] %v1146
                  %v1148 = vld [vmem:[%s1086 + $0x170] sm:$0xff]
                  %1149 = vst [vmem:[%s1087 + $0xf0] sm:$0xff] %v1148
                  %v1150 = vld [vmem:[%s1086 + $0x178] sm:$0xff]
                  %1151 = vst [vmem:[%s1087 + $0xf8] sm:$0xff] %v1150
                  %v1152 = vld [vmem:[%s1086 + $0x200] sm:$0xff]
                  %1153 = vst [vmem:[%s1087 + $0x100] sm:$0xff] %v1152
                  %v1154 = vld [vmem:[%s1086 + $0x208] sm:$0xff]
                  %1155 = vst [vmem:[%s1087 + $0x108] sm:$0xff] %v1154
                  %v1156 = vld [vmem:[%s1086 + $0x210] sm:$0xff]
                  %1157 = vst [vmem:[%s1087 + $0x110] sm:$0xff] %v1156
                  %v1158 = vld [vmem:[%s1086 + $0x218] sm:$0xff]
                  %1159 = vst [vmem:[%s1087 + $0x118] sm:$0xff] %v1158
                  %v1160 = vld [vmem:[%s1086 + $0x220] sm:$0xff]
                  %1161 = vst [vmem:[%s1087 + $0x120] sm:$0xff] %v1160
                  %v1162 = vld [vmem:[%s1086 + $0x228] sm:$0xff]
                  %1163 = vst [vmem:[%s1087 + $0x128] sm:$0xff] %v1162
                  %v1164 = vld [vmem:[%s1086 + $0x230] sm:$0xff]
                  %1165 = vst [vmem:[%s1087 + $0x130] sm:$0xff] %v1164
                  %v1166 = vld [vmem:[%s1086 + $0x238] sm:$0xff]
                  %1167 = vst [vmem:[%s1087 + $0x138] sm:$0xff] %v1166
                  %v1168 = vld [vmem:[%s1086 + $0x240] sm:$0xff]
                  %1169 = vst [vmem:[%s1087 + $0x140] sm:$0xff] %v1168
                  %v1170 = vld [vmem:[%s1086 + $0x248] sm:$0xff]
                  %1171 = vst [vmem:[%s1087 + $0x148] sm:$0xff] %v1170
                  %v1172 = vld [vmem:[%s1086 + $0x250] sm:$0xff]
                  %1173 = vst [vmem:[%s1087 + $0x150] sm:$0xff] %v1172
                  %v1174 = vld [vmem:[%s1086 + $0x258] sm:$0xff]
                  %1175 = vst [vmem:[%s1087 + $0x158] sm:$0xff] %v1174
                  %v1176 = vld [vmem:[%s1086 + $0x260] sm:$0xff]
                  %1177 = vst [vmem:[%s1087 + $0x160] sm:$0xff] %v1176
                  %v1178 = vld [vmem:[%s1086 + $0x268] sm:$0xff]
                  %1179 = vst [vmem:[%s1087 + $0x168] sm:$0xff] %v1178
                  %v1180 = vld [vmem:[%s1086 + $0x270] sm:$0xff]
                  %1181 = vst [vmem:[%s1087 + $0x170] sm:$0xff] %v1180
                  %v1182 = vld [vmem:[%s1086 + $0x278] sm:$0xff]
                  %1183 = vst [vmem:[%s1087 + $0x178] sm:$0xff] %v1182
                  %v1184 = vld [vmem:[%s1086 + $0x300] sm:$0xff]
                  %1185 = vst [vmem:[%s1087 + $0x180] sm:$0xff] %v1184
                  %v1186 = vld [vmem:[%s1086 + $0x308] sm:$0xff]
                  %1187 = vst [vmem:[%s1087 + $0x188] sm:$0xff] %v1186
                  %v1188 = vld [vmem:[%s1086 + $0x310] sm:$0xff]
                  %1189 = vst [vmem:[%s1087 + $0x190] sm:$0xff] %v1188
                  %v1190 = vld [vmem:[%s1086 + $0x318] sm:$0xff]
                  %1191 = vst [vmem:[%s1087 + $0x198] sm:$0xff] %v1190
                  %v1192 = vld [vmem:[%s1086 + $0x320] sm:$0xff]
                  %1193 = vst [vmem:[%s1087 + $0x1a0] sm:$0xff] %v1192
                  %v1194 = vld [vmem:[%s1086 + $0x328] sm:$0xff]
                  %1195 = vst [vmem:[%s1087 + $0x1a8] sm:$0xff] %v1194
                  %v1196 = vld [vmem:[%s1086 + $0x330] sm:$0xff]
                  %1197 = vst [vmem:[%s1087 + $0x1b0] sm:$0xff] %v1196
                  %v1198 = vld [vmem:[%s1086 + $0x338] sm:$0xff]
                  %1199 = vst [vmem:[%s1087 + $0x1b8] sm:$0xff] %v1198
                  %v1200 = vld [vmem:[%s1086 + $0x340] sm:$0xff]
                  %1201 = vst [vmem:[%s1087 + $0x1c0] sm:$0xff] %v1200
                  %v1202 = vld [vmem:[%s1086 + $0x348] sm:$0xff]
                  %1203 = vst [vmem:[%s1087 + $0x1c8] sm:$0xff] %v1202
                  %v1204 = vld [vmem:[%s1086 + $0x350] sm:$0xff]
                  %1205 = vst [vmem:[%s1087 + $0x1d0] sm:$0xff] %v1204
                  %v1206 = vld [vmem:[%s1086 + $0x358] sm:$0xff]
                  %1207 = vst [vmem:[%s1087 + $0x1d8] sm:$0xff] %v1206
                  %v1208 = vld [vmem:[%s1086 + $0x360] sm:$0xff]
                  %1209 = vst [vmem:[%s1087 + $0x1e0] sm:$0xff] %v1208
                  %v1210 = vld [vmem:[%s1086 + $0x368] sm:$0xff]
                  %1211 = vst [vmem:[%s1087 + $0x1e8] sm:$0xff] %v1210
                  %v1212 = vld [vmem:[%s1086 + $0x370] sm:$0xff]
                  %1213 = vst [vmem:[%s1087 + $0x1f0] sm:$0xff] %v1212
                  %v1214 = vld [vmem:[%s1086 + $0x378] sm:$0xff]
                  %1215 = vst [vmem:[%s1087 + $0x1f8] sm:$0xff] %v1214
                $region144: #{multi_head_attention.4} parent=138 // loop_footer
                  %s1085 = sadd.s32 1, %s1081
                $region145: #{multi_head_attention.4} parent=138 // loop_footer_branch
                  %1080 = sbr.rel target = $region141
                $region146: #{multi_head_attention.4} parent=138 // loop_exit
                  _
              $region139: #{multi_head_attention.4} parent=123 // pred_fallthru
                _
              // Predicated region
              $region147: #{multi_head_attention.4} parent=123 // pred_check
                _
              $region148: #{multi_head_attention.4} parent=123 // pred_check_branch
                %1217 = sbr.rel target = $region150
              $region149: #{multi_head_attention.4} parent=123 // pred_region
                _
              $region150: #{multi_head_attention.4} parent=123 // pred_fallthru
                _
            $region124: #{multi_head_attention.4} parent=119 // pred_fallthru
              _
            // Predicated region
            $region125: #{multi_head_attention.4} parent=119 // pred_check
              _
            $region126: #{multi_head_attention.4} parent=119 // pred_check_branch
              %939 = sbr.rel target = $region128
            $region127: #{multi_head_attention.4} parent=119 // pred_region
              %s941 = ssub.s32 256, 1
              loop: start=0, step=1, limit=1
              $region129: #{multi_head_attention.4} parent=127 // loop_pre_header
                _
              $region130: #{multi_head_attention.4} parent=127 // loop_header
                %s943 = sphi 0, %s947
                %p944 = scmp.ge.s32.totalorder %s943, 1
                %s948 = sphi %s933, %s933
                %s949 = sphi %s928, %s928
              $region131: #{multi_head_attention.4} parent=127 // loop_header_branch
                %946 = sbr.rel (%p944) target = $region135
              $region132: #{multi_head_attention.4} parent=127 // loop_body
                %v950 = vld [vmem:[%s948] sm:%s941]
                %951 = vst [vmem:[%s949] sm:%s941] %v950
                %v952 = vld [vmem:[%s948 + $0x8] sm:%s941]
                %953 = vst [vmem:[%s949 + $0x8] sm:%s941] %v952
                %v954 = vld [vmem:[%s948 + $0x10] sm:%s941]
                %955 = vst [vmem:[%s949 + $0x10] sm:%s941] %v954
                %v956 = vld [vmem:[%s948 + $0x18] sm:%s941]
                %957 = vst [vmem:[%s949 + $0x18] sm:%s941] %v956
                %v958 = vld [vmem:[%s948 + $0x20] sm:%s941]
                %959 = vst [vmem:[%s949 + $0x20] sm:%s941] %v958
                %v960 = vld [vmem:[%s948 + $0x28] sm:%s941]
                %961 = vst [vmem:[%s949 + $0x28] sm:%s941] %v960
                %v962 = vld [vmem:[%s948 + $0x30] sm:%s941]
                %963 = vst [vmem:[%s949 + $0x30] sm:%s941] %v962
                %v964 = vld [vmem:[%s948 + $0x38] sm:%s941]
                %965 = vst [vmem:[%s949 + $0x38] sm:%s941] %v964
                %v966 = vld [vmem:[%s948 + $0x40] sm:%s941]
                %967 = vst [vmem:[%s949 + $0x40] sm:%s941] %v966
                %v968 = vld [vmem:[%s948 + $0x48] sm:%s941]
                %969 = vst [vmem:[%s949 + $0x48] sm:%s941] %v968
                %v970 = vld [vmem:[%s948 + $0x50] sm:%s941]
                %971 = vst [vmem:[%s949 + $0x50] sm:%s941] %v970
                %v972 = vld [vmem:[%s948 + $0x58] sm:%s941]
                %973 = vst [vmem:[%s949 + $0x58] sm:%s941] %v972
                %v974 = vld [vmem:[%s948 + $0x60] sm:%s941]
                %975 = vst [vmem:[%s949 + $0x60] sm:%s941] %v974
                %v976 = vld [vmem:[%s948 + $0x68] sm:%s941]
                %977 = vst [vmem:[%s949 + $0x68] sm:%s941] %v976
                %v978 = vld [vmem:[%s948 + $0x70] sm:%s941]
                %979 = vst [vmem:[%s949 + $0x70] sm:%s941] %v978
                %v980 = vld [vmem:[%s948 + $0x78] sm:%s941]
                %981 = vst [vmem:[%s949 + $0x78] sm:%s941] %v980
                %v982 = vld [vmem:[%s948 + $0x100] sm:%s941]
                %983 = vst [vmem:[%s949 + $0x80] sm:%s941] %v982
                %v984 = vld [vmem:[%s948 + $0x108] sm:%s941]
                %985 = vst [vmem:[%s949 + $0x88] sm:%s941] %v984
                %v986 = vld [vmem:[%s948 + $0x110] sm:%s941]
                %987 = vst [vmem:[%s949 + $0x90] sm:%s941] %v986
                %v988 = vld [vmem:[%s948 + $0x118] sm:%s941]
                %989 = vst [vmem:[%s949 + $0x98] sm:%s941] %v988
                %v990 = vld [vmem:[%s948 + $0x120] sm:%s941]
                %991 = vst [vmem:[%s949 + $0xa0] sm:%s941] %v990
                %v992 = vld [vmem:[%s948 + $0x128] sm:%s941]
                %993 = vst [vmem:[%s949 + $0xa8] sm:%s941] %v992
                %v994 = vld [vmem:[%s948 + $0x130] sm:%s941]
                %995 = vst [vmem:[%s949 + $0xb0] sm:%s941] %v994
                %v996 = vld [vmem:[%s948 + $0x138] sm:%s941]
                %997 = vst [vmem:[%s949 + $0xb8] sm:%s941] %v996
                %v998 = vld [vmem:[%s948 + $0x140] sm:%s941]
                %999 = vst [vmem:[%s949 + $0xc0] sm:%s941] %v998
                %v1000 = vld [vmem:[%s948 + $0x148] sm:%s941]
                %1001 = vst [vmem:[%s949 + $0xc8] sm:%s941] %v1000
                %v1002 = vld [vmem:[%s948 + $0x150] sm:%s941]
                %1003 = vst [vmem:[%s949 + $0xd0] sm:%s941] %v1002
                %v1004 = vld [vmem:[%s948 + $0x158] sm:%s941]
                %1005 = vst [vmem:[%s949 + $0xd8] sm:%s941] %v1004
                %v1006 = vld [vmem:[%s948 + $0x160] sm:%s941]
                %1007 = vst [vmem:[%s949 + $0xe0] sm:%s941] %v1006
                %v1008 = vld [vmem:[%s948 + $0x168] sm:%s941]
                %1009 = vst [vmem:[%s949 + $0xe8] sm:%s941] %v1008
                %v1010 = vld [vmem:[%s948 + $0x170] sm:%s941]
                %1011 = vst [vmem:[%s949 + $0xf0] sm:%s941] %v1010
                %v1012 = vld [vmem:[%s948 + $0x178] sm:%s941]
                %1013 = vst [vmem:[%s949 + $0xf8] sm:%s941] %v1012
                %v1014 = vld [vmem:[%s948 + $0x200] sm:%s941]
                %1015 = vst [vmem:[%s949 + $0x100] sm:%s941] %v1014
                %v1016 = vld [vmem:[%s948 + $0x208] sm:%s941]
                %1017 = vst [vmem:[%s949 + $0x108] sm:%s941] %v1016
                %v1018 = vld [vmem:[%s948 + $0x210] sm:%s941]
                %1019 = vst [vmem:[%s949 + $0x110] sm:%s941] %v1018
                %v1020 = vld [vmem:[%s948 + $0x218] sm:%s941]
                %1021 = vst [vmem:[%s949 + $0x118] sm:%s941] %v1020
                %v1022 = vld [vmem:[%s948 + $0x220] sm:%s941]
                %1023 = vst [vmem:[%s949 + $0x120] sm:%s941] %v1022
                %v1024 = vld [vmem:[%s948 + $0x228] sm:%s941]
                %1025 = vst [vmem:[%s949 + $0x128] sm:%s941] %v1024
                %v1026 = vld [vmem:[%s948 + $0x230] sm:%s941]
                %1027 = vst [vmem:[%s949 + $0x130] sm:%s941] %v1026
                %v1028 = vld [vmem:[%s948 + $0x238] sm:%s941]
                %1029 = vst [vmem:[%s949 + $0x138] sm:%s941] %v1028
                %v1030 = vld [vmem:[%s948 + $0x240] sm:%s941]
                %1031 = vst [vmem:[%s949 + $0x140] sm:%s941] %v1030
                %v1032 = vld [vmem:[%s948 + $0x248] sm:%s941]
                %1033 = vst [vmem:[%s949 + $0x148] sm:%s941] %v1032
                %v1034 = vld [vmem:[%s948 + $0x250] sm:%s941]
                %1035 = vst [vmem:[%s949 + $0x150] sm:%s941] %v1034
                %v1036 = vld [vmem:[%s948 + $0x258] sm:%s941]
                %1037 = vst [vmem:[%s949 + $0x158] sm:%s941] %v1036
                %v1038 = vld [vmem:[%s948 + $0x260] sm:%s941]
                %1039 = vst [vmem:[%s949 + $0x160] sm:%s941] %v1038
                %v1040 = vld [vmem:[%s948 + $0x268] sm:%s941]
                %1041 = vst [vmem:[%s949 + $0x168] sm:%s941] %v1040
                %v1042 = vld [vmem:[%s948 + $0x270] sm:%s941]
                %1043 = vst [vmem:[%s949 + $0x170] sm:%s941] %v1042
                %v1044 = vld [vmem:[%s948 + $0x278] sm:%s941]
                %1045 = vst [vmem:[%s949 + $0x178] sm:%s941] %v1044
                %v1046 = vld [vmem:[%s948 + $0x300] sm:%s941]
                %1047 = vst [vmem:[%s949 + $0x180] sm:%s941] %v1046
                %v1048 = vld [vmem:[%s948 + $0x308] sm:%s941]
                %1049 = vst [vmem:[%s949 + $0x188] sm:%s941] %v1048
                %v1050 = vld [vmem:[%s948 + $0x310] sm:%s941]
                %1051 = vst [vmem:[%s949 + $0x190] sm:%s941] %v1050
                %v1052 = vld [vmem:[%s948 + $0x318] sm:%s941]
                %1053 = vst [vmem:[%s949 + $0x198] sm:%s941] %v1052
                %v1054 = vld [vmem:[%s948 + $0x320] sm:%s941]
                %1055 = vst [vmem:[%s949 + $0x1a0] sm:%s941] %v1054
                %v1056 = vld [vmem:[%s948 + $0x328] sm:%s941]
                %1057 = vst [vmem:[%s949 + $0x1a8] sm:%s941] %v1056
                %v1058 = vld [vmem:[%s948 + $0x330] sm:%s941]
                %1059 = vst [vmem:[%s949 + $0x1b0] sm:%s941] %v1058
                %v1060 = vld [vmem:[%s948 + $0x338] sm:%s941]
                %1061 = vst [vmem:[%s949 + $0x1b8] sm:%s941] %v1060
                %v1062 = vld [vmem:[%s948 + $0x340] sm:%s941]
                %1063 = vst [vmem:[%s949 + $0x1c0] sm:%s941] %v1062
                %v1064 = vld [vmem:[%s948 + $0x348] sm:%s941]
                %1065 = vst [vmem:[%s949 + $0x1c8] sm:%s941] %v1064
                %v1066 = vld [vmem:[%s948 + $0x350] sm:%s941]
                %1067 = vst [vmem:[%s949 + $0x1d0] sm:%s941] %v1066
                %v1068 = vld [vmem:[%s948 + $0x358] sm:%s941]
                %1069 = vst [vmem:[%s949 + $0x1d8] sm:%s941] %v1068
                %v1070 = vld [vmem:[%s948 + $0x360] sm:%s941]
                %1071 = vst [vmem:[%s949 + $0x1e0] sm:%s941] %v1070
                %v1072 = vld [vmem:[%s948 + $0x368] sm:%s941]
                %1073 = vst [vmem:[%s949 + $0x1e8] sm:%s941] %v1072
                %v1074 = vld [vmem:[%s948 + $0x370] sm:%s941]
                %1075 = vst [vmem:[%s949 + $0x1f0] sm:%s941] %v1074
                %v1076 = vld [vmem:[%s948 + $0x378] sm:%s941]
                %1077 = vst [vmem:[%s949 + $0x1f8] sm:%s941] %v1076
              $region133: #{multi_head_attention.4} parent=127 // loop_footer
                %s947 = sadd.s32 1, %s943
              $region134: #{multi_head_attention.4} parent=127 // loop_footer_branch
                %942 = sbr.rel target = $region130
              $region135: #{multi_head_attention.4} parent=127 // loop_exit
                _
            $region128: #{multi_head_attention.4} parent=119 // pred_fallthru
              _
          $region120: #{multi_head_attention.4} parent=115 // pred_fallthru
            _
          %1218 = vnop
        $region116: #{multi_head_attention.4} parent=19 // pred_fallthru
          _
      $region20: #{multi_head_attention.4} parent=5 // pred_fallthru
        _
      %p1219 = scmp.le.s32.totalorder 1, %s14
      %p1220 = scmp.lt.s32.totalorder %s14, 9
      %p1221 = pnand %p1219, %p1220
      %p1222 = pneg %p1221
      // Predicated region
      $region151: #{multi_head_attention.4} parent=5 // pred_check
        _
      $region152: #{multi_head_attention.4} parent=5 // pred_check_branch
        %1224 = sbr.rel (%p1221) target = $region154
      $region153: #{multi_head_attention.4} parent=5 // pred_region
        %s1225 = ssub.s32 %s14, 1
        %s1226 = sand.u32 %s173, 1
        %s1227 = sand.u32 %s173, 1
        %s1228 = smul.addr %s1227, 512
        %s1229 = scalar_lea.vmem [#allocation6], %s1228
        // Predicated region
        $region155: #{multi_head_attention.4} parent=153 // pred_check
          %p1230 = pneg %p186
        $region156: #{multi_head_attention.4} parent=153 // pred_check_branch
          %1232 = sbr.rel (%p1230) target = $region158
        $region157: #{multi_head_attention.4} parent=153 // pred_region
          _
        $region158: #{multi_head_attention.4} parent=153 // pred_fallthru
          _
        %s1233 = sand.u32 %s201, 1
        %s1234 = sand.u32 %s201, 1
        %s1235 = smul.addr %s1234, 512
        %s1236 = scalar_lea.vmem [#allocation7], %s1235
        // Predicated region
        $region159: #{multi_head_attention.4} parent=153 // pred_check
          %p1237 = pneg %p214
        $region160: #{multi_head_attention.4} parent=153 // pred_check_branch
          %1239 = sbr.rel (%p1237) target = $region162
        $region161: #{multi_head_attention.4} parent=153 // pred_region
          _
        $region162: #{multi_head_attention.4} parent=153 // pred_fallthru
          _
        %s1240 = sand.u32 %s229, 1
        %s1241 = sand.u32 %s229, 1
        %s1242 = smul.addr %s1241, 512
        %s1243 = scalar_lea.vmem [#allocation8], %s1242
        // Predicated region
        $region163: #{multi_head_attention.4} parent=153 // pred_check
          %p1244 = pneg %p242
        $region164: #{multi_head_attention.4} parent=153 // pred_check_branch
          %1246 = sbr.rel (%p1244) target = $region166
        $region165: #{multi_head_attention.4} parent=153 // pred_region
          _
        $region166: #{multi_head_attention.4} parent=153 // pred_fallthru
          _
        %s1247 = smul.u32 16, %s25
        %p1248 = scmp.lt.s32.totalorder %s1247, 31
        %s1249 = scalar_select %p1248, %s1247, 31
        %s1250 = smul.addr %s1249, 8
        %s1251 = scalar_lea.vmem %s0, %s1250
        %p1252 = pneg %p59
        %p1253 = pneg %p56
        %s1254 = smul.u32 16, %s25
        %p1255 = scmp.lt.s32.totalorder %s1254, 31
        %s1256 = scalar_select %p1255, %s1254, 31
        %s1257 = smul.addr %s1256, 8
        %s1258 = scalar_lea.vmem %s1, %s1257
        %p1259 = pneg %p85
        %p1260 = pneg %p82
        %s1261 = smul.u32 16, %s26
        %p1262 = scmp.lt.s32.totalorder %s1261, 31
        %s1263 = scalar_select %p1262, %s1261, 31
        %s1264 = smul.addr %s1263, 8
        %s1265 = scalar_lea.vmem %s2, %s1264
        %p1266 = pneg %p111
        %p1267 = pneg %p108
        %s1268 = smul.u32 16, %s26
        %p1269 = scmp.lt.s32.totalorder %s1268, 31
        %s1270 = scalar_select %p1269, %s1268, 31
        %s1271 = smul.addr %s1270, 8
        %s1272 = scalar_lea.vmem %s3, %s1271
        %p1273 = pneg %p137
        %p1274 = pneg %p134
        %p1275 = pneg %p158
        %p1276 = pneg %p155
        %s1277 = sand.u32 %s173, 1
        %s1278 = sand.u32 %s173, 1
        %s1279 = smul.addr %s1278, 512
        %s1280 = scalar_lea.vmem [#allocation6], %s1279
        %p1281 = pneg %p186
        %p1282 = pneg %p183
        %s1283 = sand.u32 %s201, 1
        %s1284 = sand.u32 %s201, 1
        %s1285 = smul.addr %s1284, 512
        %s1286 = scalar_lea.vmem [#allocation7], %s1285
        %p1287 = pneg %p214
        %p1288 = pneg %p211
        %s1289 = sand.u32 %s229, 1
        %s1290 = sand.u32 %s229, 1
        %s1291 = smul.addr %s1290, 512
        %s1292 = scalar_lea.vmem [#allocation8], %s1291
        %p1293 = pneg %p242
        %p1294 = pneg %p239
        %p1295 = pneg %p270
        %p1296 = pneg %p267
        %s1297 = sand.u32 %s257, 1
        %s1298 = sand.u32 %s257, 1
        %s1299 = smul.addr %s1298, 512
        %s1300 = scalar_lea.vmem [#allocation9], %s1299
        %s1301 = smul.u32 16, %s25
        %p1302 = scmp.lt.s32.totalorder %s1301, 31
        %s1303 = scalar_select %p1302, %s1301, 31
        %s1304 = smul.addr %s1303, 8
        %s1305 = scalar_lea.vmem %s0, %s1304
        %s1306 = smul.u32 16, %s25
        %s1307 = smul.u32 16, %s25
        %p1308 = scmp.lt.s32.totalorder %s1307, 31
        %s1309 = scalar_select %p1308, %s1307, 31
        %s1310 = smul.addr %s1309, 8
        %s1311 = scalar_lea.vmem %s1, %s1310
        %s1312 = smul.u32 16, %s25
        %s1313 = smul.u32 16, %s26
        %p1314 = scmp.lt.s32.totalorder %s1313, 31
        %s1315 = scalar_select %p1314, %s1313, 31
        %s1316 = smul.addr %s1315, 8
        %s1317 = scalar_lea.vmem %s2, %s1316
        %s1318 = smul.u32 16, %s26
        %s1319 = smul.u32 16, %s26
        %p1320 = scmp.lt.s32.totalorder %s1319, 31
        %s1321 = scalar_select %p1320, %s1319, 31
        %s1322 = smul.addr %s1321, 8
        %s1323 = scalar_lea.vmem %s3, %s1322
        %s1324 = smul.u32 16, %s26
        %s1325 = smul.u32 16, %s25
        %s1326 = smul.u32 16, %s26
        %s1327 = smul.u32 16, %s26
        %s1328 = smul.u32 16, %s25
        %s1329 = smul.u32 %s25, 128
        %s1330 = smul.u32 %s26, 128
        %p1331 = scmp.eq.s32.totalorder %s26, 0
        // Predicated region
        $region167: #{multi_head_attention.4} parent=153 // pred_check
          %p1332 = pneg %p1331
        $region168: #{multi_head_attention.4} parent=153 // pred_check_branch
          %1334 = sbr.rel (%p1332) target = $region170
        $region169: #{multi_head_attention.4} parent=153 // pred_region
          %v1335 = vld [vmem:[%s1229] sm:$0xff]
          %v1336 = vld [vmem:[%s1229 + $0x8] sm:$0xff]
          %v1337 = vld [vmem:[%s1229 + $0x10] sm:$0xff]
          %v1338 = vld [vmem:[%s1229 + $0x18] sm:$0xff]
          %v1339 = vld [vmem:[%s1229 + $0x20] sm:$0xff]
          %v1340 = vld [vmem:[%s1229 + $0x28] sm:$0xff]
          %v1341 = vld [vmem:[%s1229 + $0x30] sm:$0xff]
          %v1342 = vld [vmem:[%s1229 + $0x38] sm:$0xff]
          %v1343 = vld [vmem:[%s1229 + $0x40] sm:$0xff]
          %v1344 = vld [vmem:[%s1229 + $0x48] sm:$0xff]
          %v1345 = vld [vmem:[%s1229 + $0x50] sm:$0xff]
          %v1346 = vld [vmem:[%s1229 + $0x58] sm:$0xff]
          %v1347 = vld [vmem:[%s1229 + $0x60] sm:$0xff]
          %v1348 = vld [vmem:[%s1229 + $0x68] sm:$0xff]
          %v1349 = vld [vmem:[%s1229 + $0x70] sm:$0xff]
          %v1350 = vld [vmem:[%s1229 + $0x78] sm:$0xff]
          %v1351 = vld [vmem:[%s1229 + $0x80] sm:$0xff]
          %v1352 = vld [vmem:[%s1229 + $0x88] sm:$0xff]
          %v1353 = vld [vmem:[%s1229 + $0x90] sm:$0xff]
          %v1354 = vld [vmem:[%s1229 + $0x98] sm:$0xff]
          %v1355 = vld [vmem:[%s1229 + $0xa0] sm:$0xff]
          %v1356 = vld [vmem:[%s1229 + $0xa8] sm:$0xff]
          %v1357 = vld [vmem:[%s1229 + $0xb0] sm:$0xff]
          %v1358 = vld [vmem:[%s1229 + $0xb8] sm:$0xff]
          %v1359 = vld [vmem:[%s1229 + $0xc0] sm:$0xff]
          %v1360 = vld [vmem:[%s1229 + $0xc8] sm:$0xff]
          %v1361 = vld [vmem:[%s1229 + $0xd0] sm:$0xff]
          %v1362 = vld [vmem:[%s1229 + $0xd8] sm:$0xff]
          %v1363 = vld [vmem:[%s1229 + $0xe0] sm:$0xff]
          %v1364 = vld [vmem:[%s1229 + $0xe8] sm:$0xff]
          %v1365 = vld [vmem:[%s1229 + $0xf0] sm:$0xff]
          %v1366 = vld [vmem:[%s1229 + $0xf8] sm:$0xff]
          %v1367 = vld [vmem:[%s1229 + $0x100] sm:$0xff]
          %v1368 = vld [vmem:[%s1229 + $0x108] sm:$0xff]
          %v1369 = vld [vmem:[%s1229 + $0x110] sm:$0xff]
          %v1370 = vld [vmem:[%s1229 + $0x118] sm:$0xff]
          %v1371 = vld [vmem:[%s1229 + $0x120] sm:$0xff]
          %v1372 = vld [vmem:[%s1229 + $0x128] sm:$0xff]
          %v1373 = vld [vmem:[%s1229 + $0x130] sm:$0xff]
          %v1374 = vld [vmem:[%s1229 + $0x138] sm:$0xff]
          %v1375 = vld [vmem:[%s1229 + $0x140] sm:$0xff]
          %v1376 = vld [vmem:[%s1229 + $0x148] sm:$0xff]
          %v1377 = vld [vmem:[%s1229 + $0x150] sm:$0xff]
          %v1378 = vld [vmem:[%s1229 + $0x158] sm:$0xff]
          %v1379 = vld [vmem:[%s1229 + $0x160] sm:$0xff]
          %v1380 = vld [vmem:[%s1229 + $0x168] sm:$0xff]
          %v1381 = vld [vmem:[%s1229 + $0x170] sm:$0xff]
          %v1382 = vld [vmem:[%s1229 + $0x178] sm:$0xff]
          %v1383 = vld [vmem:[%s1229 + $0x180] sm:$0xff]
          %v1384 = vld [vmem:[%s1229 + $0x188] sm:$0xff]
          %v1385 = vld [vmem:[%s1229 + $0x190] sm:$0xff]
          %v1386 = vld [vmem:[%s1229 + $0x198] sm:$0xff]
          %v1387 = vld [vmem:[%s1229 + $0x1a0] sm:$0xff]
          %v1388 = vld [vmem:[%s1229 + $0x1a8] sm:$0xff]
          %v1389 = vld [vmem:[%s1229 + $0x1b0] sm:$0xff]
          %v1390 = vld [vmem:[%s1229 + $0x1b8] sm:$0xff]
          %v1391 = vld [vmem:[%s1229 + $0x1c0] sm:$0xff]
          %v1392 = vld [vmem:[%s1229 + $0x1c8] sm:$0xff]
          %v1393 = vld [vmem:[%s1229 + $0x1d0] sm:$0xff]
          %v1394 = vld [vmem:[%s1229 + $0x1d8] sm:$0xff]
          %v1395 = vld [vmem:[%s1229 + $0x1e0] sm:$0xff]
          %v1396 = vld [vmem:[%s1229 + $0x1e8] sm:$0xff]
          %v1397 = vld [vmem:[%s1229 + $0x1f0] sm:$0xff]
          %v1398 = vld [vmem:[%s1229 + $0x1f8] sm:$0xff]
          %v1399 = vld [vmem:[%s1305] sm:$0xff]
          %v1400 = vld [vmem:[%s1305 + $0x8] sm:$0xff]
          %v1401 = vld [vmem:[%s1305 + $0x10] sm:$0xff]
          %v1402 = vld [vmem:[%s1305 + $0x18] sm:$0xff]
          %v1403 = vld [vmem:[%s1305 + $0x20] sm:$0xff]
          %v1404 = vld [vmem:[%s1305 + $0x28] sm:$0xff]
          %v1405 = vld [vmem:[%s1305 + $0x30] sm:$0xff]
          %v1406 = vld [vmem:[%s1305 + $0x38] sm:$0xff]
          %v1407 = vld [vmem:[%s1305 + $0x40] sm:$0xff]
          %v1408 = vld [vmem:[%s1305 + $0x48] sm:$0xff]
          %v1409 = vld [vmem:[%s1305 + $0x50] sm:$0xff]
          %v1410 = vld [vmem:[%s1305 + $0x58] sm:$0xff]
          %v1411 = vld [vmem:[%s1305 + $0x60] sm:$0xff]
          %v1412 = vld [vmem:[%s1305 + $0x68] sm:$0xff]
          %v1413 = vld [vmem:[%s1305 + $0x70] sm:$0xff]
          %v1414 = vld [vmem:[%s1305 + $0x78] sm:$0xff]
          %v1415 = vld [vmem:[%s1311] sm:$0xff]
          %v1416 = vld [vmem:[%s1311 + $0x8] sm:$0xff]
          %v1417 = vld [vmem:[%s1311 + $0x10] sm:$0xff]
          %v1418 = vld [vmem:[%s1311 + $0x18] sm:$0xff]
          %v1419 = vld [vmem:[%s1311 + $0x20] sm:$0xff]
          %v1420 = vld [vmem:[%s1311 + $0x28] sm:$0xff]
          %v1421 = vld [vmem:[%s1311 + $0x30] sm:$0xff]
          %v1422 = vld [vmem:[%s1311 + $0x38] sm:$0xff]
          %v1423 = vld [vmem:[%s1311 + $0x40] sm:$0xff]
          %v1424 = vld [vmem:[%s1311 + $0x48] sm:$0xff]
          %v1425 = vld [vmem:[%s1311 + $0x50] sm:$0xff]
          %v1426 = vld [vmem:[%s1311 + $0x58] sm:$0xff]
          %v1427 = vld [vmem:[%s1311 + $0x60] sm:$0xff]
          %v1428 = vld [vmem:[%s1311 + $0x68] sm:$0xff]
          %v1429 = vld [vmem:[%s1311 + $0x70] sm:$0xff]
          %v1430 = vld [vmem:[%s1311 + $0x78] sm:$0xff]
          %v1431 = vld [vmem:[%s4] sm:$0xff]
          %v1432 = vld [vmem:[%s4 + $0x8] sm:$0xff]
          %v1433 = vld [vmem:[%s4 + $0x10] sm:$0xff]
          %v1434 = vld [vmem:[%s4 + $0x18] sm:$0xff]
          %v1435 = vld [vmem:[%s4 + $0x20] sm:$0xff]
          %v1436 = vld [vmem:[%s4 + $0x28] sm:$0xff]
          %v1437 = vld [vmem:[%s4 + $0x30] sm:$0xff]
          %v1438 = vld [vmem:[%s4 + $0x38] sm:$0xff]
          %vm1439 = vcmask 523264
          %v1441 = vsel %vm1439, %v1335, 0
          %v1444 = vsel %vm1439, %v1336, 0
          %v1447 = vsel %vm1439, %v1337, 0
          %v1450 = vsel %vm1439, %v1338, 0
          %v1453 = vsel %vm1439, %v1339, 0
          %v1456 = vsel %vm1439, %v1340, 0
          %v1459 = vsel %vm1439, %v1341, 0
          %v1462 = vsel %vm1439, %v1342, 0
          %v1465 = vsel %vm1439, %v1343, 0
          %v1468 = vsel %vm1439, %v1344, 0
          %v1471 = vsel %vm1439, %v1345, 0
          %v1474 = vsel %vm1439, %v1346, 0
          %v1477 = vsel %vm1439, %v1347, 0
          %v1480 = vsel %vm1439, %v1348, 0
          %v1483 = vsel %vm1439, %v1349, 0
          %v1486 = vsel %vm1439, %v1350, 0
          %v1489 = vsel %vm1439, %v1351, 0
          %v1492 = vsel %vm1439, %v1352, 0
          %v1495 = vsel %vm1439, %v1353, 0
          %v1498 = vsel %vm1439, %v1354, 0
          %v1501 = vsel %vm1439, %v1355, 0
          %v1504 = vsel %vm1439, %v1356, 0
          %v1507 = vsel %vm1439, %v1357, 0
          %v1510 = vsel %vm1439, %v1358, 0
          %v1513 = vsel %vm1439, %v1359, 0
          %v1516 = vsel %vm1439, %v1360, 0
          %v1519 = vsel %vm1439, %v1361, 0
          %v1522 = vsel %vm1439, %v1362, 0
          %v1525 = vsel %vm1439, %v1363, 0
          %v1528 = vsel %vm1439, %v1364, 0
          %v1531 = vsel %vm1439, %v1365, 0
          %v1534 = vsel %vm1439, %v1366, 0
          %v1537 = vsel %vm1439, %v1367, 0
          %v1540 = vsel %vm1439, %v1368, 0
          %v1543 = vsel %vm1439, %v1369, 0
          %v1546 = vsel %vm1439, %v1370, 0
          %v1549 = vsel %vm1439, %v1371, 0
          %v1552 = vsel %vm1439, %v1372, 0
          %v1555 = vsel %vm1439, %v1373, 0
          %v1558 = vsel %vm1439, %v1374, 0
          %v1561 = vsel %vm1439, %v1375, 0
          %v1564 = vsel %vm1439, %v1376, 0
          %v1567 = vsel %vm1439, %v1377, 0
          %v1570 = vsel %vm1439, %v1378, 0
          %v1573 = vsel %vm1439, %v1379, 0
          %v1576 = vsel %vm1439, %v1380, 0
          %v1579 = vsel %vm1439, %v1381, 0
          %v1582 = vsel %vm1439, %v1382, 0
          %v1585 = vsel %vm1439, %v1383, 0
          %v1588 = vsel %vm1439, %v1384, 0
          %v1591 = vsel %vm1439, %v1385, 0
          %v1594 = vsel %vm1439, %v1386, 0
          %v1597 = vsel %vm1439, %v1387, 0
          %v1600 = vsel %vm1439, %v1388, 0
          %v1603 = vsel %vm1439, %v1389, 0
          %v1606 = vsel %vm1439, %v1390, 0
          %v1609 = vsel %vm1439, %v1391, 0
          %v1612 = vsel %vm1439, %v1392, 0
          %v1615 = vsel %vm1439, %v1393, 0
          %v1618 = vsel %vm1439, %v1394, 0
          %v1621 = vsel %vm1439, %v1395, 0
          %v1624 = vsel %vm1439, %v1396, 0
          %v1627 = vsel %vm1439, %v1397, 0
          %v1630 = vsel %vm1439, %v1398, 0
          %1632 = vmatprep.subr.mxu0 0.0
          %1633 = vmatpush1.msra.mxu0 0.0
          %1634 = vmatprep.subr.mxu0 0.0
          %1635 = vmatpush1.msra.mxu0 0.0
          %1636 = vmatprep.subr.mxu0 0.0
          %1637 = vmatpush1.msra.mxu0 0.0
          %1638 = vmatprep.subr.mxu0 0.0
          %1639 = vmatpush1.msra.mxu0 0.0
          %1640 = vmatprep.subr.mxu0 0.0
          %1641 = vmatpush1.msra.mxu0 0.0
          %1642 = vmatprep.subr.mxu0 0.0
          %1643 = vmatpush1.msra.mxu0 0.0
          %1644 = vmatprep.subr.mxu0 0.0
          %1645 = vmatpush1.msra.mxu0 0.0
          %1646 = vmatprep.subr.mxu0 0.0
          %1647 = vmatpush1.msra.mxu0 0.0
          %1648 = vmatprep.subr.mxu0 0.0
          %1649 = vmatpush1.msra.mxu0 %v1438
          %1650 = vmatprep.subr.mxu0 0.0
          %1651 = vmatpush1.msra.mxu0 %v1437
          %1652 = vmatprep.subr.mxu0 0.0
          %1653 = vmatpush1.msra.mxu0 %v1436
          %1654 = vmatprep.subr.mxu0 0.0
          %1655 = vmatpush1.msra.mxu0 %v1435
          %1656 = vmatprep.subr.mxu0 0.0
          %1657 = vmatpush1.msra.mxu0 %v1434
          %1658 = vmatprep.subr.mxu0 0.0
          %1659 = vmatpush1.msra.mxu0 %v1433
          %1660 = vmatprep.subr.mxu0 0.0
          %1661 = vmatpush1.msra.mxu0 %v1432
          %1662 = vmatprep.subr.mxu0 0.0
          %1663 = vmatpush1.msra.mxu0 %v1431
          %1664 = vmatprep.subr.mxu0 0.0
          %1665 = vmatpush2.msra.mxu0 0.0
          %1666 = vmatprep.subr.mxu0 0.0
          %1667 = vmatpush2.msra.mxu0 0.0
          %1668 = vmatprep.subr.mxu0 0.0
          %1669 = vmatpush2.msra.mxu0 0.0
          %1670 = vmatprep.subr.mxu0 0.0
          %1671 = vmatpush2.msra.mxu0 0.0
          %1672 = vmatprep.subr.mxu0 0.0
          %1673 = vmatpush2.msra.mxu0 0.0
          %1674 = vmatprep.subr.mxu0 0.0
          %1675 = vmatpush2.msra.mxu0 0.0
          %1676 = vmatprep.subr.mxu0 0.0
          %1677 = vmatpush2.msra.mxu0 0.0
          %1678 = vmatprep.subr.mxu0 0.0
          %1679 = vmatpush2.msra.mxu0 0.0
          %1680 = vmatprep.subr.mxu0 0.0
          %1681 = vmatpush2.msra.mxu0 0.0
          %1682 = vmatprep.subr.mxu0 0.0
          %1683 = vmatpush2.msra.mxu0 0.0
          %1684 = vmatprep.subr.mxu0 0.0
          %1685 = vmatpush2.msra.mxu0 0.0
          %1686 = vmatprep.subr.mxu0 0.0
          %1687 = vmatpush2.msra.mxu0 0.0
          %1688 = vmatprep.subr.mxu0 0.0
          %1689 = vmatpush2.msra.mxu0 0.0
          %1690 = vmatprep.subr.mxu0 0.0
          %1691 = vmatpush2.msra.mxu0 0.0
          %1692 = vmatprep.subr.mxu0 0.0
          %1693 = vmatpush2.msra.mxu0 0.0
          %1694 = vmatprep.subr.mxu0 0.0
          %1695 = vmatpush2.msra.mxu0 0.0
          %1696 = vmatprep.mubr.f32.mxu0 0.0
          %1697 = vmatmul.mubr.f32.gmra.mxu0 %v1441
          %v1698 = vpop.f32.mrf.mxu0
          %v1699 = vadd.f32 0.0, %v1698
          %v1700 = vpop.f32.mrf.mxu0
          %1701 = vmatprep.mubr.f32.mxu0 0.0
          %1702 = vmatmul.mubr.f32.gmra.mxu0 %v1444
          %v1703 = vpop.f32.mrf.mxu0
          %v1704 = vadd.f32 0.0, %v1703
          %v1705 = vpop.f32.mrf.mxu0
          %1706 = vmatprep.mubr.f32.mxu0 0.0
          %1707 = vmatmul.mubr.f32.gmra.mxu0 %v1447
          %v1708 = vpop.f32.mrf.mxu0
          %v1709 = vadd.f32 0.0, %v1708
          %v1710 = vpop.f32.mrf.mxu0
          %1711 = vmatprep.mubr.f32.mxu0 0.0
          %1712 = vmatmul.mubr.f32.gmra.mxu0 %v1450
          %v1713 = vpop.f32.mrf.mxu0
          %v1714 = vadd.f32 0.0, %v1713
          %v1715 = vpop.f32.mrf.mxu0
          %1716 = vmatprep.mubr.f32.mxu0 0.0
          %1717 = vmatmul.mubr.f32.gmra.mxu0 %v1453
          %v1718 = vpop.f32.mrf.mxu0
          %v1719 = vadd.f32 0.0, %v1718
          %v1720 = vpop.f32.mrf.mxu0
          %1721 = vmatprep.mubr.f32.mxu0 0.0
          %1722 = vmatmul.mubr.f32.gmra.mxu0 %v1456
          %v1723 = vpop.f32.mrf.mxu0
          %v1724 = vadd.f32 0.0, %v1723
          %v1725 = vpop.f32.mrf.mxu0
          %1726 = vmatprep.mubr.f32.mxu0 0.0
          %1727 = vmatmul.mubr.f32.gmra.mxu0 %v1459
          %v1728 = vpop.f32.mrf.mxu0
          %v1729 = vadd.f32 0.0, %v1728
          %v1730 = vpop.f32.mrf.mxu0
          %1731 = vmatprep.mubr.f32.mxu0 0.0
          %1732 = vmatmul.mubr.f32.gmra.mxu0 %v1462
          %v1733 = vpop.f32.mrf.mxu0
          %v1734 = vadd.f32 0.0, %v1733
          %v1735 = vpop.f32.mrf.mxu0
          %1736 = vmatprep.mubr.f32.mxu0 0.0
          %1737 = vmatmul.mubr.f32.gmra.mxu0 %v1465
          %v1738 = vpop.f32.mrf.mxu0
          %v1739 = vadd.f32 0.0, %v1738
          %v1740 = vpop.f32.mrf.mxu0
          %1741 = vmatprep.mubr.f32.mxu0 0.0
          %1742 = vmatmul.mubr.f32.gmra.mxu0 %v1468
          %v1743 = vpop.f32.mrf.mxu0
          %v1744 = vadd.f32 0.0, %v1743
          %v1745 = vpop.f32.mrf.mxu0
          %1746 = vmatprep.mubr.f32.mxu0 0.0
          %1747 = vmatmul.mubr.f32.gmra.mxu0 %v1471
          %v1748 = vpop.f32.mrf.mxu0
          %v1749 = vadd.f32 0.0, %v1748
          %v1750 = vpop.f32.mrf.mxu0
          %1751 = vmatprep.mubr.f32.mxu0 0.0
          %1752 = vmatmul.mubr.f32.gmra.mxu0 %v1474
          %v1753 = vpop.f32.mrf.mxu0
          %v1754 = vadd.f32 0.0, %v1753
          %v1755 = vpop.f32.mrf.mxu0
          %1756 = vmatprep.mubr.f32.mxu0 0.0
          %1757 = vmatmul.mubr.f32.gmra.mxu0 %v1477
          %v1758 = vpop.f32.mrf.mxu0
          %v1759 = vadd.f32 0.0, %v1758
          %v1760 = vpop.f32.mrf.mxu0
          %1761 = vmatprep.mubr.f32.mxu0 0.0
          %1762 = vmatmul.mubr.f32.gmra.mxu0 %v1480
          %v1763 = vpop.f32.mrf.mxu0
          %v1764 = vadd.f32 0.0, %v1763
          %v1765 = vpop.f32.mrf.mxu0
          %1766 = vmatprep.mubr.f32.mxu0 0.0
          %1767 = vmatmul.mubr.f32.gmra.mxu0 %v1483
          %v1768 = vpop.f32.mrf.mxu0
          %v1769 = vadd.f32 0.0, %v1768
          %v1770 = vpop.f32.mrf.mxu0
          %1771 = vmatprep.mubr.f32.mxu0 0.0
          %1772 = vmatmul.mubr.f32.gmra.mxu0 %v1486
          %v1773 = vpop.f32.mrf.mxu0
          %v1774 = vadd.f32 0.0, %v1773
          %v1775 = vpop.f32.mrf.mxu0
          %1776 = vmatprep.mubr.f32.mxu0 0.0
          %1777 = vmatmul.mubr.f32.gmra.mxu0 %v1489
          %v1778 = vpop.f32.mrf.mxu0
          %v1779 = vadd.f32 0.0, %v1778
          %v1780 = vpop.f32.mrf.mxu0
          %1781 = vmatprep.mubr.f32.mxu0 0.0
          %1782 = vmatmul.mubr.f32.gmra.mxu0 %v1492
          %v1783 = vpop.f32.mrf.mxu0
          %v1784 = vadd.f32 0.0, %v1783
          %v1785 = vpop.f32.mrf.mxu0
          %1786 = vmatprep.mubr.f32.mxu0 0.0
          %1787 = vmatmul.mubr.f32.gmra.mxu0 %v1495
          %v1788 = vpop.f32.mrf.mxu0
          %v1789 = vadd.f32 0.0, %v1788
          %v1790 = vpop.f32.mrf.mxu0
          %1791 = vmatprep.mubr.f32.mxu0 0.0
          %1792 = vmatmul.mubr.f32.gmra.mxu0 %v1498
          %v1793 = vpop.f32.mrf.mxu0
          %v1794 = vadd.f32 0.0, %v1793
          %v1795 = vpop.f32.mrf.mxu0
          %1796 = vmatprep.mubr.f32.mxu0 0.0
          %1797 = vmatmul.mubr.f32.gmra.mxu0 %v1501
          %v1798 = vpop.f32.mrf.mxu0
          %v1799 = vadd.f32 0.0, %v1798
          %v1800 = vpop.f32.mrf.mxu0
          %1801 = vmatprep.mubr.f32.mxu0 0.0
          %1802 = vmatmul.mubr.f32.gmra.mxu0 %v1504
          %v1803 = vpop.f32.mrf.mxu0
          %v1804 = vadd.f32 0.0, %v1803
          %v1805 = vpop.f32.mrf.mxu0
          %1806 = vmatprep.mubr.f32.mxu0 0.0
          %1807 = vmatmul.mubr.f32.gmra.mxu0 %v1507
          %v1808 = vpop.f32.mrf.mxu0
          %v1809 = vadd.f32 0.0, %v1808
          %v1810 = vpop.f32.mrf.mxu0
          %1811 = vmatprep.mubr.f32.mxu0 0.0
          %1812 = vmatmul.mubr.f32.gmra.mxu0 %v1510
          %v1813 = vpop.f32.mrf.mxu0
          %v1814 = vadd.f32 0.0, %v1813
          %v1815 = vpop.f32.mrf.mxu0
          %1816 = vmatprep.mubr.f32.mxu0 0.0
          %1817 = vmatmul.mubr.f32.gmra.mxu0 %v1513
          %v1818 = vpop.f32.mrf.mxu0
          %v1819 = vadd.f32 0.0, %v1818
          %v1820 = vpop.f32.mrf.mxu0
          %1821 = vmatprep.mubr.f32.mxu0 0.0
          %1822 = vmatmul.mubr.f32.gmra.mxu0 %v1516
          %v1823 = vpop.f32.mrf.mxu0
          %v1824 = vadd.f32 0.0, %v1823
          %v1825 = vpop.f32.mrf.mxu0
          %1826 = vmatprep.mubr.f32.mxu0 0.0
          %1827 = vmatmul.mubr.f32.gmra.mxu0 %v1519
          %v1828 = vpop.f32.mrf.mxu0
          %v1829 = vadd.f32 0.0, %v1828
          %v1830 = vpop.f32.mrf.mxu0
          %1831 = vmatprep.mubr.f32.mxu0 0.0
          %1832 = vmatmul.mubr.f32.gmra.mxu0 %v1522
          %v1833 = vpop.f32.mrf.mxu0
          %v1834 = vadd.f32 0.0, %v1833
          %v1835 = vpop.f32.mrf.mxu0
          %1836 = vmatprep.mubr.f32.mxu0 0.0
          %1837 = vmatmul.mubr.f32.gmra.mxu0 %v1525
          %v1838 = vpop.f32.mrf.mxu0
          %v1839 = vadd.f32 0.0, %v1838
          %v1840 = vpop.f32.mrf.mxu0
          %1841 = vmatprep.mubr.f32.mxu0 0.0
          %1842 = vmatmul.mubr.f32.gmra.mxu0 %v1528
          %v1843 = vpop.f32.mrf.mxu0
          %v1844 = vadd.f32 0.0, %v1843
          %v1845 = vpop.f32.mrf.mxu0
          %1846 = vmatprep.mubr.f32.mxu0 0.0
          %1847 = vmatmul.mubr.f32.gmra.mxu0 %v1531
          %v1848 = vpop.f32.mrf.mxu0
          %v1849 = vadd.f32 0.0, %v1848
          %v1850 = vpop.f32.mrf.mxu0
          %1851 = vmatprep.mubr.f32.mxu0 0.0
          %1852 = vmatmul.mubr.f32.gmra.mxu0 %v1534
          %v1853 = vpop.f32.mrf.mxu0
          %v1854 = vadd.f32 0.0, %v1853
          %v1855 = vpop.f32.mrf.mxu0
          %1856 = vmatprep.mubr.f32.mxu0 0.0
          %1857 = vmatmul.mubr.f32.gmra.mxu0 %v1537
          %v1858 = vpop.f32.mrf.mxu0
          %v1859 = vadd.f32 0.0, %v1858
          %v1860 = vpop.f32.mrf.mxu0
          %1861 = vmatprep.mubr.f32.mxu0 0.0
          %1862 = vmatmul.mubr.f32.gmra.mxu0 %v1540
          %v1863 = vpop.f32.mrf.mxu0
          %v1864 = vadd.f32 0.0, %v1863
          %v1865 = vpop.f32.mrf.mxu0
          %1866 = vmatprep.mubr.f32.mxu0 0.0
          %1867 = vmatmul.mubr.f32.gmra.mxu0 %v1543
          %v1868 = vpop.f32.mrf.mxu0
          %v1869 = vadd.f32 0.0, %v1868
          %v1870 = vpop.f32.mrf.mxu0
          %1871 = vmatprep.mubr.f32.mxu0 0.0
          %1872 = vmatmul.mubr.f32.gmra.mxu0 %v1546
          %v1873 = vpop.f32.mrf.mxu0
          %v1874 = vadd.f32 0.0, %v1873
          %v1875 = vpop.f32.mrf.mxu0
          %1876 = vmatprep.mubr.f32.mxu0 0.0
          %1877 = vmatmul.mubr.f32.gmra.mxu0 %v1549
          %v1878 = vpop.f32.mrf.mxu0
          %v1879 = vadd.f32 0.0, %v1878
          %v1880 = vpop.f32.mrf.mxu0
          %1881 = vmatprep.mubr.f32.mxu0 0.0
          %1882 = vmatmul.mubr.f32.gmra.mxu0 %v1552
          %v1883 = vpop.f32.mrf.mxu0
          %v1884 = vadd.f32 0.0, %v1883
          %v1885 = vpop.f32.mrf.mxu0
          %1886 = vmatprep.mubr.f32.mxu0 0.0
          %1887 = vmatmul.mubr.f32.gmra.mxu0 %v1555
          %v1888 = vpop.f32.mrf.mxu0
          %v1889 = vadd.f32 0.0, %v1888
          %v1890 = vpop.f32.mrf.mxu0
          %1891 = vmatprep.mubr.f32.mxu0 0.0
          %1892 = vmatmul.mubr.f32.gmra.mxu0 %v1558
          %v1893 = vpop.f32.mrf.mxu0
          %v1894 = vadd.f32 0.0, %v1893
          %v1895 = vpop.f32.mrf.mxu0
          %1896 = vmatprep.mubr.f32.mxu0 0.0
          %1897 = vmatmul.mubr.f32.gmra.mxu0 %v1561
          %v1898 = vpop.f32.mrf.mxu0
          %v1899 = vadd.f32 0.0, %v1898
          %v1900 = vpop.f32.mrf.mxu0
          %1901 = vmatprep.mubr.f32.mxu0 0.0
          %1902 = vmatmul.mubr.f32.gmra.mxu0 %v1564
          %v1903 = vpop.f32.mrf.mxu0
          %v1904 = vadd.f32 0.0, %v1903
          %v1905 = vpop.f32.mrf.mxu0
          %1906 = vmatprep.mubr.f32.mxu0 0.0
          %1907 = vmatmul.mubr.f32.gmra.mxu0 %v1567
          %v1908 = vpop.f32.mrf.mxu0
          %v1909 = vadd.f32 0.0, %v1908
          %v1910 = vpop.f32.mrf.mxu0
          %1911 = vmatprep.mubr.f32.mxu0 0.0
          %1912 = vmatmul.mubr.f32.gmra.mxu0 %v1570
          %v1913 = vpop.f32.mrf.mxu0
          %v1914 = vadd.f32 0.0, %v1913
          %v1915 = vpop.f32.mrf.mxu0
          %1916 = vmatprep.mubr.f32.mxu0 0.0
          %1917 = vmatmul.mubr.f32.gmra.mxu0 %v1573
          %v1918 = vpop.f32.mrf.mxu0
          %v1919 = vadd.f32 0.0, %v1918
          %v1920 = vpop.f32.mrf.mxu0
          %1921 = vmatprep.mubr.f32.mxu0 0.0
          %1922 = vmatmul.mubr.f32.gmra.mxu0 %v1576
          %v1923 = vpop.f32.mrf.mxu0
          %v1924 = vadd.f32 0.0, %v1923
          %v1925 = vpop.f32.mrf.mxu0
          %1926 = vmatprep.mubr.f32.mxu0 0.0
          %1927 = vmatmul.mubr.f32.gmra.mxu0 %v1579
          %v1928 = vpop.f32.mrf.mxu0
          %v1929 = vadd.f32 0.0, %v1928
          %v1930 = vpop.f32.mrf.mxu0
          %1931 = vmatprep.mubr.f32.mxu0 0.0
          %1932 = vmatmul.mubr.f32.gmra.mxu0 %v1582
          %v1933 = vpop.f32.mrf.mxu0
          %v1934 = vadd.f32 0.0, %v1933
          %v1935 = vpop.f32.mrf.mxu0
          %1936 = vmatprep.mubr.f32.mxu0 0.0
          %1937 = vmatmul.mubr.f32.gmra.mxu0 %v1585
          %v1938 = vpop.f32.mrf.mxu0
          %v1939 = vadd.f32 0.0, %v1938
          %v1940 = vpop.f32.mrf.mxu0
          %1941 = vmatprep.mubr.f32.mxu0 0.0
          %1942 = vmatmul.mubr.f32.gmra.mxu0 %v1588
          %v1943 = vpop.f32.mrf.mxu0
          %v1944 = vadd.f32 0.0, %v1943
          %v1945 = vpop.f32.mrf.mxu0
          %1946 = vmatprep.mubr.f32.mxu0 0.0
          %1947 = vmatmul.mubr.f32.gmra.mxu0 %v1591
          %v1948 = vpop.f32.mrf.mxu0
          %v1949 = vadd.f32 0.0, %v1948
          %v1950 = vpop.f32.mrf.mxu0
          %1951 = vmatprep.mubr.f32.mxu0 0.0
          %1952 = vmatmul.mubr.f32.gmra.mxu0 %v1594
          %v1953 = vpop.f32.mrf.mxu0
          %v1954 = vadd.f32 0.0, %v1953
          %v1955 = vpop.f32.mrf.mxu0
          %1956 = vmatprep.mubr.f32.mxu0 0.0
          %1957 = vmatmul.mubr.f32.gmra.mxu0 %v1597
          %v1958 = vpop.f32.mrf.mxu0
          %v1959 = vadd.f32 0.0, %v1958
          %v1960 = vpop.f32.mrf.mxu0
          %1961 = vmatprep.mubr.f32.mxu0 0.0
          %1962 = vmatmul.mubr.f32.gmra.mxu0 %v1600
          %v1963 = vpop.f32.mrf.mxu0
          %v1964 = vadd.f32 0.0, %v1963
          %v1965 = vpop.f32.mrf.mxu0
          %1966 = vmatprep.mubr.f32.mxu0 0.0
          %1967 = vmatmul.mubr.f32.gmra.mxu0 %v1603
          %v1968 = vpop.f32.mrf.mxu0
          %v1969 = vadd.f32 0.0, %v1968
          %v1970 = vpop.f32.mrf.mxu0
          %1971 = vmatprep.mubr.f32.mxu0 0.0
          %1972 = vmatmul.mubr.f32.gmra.mxu0 %v1606
          %v1973 = vpop.f32.mrf.mxu0
          %v1974 = vadd.f32 0.0, %v1973
          %v1975 = vpop.f32.mrf.mxu0
          %1976 = vmatprep.mubr.f32.mxu0 0.0
          %1977 = vmatmul.mubr.f32.gmra.mxu0 %v1609
          %v1978 = vpop.f32.mrf.mxu0
          %v1979 = vadd.f32 0.0, %v1978
          %v1980 = vpop.f32.mrf.mxu0
          %1981 = vmatprep.mubr.f32.mxu0 0.0
          %1982 = vmatmul.mubr.f32.gmra.mxu0 %v1612
          %v1983 = vpop.f32.mrf.mxu0
          %v1984 = vadd.f32 0.0, %v1983
          %v1985 = vpop.f32.mrf.mxu0
          %1986 = vmatprep.mubr.f32.mxu0 0.0
          %1987 = vmatmul.mubr.f32.gmra.mxu0 %v1615
          %v1988 = vpop.f32.mrf.mxu0
          %v1989 = vadd.f32 0.0, %v1988
          %v1990 = vpop.f32.mrf.mxu0
          %1991 = vmatprep.mubr.f32.mxu0 0.0
          %1992 = vmatmul.mubr.f32.gmra.mxu0 %v1618
          %v1993 = vpop.f32.mrf.mxu0
          %v1994 = vadd.f32 0.0, %v1993
          %v1995 = vpop.f32.mrf.mxu0
          %1996 = vmatprep.mubr.f32.mxu0 0.0
          %1997 = vmatmul.mubr.f32.gmra.mxu0 %v1621
          %v1998 = vpop.f32.mrf.mxu0
          %v1999 = vadd.f32 0.0, %v1998
          %v2000 = vpop.f32.mrf.mxu0
          %2001 = vmatprep.mubr.f32.mxu0 0.0
          %2002 = vmatmul.mubr.f32.gmra.mxu0 %v1624
          %v2003 = vpop.f32.mrf.mxu0
          %v2004 = vadd.f32 0.0, %v2003
          %v2005 = vpop.f32.mrf.mxu0
          %2006 = vmatprep.mubr.f32.mxu0 0.0
          %2007 = vmatmul.mubr.f32.gmra.mxu0 %v1627
          %v2008 = vpop.f32.mrf.mxu0
          %v2009 = vadd.f32 0.0, %v2008
          %v2010 = vpop.f32.mrf.mxu0
          %2011 = vmatprep.mubr.f32.mxu0 0.0
          %2012 = vmatmul.mubr.f32.gmra.mxu0 %v1630
          %v2013 = vpop.f32.mrf.mxu0
          %v2014 = vadd.f32 0.0, %v2013
          %v2015 = vpop.f32.mrf.mxu0
          %2016 = vdwg.mxu0
          %v2017 = vmul.f32 %v1335, %v1399
          %v2018 = vmul.f32 %v1336, %v1400
          %v2019 = vmul.f32 %v1337, %v1401
          %v2020 = vmul.f32 %v1338, %v1402
          %v2021 = vmul.f32 %v1339, %v1403
          %v2022 = vmul.f32 %v1340, %v1404
          %v2023 = vmul.f32 %v1341, %v1405
          %v2024 = vmul.f32 %v1342, %v1406
          %v2025 = vmul.f32 %v1343, %v1407
          %v2026 = vmul.f32 %v1344, %v1408
          %v2027 = vmul.f32 %v1345, %v1409
          %v2028 = vmul.f32 %v1346, %v1410
          %v2029 = vmul.f32 %v1347, %v1411
          %v2030 = vmul.f32 %v1348, %v1412
          %v2031 = vmul.f32 %v1349, %v1413
          %v2032 = vmul.f32 %v1350, %v1414
          %v2033 = vmul.f32 %v1351, %v1399
          %v2034 = vmul.f32 %v1352, %v1400
          %v2035 = vmul.f32 %v1353, %v1401
          %v2036 = vmul.f32 %v1354, %v1402
          %v2037 = vmul.f32 %v1355, %v1403
          %v2038 = vmul.f32 %v1356, %v1404
          %v2039 = vmul.f32 %v1357, %v1405
          %v2040 = vmul.f32 %v1358, %v1406
          %v2041 = vmul.f32 %v1359, %v1407
          %v2042 = vmul.f32 %v1360, %v1408
          %v2043 = vmul.f32 %v1361, %v1409
          %v2044 = vmul.f32 %v1362, %v1410
          %v2045 = vmul.f32 %v1363, %v1411
          %v2046 = vmul.f32 %v1364, %v1412
          %v2047 = vmul.f32 %v1365, %v1413
          %v2048 = vmul.f32 %v1366, %v1414
          %v2049 = vmul.f32 %v1367, %v1399
          %v2050 = vmul.f32 %v1368, %v1400
          %v2051 = vmul.f32 %v1369, %v1401
          %v2052 = vmul.f32 %v1370, %v1402
          %v2053 = vmul.f32 %v1371, %v1403
          %v2054 = vmul.f32 %v1372, %v1404
          %v2055 = vmul.f32 %v1373, %v1405
          %v2056 = vmul.f32 %v1374, %v1406
          %v2057 = vmul.f32 %v1375, %v1407
          %v2058 = vmul.f32 %v1376, %v1408
          %v2059 = vmul.f32 %v1377, %v1409
          %v2060 = vmul.f32 %v1378, %v1410
          %v2061 = vmul.f32 %v1379, %v1411
          %v2062 = vmul.f32 %v1380, %v1412
          %v2063 = vmul.f32 %v1381, %v1413
          %v2064 = vmul.f32 %v1382, %v1414
          %v2065 = vmul.f32 %v1383, %v1399
          %v2066 = vmul.f32 %v1384, %v1400
          %v2067 = vmul.f32 %v1385, %v1401
          %v2068 = vmul.f32 %v1386, %v1402
          %v2069 = vmul.f32 %v1387, %v1403
          %v2070 = vmul.f32 %v1388, %v1404
          %v2071 = vmul.f32 %v1389, %v1405
          %v2072 = vmul.f32 %v1390, %v1406
          %v2073 = vmul.f32 %v1391, %v1407
          %v2074 = vmul.f32 %v1392, %v1408
          %v2075 = vmul.f32 %v1393, %v1409
          %v2076 = vmul.f32 %v1394, %v1410
          %v2077 = vmul.f32 %v1395, %v1411
          %v2078 = vmul.f32 %v1396, %v1412
          %v2079 = vmul.f32 %v1397, %v1413
          %v2080 = vmul.f32 %v1398, %v1414
          %v2081 = vmul.f32 %v1699, %v1415
          %v2082 = vmul.f32 %v1704, %v1416
          %v2083 = vmul.f32 %v1709, %v1417
          %v2084 = vmul.f32 %v1714, %v1418
          %v2085 = vmul.f32 %v1719, %v1419
          %v2086 = vmul.f32 %v1724, %v1420
          %v2087 = vmul.f32 %v1729, %v1421
          %v2088 = vmul.f32 %v1734, %v1422
          %v2089 = vmul.f32 %v1739, %v1423
          %v2090 = vmul.f32 %v1744, %v1424
          %v2091 = vmul.f32 %v1749, %v1425
          %v2092 = vmul.f32 %v1754, %v1426
          %v2093 = vmul.f32 %v1759, %v1427
          %v2094 = vmul.f32 %v1764, %v1428
          %v2095 = vmul.f32 %v1769, %v1429
          %v2096 = vmul.f32 %v1774, %v1430
          %v2097 = vmul.f32 %v1779, %v1415
          %v2098 = vmul.f32 %v1784, %v1416
          %v2099 = vmul.f32 %v1789, %v1417
          %v2100 = vmul.f32 %v1794, %v1418
          %v2101 = vmul.f32 %v1799, %v1419
          %v2102 = vmul.f32 %v1804, %v1420
          %v2103 = vmul.f32 %v1809, %v1421
          %v2104 = vmul.f32 %v1814, %v1422
          %v2105 = vmul.f32 %v1819, %v1423
          %v2106 = vmul.f32 %v1824, %v1424
          %v2107 = vmul.f32 %v1829, %v1425
          %v2108 = vmul.f32 %v1834, %v1426
          %v2109 = vmul.f32 %v1839, %v1427
          %v2110 = vmul.f32 %v1844, %v1428
          %v2111 = vmul.f32 %v1849, %v1429
          %v2112 = vmul.f32 %v1854, %v1430
          %v2113 = vmul.f32 %v1859, %v1415
          %v2114 = vmul.f32 %v1864, %v1416
          %v2115 = vmul.f32 %v1869, %v1417
          %v2116 = vmul.f32 %v1874, %v1418
          %v2117 = vmul.f32 %v1879, %v1419
          %v2118 = vmul.f32 %v1884, %v1420
          %v2119 = vmul.f32 %v1889, %v1421
          %v2120 = vmul.f32 %v1894, %v1422
          %v2121 = vmul.f32 %v1899, %v1423
          %v2122 = vmul.f32 %v1904, %v1424
          %v2123 = vmul.f32 %v1909, %v1425
          %v2124 = vmul.f32 %v1914, %v1426
          %v2125 = vmul.f32 %v1919, %v1427
          %v2126 = vmul.f32 %v1924, %v1428
          %v2127 = vmul.f32 %v1929, %v1429
          %v2128 = vmul.f32 %v1934, %v1430
          %v2129 = vmul.f32 %v1939, %v1415
          %v2130 = vmul.f32 %v1944, %v1416
          %v2131 = vmul.f32 %v1949, %v1417
          %v2132 = vmul.f32 %v1954, %v1418
          %v2133 = vmul.f32 %v1959, %v1419
          %v2134 = vmul.f32 %v1964, %v1420
          %v2135 = vmul.f32 %v1969, %v1421
          %v2136 = vmul.f32 %v1974, %v1422
          %v2137 = vmul.f32 %v1979, %v1423
          %v2138 = vmul.f32 %v1984, %v1424
          %v2139 = vmul.f32 %v1989, %v1425
          %v2140 = vmul.f32 %v1994, %v1426
          %v2141 = vmul.f32 %v1999, %v1427
          %v2142 = vmul.f32 %v2004, %v1428
          %v2143 = vmul.f32 %v2009, %v1429
          %v2144 = vmul.f32 %v2014, %v1430
          %v2145 = vadd.f32 %v2017, %v2081
          %v2146 = vadd.f32 %v2018, %v2082
          %v2147 = vadd.f32 %v2019, %v2083
          %v2148 = vadd.f32 %v2020, %v2084
          %v2149 = vadd.f32 %v2021, %v2085
          %v2150 = vadd.f32 %v2022, %v2086
          %v2151 = vadd.f32 %v2023, %v2087
          %v2152 = vadd.f32 %v2024, %v2088
          %v2153 = vadd.f32 %v2025, %v2089
          %v2154 = vadd.f32 %v2026, %v2090
          %v2155 = vadd.f32 %v2027, %v2091
          %v2156 = vadd.f32 %v2028, %v2092
          %v2157 = vadd.f32 %v2029, %v2093
          %v2158 = vadd.f32 %v2030, %v2094
          %v2159 = vadd.f32 %v2031, %v2095
          %v2160 = vadd.f32 %v2032, %v2096
          %v2161 = vadd.f32 %v2033, %v2097
          %v2162 = vadd.f32 %v2034, %v2098
          %v2163 = vadd.f32 %v2035, %v2099
          %v2164 = vadd.f32 %v2036, %v2100
          %v2165 = vadd.f32 %v2037, %v2101
          %v2166 = vadd.f32 %v2038, %v2102
          %v2167 = vadd.f32 %v2039, %v2103
          %v2168 = vadd.f32 %v2040, %v2104
          %v2169 = vadd.f32 %v2041, %v2105
          %v2170 = vadd.f32 %v2042, %v2106
          %v2171 = vadd.f32 %v2043, %v2107
          %v2172 = vadd.f32 %v2044, %v2108
          %v2173 = vadd.f32 %v2045, %v2109
          %v2174 = vadd.f32 %v2046, %v2110
          %v2175 = vadd.f32 %v2047, %v2111
          %v2176 = vadd.f32 %v2048, %v2112
          %v2177 = vadd.f32 %v2049, %v2113
          %v2178 = vadd.f32 %v2050, %v2114
          %v2179 = vadd.f32 %v2051, %v2115
          %v2180 = vadd.f32 %v2052, %v2116
          %v2181 = vadd.f32 %v2053, %v2117
          %v2182 = vadd.f32 %v2054, %v2118
          %v2183 = vadd.f32 %v2055, %v2119
          %v2184 = vadd.f32 %v2056, %v2120
          %v2185 = vadd.f32 %v2057, %v2121
          %v2186 = vadd.f32 %v2058, %v2122
          %v2187 = vadd.f32 %v2059, %v2123
          %v2188 = vadd.f32 %v2060, %v2124
          %v2189 = vadd.f32 %v2061, %v2125
          %v2190 = vadd.f32 %v2062, %v2126
          %v2191 = vadd.f32 %v2063, %v2127
          %v2192 = vadd.f32 %v2064, %v2128
          %v2193 = vadd.f32 %v2065, %v2129
          %v2194 = vadd.f32 %v2066, %v2130
          %v2195 = vadd.f32 %v2067, %v2131
          %v2196 = vadd.f32 %v2068, %v2132
          %v2197 = vadd.f32 %v2069, %v2133
          %v2198 = vadd.f32 %v2070, %v2134
          %v2199 = vadd.f32 %v2071, %v2135
          %v2200 = vadd.f32 %v2072, %v2136
          %v2201 = vadd.f32 %v2073, %v2137
          %v2202 = vadd.f32 %v2074, %v2138
          %v2203 = vadd.f32 %v2075, %v2139
          %v2204 = vadd.f32 %v2076, %v2140
          %v2205 = vadd.f32 %v2077, %v2141
          %v2206 = vadd.f32 %v2078, %v2142
          %v2207 = vadd.f32 %v2079, %v2143
          %v2208 = vadd.f32 %v2080, %v2144
          %v2209 = vmul.f32 %v2145, 0.125
          %v2210 = vmul.f32 %v2146, 0.125
          %v2211 = vmul.f32 %v2147, 0.125
          %v2212 = vmul.f32 %v2148, 0.125
          %v2213 = vmul.f32 %v2149, 0.125
          %v2214 = vmul.f32 %v2150, 0.125
          %v2215 = vmul.f32 %v2151, 0.125
          %v2216 = vmul.f32 %v2152, 0.125
          %v2217 = vmul.f32 %v2153, 0.125
          %v2218 = vmul.f32 %v2154, 0.125
          %v2219 = vmul.f32 %v2155, 0.125
          %v2220 = vmul.f32 %v2156, 0.125
          %v2221 = vmul.f32 %v2157, 0.125
          %v2222 = vmul.f32 %v2158, 0.125
          %v2223 = vmul.f32 %v2159, 0.125
          %v2224 = vmul.f32 %v2160, 0.125
          %v2225 = vmul.f32 %v2161, 0.125
          %v2226 = vmul.f32 %v2162, 0.125
          %v2227 = vmul.f32 %v2163, 0.125
          %v2228 = vmul.f32 %v2164, 0.125
          %v2229 = vmul.f32 %v2165, 0.125
          %v2230 = vmul.f32 %v2166, 0.125
          %v2231 = vmul.f32 %v2167, 0.125
          %v2232 = vmul.f32 %v2168, 0.125
          %v2233 = vmul.f32 %v2169, 0.125
          %v2234 = vmul.f32 %v2170, 0.125
          %v2235 = vmul.f32 %v2171, 0.125
          %v2236 = vmul.f32 %v2172, 0.125
          %v2237 = vmul.f32 %v2173, 0.125
          %v2238 = vmul.f32 %v2174, 0.125
          %v2239 = vmul.f32 %v2175, 0.125
          %v2240 = vmul.f32 %v2176, 0.125
          %v2241 = vmul.f32 %v2177, 0.125
          %v2242 = vmul.f32 %v2178, 0.125
          %v2243 = vmul.f32 %v2179, 0.125
          %v2244 = vmul.f32 %v2180, 0.125
          %v2245 = vmul.f32 %v2181, 0.125
          %v2246 = vmul.f32 %v2182, 0.125
          %v2247 = vmul.f32 %v2183, 0.125
          %v2248 = vmul.f32 %v2184, 0.125
          %v2249 = vmul.f32 %v2185, 0.125
          %v2250 = vmul.f32 %v2186, 0.125
          %v2251 = vmul.f32 %v2187, 0.125
          %v2252 = vmul.f32 %v2188, 0.125
          %v2253 = vmul.f32 %v2189, 0.125
          %v2254 = vmul.f32 %v2190, 0.125
          %v2255 = vmul.f32 %v2191, 0.125
          %v2256 = vmul.f32 %v2192, 0.125
          %v2257 = vmul.f32 %v2193, 0.125
          %v2258 = vmul.f32 %v2194, 0.125
          %v2259 = vmul.f32 %v2195, 0.125
          %v2260 = vmul.f32 %v2196, 0.125
          %v2261 = vmul.f32 %v2197, 0.125
          %v2262 = vmul.f32 %v2198, 0.125
          %v2263 = vmul.f32 %v2199, 0.125
          %v2264 = vmul.f32 %v2200, 0.125
          %v2265 = vmul.f32 %v2201, 0.125
          %v2266 = vmul.f32 %v2202, 0.125
          %v2267 = vmul.f32 %v2203, 0.125
          %v2268 = vmul.f32 %v2204, 0.125
          %v2269 = vmul.f32 %v2205, 0.125
          %v2270 = vmul.f32 %v2206, 0.125
          %v2271 = vmul.f32 %v2207, 0.125
          %v2272 = vmul.f32 %v2208, 0.125
          %2273 = vst.msk [vmem:[#allocation2] sm:$0xff] %vm1439, %v2209
          %2274 = vst.msk [vmem:[#allocation2 + $0x8] sm:$0xff] %vm1439, %v2210
          %2275 = vst.msk [vmem:[#allocation2 + $0x10] sm:$0xff] %vm1439, %v2211
          %2276 = vst.msk [vmem:[#allocation2 + $0x18] sm:$0xff] %vm1439, %v2212
          %2277 = vst.msk [vmem:[#allocation2 + $0x20] sm:$0xff] %vm1439, %v2213
          %2278 = vst.msk [vmem:[#allocation2 + $0x28] sm:$0xff] %vm1439, %v2214
          %2279 = vst.msk [vmem:[#allocation2 + $0x30] sm:$0xff] %vm1439, %v2215
          %2280 = vst.msk [vmem:[#allocation2 + $0x38] sm:$0xff] %vm1439, %v2216
          %2281 = vst.msk [vmem:[#allocation2 + $0x40] sm:$0xff] %vm1439, %v2217
          %2282 = vst.msk [vmem:[#allocation2 + $0x48] sm:$0xff] %vm1439, %v2218
          %2283 = vst.msk [vmem:[#allocation2 + $0x50] sm:$0xff] %vm1439, %v2219
          %2284 = vst.msk [vmem:[#allocation2 + $0x58] sm:$0xff] %vm1439, %v2220
          %2285 = vst.msk [vmem:[#allocation2 + $0x60] sm:$0xff] %vm1439, %v2221
          %2286 = vst.msk [vmem:[#allocation2 + $0x68] sm:$0xff] %vm1439, %v2222
          %2287 = vst.msk [vmem:[#allocation2 + $0x70] sm:$0xff] %vm1439, %v2223
          %2288 = vst.msk [vmem:[#allocation2 + $0x78] sm:$0xff] %vm1439, %v2224
          %2289 = vst.msk [vmem:[#allocation2 + $0x80] sm:$0xff] %vm1439, %v2225
          %2290 = vst.msk [vmem:[#allocation2 + $0x88] sm:$0xff] %vm1439, %v2226
          %2291 = vst.msk [vmem:[#allocation2 + $0x90] sm:$0xff] %vm1439, %v2227
          %2292 = vst.msk [vmem:[#allocation2 + $0x98] sm:$0xff] %vm1439, %v2228
          %2293 = vst.msk [vmem:[#allocation2 + $0xa0] sm:$0xff] %vm1439, %v2229
          %2294 = vst.msk [vmem:[#allocation2 + $0xa8] sm:$0xff] %vm1439, %v2230
          %2295 = vst.msk [vmem:[#allocation2 + $0xb0] sm:$0xff] %vm1439, %v2231
          %2296 = vst.msk [vmem:[#allocation2 + $0xb8] sm:$0xff] %vm1439, %v2232
          %2297 = vst.msk [vmem:[#allocation2 + $0xc0] sm:$0xff] %vm1439, %v2233
          %2298 = vst.msk [vmem:[#allocation2 + $0xc8] sm:$0xff] %vm1439, %v2234
          %2299 = vst.msk [vmem:[#allocation2 + $0xd0] sm:$0xff] %vm1439, %v2235
          %2300 = vst.msk [vmem:[#allocation2 + $0xd8] sm:$0xff] %vm1439, %v2236
          %2301 = vst.msk [vmem:[#allocation2 + $0xe0] sm:$0xff] %vm1439, %v2237
          %2302 = vst.msk [vmem:[#allocation2 + $0xe8] sm:$0xff] %vm1439, %v2238
          %2303 = vst.msk [vmem:[#allocation2 + $0xf0] sm:$0xff] %vm1439, %v2239
          %2304 = vst.msk [vmem:[#allocation2 + $0xf8] sm:$0xff] %vm1439, %v2240
          %2305 = vst.msk [vmem:[#allocation2 + $0x100] sm:$0xff] %vm1439, %v2241
          %2306 = vst.msk [vmem:[#allocation2 + $0x108] sm:$0xff] %vm1439, %v2242
          %2307 = vst.msk [vmem:[#allocation2 + $0x110] sm:$0xff] %vm1439, %v2243
          %2308 = vst.msk [vmem:[#allocation2 + $0x118] sm:$0xff] %vm1439, %v2244
          %2309 = vst.msk [vmem:[#allocation2 + $0x120] sm:$0xff] %vm1439, %v2245
          %2310 = vst.msk [vmem:[#allocation2 + $0x128] sm:$0xff] %vm1439, %v2246
          %2311 = vst.msk [vmem:[#allocation2 + $0x130] sm:$0xff] %vm1439, %v2247
          %2312 = vst.msk [vmem:[#allocation2 + $0x138] sm:$0xff] %vm1439, %v2248
          %2313 = vst.msk [vmem:[#allocation2 + $0x140] sm:$0xff] %vm1439, %v2249
          %2314 = vst.msk [vmem:[#allocation2 + $0x148] sm:$0xff] %vm1439, %v2250
          %2315 = vst.msk [vmem:[#allocation2 + $0x150] sm:$0xff] %vm1439, %v2251
          %2316 = vst.msk [vmem:[#allocation2 + $0x158] sm:$0xff] %vm1439, %v2252
          %2317 = vst.msk [vmem:[#allocation2 + $0x160] sm:$0xff] %vm1439, %v2253
          %2318 = vst.msk [vmem:[#allocation2 + $0x168] sm:$0xff] %vm1439, %v2254
          %2319 = vst.msk [vmem:[#allocation2 + $0x170] sm:$0xff] %vm1439, %v2255
          %2320 = vst.msk [vmem:[#allocation2 + $0x178] sm:$0xff] %vm1439, %v2256
          %2321 = vst.msk [vmem:[#allocation2 + $0x180] sm:$0xff] %vm1439, %v2257
          %2322 = vst.msk [vmem:[#allocation2 + $0x188] sm:$0xff] %vm1439, %v2258
          %2323 = vst.msk [vmem:[#allocation2 + $0x190] sm:$0xff] %vm1439, %v2259
          %2324 = vst.msk [vmem:[#allocation2 + $0x198] sm:$0xff] %vm1439, %v2260
          %2325 = vst.msk [vmem:[#allocation2 + $0x1a0] sm:$0xff] %vm1439, %v2261
          %2326 = vst.msk [vmem:[#allocation2 + $0x1a8] sm:$0xff] %vm1439, %v2262
          %2327 = vst.msk [vmem:[#allocation2 + $0x1b0] sm:$0xff] %vm1439, %v2263
          %2328 = vst.msk [vmem:[#allocation2 + $0x1b8] sm:$0xff] %vm1439, %v2264
          %2329 = vst.msk [vmem:[#allocation2 + $0x1c0] sm:$0xff] %vm1439, %v2265
          %2330 = vst.msk [vmem:[#allocation2 + $0x1c8] sm:$0xff] %vm1439, %v2266
          %2331 = vst.msk [vmem:[#allocation2 + $0x1d0] sm:$0xff] %vm1439, %v2267
          %2332 = vst.msk [vmem:[#allocation2 + $0x1d8] sm:$0xff] %vm1439, %v2268
          %2333 = vst.msk [vmem:[#allocation2 + $0x1e0] sm:$0xff] %vm1439, %v2269
          %2334 = vst.msk [vmem:[#allocation2 + $0x1e8] sm:$0xff] %vm1439, %v2270
          %2335 = vst.msk [vmem:[#allocation2 + $0x1f0] sm:$0xff] %vm1439, %v2271
          %2336 = vst.msk [vmem:[#allocation2 + $0x1f8] sm:$0xff] %vm1439, %v2272
          %vm2337 = vcmask 7168
          %2338 = vst.msk [vmem:[#allocation3] sm:$0xff] %vm2337, -1e+30
          %2339 = vst.msk [vmem:[#allocation3 + $0x8] sm:$0xff] %vm2337, -1e+30
          %2340 = vst.msk [vmem:[#allocation3 + $0x10] sm:$0xff] %vm2337, -1e+30
          %2341 = vst.msk [vmem:[#allocation3 + $0x18] sm:$0xff] %vm2337, -1e+30
          %2342 = vst.msk [vmem:[#allocation3 + $0x20] sm:$0xff] %vm2337, -1e+30
          %2343 = vst.msk [vmem:[#allocation3 + $0x28] sm:$0xff] %vm2337, -1e+30
          %2344 = vst.msk [vmem:[#allocation3 + $0x30] sm:$0xff] %vm2337, -1e+30
          %2345 = vst.msk [vmem:[#allocation3 + $0x38] sm:$0xff] %vm2337, -1e+30
          %2346 = vst.msk [vmem:[#allocation3 + $0x40] sm:$0xff] %vm2337, -1e+30
          %2347 = vst.msk [vmem:[#allocation3 + $0x48] sm:$0xff] %vm2337, -1e+30
          %2348 = vst.msk [vmem:[#allocation3 + $0x50] sm:$0xff] %vm2337, -1e+30
          %2349 = vst.msk [vmem:[#allocation3 + $0x58] sm:$0xff] %vm2337, -1e+30
          %2350 = vst.msk [vmem:[#allocation3 + $0x60] sm:$0xff] %vm2337, -1e+30
          %2351 = vst.msk [vmem:[#allocation3 + $0x68] sm:$0xff] %vm2337, -1e+30
          %2352 = vst.msk [vmem:[#allocation3 + $0x70] sm:$0xff] %vm2337, -1e+30
          %2353 = vst.msk [vmem:[#allocation3 + $0x78] sm:$0xff] %vm2337, -1e+30
          %2354 = vst.msk [vmem:[#allocation3 + $0x80] sm:$0xff] %vm2337, -1e+30
          %2355 = vst.msk [vmem:[#allocation3 + $0x88] sm:$0xff] %vm2337, -1e+30
          %2356 = vst.msk [vmem:[#allocation3 + $0x90] sm:$0xff] %vm2337, -1e+30
          %2357 = vst.msk [vmem:[#allocation3 + $0x98] sm:$0xff] %vm2337, -1e+30
          %2358 = vst.msk [vmem:[#allocation3 + $0xa0] sm:$0xff] %vm2337, -1e+30
          %2359 = vst.msk [vmem:[#allocation3 + $0xa8] sm:$0xff] %vm2337, -1e+30
          %2360 = vst.msk [vmem:[#allocation3 + $0xb0] sm:$0xff] %vm2337, -1e+30
          %2361 = vst.msk [vmem:[#allocation3 + $0xb8] sm:$0xff] %vm2337, -1e+30
          %2362 = vst.msk [vmem:[#allocation3 + $0xc0] sm:$0xff] %vm2337, -1e+30
          %2363 = vst.msk [vmem:[#allocation3 + $0xc8] sm:$0xff] %vm2337, -1e+30
          %2364 = vst.msk [vmem:[#allocation3 + $0xd0] sm:$0xff] %vm2337, -1e+30
          %2365 = vst.msk [vmem:[#allocation3 + $0xd8] sm:$0xff] %vm2337, -1e+30
          %2366 = vst.msk [vmem:[#allocation3 + $0xe0] sm:$0xff] %vm2337, -1e+30
          %2367 = vst.msk [vmem:[#allocation3 + $0xe8] sm:$0xff] %vm2337, -1e+30
          %2368 = vst.msk [vmem:[#allocation3 + $0xf0] sm:$0xff] %vm2337, -1e+30
          %2369 = vst.msk [vmem:[#allocation3 + $0xf8] sm:$0xff] %vm2337, -1e+30
          %2370 = vst.msk [vmem:[#allocation3 + $0x100] sm:$0xff] %vm2337, -1e+30
          %2371 = vst.msk [vmem:[#allocation3 + $0x108] sm:$0xff] %vm2337, -1e+30
          %2372 = vst.msk [vmem:[#allocation3 + $0x110] sm:$0xff] %vm2337, -1e+30
          %2373 = vst.msk [vmem:[#allocation3 + $0x118] sm:$0xff] %vm2337, -1e+30
          %2374 = vst.msk [vmem:[#allocation3 + $0x120] sm:$0xff] %vm2337, -1e+30
          %2375 = vst.msk [vmem:[#allocation3 + $0x128] sm:$0xff] %vm2337, -1e+30
          %2376 = vst.msk [vmem:[#allocation3 + $0x130] sm:$0xff] %vm2337, -1e+30
          %2377 = vst.msk [vmem:[#allocation3 + $0x138] sm:$0xff] %vm2337, -1e+30
          %2378 = vst.msk [vmem:[#allocation3 + $0x140] sm:$0xff] %vm2337, -1e+30
          %2379 = vst.msk [vmem:[#allocation3 + $0x148] sm:$0xff] %vm2337, -1e+30
          %2380 = vst.msk [vmem:[#allocation3 + $0x150] sm:$0xff] %vm2337, -1e+30
          %2381 = vst.msk [vmem:[#allocation3 + $0x158] sm:$0xff] %vm2337, -1e+30
          %2382 = vst.msk [vmem:[#allocation3 + $0x160] sm:$0xff] %vm2337, -1e+30
          %2383 = vst.msk [vmem:[#allocation3 + $0x168] sm:$0xff] %vm2337, -1e+30
          %2384 = vst.msk [vmem:[#allocation3 + $0x170] sm:$0xff] %vm2337, -1e+30
          %2385 = vst.msk [vmem:[#allocation3 + $0x178] sm:$0xff] %vm2337, -1e+30
          %2386 = vst.msk [vmem:[#allocation3 + $0x180] sm:$0xff] %vm2337, -1e+30
          %2387 = vst.msk [vmem:[#allocation3 + $0x188] sm:$0xff] %vm2337, -1e+30
          %2388 = vst.msk [vmem:[#allocation3 + $0x190] sm:$0xff] %vm2337, -1e+30
          %2389 = vst.msk [vmem:[#allocation3 + $0x198] sm:$0xff] %vm2337, -1e+30
          %2390 = vst.msk [vmem:[#allocation3 + $0x1a0] sm:$0xff] %vm2337, -1e+30
          %2391 = vst.msk [vmem:[#allocation3 + $0x1a8] sm:$0xff] %vm2337, -1e+30
          %2392 = vst.msk [vmem:[#allocation3 + $0x1b0] sm:$0xff] %vm2337, -1e+30
          %2393 = vst.msk [vmem:[#allocation3 + $0x1b8] sm:$0xff] %vm2337, -1e+30
          %2394 = vst.msk [vmem:[#allocation3 + $0x1c0] sm:$0xff] %vm2337, -1e+30
          %2395 = vst.msk [vmem:[#allocation3 + $0x1c8] sm:$0xff] %vm2337, -1e+30
          %2396 = vst.msk [vmem:[#allocation3 + $0x1d0] sm:$0xff] %vm2337, -1e+30
          %2397 = vst.msk [vmem:[#allocation3 + $0x1d8] sm:$0xff] %vm2337, -1e+30
          %2398 = vst.msk [vmem:[#allocation3 + $0x1e0] sm:$0xff] %vm2337, -1e+30
          %2399 = vst.msk [vmem:[#allocation3 + $0x1e8] sm:$0xff] %vm2337, -1e+30
          %2400 = vst.msk [vmem:[#allocation3 + $0x1f0] sm:$0xff] %vm2337, -1e+30
          %2401 = vst.msk [vmem:[#allocation3 + $0x1f8] sm:$0xff] %vm2337, -1e+30
          %2402 = vst.msk [vmem:[#allocation4] sm:$0xff] %vm2337, 0.0
          %2403 = vst.msk [vmem:[#allocation4 + $0x8] sm:$0xff] %vm2337, 0.0
          %2404 = vst.msk [vmem:[#allocation4 + $0x10] sm:$0xff] %vm2337, 0.0
          %2405 = vst.msk [vmem:[#allocation4 + $0x18] sm:$0xff] %vm2337, 0.0
          %2406 = vst.msk [vmem:[#allocation4 + $0x20] sm:$0xff] %vm2337, 0.0
          %2407 = vst.msk [vmem:[#allocation4 + $0x28] sm:$0xff] %vm2337, 0.0
          %2408 = vst.msk [vmem:[#allocation4 + $0x30] sm:$0xff] %vm2337, 0.0
          %2409 = vst.msk [vmem:[#allocation4 + $0x38] sm:$0xff] %vm2337, 0.0
          %2410 = vst.msk [vmem:[#allocation4 + $0x40] sm:$0xff] %vm2337, 0.0
          %2411 = vst.msk [vmem:[#allocation4 + $0x48] sm:$0xff] %vm2337, 0.0
          %2412 = vst.msk [vmem:[#allocation4 + $0x50] sm:$0xff] %vm2337, 0.0
          %2413 = vst.msk [vmem:[#allocation4 + $0x58] sm:$0xff] %vm2337, 0.0
          %2414 = vst.msk [vmem:[#allocation4 + $0x60] sm:$0xff] %vm2337, 0.0
          %2415 = vst.msk [vmem:[#allocation4 + $0x68] sm:$0xff] %vm2337, 0.0
          %2416 = vst.msk [vmem:[#allocation4 + $0x70] sm:$0xff] %vm2337, 0.0
          %2417 = vst.msk [vmem:[#allocation4 + $0x78] sm:$0xff] %vm2337, 0.0
          %2418 = vst.msk [vmem:[#allocation4 + $0x80] sm:$0xff] %vm2337, 0.0
          %2419 = vst.msk [vmem:[#allocation4 + $0x88] sm:$0xff] %vm2337, 0.0
          %2420 = vst.msk [vmem:[#allocation4 + $0x90] sm:$0xff] %vm2337, 0.0
          %2421 = vst.msk [vmem:[#allocation4 + $0x98] sm:$0xff] %vm2337, 0.0
          %2422 = vst.msk [vmem:[#allocation4 + $0xa0] sm:$0xff] %vm2337, 0.0
          %2423 = vst.msk [vmem:[#allocation4 + $0xa8] sm:$0xff] %vm2337, 0.0
          %2424 = vst.msk [vmem:[#allocation4 + $0xb0] sm:$0xff] %vm2337, 0.0
          %2425 = vst.msk [vmem:[#allocation4 + $0xb8] sm:$0xff] %vm2337, 0.0
          %2426 = vst.msk [vmem:[#allocation4 + $0xc0] sm:$0xff] %vm2337, 0.0
          %2427 = vst.msk [vmem:[#allocation4 + $0xc8] sm:$0xff] %vm2337, 0.0
          %2428 = vst.msk [vmem:[#allocation4 + $0xd0] sm:$0xff] %vm2337, 0.0
          %2429 = vst.msk [vmem:[#allocation4 + $0xd8] sm:$0xff] %vm2337, 0.0
          %2430 = vst.msk [vmem:[#allocation4 + $0xe0] sm:$0xff] %vm2337, 0.0
          %2431 = vst.msk [vmem:[#allocation4 + $0xe8] sm:$0xff] %vm2337, 0.0
          %2432 = vst.msk [vmem:[#allocation4 + $0xf0] sm:$0xff] %vm2337, 0.0
          %2433 = vst.msk [vmem:[#allocation4 + $0xf8] sm:$0xff] %vm2337, 0.0
          %2434 = vst.msk [vmem:[#allocation4 + $0x100] sm:$0xff] %vm2337, 0.0
          %2435 = vst.msk [vmem:[#allocation4 + $0x108] sm:$0xff] %vm2337, 0.0
          %2436 = vst.msk [vmem:[#allocation4 + $0x110] sm:$0xff] %vm2337, 0.0
          %2437 = vst.msk [vmem:[#allocation4 + $0x118] sm:$0xff] %vm2337, 0.0
          %2438 = vst.msk [vmem:[#allocation4 + $0x120] sm:$0xff] %vm2337, 0.0
          %2439 = vst.msk [vmem:[#allocation4 + $0x128] sm:$0xff] %vm2337, 0.0
          %2440 = vst.msk [vmem:[#allocation4 + $0x130] sm:$0xff] %vm2337, 0.0
          %2441 = vst.msk [vmem:[#allocation4 + $0x138] sm:$0xff] %vm2337, 0.0
          %2442 = vst.msk [vmem:[#allocation4 + $0x140] sm:$0xff] %vm2337, 0.0
          %2443 = vst.msk [vmem:[#allocation4 + $0x148] sm:$0xff] %vm2337, 0.0
          %2444 = vst.msk [vmem:[#allocation4 + $0x150] sm:$0xff] %vm2337, 0.0
          %2445 = vst.msk [vmem:[#allocation4 + $0x158] sm:$0xff] %vm2337, 0.0
          %2446 = vst.msk [vmem:[#allocation4 + $0x160] sm:$0xff] %vm2337, 0.0
          %2447 = vst.msk [vmem:[#allocation4 + $0x168] sm:$0xff] %vm2337, 0.0
          %2448 = vst.msk [vmem:[#allocation4 + $0x170] sm:$0xff] %vm2337, 0.0
          %2449 = vst.msk [vmem:[#allocation4 + $0x178] sm:$0xff] %vm2337, 0.0
          %2450 = vst.msk [vmem:[#allocation4 + $0x180] sm:$0xff] %vm2337, 0.0
          %2451 = vst.msk [vmem:[#allocation4 + $0x188] sm:$0xff] %vm2337, 0.0
          %2452 = vst.msk [vmem:[#allocation4 + $0x190] sm:$0xff] %vm2337, 0.0
          %2453 = vst.msk [vmem:[#allocation4 + $0x198] sm:$0xff] %vm2337, 0.0
          %2454 = vst.msk [vmem:[#allocation4 + $0x1a0] sm:$0xff] %vm2337, 0.0
          %2455 = vst.msk [vmem:[#allocation4 + $0x1a8] sm:$0xff] %vm2337, 0.0
          %2456 = vst.msk [vmem:[#allocation4 + $0x1b0] sm:$0xff] %vm2337, 0.0
          %2457 = vst.msk [vmem:[#allocation4 + $0x1b8] sm:$0xff] %vm2337, 0.0
          %2458 = vst.msk [vmem:[#allocation4 + $0x1c0] sm:$0xff] %vm2337, 0.0
          %2459 = vst.msk [vmem:[#allocation4 + $0x1c8] sm:$0xff] %vm2337, 0.0
          %2460 = vst.msk [vmem:[#allocation4 + $0x1d0] sm:$0xff] %vm2337, 0.0
          %2461 = vst.msk [vmem:[#allocation4 + $0x1d8] sm:$0xff] %vm2337, 0.0
          %2462 = vst.msk [vmem:[#allocation4 + $0x1e0] sm:$0xff] %vm2337, 0.0
          %2463 = vst.msk [vmem:[#allocation4 + $0x1e8] sm:$0xff] %vm2337, 0.0
          %2464 = vst.msk [vmem:[#allocation4 + $0x1f0] sm:$0xff] %vm2337, 0.0
          %2465 = vst.msk [vmem:[#allocation4 + $0x1f8] sm:$0xff] %vm2337, 0.0
          %2466 = vst.msk [vmem:[#allocation5] sm:$0xff] %vm1439, 0.0
          %2467 = vst.msk [vmem:[#allocation5 + $0x8] sm:$0xff] %vm1439, 0.0
          %2468 = vst.msk [vmem:[#allocation5 + $0x10] sm:$0xff] %vm1439, 0.0
          %2469 = vst.msk [vmem:[#allocation5 + $0x18] sm:$0xff] %vm1439, 0.0
          %2470 = vst.msk [vmem:[#allocation5 + $0x20] sm:$0xff] %vm1439, 0.0
          %2471 = vst.msk [vmem:[#allocation5 + $0x28] sm:$0xff] %vm1439, 0.0
          %2472 = vst.msk [vmem:[#allocation5 + $0x30] sm:$0xff] %vm1439, 0.0
          %2473 = vst.msk [vmem:[#allocation5 + $0x38] sm:$0xff] %vm1439, 0.0
          %2474 = vst.msk [vmem:[#allocation5 + $0x40] sm:$0xff] %vm1439, 0.0
          %2475 = vst.msk [vmem:[#allocation5 + $0x48] sm:$0xff] %vm1439, 0.0
          %2476 = vst.msk [vmem:[#allocation5 + $0x50] sm:$0xff] %vm1439, 0.0
          %2477 = vst.msk [vmem:[#allocation5 + $0x58] sm:$0xff] %vm1439, 0.0
          %2478 = vst.msk [vmem:[#allocation5 + $0x60] sm:$0xff] %vm1439, 0.0
          %2479 = vst.msk [vmem:[#allocation5 + $0x68] sm:$0xff] %vm1439, 0.0
          %2480 = vst.msk [vmem:[#allocation5 + $0x70] sm:$0xff] %vm1439, 0.0
          %2481 = vst.msk [vmem:[#allocation5 + $0x78] sm:$0xff] %vm1439, 0.0
          %2482 = vst.msk [vmem:[#allocation5 + $0x80] sm:$0xff] %vm1439, 0.0
          %2483 = vst.msk [vmem:[#allocation5 + $0x88] sm:$0xff] %vm1439, 0.0
          %2484 = vst.msk [vmem:[#allocation5 + $0x90] sm:$0xff] %vm1439, 0.0
          %2485 = vst.msk [vmem:[#allocation5 + $0x98] sm:$0xff] %vm1439, 0.0
          %2486 = vst.msk [vmem:[#allocation5 + $0xa0] sm:$0xff] %vm1439, 0.0
          %2487 = vst.msk [vmem:[#allocation5 + $0xa8] sm:$0xff] %vm1439, 0.0
          %2488 = vst.msk [vmem:[#allocation5 + $0xb0] sm:$0xff] %vm1439, 0.0
          %2489 = vst.msk [vmem:[#allocation5 + $0xb8] sm:$0xff] %vm1439, 0.0
          %2490 = vst.msk [vmem:[#allocation5 + $0xc0] sm:$0xff] %vm1439, 0.0
          %2491 = vst.msk [vmem:[#allocation5 + $0xc8] sm:$0xff] %vm1439, 0.0
          %2492 = vst.msk [vmem:[#allocation5 + $0xd0] sm:$0xff] %vm1439, 0.0
          %2493 = vst.msk [vmem:[#allocation5 + $0xd8] sm:$0xff] %vm1439, 0.0
          %2494 = vst.msk [vmem:[#allocation5 + $0xe0] sm:$0xff] %vm1439, 0.0
          %2495 = vst.msk [vmem:[#allocation5 + $0xe8] sm:$0xff] %vm1439, 0.0
          %2496 = vst.msk [vmem:[#allocation5 + $0xf0] sm:$0xff] %vm1439, 0.0
          %2497 = vst.msk [vmem:[#allocation5 + $0xf8] sm:$0xff] %vm1439, 0.0
          %2498 = vst.msk [vmem:[#allocation5 + $0x100] sm:$0xff] %vm1439, 0.0
          %2499 = vst.msk [vmem:[#allocation5 + $0x108] sm:$0xff] %vm1439, 0.0
          %2500 = vst.msk [vmem:[#allocation5 + $0x110] sm:$0xff] %vm1439, 0.0
          %2501 = vst.msk [vmem:[#allocation5 + $0x118] sm:$0xff] %vm1439, 0.0
          %2502 = vst.msk [vmem:[#allocation5 + $0x120] sm:$0xff] %vm1439, 0.0
          %2503 = vst.msk [vmem:[#allocation5 + $0x128] sm:$0xff] %vm1439, 0.0
          %2504 = vst.msk [vmem:[#allocation5 + $0x130] sm:$0xff] %vm1439, 0.0
          %2505 = vst.msk [vmem:[#allocation5 + $0x138] sm:$0xff] %vm1439, 0.0
          %2506 = vst.msk [vmem:[#allocation5 + $0x140] sm:$0xff] %vm1439, 0.0
          %2507 = vst.msk [vmem:[#allocation5 + $0x148] sm:$0xff] %vm1439, 0.0
          %2508 = vst.msk [vmem:[#allocation5 + $0x150] sm:$0xff] %vm1439, 0.0
          %2509 = vst.msk [vmem:[#allocation5 + $0x158] sm:$0xff] %vm1439, 0.0
          %2510 = vst.msk [vmem:[#allocation5 + $0x160] sm:$0xff] %vm1439, 0.0
          %2511 = vst.msk [vmem:[#allocation5 + $0x168] sm:$0xff] %vm1439, 0.0
          %2512 = vst.msk [vmem:[#allocation5 + $0x170] sm:$0xff] %vm1439, 0.0
          %2513 = vst.msk [vmem:[#allocation5 + $0x178] sm:$0xff] %vm1439, 0.0
          %2514 = vst.msk [vmem:[#allocation5 + $0x180] sm:$0xff] %vm1439, 0.0
          %2515 = vst.msk [vmem:[#allocation5 + $0x188] sm:$0xff] %vm1439, 0.0
          %2516 = vst.msk [vmem:[#allocation5 + $0x190] sm:$0xff] %vm1439, 0.0
          %2517 = vst.msk [vmem:[#allocation5 + $0x198] sm:$0xff] %vm1439, 0.0
          %2518 = vst.msk [vmem:[#allocation5 + $0x1a0] sm:$0xff] %vm1439, 0.0
          %2519 = vst.msk [vmem:[#allocation5 + $0x1a8] sm:$0xff] %vm1439, 0.0
          %2520 = vst.msk [vmem:[#allocation5 + $0x1b0] sm:$0xff] %vm1439, 0.0
          %2521 = vst.msk [vmem:[#allocation5 + $0x1b8] sm:$0xff] %vm1439, 0.0
          %2522 = vst.msk [vmem:[#allocation5 + $0x1c0] sm:$0xff] %vm1439, 0.0
          %2523 = vst.msk [vmem:[#allocation5 + $0x1c8] sm:$0xff] %vm1439, 0.0
          %2524 = vst.msk [vmem:[#allocation5 + $0x1d0] sm:$0xff] %vm1439, 0.0
          %2525 = vst.msk [vmem:[#allocation5 + $0x1d8] sm:$0xff] %vm1439, 0.0
          %2526 = vst.msk [vmem:[#allocation5 + $0x1e0] sm:$0xff] %vm1439, 0.0
          %2527 = vst.msk [vmem:[#allocation5 + $0x1e8] sm:$0xff] %vm1439, 0.0
          %2528 = vst.msk [vmem:[#allocation5 + $0x1f0] sm:$0xff] %vm1439, 0.0
          %2529 = vst.msk [vmem:[#allocation5 + $0x1f8] sm:$0xff] %vm1439, 0.0
        $region170: #{multi_head_attention.4} parent=153 // pred_fallthru
          _
        %s2530 = sadd.s32 %s1329, 127
        %p2531 = scmp.le.s32.totalorder %s1330, %s2530
        // Predicated region
        $region171: #{multi_head_attention.4} parent=153 // pred_check
          %p2532 = pneg %p2531
        $region172: #{multi_head_attention.4} parent=153 // pred_check_branch
          %2534 = sbr.rel (%p2532) target = $region174
        $region173: #{multi_head_attention.4} parent=153 // pred_region
          %v2535 = vld [vmem:[%s1236] sm:$0xff]
          %v2536 = vld [vmem:[%s1236 + $0x8] sm:$0xff]
          %v2537 = vld [vmem:[%s1236 + $0x10] sm:$0xff]
          %v2538 = vld [vmem:[%s1236 + $0x18] sm:$0xff]
          %v2539 = vld [vmem:[%s1236 + $0x20] sm:$0xff]
          %v2540 = vld [vmem:[%s1236 + $0x28] sm:$0xff]
          %v2541 = vld [vmem:[%s1236 + $0x30] sm:$0xff]
          %v2542 = vld [vmem:[%s1236 + $0x38] sm:$0xff]
          %v2543 = vld [vmem:[%s1236 + $0x40] sm:$0xff]
          %v2544 = vld [vmem:[%s1236 + $0x48] sm:$0xff]
          %v2545 = vld [vmem:[%s1236 + $0x50] sm:$0xff]
          %v2546 = vld [vmem:[%s1236 + $0x58] sm:$0xff]
          %v2547 = vld [vmem:[%s1236 + $0x60] sm:$0xff]
          %v2548 = vld [vmem:[%s1236 + $0x68] sm:$0xff]
          %v2549 = vld [vmem:[%s1236 + $0x70] sm:$0xff]
          %v2550 = vld [vmem:[%s1236 + $0x78] sm:$0xff]
          %v2551 = vld [vmem:[%s1236 + $0x80] sm:$0xff]
          %v2552 = vld [vmem:[%s1236 + $0x88] sm:$0xff]
          %v2553 = vld [vmem:[%s1236 + $0x90] sm:$0xff]
          %v2554 = vld [vmem:[%s1236 + $0x98] sm:$0xff]
          %v2555 = vld [vmem:[%s1236 + $0xa0] sm:$0xff]
          %v2556 = vld [vmem:[%s1236 + $0xa8] sm:$0xff]
          %v2557 = vld [vmem:[%s1236 + $0xb0] sm:$0xff]
          %v2558 = vld [vmem:[%s1236 + $0xb8] sm:$0xff]
          %v2559 = vld [vmem:[%s1236 + $0xc0] sm:$0xff]
          %v2560 = vld [vmem:[%s1236 + $0xc8] sm:$0xff]
          %v2561 = vld [vmem:[%s1236 + $0xd0] sm:$0xff]
          %v2562 = vld [vmem:[%s1236 + $0xd8] sm:$0xff]
          %v2563 = vld [vmem:[%s1236 + $0xe0] sm:$0xff]
          %v2564 = vld [vmem:[%s1236 + $0xe8] sm:$0xff]
          %v2565 = vld [vmem:[%s1236 + $0xf0] sm:$0xff]
          %v2566 = vld [vmem:[%s1236 + $0xf8] sm:$0xff]
          %v2567 = vld [vmem:[%s1236 + $0x100] sm:$0xff]
          %v2568 = vld [vmem:[%s1236 + $0x108] sm:$0xff]
          %v2569 = vld [vmem:[%s1236 + $0x110] sm:$0xff]
          %v2570 = vld [vmem:[%s1236 + $0x118] sm:$0xff]
          %v2571 = vld [vmem:[%s1236 + $0x120] sm:$0xff]
          %v2572 = vld [vmem:[%s1236 + $0x128] sm:$0xff]
          %v2573 = vld [vmem:[%s1236 + $0x130] sm:$0xff]
          %v2574 = vld [vmem:[%s1236 + $0x138] sm:$0xff]
          %v2575 = vld [vmem:[%s1236 + $0x140] sm:$0xff]
          %v2576 = vld [vmem:[%s1236 + $0x148] sm:$0xff]
          %v2577 = vld [vmem:[%s1236 + $0x150] sm:$0xff]
          %v2578 = vld [vmem:[%s1236 + $0x158] sm:$0xff]
          %v2579 = vld [vmem:[%s1236 + $0x160] sm:$0xff]
          %v2580 = vld [vmem:[%s1236 + $0x168] sm:$0xff]
          %v2581 = vld [vmem:[%s1236 + $0x170] sm:$0xff]
          %v2582 = vld [vmem:[%s1236 + $0x178] sm:$0xff]
          %v2583 = vld [vmem:[%s1236 + $0x180] sm:$0xff]
          %v2584 = vld [vmem:[%s1236 + $0x188] sm:$0xff]
          %v2585 = vld [vmem:[%s1236 + $0x190] sm:$0xff]
          %v2586 = vld [vmem:[%s1236 + $0x198] sm:$0xff]
          %v2587 = vld [vmem:[%s1236 + $0x1a0] sm:$0xff]
          %v2588 = vld [vmem:[%s1236 + $0x1a8] sm:$0xff]
          %v2589 = vld [vmem:[%s1236 + $0x1b0] sm:$0xff]
          %v2590 = vld [vmem:[%s1236 + $0x1b8] sm:$0xff]
          %v2591 = vld [vmem:[%s1236 + $0x1c0] sm:$0xff]
          %v2592 = vld [vmem:[%s1236 + $0x1c8] sm:$0xff]
          %v2593 = vld [vmem:[%s1236 + $0x1d0] sm:$0xff]
          %v2594 = vld [vmem:[%s1236 + $0x1d8] sm:$0xff]
          %v2595 = vld [vmem:[%s1236 + $0x1e0] sm:$0xff]
          %v2596 = vld [vmem:[%s1236 + $0x1e8] sm:$0xff]
          %v2597 = vld [vmem:[%s1236 + $0x1f0] sm:$0xff]
          %v2598 = vld [vmem:[%s1236 + $0x1f8] sm:$0xff]
          %v2599 = vld [vmem:[%s1317] sm:$0xff]
          %v2600 = vld [vmem:[%s1317 + $0x8] sm:$0xff]
          %v2601 = vld [vmem:[%s1317 + $0x10] sm:$0xff]
          %v2602 = vld [vmem:[%s1317 + $0x18] sm:$0xff]
          %v2603 = vld [vmem:[%s1317 + $0x20] sm:$0xff]
          %v2604 = vld [vmem:[%s1317 + $0x28] sm:$0xff]
          %v2605 = vld [vmem:[%s1317 + $0x30] sm:$0xff]
          %v2606 = vld [vmem:[%s1317 + $0x38] sm:$0xff]
          %v2607 = vld [vmem:[%s1317 + $0x40] sm:$0xff]
          %v2608 = vld [vmem:[%s1317 + $0x48] sm:$0xff]
          %v2609 = vld [vmem:[%s1317 + $0x50] sm:$0xff]
          %v2610 = vld [vmem:[%s1317 + $0x58] sm:$0xff]
          %v2611 = vld [vmem:[%s1317 + $0x60] sm:$0xff]
          %v2612 = vld [vmem:[%s1317 + $0x68] sm:$0xff]
          %v2613 = vld [vmem:[%s1317 + $0x70] sm:$0xff]
          %v2614 = vld [vmem:[%s1317 + $0x78] sm:$0xff]
          %v2615 = vld [vmem:[%s1323] sm:$0xff]
          %v2616 = vld [vmem:[%s1323 + $0x8] sm:$0xff]
          %v2617 = vld [vmem:[%s1323 + $0x10] sm:$0xff]
          %v2618 = vld [vmem:[%s1323 + $0x18] sm:$0xff]
          %v2619 = vld [vmem:[%s1323 + $0x20] sm:$0xff]
          %v2620 = vld [vmem:[%s1323 + $0x28] sm:$0xff]
          %v2621 = vld [vmem:[%s1323 + $0x30] sm:$0xff]
          %v2622 = vld [vmem:[%s1323 + $0x38] sm:$0xff]
          %v2623 = vld [vmem:[%s1323 + $0x40] sm:$0xff]
          %v2624 = vld [vmem:[%s1323 + $0x48] sm:$0xff]
          %v2625 = vld [vmem:[%s1323 + $0x50] sm:$0xff]
          %v2626 = vld [vmem:[%s1323 + $0x58] sm:$0xff]
          %v2627 = vld [vmem:[%s1323 + $0x60] sm:$0xff]
          %v2628 = vld [vmem:[%s1323 + $0x68] sm:$0xff]
          %v2629 = vld [vmem:[%s1323 + $0x70] sm:$0xff]
          %v2630 = vld [vmem:[%s1323 + $0x78] sm:$0xff]
          %v2631 = vld [vmem:[%s4] sm:$0xff]
          %v2632 = vld [vmem:[%s4 + $0x8] sm:$0xff]
          %v2633 = vld [vmem:[%s4 + $0x10] sm:$0xff]
          %v2634 = vld [vmem:[%s4 + $0x18] sm:$0xff]
          %v2635 = vld [vmem:[%s4 + $0x20] sm:$0xff]
          %v2636 = vld [vmem:[%s4 + $0x28] sm:$0xff]
          %v2637 = vld [vmem:[%s4 + $0x30] sm:$0xff]
          %v2638 = vld [vmem:[%s4 + $0x38] sm:$0xff]
          %vm2639 = vcmask 523264
          %v2641 = vsel %vm2639, %v2535, 0
          %v2644 = vsel %vm2639, %v2536, 0
          %v2647 = vsel %vm2639, %v2537, 0
          %v2650 = vsel %vm2639, %v2538, 0
          %v2653 = vsel %vm2639, %v2539, 0
          %v2656 = vsel %vm2639, %v2540, 0
          %v2659 = vsel %vm2639, %v2541, 0
          %v2662 = vsel %vm2639, %v2542, 0
          %v2665 = vsel %vm2639, %v2543, 0
          %v2668 = vsel %vm2639, %v2544, 0
          %v2671 = vsel %vm2639, %v2545, 0
          %v2674 = vsel %vm2639, %v2546, 0
          %v2677 = vsel %vm2639, %v2547, 0
          %v2680 = vsel %vm2639, %v2548, 0
          %v2683 = vsel %vm2639, %v2549, 0
          %v2686 = vsel %vm2639, %v2550, 0
          %v2689 = vsel %vm2639, %v2551, 0
          %v2692 = vsel %vm2639, %v2552, 0
          %v2695 = vsel %vm2639, %v2553, 0
          %v2698 = vsel %vm2639, %v2554, 0
          %v2701 = vsel %vm2639, %v2555, 0
          %v2704 = vsel %vm2639, %v2556, 0
          %v2707 = vsel %vm2639, %v2557, 0
          %v2710 = vsel %vm2639, %v2558, 0
          %v2713 = vsel %vm2639, %v2559, 0
          %v2716 = vsel %vm2639, %v2560, 0
          %v2719 = vsel %vm2639, %v2561, 0
          %v2722 = vsel %vm2639, %v2562, 0
          %v2725 = vsel %vm2639, %v2563, 0
          %v2728 = vsel %vm2639, %v2564, 0
          %v2731 = vsel %vm2639, %v2565, 0
          %v2734 = vsel %vm2639, %v2566, 0
          %v2737 = vsel %vm2639, %v2567, 0
          %v2740 = vsel %vm2639, %v2568, 0
          %v2743 = vsel %vm2639, %v2569, 0
          %v2746 = vsel %vm2639, %v2570, 0
          %v2749 = vsel %vm2639, %v2571, 0
          %v2752 = vsel %vm2639, %v2572, 0
          %v2755 = vsel %vm2639, %v2573, 0
          %v2758 = vsel %vm2639, %v2574, 0
          %v2761 = vsel %vm2639, %v2575, 0
          %v2764 = vsel %vm2639, %v2576, 0
          %v2767 = vsel %vm2639, %v2577, 0
          %v2770 = vsel %vm2639, %v2578, 0
          %v2773 = vsel %vm2639, %v2579, 0
          %v2776 = vsel %vm2639, %v2580, 0
          %v2779 = vsel %vm2639, %v2581, 0
          %v2782 = vsel %vm2639, %v2582, 0
          %v2785 = vsel %vm2639, %v2583, 0
          %v2788 = vsel %vm2639, %v2584, 0
          %v2791 = vsel %vm2639, %v2585, 0
          %v2794 = vsel %vm2639, %v2586, 0
          %v2797 = vsel %vm2639, %v2587, 0
          %v2800 = vsel %vm2639, %v2588, 0
          %v2803 = vsel %vm2639, %v2589, 0
          %v2806 = vsel %vm2639, %v2590, 0
          %v2809 = vsel %vm2639, %v2591, 0
          %v2812 = vsel %vm2639, %v2592, 0
          %v2815 = vsel %vm2639, %v2593, 0
          %v2818 = vsel %vm2639, %v2594, 0
          %v2821 = vsel %vm2639, %v2595, 0
          %v2824 = vsel %vm2639, %v2596, 0
          %v2827 = vsel %vm2639, %v2597, 0
          %v2830 = vsel %vm2639, %v2598, 0
          %2832 = vmatprep.subr.mxu0 0.0
          %2833 = vmatpush1.msra.mxu0 0.0
          %2834 = vmatprep.subr.mxu0 0.0
          %2835 = vmatpush1.msra.mxu0 0.0
          %2836 = vmatprep.subr.mxu0 0.0
          %2837 = vmatpush1.msra.mxu0 0.0
          %2838 = vmatprep.subr.mxu0 0.0
          %2839 = vmatpush1.msra.mxu0 0.0
          %2840 = vmatprep.subr.mxu0 0.0
          %2841 = vmatpush1.msra.mxu0 0.0
          %2842 = vmatprep.subr.mxu0 0.0
          %2843 = vmatpush1.msra.mxu0 0.0
          %2844 = vmatprep.subr.mxu0 0.0
          %2845 = vmatpush1.msra.mxu0 0.0
          %2846 = vmatprep.subr.mxu0 0.0
          %2847 = vmatpush1.msra.mxu0 0.0
          %2848 = vmatprep.subr.mxu0 0.0
          %2849 = vmatpush1.msra.mxu0 %v2638
          %2850 = vmatprep.subr.mxu0 0.0
          %2851 = vmatpush1.msra.mxu0 %v2637
          %2852 = vmatprep.subr.mxu0 0.0
          %2853 = vmatpush1.msra.mxu0 %v2636
          %2854 = vmatprep.subr.mxu0 0.0
          %2855 = vmatpush1.msra.mxu0 %v2635
          %2856 = vmatprep.subr.mxu0 0.0
          %2857 = vmatpush1.msra.mxu0 %v2634
          %2858 = vmatprep.subr.mxu0 0.0
          %2859 = vmatpush1.msra.mxu0 %v2633
          %2860 = vmatprep.subr.mxu0 0.0
          %2861 = vmatpush1.msra.mxu0 %v2632
          %2862 = vmatprep.subr.mxu0 0.0
          %2863 = vmatpush1.msra.mxu0 %v2631
          %2864 = vmatprep.subr.mxu0 0.0
          %2865 = vmatpush2.msra.mxu0 0.0
          %2866 = vmatprep.subr.mxu0 0.0
          %2867 = vmatpush2.msra.mxu0 0.0
          %2868 = vmatprep.subr.mxu0 0.0
          %2869 = vmatpush2.msra.mxu0 0.0
          %2870 = vmatprep.subr.mxu0 0.0
          %2871 = vmatpush2.msra.mxu0 0.0
          %2872 = vmatprep.subr.mxu0 0.0
          %2873 = vmatpush2.msra.mxu0 0.0
          %2874 = vmatprep.subr.mxu0 0.0
          %2875 = vmatpush2.msra.mxu0 0.0
          %2876 = vmatprep.subr.mxu0 0.0
          %2877 = vmatpush2.msra.mxu0 0.0
          %2878 = vmatprep.subr.mxu0 0.0
          %2879 = vmatpush2.msra.mxu0 0.0
          %2880 = vmatprep.subr.mxu0 0.0
          %2881 = vmatpush2.msra.mxu0 0.0
          %2882 = vmatprep.subr.mxu0 0.0
          %2883 = vmatpush2.msra.mxu0 0.0
          %2884 = vmatprep.subr.mxu0 0.0
          %2885 = vmatpush2.msra.mxu0 0.0
          %2886 = vmatprep.subr.mxu0 0.0
          %2887 = vmatpush2.msra.mxu0 0.0
          %2888 = vmatprep.subr.mxu0 0.0
          %2889 = vmatpush2.msra.mxu0 0.0
          %2890 = vmatprep.subr.mxu0 0.0
          %2891 = vmatpush2.msra.mxu0 0.0
          %2892 = vmatprep.subr.mxu0 0.0
          %2893 = vmatpush2.msra.mxu0 0.0
          %2894 = vmatprep.subr.mxu0 0.0
          %2895 = vmatpush2.msra.mxu0 0.0
          %2896 = vmatprep.mubr.f32.mxu0 0.0
          %2897 = vmatmul.mubr.f32.gmra.mxu0 %v2641
          %v2898 = vpop.f32.mrf.mxu0
          %v2899 = vadd.f32 0.0, %v2898
          %v2900 = vpop.f32.mrf.mxu0
          %2901 = vmatprep.mubr.f32.mxu0 0.0
          %2902 = vmatmul.mubr.f32.gmra.mxu0 %v2644
          %v2903 = vpop.f32.mrf.mxu0
          %v2904 = vadd.f32 0.0, %v2903
          %v2905 = vpop.f32.mrf.mxu0
          %2906 = vmatprep.mubr.f32.mxu0 0.0
          %2907 = vmatmul.mubr.f32.gmra.mxu0 %v2647
          %v2908 = vpop.f32.mrf.mxu0
          %v2909 = vadd.f32 0.0, %v2908
          %v2910 = vpop.f32.mrf.mxu0
          %2911 = vmatprep.mubr.f32.mxu0 0.0
          %2912 = vmatmul.mubr.f32.gmra.mxu0 %v2650
          %v2913 = vpop.f32.mrf.mxu0
          %v2914 = vadd.f32 0.0, %v2913
          %v2915 = vpop.f32.mrf.mxu0
          %2916 = vmatprep.mubr.f32.mxu0 0.0
          %2917 = vmatmul.mubr.f32.gmra.mxu0 %v2653
          %v2918 = vpop.f32.mrf.mxu0
          %v2919 = vadd.f32 0.0, %v2918
          %v2920 = vpop.f32.mrf.mxu0
          %2921 = vmatprep.mubr.f32.mxu0 0.0
          %2922 = vmatmul.mubr.f32.gmra.mxu0 %v2656
          %v2923 = vpop.f32.mrf.mxu0
          %v2924 = vadd.f32 0.0, %v2923
          %v2925 = vpop.f32.mrf.mxu0
          %2926 = vmatprep.mubr.f32.mxu0 0.0
          %2927 = vmatmul.mubr.f32.gmra.mxu0 %v2659
          %v2928 = vpop.f32.mrf.mxu0
          %v2929 = vadd.f32 0.0, %v2928
          %v2930 = vpop.f32.mrf.mxu0
          %2931 = vmatprep.mubr.f32.mxu0 0.0
          %2932 = vmatmul.mubr.f32.gmra.mxu0 %v2662
          %v2933 = vpop.f32.mrf.mxu0
          %v2934 = vadd.f32 0.0, %v2933
          %v2935 = vpop.f32.mrf.mxu0
          %2936 = vmatprep.mubr.f32.mxu0 0.0
          %2937 = vmatmul.mubr.f32.gmra.mxu0 %v2665
          %v2938 = vpop.f32.mrf.mxu0
          %v2939 = vadd.f32 0.0, %v2938
          %v2940 = vpop.f32.mrf.mxu0
          %2941 = vmatprep.mubr.f32.mxu0 0.0
          %2942 = vmatmul.mubr.f32.gmra.mxu0 %v2668
          %v2943 = vpop.f32.mrf.mxu0
          %v2944 = vadd.f32 0.0, %v2943
          %v2945 = vpop.f32.mrf.mxu0
          %2946 = vmatprep.mubr.f32.mxu0 0.0
          %2947 = vmatmul.mubr.f32.gmra.mxu0 %v2671
          %v2948 = vpop.f32.mrf.mxu0
          %v2949 = vadd.f32 0.0, %v2948
          %v2950 = vpop.f32.mrf.mxu0
          %2951 = vmatprep.mubr.f32.mxu0 0.0
          %2952 = vmatmul.mubr.f32.gmra.mxu0 %v2674
          %v2953 = vpop.f32.mrf.mxu0
          %v2954 = vadd.f32 0.0, %v2953
          %v2955 = vpop.f32.mrf.mxu0
          %2956 = vmatprep.mubr.f32.mxu0 0.0
          %2957 = vmatmul.mubr.f32.gmra.mxu0 %v2677
          %v2958 = vpop.f32.mrf.mxu0
          %v2959 = vadd.f32 0.0, %v2958
          %v2960 = vpop.f32.mrf.mxu0
          %2961 = vmatprep.mubr.f32.mxu0 0.0
          %2962 = vmatmul.mubr.f32.gmra.mxu0 %v2680
          %v2963 = vpop.f32.mrf.mxu0
          %v2964 = vadd.f32 0.0, %v2963
          %v2965 = vpop.f32.mrf.mxu0
          %2966 = vmatprep.mubr.f32.mxu0 0.0
          %2967 = vmatmul.mubr.f32.gmra.mxu0 %v2683
          %v2968 = vpop.f32.mrf.mxu0
          %v2969 = vadd.f32 0.0, %v2968
          %v2970 = vpop.f32.mrf.mxu0
          %2971 = vmatprep.mubr.f32.mxu0 0.0
          %2972 = vmatmul.mubr.f32.gmra.mxu0 %v2686
          %v2973 = vpop.f32.mrf.mxu0
          %v2974 = vadd.f32 0.0, %v2973
          %v2975 = vpop.f32.mrf.mxu0
          %2976 = vmatprep.mubr.f32.mxu0 0.0
          %2977 = vmatmul.mubr.f32.gmra.mxu0 %v2689
          %v2978 = vpop.f32.mrf.mxu0
          %v2979 = vadd.f32 0.0, %v2978
          %v2980 = vpop.f32.mrf.mxu0
          %2981 = vmatprep.mubr.f32.mxu0 0.0
          %2982 = vmatmul.mubr.f32.gmra.mxu0 %v2692
          %v2983 = vpop.f32.mrf.mxu0
          %v2984 = vadd.f32 0.0, %v2983
          %v2985 = vpop.f32.mrf.mxu0
          %2986 = vmatprep.mubr.f32.mxu0 0.0
          %2987 = vmatmul.mubr.f32.gmra.mxu0 %v2695
          %v2988 = vpop.f32.mrf.mxu0
          %v2989 = vadd.f32 0.0, %v2988
          %v2990 = vpop.f32.mrf.mxu0
          %2991 = vmatprep.mubr.f32.mxu0 0.0
          %2992 = vmatmul.mubr.f32.gmra.mxu0 %v2698
          %v2993 = vpop.f32.mrf.mxu0
          %v2994 = vadd.f32 0.0, %v2993
          %v2995 = vpop.f32.mrf.mxu0
          %2996 = vmatprep.mubr.f32.mxu0 0.0
          %2997 = vmatmul.mubr.f32.gmra.mxu0 %v2701
          %v2998 = vpop.f32.mrf.mxu0
          %v2999 = vadd.f32 0.0, %v2998
          %v3000 = vpop.f32.mrf.mxu0
          %3001 = vmatprep.mubr.f32.mxu0 0.0
          %3002 = vmatmul.mubr.f32.gmra.mxu0 %v2704
          %v3003 = vpop.f32.mrf.mxu0
          %v3004 = vadd.f32 0.0, %v3003
          %v3005 = vpop.f32.mrf.mxu0
          %3006 = vmatprep.mubr.f32.mxu0 0.0
          %3007 = vmatmul.mubr.f32.gmra.mxu0 %v2707
          %v3008 = vpop.f32.mrf.mxu0
          %v3009 = vadd.f32 0.0, %v3008
          %v3010 = vpop.f32.mrf.mxu0
          %3011 = vmatprep.mubr.f32.mxu0 0.0
          %3012 = vmatmul.mubr.f32.gmra.mxu0 %v2710
          %v3013 = vpop.f32.mrf.mxu0
          %v3014 = vadd.f32 0.0, %v3013
          %v3015 = vpop.f32.mrf.mxu0
          %3016 = vmatprep.mubr.f32.mxu0 0.0
          %3017 = vmatmul.mubr.f32.gmra.mxu0 %v2713
          %v3018 = vpop.f32.mrf.mxu0
          %v3019 = vadd.f32 0.0, %v3018
          %v3020 = vpop.f32.mrf.mxu0
          %3021 = vmatprep.mubr.f32.mxu0 0.0
          %3022 = vmatmul.mubr.f32.gmra.mxu0 %v2716
          %v3023 = vpop.f32.mrf.mxu0
          %v3024 = vadd.f32 0.0, %v3023
          %v3025 = vpop.f32.mrf.mxu0
          %3026 = vmatprep.mubr.f32.mxu0 0.0
          %3027 = vmatmul.mubr.f32.gmra.mxu0 %v2719
          %v3028 = vpop.f32.mrf.mxu0
          %v3029 = vadd.f32 0.0, %v3028
          %v3030 = vpop.f32.mrf.mxu0
          %3031 = vmatprep.mubr.f32.mxu0 0.0
          %3032 = vmatmul.mubr.f32.gmra.mxu0 %v2722
          %v3033 = vpop.f32.mrf.mxu0
          %v3034 = vadd.f32 0.0, %v3033
          %v3035 = vpop.f32.mrf.mxu0
          %3036 = vmatprep.mubr.f32.mxu0 0.0
          %3037 = vmatmul.mubr.f32.gmra.mxu0 %v2725
          %v3038 = vpop.f32.mrf.mxu0
          %v3039 = vadd.f32 0.0, %v3038
          %v3040 = vpop.f32.mrf.mxu0
          %3041 = vmatprep.mubr.f32.mxu0 0.0
          %3042 = vmatmul.mubr.f32.gmra.mxu0 %v2728
          %v3043 = vpop.f32.mrf.mxu0
          %v3044 = vadd.f32 0.0, %v3043
          %v3045 = vpop.f32.mrf.mxu0
          %3046 = vmatprep.mubr.f32.mxu0 0.0
          %3047 = vmatmul.mubr.f32.gmra.mxu0 %v2731
          %v3048 = vpop.f32.mrf.mxu0
          %v3049 = vadd.f32 0.0, %v3048
          %v3050 = vpop.f32.mrf.mxu0
          %3051 = vmatprep.mubr.f32.mxu0 0.0
          %3052 = vmatmul.mubr.f32.gmra.mxu0 %v2734
          %v3053 = vpop.f32.mrf.mxu0
          %v3054 = vadd.f32 0.0, %v3053
          %v3055 = vpop.f32.mrf.mxu0
          %3056 = vmatprep.mubr.f32.mxu0 0.0
          %3057 = vmatmul.mubr.f32.gmra.mxu0 %v2737
          %v3058 = vpop.f32.mrf.mxu0
          %v3059 = vadd.f32 0.0, %v3058
          %v3060 = vpop.f32.mrf.mxu0
          %3061 = vmatprep.mubr.f32.mxu0 0.0
          %3062 = vmatmul.mubr.f32.gmra.mxu0 %v2740
          %v3063 = vpop.f32.mrf.mxu0
          %v3064 = vadd.f32 0.0, %v3063
          %v3065 = vpop.f32.mrf.mxu0
          %3066 = vmatprep.mubr.f32.mxu0 0.0
          %3067 = vmatmul.mubr.f32.gmra.mxu0 %v2743
          %v3068 = vpop.f32.mrf.mxu0
          %v3069 = vadd.f32 0.0, %v3068
          %v3070 = vpop.f32.mrf.mxu0
          %3071 = vmatprep.mubr.f32.mxu0 0.0
          %3072 = vmatmul.mubr.f32.gmra.mxu0 %v2746
          %v3073 = vpop.f32.mrf.mxu0
          %v3074 = vadd.f32 0.0, %v3073
          %v3075 = vpop.f32.mrf.mxu0
          %3076 = vmatprep.mubr.f32.mxu0 0.0
          %3077 = vmatmul.mubr.f32.gmra.mxu0 %v2749
          %v3078 = vpop.f32.mrf.mxu0
          %v3079 = vadd.f32 0.0, %v3078
          %v3080 = vpop.f32.mrf.mxu0
          %3081 = vmatprep.mubr.f32.mxu0 0.0
          %3082 = vmatmul.mubr.f32.gmra.mxu0 %v2752
          %v3083 = vpop.f32.mrf.mxu0
          %v3084 = vadd.f32 0.0, %v3083
          %v3085 = vpop.f32.mrf.mxu0
          %3086 = vmatprep.mubr.f32.mxu0 0.0
          %3087 = vmatmul.mubr.f32.gmra.mxu0 %v2755
          %v3088 = vpop.f32.mrf.mxu0
          %v3089 = vadd.f32 0.0, %v3088
          %v3090 = vpop.f32.mrf.mxu0
          %3091 = vmatprep.mubr.f32.mxu0 0.0
          %3092 = vmatmul.mubr.f32.gmra.mxu0 %v2758
          %v3093 = vpop.f32.mrf.mxu0
          %v3094 = vadd.f32 0.0, %v3093
          %v3095 = vpop.f32.mrf.mxu0
          %3096 = vmatprep.mubr.f32.mxu0 0.0
          %3097 = vmatmul.mubr.f32.gmra.mxu0 %v2761
          %v3098 = vpop.f32.mrf.mxu0
          %v3099 = vadd.f32 0.0, %v3098
          %v3100 = vpop.f32.mrf.mxu0
          %3101 = vmatprep.mubr.f32.mxu0 0.0
          %3102 = vmatmul.mubr.f32.gmra.mxu0 %v2764
          %v3103 = vpop.f32.mrf.mxu0
          %v3104 = vadd.f32 0.0, %v3103
          %v3105 = vpop.f32.mrf.mxu0
          %3106 = vmatprep.mubr.f32.mxu0 0.0
          %3107 = vmatmul.mubr.f32.gmra.mxu0 %v2767
          %v3108 = vpop.f32.mrf.mxu0
          %v3109 = vadd.f32 0.0, %v3108
          %v3110 = vpop.f32.mrf.mxu0
          %3111 = vmatprep.mubr.f32.mxu0 0.0
          %3112 = vmatmul.mubr.f32.gmra.mxu0 %v2770
          %v3113 = vpop.f32.mrf.mxu0
          %v3114 = vadd.f32 0.0, %v3113
          %v3115 = vpop.f32.mrf.mxu0
          %3116 = vmatprep.mubr.f32.mxu0 0.0
          %3117 = vmatmul.mubr.f32.gmra.mxu0 %v2773
          %v3118 = vpop.f32.mrf.mxu0
          %v3119 = vadd.f32 0.0, %v3118
          %v3120 = vpop.f32.mrf.mxu0
          %3121 = vmatprep.mubr.f32.mxu0 0.0
          %3122 = vmatmul.mubr.f32.gmra.mxu0 %v2776
          %v3123 = vpop.f32.mrf.mxu0
          %v3124 = vadd.f32 0.0, %v3123
          %v3125 = vpop.f32.mrf.mxu0
          %3126 = vmatprep.mubr.f32.mxu0 0.0
          %3127 = vmatmul.mubr.f32.gmra.mxu0 %v2779
          %v3128 = vpop.f32.mrf.mxu0
          %v3129 = vadd.f32 0.0, %v3128
          %v3130 = vpop.f32.mrf.mxu0
          %3131 = vmatprep.mubr.f32.mxu0 0.0
          %3132 = vmatmul.mubr.f32.gmra.mxu0 %v2782
          %v3133 = vpop.f32.mrf.mxu0
          %v3134 = vadd.f32 0.0, %v3133
          %v3135 = vpop.f32.mrf.mxu0
          %3136 = vmatprep.mubr.f32.mxu0 0.0
          %3137 = vmatmul.mubr.f32.gmra.mxu0 %v2785
          %v3138 = vpop.f32.mrf.mxu0
          %v3139 = vadd.f32 0.0, %v3138
          %v3140 = vpop.f32.mrf.mxu0
          %3141 = vmatprep.mubr.f32.mxu0 0.0
          %3142 = vmatmul.mubr.f32.gmra.mxu0 %v2788
          %v3143 = vpop.f32.mrf.mxu0
          %v3144 = vadd.f32 0.0, %v3143
          %v3145 = vpop.f32.mrf.mxu0
          %3146 = vmatprep.mubr.f32.mxu0 0.0
          %3147 = vmatmul.mubr.f32.gmra.mxu0 %v2791
          %v3148 = vpop.f32.mrf.mxu0
          %v3149 = vadd.f32 0.0, %v3148
          %v3150 = vpop.f32.mrf.mxu0
          %3151 = vmatprep.mubr.f32.mxu0 0.0
          %3152 = vmatmul.mubr.f32.gmra.mxu0 %v2794
          %v3153 = vpop.f32.mrf.mxu0
          %v3154 = vadd.f32 0.0, %v3153
          %v3155 = vpop.f32.mrf.mxu0
          %3156 = vmatprep.mubr.f32.mxu0 0.0
          %3157 = vmatmul.mubr.f32.gmra.mxu0 %v2797
          %v3158 = vpop.f32.mrf.mxu0
          %v3159 = vadd.f32 0.0, %v3158
          %v3160 = vpop.f32.mrf.mxu0
          %3161 = vmatprep.mubr.f32.mxu0 0.0
          %3162 = vmatmul.mubr.f32.gmra.mxu0 %v2800
          %v3163 = vpop.f32.mrf.mxu0
          %v3164 = vadd.f32 0.0, %v3163
          %v3165 = vpop.f32.mrf.mxu0
          %3166 = vmatprep.mubr.f32.mxu0 0.0
          %3167 = vmatmul.mubr.f32.gmra.mxu0 %v2803
          %v3168 = vpop.f32.mrf.mxu0
          %v3169 = vadd.f32 0.0, %v3168
          %v3170 = vpop.f32.mrf.mxu0
          %3171 = vmatprep.mubr.f32.mxu0 0.0
          %3172 = vmatmul.mubr.f32.gmra.mxu0 %v2806
          %v3173 = vpop.f32.mrf.mxu0
          %v3174 = vadd.f32 0.0, %v3173
          %v3175 = vpop.f32.mrf.mxu0
          %3176 = vmatprep.mubr.f32.mxu0 0.0
          %3177 = vmatmul.mubr.f32.gmra.mxu0 %v2809
          %v3178 = vpop.f32.mrf.mxu0
          %v3179 = vadd.f32 0.0, %v3178
          %v3180 = vpop.f32.mrf.mxu0
          %3181 = vmatprep.mubr.f32.mxu0 0.0
          %3182 = vmatmul.mubr.f32.gmra.mxu0 %v2812
          %v3183 = vpop.f32.mrf.mxu0
          %v3184 = vadd.f32 0.0, %v3183
          %v3185 = vpop.f32.mrf.mxu0
          %3186 = vmatprep.mubr.f32.mxu0 0.0
          %3187 = vmatmul.mubr.f32.gmra.mxu0 %v2815
          %v3188 = vpop.f32.mrf.mxu0
          %v3189 = vadd.f32 0.0, %v3188
          %v3190 = vpop.f32.mrf.mxu0
          %3191 = vmatprep.mubr.f32.mxu0 0.0
          %3192 = vmatmul.mubr.f32.gmra.mxu0 %v2818
          %v3193 = vpop.f32.mrf.mxu0
          %v3194 = vadd.f32 0.0, %v3193
          %v3195 = vpop.f32.mrf.mxu0
          %3196 = vmatprep.mubr.f32.mxu0 0.0
          %3197 = vmatmul.mubr.f32.gmra.mxu0 %v2821
          %v3198 = vpop.f32.mrf.mxu0
          %v3199 = vadd.f32 0.0, %v3198
          %v3200 = vpop.f32.mrf.mxu0
          %3201 = vmatprep.mubr.f32.mxu0 0.0
          %3202 = vmatmul.mubr.f32.gmra.mxu0 %v2824
          %v3203 = vpop.f32.mrf.mxu0
          %v3204 = vadd.f32 0.0, %v3203
          %v3205 = vpop.f32.mrf.mxu0
          %3206 = vmatprep.mubr.f32.mxu0 0.0
          %3207 = vmatmul.mubr.f32.gmra.mxu0 %v2827
          %v3208 = vpop.f32.mrf.mxu0
          %v3209 = vadd.f32 0.0, %v3208
          %v3210 = vpop.f32.mrf.mxu0
          %3211 = vmatprep.mubr.f32.mxu0 0.0
          %3212 = vmatmul.mubr.f32.gmra.mxu0 %v2830
          %v3213 = vpop.f32.mrf.mxu0
          %v3214 = vadd.f32 0.0, %v3213
          %v3215 = vpop.f32.mrf.mxu0
          %3216 = vdwg.mxu0
          %v3217 = vmul.f32 %v2535, %v2599
          %v3218 = vmul.f32 %v2536, %v2600
          %v3219 = vmul.f32 %v2537, %v2601
          %v3220 = vmul.f32 %v2538, %v2602
          %v3221 = vmul.f32 %v2539, %v2603
          %v3222 = vmul.f32 %v2540, %v2604
          %v3223 = vmul.f32 %v2541, %v2605
          %v3224 = vmul.f32 %v2542, %v2606
          %v3225 = vmul.f32 %v2543, %v2607
          %v3226 = vmul.f32 %v2544, %v2608
          %v3227 = vmul.f32 %v2545, %v2609
          %v3228 = vmul.f32 %v2546, %v2610
          %v3229 = vmul.f32 %v2547, %v2611
          %v3230 = vmul.f32 %v2548, %v2612
          %v3231 = vmul.f32 %v2549, %v2613
          %v3232 = vmul.f32 %v2550, %v2614
          %v3233 = vmul.f32 %v2551, %v2599
          %v3234 = vmul.f32 %v2552, %v2600
          %v3235 = vmul.f32 %v2553, %v2601
          %v3236 = vmul.f32 %v2554, %v2602
          %v3237 = vmul.f32 %v2555, %v2603
          %v3238 = vmul.f32 %v2556, %v2604
          %v3239 = vmul.f32 %v2557, %v2605
          %v3240 = vmul.f32 %v2558, %v2606
          %v3241 = vmul.f32 %v2559, %v2607
          %v3242 = vmul.f32 %v2560, %v2608
          %v3243 = vmul.f32 %v2561, %v2609
          %v3244 = vmul.f32 %v2562, %v2610
          %v3245 = vmul.f32 %v2563, %v2611
          %v3246 = vmul.f32 %v2564, %v2612
          %v3247 = vmul.f32 %v2565, %v2613
          %v3248 = vmul.f32 %v2566, %v2614
          %v3249 = vmul.f32 %v2567, %v2599
          %v3250 = vmul.f32 %v2568, %v2600
          %v3251 = vmul.f32 %v2569, %v2601
          %v3252 = vmul.f32 %v2570, %v2602
          %v3253 = vmul.f32 %v2571, %v2603
          %v3254 = vmul.f32 %v2572, %v2604
          %v3255 = vmul.f32 %v2573, %v2605
          %v3256 = vmul.f32 %v2574, %v2606
          %v3257 = vmul.f32 %v2575, %v2607
          %v3258 = vmul.f32 %v2576, %v2608
          %v3259 = vmul.f32 %v2577, %v2609
          %v3260 = vmul.f32 %v2578, %v2610
          %v3261 = vmul.f32 %v2579, %v2611
          %v3262 = vmul.f32 %v2580, %v2612
          %v3263 = vmul.f32 %v2581, %v2613
          %v3264 = vmul.f32 %v2582, %v2614
          %v3265 = vmul.f32 %v2583, %v2599
          %v3266 = vmul.f32 %v2584, %v2600
          %v3267 = vmul.f32 %v2585, %v2601
          %v3268 = vmul.f32 %v2586, %v2602
          %v3269 = vmul.f32 %v2587, %v2603
          %v3270 = vmul.f32 %v2588, %v2604
          %v3271 = vmul.f32 %v2589, %v2605
          %v3272 = vmul.f32 %v2590, %v2606
          %v3273 = vmul.f32 %v2591, %v2607
          %v3274 = vmul.f32 %v2592, %v2608
          %v3275 = vmul.f32 %v2593, %v2609
          %v3276 = vmul.f32 %v2594, %v2610
          %v3277 = vmul.f32 %v2595, %v2611
          %v3278 = vmul.f32 %v2596, %v2612
          %v3279 = vmul.f32 %v2597, %v2613
          %v3280 = vmul.f32 %v2598, %v2614
          %v3281 = vmul.f32 %v2899, %v2615
          %v3282 = vmul.f32 %v2904, %v2616
          %v3283 = vmul.f32 %v2909, %v2617
          %v3284 = vmul.f32 %v2914, %v2618
          %v3285 = vmul.f32 %v2919, %v2619
          %v3286 = vmul.f32 %v2924, %v2620
          %v3287 = vmul.f32 %v2929, %v2621
          %v3288 = vmul.f32 %v2934, %v2622
          %v3289 = vmul.f32 %v2939, %v2623
          %v3290 = vmul.f32 %v2944, %v2624
          %v3291 = vmul.f32 %v2949, %v2625
          %v3292 = vmul.f32 %v2954, %v2626
          %v3293 = vmul.f32 %v2959, %v2627
          %v3294 = vmul.f32 %v2964, %v2628
          %v3295 = vmul.f32 %v2969, %v2629
          %v3296 = vmul.f32 %v2974, %v2630
          %v3297 = vmul.f32 %v2979, %v2615
          %v3298 = vmul.f32 %v2984, %v2616
          %v3299 = vmul.f32 %v2989, %v2617
          %v3300 = vmul.f32 %v2994, %v2618
          %v3301 = vmul.f32 %v2999, %v2619
          %v3302 = vmul.f32 %v3004, %v2620
          %v3303 = vmul.f32 %v3009, %v2621
          %v3304 = vmul.f32 %v3014, %v2622
          %v3305 = vmul.f32 %v3019, %v2623
          %v3306 = vmul.f32 %v3024, %v2624
          %v3307 = vmul.f32 %v3029, %v2625
          %v3308 = vmul.f32 %v3034, %v2626
          %v3309 = vmul.f32 %v3039, %v2627
          %v3310 = vmul.f32 %v3044, %v2628
          %v3311 = vmul.f32 %v3049, %v2629
          %v3312 = vmul.f32 %v3054, %v2630
          %v3313 = vmul.f32 %v3059, %v2615
          %v3314 = vmul.f32 %v3064, %v2616
          %v3315 = vmul.f32 %v3069, %v2617
          %v3316 = vmul.f32 %v3074, %v2618
          %v3317 = vmul.f32 %v3079, %v2619
          %v3318 = vmul.f32 %v3084, %v2620
          %v3319 = vmul.f32 %v3089, %v2621
          %v3320 = vmul.f32 %v3094, %v2622
          %v3321 = vmul.f32 %v3099, %v2623
          %v3322 = vmul.f32 %v3104, %v2624
          %v3323 = vmul.f32 %v3109, %v2625
          %v3324 = vmul.f32 %v3114, %v2626
          %v3325 = vmul.f32 %v3119, %v2627
          %v3326 = vmul.f32 %v3124, %v2628
          %v3327 = vmul.f32 %v3129, %v2629
          %v3328 = vmul.f32 %v3134, %v2630
          %v3329 = vmul.f32 %v3139, %v2615
          %v3330 = vmul.f32 %v3144, %v2616
          %v3331 = vmul.f32 %v3149, %v2617
          %v3332 = vmul.f32 %v3154, %v2618
          %v3333 = vmul.f32 %v3159, %v2619
          %v3334 = vmul.f32 %v3164, %v2620
          %v3335 = vmul.f32 %v3169, %v2621
          %v3336 = vmul.f32 %v3174, %v2622
          %v3337 = vmul.f32 %v3179, %v2623
          %v3338 = vmul.f32 %v3184, %v2624
          %v3339 = vmul.f32 %v3189, %v2625
          %v3340 = vmul.f32 %v3194, %v2626
          %v3341 = vmul.f32 %v3199, %v2627
          %v3342 = vmul.f32 %v3204, %v2628
          %v3343 = vmul.f32 %v3209, %v2629
          %v3344 = vmul.f32 %v3214, %v2630
          %v3345 = vadd.f32 %v3217, %v3281
          %v3346 = vadd.f32 %v3218, %v3282
          %v3347 = vadd.f32 %v3219, %v3283
          %v3348 = vadd.f32 %v3220, %v3284
          %v3349 = vadd.f32 %v3221, %v3285
          %v3350 = vadd.f32 %v3222, %v3286
          %v3351 = vadd.f32 %v3223, %v3287
          %v3352 = vadd.f32 %v3224, %v3288
          %v3353 = vadd.f32 %v3225, %v3289
          %v3354 = vadd.f32 %v3226, %v3290
          %v3355 = vadd.f32 %v3227, %v3291
          %v3356 = vadd.f32 %v3228, %v3292
          %v3357 = vadd.f32 %v3229, %v3293
          %v3358 = vadd.f32 %v3230, %v3294
          %v3359 = vadd.f32 %v3231, %v3295
          %v3360 = vadd.f32 %v3232, %v3296
          %v3361 = vadd.f32 %v3233, %v3297
          %v3362 = vadd.f32 %v3234, %v3298
          %v3363 = vadd.f32 %v3235, %v3299
          %v3364 = vadd.f32 %v3236, %v3300
          %v3365 = vadd.f32 %v3237, %v3301
          %v3366 = vadd.f32 %v3238, %v3302
          %v3367 = vadd.f32 %v3239, %v3303
          %v3368 = vadd.f32 %v3240, %v3304
          %v3369 = vadd.f32 %v3241, %v3305
          %v3370 = vadd.f32 %v3242, %v3306
          %v3371 = vadd.f32 %v3243, %v3307
          %v3372 = vadd.f32 %v3244, %v3308
          %v3373 = vadd.f32 %v3245, %v3309
          %v3374 = vadd.f32 %v3246, %v3310
          %v3375 = vadd.f32 %v3247, %v3311
          %v3376 = vadd.f32 %v3248, %v3312
          %v3377 = vadd.f32 %v3249, %v3313
          %v3378 = vadd.f32 %v3250, %v3314
          %v3379 = vadd.f32 %v3251, %v3315
          %v3380 = vadd.f32 %v3252, %v3316
          %v3381 = vadd.f32 %v3253, %v3317
          %v3382 = vadd.f32 %v3254, %v3318
          %v3383 = vadd.f32 %v3255, %v3319
          %v3384 = vadd.f32 %v3256, %v3320
          %v3385 = vadd.f32 %v3257, %v3321
          %v3386 = vadd.f32 %v3258, %v3322
          %v3387 = vadd.f32 %v3259, %v3323
          %v3388 = vadd.f32 %v3260, %v3324
          %v3389 = vadd.f32 %v3261, %v3325
          %v3390 = vadd.f32 %v3262, %v3326
          %v3391 = vadd.f32 %v3263, %v3327
          %v3392 = vadd.f32 %v3264, %v3328
          %v3393 = vadd.f32 %v3265, %v3329
          %v3394 = vadd.f32 %v3266, %v3330
          %v3395 = vadd.f32 %v3267, %v3331
          %v3396 = vadd.f32 %v3268, %v3332
          %v3397 = vadd.f32 %v3269, %v3333
          %v3398 = vadd.f32 %v3270, %v3334
          %v3399 = vadd.f32 %v3271, %v3335
          %v3400 = vadd.f32 %v3272, %v3336
          %v3401 = vadd.f32 %v3273, %v3337
          %v3402 = vadd.f32 %v3274, %v3338
          %v3403 = vadd.f32 %v3275, %v3339
          %v3404 = vadd.f32 %v3276, %v3340
          %v3405 = vadd.f32 %v3277, %v3341
          %v3406 = vadd.f32 %v3278, %v3342
          %v3407 = vadd.f32 %v3279, %v3343
          %v3408 = vadd.f32 %v3280, %v3344
          %v3409 = vld [vmem:[%s1243] sm:$0xff]
          %v3410 = vld [vmem:[%s1243 + $0x8] sm:$0xff]
          %v3411 = vld [vmem:[%s1243 + $0x10] sm:$0xff]
          %v3412 = vld [vmem:[%s1243 + $0x18] sm:$0xff]
          %v3413 = vld [vmem:[%s1243 + $0x20] sm:$0xff]
          %v3414 = vld [vmem:[%s1243 + $0x28] sm:$0xff]
          %v3415 = vld [vmem:[%s1243 + $0x30] sm:$0xff]
          %v3416 = vld [vmem:[%s1243 + $0x38] sm:$0xff]
          %v3417 = vld [vmem:[%s1243 + $0x40] sm:$0xff]
          %v3418 = vld [vmem:[%s1243 + $0x48] sm:$0xff]
          %v3419 = vld [vmem:[%s1243 + $0x50] sm:$0xff]
          %v3420 = vld [vmem:[%s1243 + $0x58] sm:$0xff]
          %v3421 = vld [vmem:[%s1243 + $0x60] sm:$0xff]
          %v3422 = vld [vmem:[%s1243 + $0x68] sm:$0xff]
          %v3423 = vld [vmem:[%s1243 + $0x70] sm:$0xff]
          %v3424 = vld [vmem:[%s1243 + $0x78] sm:$0xff]
          %v3425 = vld [vmem:[%s1243 + $0x80] sm:$0xff]
          %v3426 = vld [vmem:[%s1243 + $0x88] sm:$0xff]
          %v3427 = vld [vmem:[%s1243 + $0x90] sm:$0xff]
          %v3428 = vld [vmem:[%s1243 + $0x98] sm:$0xff]
          %v3429 = vld [vmem:[%s1243 + $0xa0] sm:$0xff]
          %v3430 = vld [vmem:[%s1243 + $0xa8] sm:$0xff]
          %v3431 = vld [vmem:[%s1243 + $0xb0] sm:$0xff]
          %v3432 = vld [vmem:[%s1243 + $0xb8] sm:$0xff]
          %v3433 = vld [vmem:[%s1243 + $0xc0] sm:$0xff]
          %v3434 = vld [vmem:[%s1243 + $0xc8] sm:$0xff]
          %v3435 = vld [vmem:[%s1243 + $0xd0] sm:$0xff]
          %v3436 = vld [vmem:[%s1243 + $0xd8] sm:$0xff]
          %v3437 = vld [vmem:[%s1243 + $0xe0] sm:$0xff]
          %v3438 = vld [vmem:[%s1243 + $0xe8] sm:$0xff]
          %v3439 = vld [vmem:[%s1243 + $0xf0] sm:$0xff]
          %v3440 = vld [vmem:[%s1243 + $0xf8] sm:$0xff]
          %v3441 = vld [vmem:[%s1243 + $0x100] sm:$0xff]
          %v3442 = vld [vmem:[%s1243 + $0x108] sm:$0xff]
          %v3443 = vld [vmem:[%s1243 + $0x110] sm:$0xff]
          %v3444 = vld [vmem:[%s1243 + $0x118] sm:$0xff]
          %v3445 = vld [vmem:[%s1243 + $0x120] sm:$0xff]
          %v3446 = vld [vmem:[%s1243 + $0x128] sm:$0xff]
          %v3447 = vld [vmem:[%s1243 + $0x130] sm:$0xff]
          %v3448 = vld [vmem:[%s1243 + $0x138] sm:$0xff]
          %v3449 = vld [vmem:[%s1243 + $0x140] sm:$0xff]
          %v3450 = vld [vmem:[%s1243 + $0x148] sm:$0xff]
          %v3451 = vld [vmem:[%s1243 + $0x150] sm:$0xff]
          %v3452 = vld [vmem:[%s1243 + $0x158] sm:$0xff]
          %v3453 = vld [vmem:[%s1243 + $0x160] sm:$0xff]
          %v3454 = vld [vmem:[%s1243 + $0x168] sm:$0xff]
          %v3455 = vld [vmem:[%s1243 + $0x170] sm:$0xff]
          %v3456 = vld [vmem:[%s1243 + $0x178] sm:$0xff]
          %v3457 = vld [vmem:[%s1243 + $0x180] sm:$0xff]
          %v3458 = vld [vmem:[%s1243 + $0x188] sm:$0xff]
          %v3459 = vld [vmem:[%s1243 + $0x190] sm:$0xff]
          %v3460 = vld [vmem:[%s1243 + $0x198] sm:$0xff]
          %v3461 = vld [vmem:[%s1243 + $0x1a0] sm:$0xff]
          %v3462 = vld [vmem:[%s1243 + $0x1a8] sm:$0xff]
          %v3463 = vld [vmem:[%s1243 + $0x1b0] sm:$0xff]
          %v3464 = vld [vmem:[%s1243 + $0x1b8] sm:$0xff]
          %v3465 = vld [vmem:[%s1243 + $0x1c0] sm:$0xff]
          %v3466 = vld [vmem:[%s1243 + $0x1c8] sm:$0xff]
          %v3467 = vld [vmem:[%s1243 + $0x1d0] sm:$0xff]
          %v3468 = vld [vmem:[%s1243 + $0x1d8] sm:$0xff]
          %v3469 = vld [vmem:[%s1243 + $0x1e0] sm:$0xff]
          %v3470 = vld [vmem:[%s1243 + $0x1e8] sm:$0xff]
          %v3471 = vld [vmem:[%s1243 + $0x1f0] sm:$0xff]
          %v3472 = vld [vmem:[%s1243 + $0x1f8] sm:$0xff]
          %v3473 = vld [vmem:[#allocation2] sm:$0xff]
          %v3474 = vld [vmem:[#allocation2 + $0x8] sm:$0xff]
          %v3475 = vld [vmem:[#allocation2 + $0x10] sm:$0xff]
          %v3476 = vld [vmem:[#allocation2 + $0x18] sm:$0xff]
          %v3477 = vld [vmem:[#allocation2 + $0x20] sm:$0xff]
          %v3478 = vld [vmem:[#allocation2 + $0x28] sm:$0xff]
          %v3479 = vld [vmem:[#allocation2 + $0x30] sm:$0xff]
          %v3480 = vld [vmem:[#allocation2 + $0x38] sm:$0xff]
          %v3481 = vld [vmem:[#allocation2 + $0x40] sm:$0xff]
          %v3482 = vld [vmem:[#allocation2 + $0x48] sm:$0xff]
          %v3483 = vld [vmem:[#allocation2 + $0x50] sm:$0xff]
          %v3484 = vld [vmem:[#allocation2 + $0x58] sm:$0xff]
          %v3485 = vld [vmem:[#allocation2 + $0x60] sm:$0xff]
          %v3486 = vld [vmem:[#allocation2 + $0x68] sm:$0xff]
          %v3487 = vld [vmem:[#allocation2 + $0x70] sm:$0xff]
          %v3488 = vld [vmem:[#allocation2 + $0x78] sm:$0xff]
          %v3489 = vld [vmem:[#allocation2 + $0x80] sm:$0xff]
          %v3490 = vld [vmem:[#allocation2 + $0x88] sm:$0xff]
          %v3491 = vld [vmem:[#allocation2 + $0x90] sm:$0xff]
          %v3492 = vld [vmem:[#allocation2 + $0x98] sm:$0xff]
          %v3493 = vld [vmem:[#allocation2 + $0xa0] sm:$0xff]
          %v3494 = vld [vmem:[#allocation2 + $0xa8] sm:$0xff]
          %v3495 = vld [vmem:[#allocation2 + $0xb0] sm:$0xff]
          %v3496 = vld [vmem:[#allocation2 + $0xb8] sm:$0xff]
          %v3497 = vld [vmem:[#allocation2 + $0xc0] sm:$0xff]
          %v3498 = vld [vmem:[#allocation2 + $0xc8] sm:$0xff]
          %v3499 = vld [vmem:[#allocation2 + $0xd0] sm:$0xff]
          %v3500 = vld [vmem:[#allocation2 + $0xd8] sm:$0xff]
          %v3501 = vld [vmem:[#allocation2 + $0xe0] sm:$0xff]
          %v3502 = vld [vmem:[#allocation2 + $0xe8] sm:$0xff]
          %v3503 = vld [vmem:[#allocation2 + $0xf0] sm:$0xff]
          %v3504 = vld [vmem:[#allocation2 + $0xf8] sm:$0xff]
          %v3505 = vld [vmem:[#allocation2 + $0x100] sm:$0xff]
          %v3506 = vld [vmem:[#allocation2 + $0x108] sm:$0xff]
          %v3507 = vld [vmem:[#allocation2 + $0x110] sm:$0xff]
          %v3508 = vld [vmem:[#allocation2 + $0x118] sm:$0xff]
          %v3509 = vld [vmem:[#allocation2 + $0x120] sm:$0xff]
          %v3510 = vld [vmem:[#allocation2 + $0x128] sm:$0xff]
          %v3511 = vld [vmem:[#allocation2 + $0x130] sm:$0xff]
          %v3512 = vld [vmem:[#allocation2 + $0x138] sm:$0xff]
          %v3513 = vld [vmem:[#allocation2 + $0x140] sm:$0xff]
          %v3514 = vld [vmem:[#allocation2 + $0x148] sm:$0xff]
          %v3515 = vld [vmem:[#allocation2 + $0x150] sm:$0xff]
          %v3516 = vld [vmem:[#allocation2 + $0x158] sm:$0xff]
          %v3517 = vld [vmem:[#allocation2 + $0x160] sm:$0xff]
          %v3518 = vld [vmem:[#allocation2 + $0x168] sm:$0xff]
          %v3519 = vld [vmem:[#allocation2 + $0x170] sm:$0xff]
          %v3520 = vld [vmem:[#allocation2 + $0x178] sm:$0xff]
          %v3521 = vld [vmem:[#allocation2 + $0x180] sm:$0xff]
          %v3522 = vld [vmem:[#allocation2 + $0x188] sm:$0xff]
          %v3523 = vld [vmem:[#allocation2 + $0x190] sm:$0xff]
          %v3524 = vld [vmem:[#allocation2 + $0x198] sm:$0xff]
          %v3525 = vld [vmem:[#allocation2 + $0x1a0] sm:$0xff]
          %v3526 = vld [vmem:[#allocation2 + $0x1a8] sm:$0xff]
          %v3527 = vld [vmem:[#allocation2 + $0x1b0] sm:$0xff]
          %v3528 = vld [vmem:[#allocation2 + $0x1b8] sm:$0xff]
          %v3529 = vld [vmem:[#allocation2 + $0x1c0] sm:$0xff]
          %v3530 = vld [vmem:[#allocation2 + $0x1c8] sm:$0xff]
          %v3531 = vld [vmem:[#allocation2 + $0x1d0] sm:$0xff]
          %v3532 = vld [vmem:[#allocation2 + $0x1d8] sm:$0xff]
          %v3533 = vld [vmem:[#allocation2 + $0x1e0] sm:$0xff]
          %v3534 = vld [vmem:[#allocation2 + $0x1e8] sm:$0xff]
          %v3535 = vld [vmem:[#allocation2 + $0x1f0] sm:$0xff]
          %v3536 = vld [vmem:[#allocation2 + $0x1f8] sm:$0xff]
          %v3538 = vsel %vm2639, %v3473, 0
          %v3541 = vsel %vm2639, %v3474, 0
          %v3544 = vsel %vm2639, %v3475, 0
          %v3547 = vsel %vm2639, %v3476, 0
          %v3550 = vsel %vm2639, %v3477, 0
          %v3553 = vsel %vm2639, %v3478, 0
          %v3556 = vsel %vm2639, %v3479, 0
          %v3559 = vsel %vm2639, %v3480, 0
          %v3562 = vsel %vm2639, %v3481, 0
          %v3565 = vsel %vm2639, %v3482, 0
          %v3568 = vsel %vm2639, %v3483, 0
          %v3571 = vsel %vm2639, %v3484, 0
          %v3574 = vsel %vm2639, %v3485, 0
          %v3577 = vsel %vm2639, %v3486, 0
          %v3580 = vsel %vm2639, %v3487, 0
          %v3583 = vsel %vm2639, %v3488, 0
          %v3586 = vsel %vm2639, %v3345, 0
          %v3589 = vsel %vm2639, %v3346, 0
          %v3592 = vsel %vm2639, %v3347, 0
          %v3595 = vsel %vm2639, %v3348, 0
          %v3598 = vsel %vm2639, %v3349, 0
          %v3601 = vsel %vm2639, %v3350, 0
          %v3604 = vsel %vm2639, %v3351, 0
          %v3607 = vsel %vm2639, %v3352, 0
          %v3610 = vsel %vm2639, %v3353, 0
          %v3613 = vsel %vm2639, %v3354, 0
          %v3616 = vsel %vm2639, %v3355, 0
          %v3619 = vsel %vm2639, %v3356, 0
          %v3622 = vsel %vm2639, %v3357, 0
          %v3625 = vsel %vm2639, %v3358, 0
          %v3628 = vsel %vm2639, %v3359, 0
          %v3631 = vsel %vm2639, %v3360, 0
          %3633 = vmatprep.subr.mxu0 0.0
          %3634 = vmatpush1.xpose.msra.mxu0 %v3631
          %3635 = vmatprep.subr.mxu0 0.0
          %3636 = vmatpush1.xpose.msra.mxu0 %v3628
          %3637 = vmatprep.subr.mxu0 0.0
          %3638 = vmatpush1.xpose.msra.mxu0 %v3625
          %3639 = vmatprep.subr.mxu0 0.0
          %3640 = vmatpush1.xpose.msra.mxu0 %v3622
          %3641 = vmatprep.subr.mxu0 0.0
          %3642 = vmatpush1.xpose.msra.mxu0 %v3619
          %3643 = vmatprep.subr.mxu0 0.0
          %3644 = vmatpush1.xpose.msra.mxu0 %v3616
          %3645 = vmatprep.subr.mxu0 0.0
          %3646 = vmatpush1.xpose.msra.mxu0 %v3613
          %3647 = vmatprep.subr.mxu0 0.0
          %3648 = vmatpush1.xpose.msra.mxu0 %v3610
          %3649 = vmatprep.subr.mxu0 0.0
          %3650 = vmatpush1.xpose.msra.mxu0 %v3607
          %3651 = vmatprep.subr.mxu0 0.0
          %3652 = vmatpush1.xpose.msra.mxu0 %v3604
          %3653 = vmatprep.subr.mxu0 0.0
          %3654 = vmatpush1.xpose.msra.mxu0 %v3601
          %3655 = vmatprep.subr.mxu0 0.0
          %3656 = vmatpush1.xpose.msra.mxu0 %v3598
          %3657 = vmatprep.subr.mxu0 0.0
          %3658 = vmatpush1.xpose.msra.mxu0 %v3595
          %3659 = vmatprep.subr.mxu0 0.0
          %3660 = vmatpush1.xpose.msra.mxu0 %v3592
          %3661 = vmatprep.subr.mxu0 0.0
          %3662 = vmatpush1.xpose.msra.mxu0 %v3589
          %3663 = vmatprep.subr.mxu0 0.0
          %3664 = vmatpush1.xpose.msra.mxu0 %v3586
          %3665 = vmatprep.subr.mxu0 0.0
          %3666 = vmatpush2.xpose.msra.mxu0 0.0
          %3667 = vmatprep.subr.mxu0 0.0
          %3668 = vmatpush2.xpose.msra.mxu0 0.0
          %3669 = vmatprep.subr.mxu0 0.0
          %3670 = vmatpush2.xpose.msra.mxu0 0.0
          %3671 = vmatprep.subr.mxu0 0.0
          %3672 = vmatpush2.xpose.msra.mxu0 0.0
          %3673 = vmatprep.subr.mxu0 0.0
          %3674 = vmatpush2.xpose.msra.mxu0 0.0
          %3675 = vmatprep.subr.mxu0 0.0
          %3676 = vmatpush2.xpose.msra.mxu0 0.0
          %3677 = vmatprep.subr.mxu0 0.0
          %3678 = vmatpush2.xpose.msra.mxu0 0.0
          %3679 = vmatprep.subr.mxu0 0.0
          %3680 = vmatpush2.xpose.msra.mxu0 0.0
          %3681 = vmatprep.subr.mxu0 0.0
          %3682 = vmatpush2.xpose.msra.mxu0 0.0
          %3683 = vmatprep.subr.mxu0 0.0
          %3684 = vmatpush2.xpose.msra.mxu0 0.0
          %3685 = vmatprep.subr.mxu0 0.0
          %3686 = vmatpush2.xpose.msra.mxu0 0.0
          %3687 = vmatprep.subr.mxu0 0.0
          %3688 = vmatpush2.xpose.msra.mxu0 0.0
          %3689 = vmatprep.subr.mxu0 0.0
          %3690 = vmatpush2.xpose.msra.mxu0 0.0
          %3691 = vmatprep.subr.mxu0 0.0
          %3692 = vmatpush2.xpose.msra.mxu0 0.0
          %3693 = vmatprep.subr.mxu0 0.0
          %3694 = vmatpush2.xpose.msra.mxu0 0.0
          %3695 = vmatprep.subr.mxu0 0.0
          %3696 = vmatpush2.xpose.msra.mxu0 0.0
          %3697 = vmatprep.mubr.f32.mxu0 0.0
          %3698 = vmatmul.mubr.f32.gmra.mxu0 %v3538
          %v3699 = vpop.f32.mrf.mxu0
          %v3700 = vadd.f32 0.0, %v3699
          %v3701 = vpop.f32.mrf.mxu0
          %3702 = vmatprep.mubr.f32.mxu0 0.0
          %3703 = vmatmul.mubr.f32.gmra.mxu0 %v3541
          %v3704 = vpop.f32.mrf.mxu0
          %v3705 = vadd.f32 0.0, %v3704
          %v3706 = vpop.f32.mrf.mxu0
          %3707 = vmatprep.mubr.f32.mxu0 0.0
          %3708 = vmatmul.mubr.f32.gmra.mxu0 %v3544
          %v3709 = vpop.f32.mrf.mxu0
          %v3710 = vadd.f32 0.0, %v3709
          %v3711 = vpop.f32.mrf.mxu0
          %3712 = vmatprep.mubr.f32.mxu0 0.0
          %3713 = vmatmul.mubr.f32.gmra.mxu0 %v3547
          %v3714 = vpop.f32.mrf.mxu0
          %v3715 = vadd.f32 0.0, %v3714
          %v3716 = vpop.f32.mrf.mxu0
          %3717 = vmatprep.mubr.f32.mxu0 0.0
          %3718 = vmatmul.mubr.f32.gmra.mxu0 %v3550
          %v3719 = vpop.f32.mrf.mxu0
          %v3720 = vadd.f32 0.0, %v3719
          %v3721 = vpop.f32.mrf.mxu0
          %3722 = vmatprep.mubr.f32.mxu0 0.0
          %3723 = vmatmul.mubr.f32.gmra.mxu0 %v3553
          %v3724 = vpop.f32.mrf.mxu0
          %v3725 = vadd.f32 0.0, %v3724
          %v3726 = vpop.f32.mrf.mxu0
          %3727 = vmatprep.mubr.f32.mxu0 0.0
          %3728 = vmatmul.mubr.f32.gmra.mxu0 %v3556
          %v3729 = vpop.f32.mrf.mxu0
          %v3730 = vadd.f32 0.0, %v3729
          %v3731 = vpop.f32.mrf.mxu0
          %3732 = vmatprep.mubr.f32.mxu0 0.0
          %3733 = vmatmul.mubr.f32.gmra.mxu0 %v3559
          %v3734 = vpop.f32.mrf.mxu0
          %v3735 = vadd.f32 0.0, %v3734
          %v3736 = vpop.f32.mrf.mxu0
          %3737 = vmatprep.mubr.f32.mxu0 0.0
          %3738 = vmatmul.mubr.f32.gmra.mxu0 %v3562
          %v3739 = vpop.f32.mrf.mxu0
          %v3740 = vadd.f32 0.0, %v3739
          %v3741 = vpop.f32.mrf.mxu0
          %3742 = vmatprep.mubr.f32.mxu0 0.0
          %3743 = vmatmul.mubr.f32.gmra.mxu0 %v3565
          %v3744 = vpop.f32.mrf.mxu0
          %v3745 = vadd.f32 0.0, %v3744
          %v3746 = vpop.f32.mrf.mxu0
          %3747 = vmatprep.mubr.f32.mxu0 0.0
          %3748 = vmatmul.mubr.f32.gmra.mxu0 %v3568
          %v3749 = vpop.f32.mrf.mxu0
          %v3750 = vadd.f32 0.0, %v3749
          %v3751 = vpop.f32.mrf.mxu0
          %3752 = vmatprep.mubr.f32.mxu0 0.0
          %3753 = vmatmul.mubr.f32.gmra.mxu0 %v3571
          %v3754 = vpop.f32.mrf.mxu0
          %v3755 = vadd.f32 0.0, %v3754
          %v3756 = vpop.f32.mrf.mxu0
          %3757 = vmatprep.mubr.f32.mxu0 0.0
          %3758 = vmatmul.mubr.f32.gmra.mxu0 %v3574
          %v3759 = vpop.f32.mrf.mxu0
          %v3760 = vadd.f32 0.0, %v3759
          %v3761 = vpop.f32.mrf.mxu0
          %3762 = vmatprep.mubr.f32.mxu0 0.0
          %3763 = vmatmul.mubr.f32.gmra.mxu0 %v3577
          %v3764 = vpop.f32.mrf.mxu0
          %v3765 = vadd.f32 0.0, %v3764
          %v3766 = vpop.f32.mrf.mxu0
          %3767 = vmatprep.mubr.f32.mxu0 0.0
          %3768 = vmatmul.mubr.f32.gmra.mxu0 %v3580
          %v3769 = vpop.f32.mrf.mxu0
          %v3770 = vadd.f32 0.0, %v3769
          %v3771 = vpop.f32.mrf.mxu0
          %3772 = vmatprep.mubr.f32.mxu0 0.0
          %3773 = vmatmul.mubr.f32.gmra.mxu0 %v3583
          %v3774 = vpop.f32.mrf.mxu0
          %v3775 = vadd.f32 0.0, %v3774
          %v3776 = vpop.f32.mrf.mxu0
          %3777 = vdwg.mxu0
          %v3779 = vsel %vm2639, %v3489, 0
          %v3782 = vsel %vm2639, %v3490, 0
          %v3785 = vsel %vm2639, %v3491, 0
          %v3788 = vsel %vm2639, %v3492, 0
          %v3791 = vsel %vm2639, %v3493, 0
          %v3794 = vsel %vm2639, %v3494, 0
          %v3797 = vsel %vm2639, %v3495, 0
          %v3800 = vsel %vm2639, %v3496, 0
          %v3803 = vsel %vm2639, %v3497, 0
          %v3806 = vsel %vm2639, %v3498, 0
          %v3809 = vsel %vm2639, %v3499, 0
          %v3812 = vsel %vm2639, %v3500, 0
          %v3815 = vsel %vm2639, %v3501, 0
          %v3818 = vsel %vm2639, %v3502, 0
          %v3821 = vsel %vm2639, %v3503, 0
          %v3824 = vsel %vm2639, %v3504, 0
          %v3827 = vsel %vm2639, %v3361, 0
          %v3830 = vsel %vm2639, %v3362, 0
          %v3833 = vsel %vm2639, %v3363, 0
          %v3836 = vsel %vm2639, %v3364, 0
          %v3839 = vsel %vm2639, %v3365, 0
          %v3842 = vsel %vm2639, %v3366, 0
          %v3845 = vsel %vm2639, %v3367, 0
          %v3848 = vsel %vm2639, %v3368, 0
          %v3851 = vsel %vm2639, %v3369, 0
          %v3854 = vsel %vm2639, %v3370, 0
          %v3857 = vsel %vm2639, %v3371, 0
          %v3860 = vsel %vm2639, %v3372, 0
          %v3863 = vsel %vm2639, %v3373, 0
          %v3866 = vsel %vm2639, %v3374, 0
          %v3869 = vsel %vm2639, %v3375, 0
          %v3872 = vsel %vm2639, %v3376, 0
          %3874 = vmatprep.subr.mxu0 0.0
          %3875 = vmatpush1.xpose.msra.mxu0 %v3872
          %3876 = vmatprep.subr.mxu0 0.0
          %3877 = vmatpush1.xpose.msra.mxu0 %v3869
          %3878 = vmatprep.subr.mxu0 0.0
          %3879 = vmatpush1.xpose.msra.mxu0 %v3866
          %3880 = vmatprep.subr.mxu0 0.0
          %3881 = vmatpush1.xpose.msra.mxu0 %v3863
          %3882 = vmatprep.subr.mxu0 0.0
          %3883 = vmatpush1.xpose.msra.mxu0 %v3860
          %3884 = vmatprep.subr.mxu0 0.0
          %3885 = vmatpush1.xpose.msra.mxu0 %v3857
          %3886 = vmatprep.subr.mxu0 0.0
          %3887 = vmatpush1.xpose.msra.mxu0 %v3854
          %3888 = vmatprep.subr.mxu0 0.0
          %3889 = vmatpush1.xpose.msra.mxu0 %v3851
          %3890 = vmatprep.subr.mxu0 0.0
          %3891 = vmatpush1.xpose.msra.mxu0 %v3848
          %3892 = vmatprep.subr.mxu0 0.0
          %3893 = vmatpush1.xpose.msra.mxu0 %v3845
          %3894 = vmatprep.subr.mxu0 0.0
          %3895 = vmatpush1.xpose.msra.mxu0 %v3842
          %3896 = vmatprep.subr.mxu0 0.0
          %3897 = vmatpush1.xpose.msra.mxu0 %v3839
          %3898 = vmatprep.subr.mxu0 0.0
          %3899 = vmatpush1.xpose.msra.mxu0 %v3836
          %3900 = vmatprep.subr.mxu0 0.0
          %3901 = vmatpush1.xpose.msra.mxu0 %v3833
          %3902 = vmatprep.subr.mxu0 0.0
          %3903 = vmatpush1.xpose.msra.mxu0 %v3830
          %3904 = vmatprep.subr.mxu0 0.0
          %3905 = vmatpush1.xpose.msra.mxu0 %v3827
          %3906 = vmatprep.subr.mxu0 0.0
          %3907 = vmatpush2.xpose.msra.mxu0 0.0
          %3908 = vmatprep.subr.mxu0 0.0
          %3909 = vmatpush2.xpose.msra.mxu0 0.0
          %3910 = vmatprep.subr.mxu0 0.0
          %3911 = vmatpush2.xpose.msra.mxu0 0.0
          %3912 = vmatprep.subr.mxu0 0.0
          %3913 = vmatpush2.xpose.msra.mxu0 0.0
          %3914 = vmatprep.subr.mxu0 0.0
          %3915 = vmatpush2.xpose.msra.mxu0 0.0
          %3916 = vmatprep.subr.mxu0 0.0
          %3917 = vmatpush2.xpose.msra.mxu0 0.0
          %3918 = vmatprep.subr.mxu0 0.0
          %3919 = vmatpush2.xpose.msra.mxu0 0.0
          %3920 = vmatprep.subr.mxu0 0.0
          %3921 = vmatpush2.xpose.msra.mxu0 0.0
          %3922 = vmatprep.subr.mxu0 0.0
          %3923 = vmatpush2.xpose.msra.mxu0 0.0
          %3924 = vmatprep.subr.mxu0 0.0
          %3925 = vmatpush2.xpose.msra.mxu0 0.0
          %3926 = vmatprep.subr.mxu0 0.0
          %3927 = vmatpush2.xpose.msra.mxu0 0.0
          %3928 = vmatprep.subr.mxu0 0.0
          %3929 = vmatpush2.xpose.msra.mxu0 0.0
          %3930 = vmatprep.subr.mxu0 0.0
          %3931 = vmatpush2.xpose.msra.mxu0 0.0
          %3932 = vmatprep.subr.mxu0 0.0
          %3933 = vmatpush2.xpose.msra.mxu0 0.0
          %3934 = vmatprep.subr.mxu0 0.0
          %3935 = vmatpush2.xpose.msra.mxu0 0.0
          %3936 = vmatprep.subr.mxu0 0.0
          %3937 = vmatpush2.xpose.msra.mxu0 0.0
          %3938 = vmatprep.mubr.f32.mxu0 0.0
          %3939 = vmatmul.mubr.f32.gmra.mxu0 %v3779
          %v3940 = vpop.f32.mrf.mxu0
          %v3941 = vadd.f32 0.0, %v3940
          %v3942 = vpop.f32.mrf.mxu0
          %3943 = vmatprep.mubr.f32.mxu0 0.0
          %3944 = vmatmul.mubr.f32.gmra.mxu0 %v3782
          %v3945 = vpop.f32.mrf.mxu0
          %v3946 = vadd.f32 0.0, %v3945
          %v3947 = vpop.f32.mrf.mxu0
          %3948 = vmatprep.mubr.f32.mxu0 0.0
          %3949 = vmatmul.mubr.f32.gmra.mxu0 %v3785
          %v3950 = vpop.f32.mrf.mxu0
          %v3951 = vadd.f32 0.0, %v3950
          %v3952 = vpop.f32.mrf.mxu0
          %3953 = vmatprep.mubr.f32.mxu0 0.0
          %3954 = vmatmul.mubr.f32.gmra.mxu0 %v3788
          %v3955 = vpop.f32.mrf.mxu0
          %v3956 = vadd.f32 0.0, %v3955
          %v3957 = vpop.f32.mrf.mxu0
          %3958 = vmatprep.mubr.f32.mxu0 0.0
          %3959 = vmatmul.mubr.f32.gmra.mxu0 %v3791
          %v3960 = vpop.f32.mrf.mxu0
          %v3961 = vadd.f32 0.0, %v3960
          %v3962 = vpop.f32.mrf.mxu0
          %3963 = vmatprep.mubr.f32.mxu0 0.0
          %3964 = vmatmul.mubr.f32.gmra.mxu0 %v3794
          %v3965 = vpop.f32.mrf.mxu0
          %v3966 = vadd.f32 0.0, %v3965
          %v3967 = vpop.f32.mrf.mxu0
          %3968 = vmatprep.mubr.f32.mxu0 0.0
          %3969 = vmatmul.mubr.f32.gmra.mxu0 %v3797
          %v3970 = vpop.f32.mrf.mxu0
          %v3971 = vadd.f32 0.0, %v3970
          %v3972 = vpop.f32.mrf.mxu0
          %3973 = vmatprep.mubr.f32.mxu0 0.0
          %3974 = vmatmul.mubr.f32.gmra.mxu0 %v3800
          %v3975 = vpop.f32.mrf.mxu0
          %v3976 = vadd.f32 0.0, %v3975
          %v3977 = vpop.f32.mrf.mxu0
          %3978 = vmatprep.mubr.f32.mxu0 0.0
          %3979 = vmatmul.mubr.f32.gmra.mxu0 %v3803
          %v3980 = vpop.f32.mrf.mxu0
          %v3981 = vadd.f32 0.0, %v3980
          %v3982 = vpop.f32.mrf.mxu0
          %3983 = vmatprep.mubr.f32.mxu0 0.0
          %3984 = vmatmul.mubr.f32.gmra.mxu0 %v3806
          %v3985 = vpop.f32.mrf.mxu0
          %v3986 = vadd.f32 0.0, %v3985
          %v3987 = vpop.f32.mrf.mxu0
          %3988 = vmatprep.mubr.f32.mxu0 0.0
          %3989 = vmatmul.mubr.f32.gmra.mxu0 %v3809
          %v3990 = vpop.f32.mrf.mxu0
          %v3991 = vadd.f32 0.0, %v3990
          %v3992 = vpop.f32.mrf.mxu0
          %3993 = vmatprep.mubr.f32.mxu0 0.0
          %3994 = vmatmul.mubr.f32.gmra.mxu0 %v3812
          %v3995 = vpop.f32.mrf.mxu0
          %v3996 = vadd.f32 0.0, %v3995
          %v3997 = vpop.f32.mrf.mxu0
          %3998 = vmatprep.mubr.f32.mxu0 0.0
          %3999 = vmatmul.mubr.f32.gmra.mxu0 %v3815
          %v4000 = vpop.f32.mrf.mxu0
          %v4001 = vadd.f32 0.0, %v4000
          %v4002 = vpop.f32.mrf.mxu0
          %4003 = vmatprep.mubr.f32.mxu0 0.0
          %4004 = vmatmul.mubr.f32.gmra.mxu0 %v3818
          %v4005 = vpop.f32.mrf.mxu0
          %v4006 = vadd.f32 0.0, %v4005
          %v4007 = vpop.f32.mrf.mxu0
          %4008 = vmatprep.mubr.f32.mxu0 0.0
          %4009 = vmatmul.mubr.f32.gmra.mxu0 %v3821
          %v4010 = vpop.f32.mrf.mxu0
          %v4011 = vadd.f32 0.0, %v4010
          %v4012 = vpop.f32.mrf.mxu0
          %4013 = vmatprep.mubr.f32.mxu0 0.0
          %4014 = vmatmul.mubr.f32.gmra.mxu0 %v3824
          %v4015 = vpop.f32.mrf.mxu0
          %v4016 = vadd.f32 0.0, %v4015
          %v4017 = vpop.f32.mrf.mxu0
          %4018 = vdwg.mxu0
          %v4020 = vsel %vm2639, %v3505, 0
          %v4023 = vsel %vm2639, %v3506, 0
          %v4026 = vsel %vm2639, %v3507, 0
          %v4029 = vsel %vm2639, %v3508, 0
          %v4032 = vsel %vm2639, %v3509, 0
          %v4035 = vsel %vm2639, %v3510, 0
          %v4038 = vsel %vm2639, %v3511, 0
          %v4041 = vsel %vm2639, %v3512, 0
          %v4044 = vsel %vm2639, %v3513, 0
          %v4047 = vsel %vm2639, %v3514, 0
          %v4050 = vsel %vm2639, %v3515, 0
          %v4053 = vsel %vm2639, %v3516, 0
          %v4056 = vsel %vm2639, %v3517, 0
          %v4059 = vsel %vm2639, %v3518, 0
          %v4062 = vsel %vm2639, %v3519, 0
          %v4065 = vsel %vm2639, %v3520, 0
          %v4068 = vsel %vm2639, %v3377, 0
          %v4071 = vsel %vm2639, %v3378, 0
          %v4074 = vsel %vm2639, %v3379, 0
          %v4077 = vsel %vm2639, %v3380, 0
          %v4080 = vsel %vm2639, %v3381, 0
          %v4083 = vsel %vm2639, %v3382, 0
          %v4086 = vsel %vm2639, %v3383, 0
          %v4089 = vsel %vm2639, %v3384, 0
          %v4092 = vsel %vm2639, %v3385, 0
          %v4095 = vsel %vm2639, %v3386, 0
          %v4098 = vsel %vm2639, %v3387, 0
          %v4101 = vsel %vm2639, %v3388, 0
          %v4104 = vsel %vm2639, %v3389, 0
          %v4107 = vsel %vm2639, %v3390, 0
          %v4110 = vsel %vm2639, %v3391, 0
          %v4113 = vsel %vm2639, %v3392, 0
          %4115 = vmatprep.subr.mxu0 0.0
          %4116 = vmatpush1.xpose.msra.mxu0 %v4113
          %4117 = vmatprep.subr.mxu0 0.0
          %4118 = vmatpush1.xpose.msra.mxu0 %v4110
          %4119 = vmatprep.subr.mxu0 0.0
          %4120 = vmatpush1.xpose.msra.mxu0 %v4107
          %4121 = vmatprep.subr.mxu0 0.0
          %4122 = vmatpush1.xpose.msra.mxu0 %v4104
          %4123 = vmatprep.subr.mxu0 0.0
          %4124 = vmatpush1.xpose.msra.mxu0 %v4101
          %4125 = vmatprep.subr.mxu0 0.0
          %4126 = vmatpush1.xpose.msra.mxu0 %v4098
          %4127 = vmatprep.subr.mxu0 0.0
          %4128 = vmatpush1.xpose.msra.mxu0 %v4095
          %4129 = vmatprep.subr.mxu0 0.0
          %4130 = vmatpush1.xpose.msra.mxu0 %v4092
          %4131 = vmatprep.subr.mxu0 0.0
          %4132 = vmatpush1.xpose.msra.mxu0 %v4089
          %4133 = vmatprep.subr.mxu0 0.0
          %4134 = vmatpush1.xpose.msra.mxu0 %v4086
          %4135 = vmatprep.subr.mxu0 0.0
          %4136 = vmatpush1.xpose.msra.mxu0 %v4083
          %4137 = vmatprep.subr.mxu0 0.0
          %4138 = vmatpush1.xpose.msra.mxu0 %v4080
          %4139 = vmatprep.subr.mxu0 0.0
          %4140 = vmatpush1.xpose.msra.mxu0 %v4077
          %4141 = vmatprep.subr.mxu0 0.0
          %4142 = vmatpush1.xpose.msra.mxu0 %v4074
          %4143 = vmatprep.subr.mxu0 0.0
          %4144 = vmatpush1.xpose.msra.mxu0 %v4071
          %4145 = vmatprep.subr.mxu0 0.0
          %4146 = vmatpush1.xpose.msra.mxu0 %v4068
          %4147 = vmatprep.subr.mxu0 0.0
          %4148 = vmatpush2.xpose.msra.mxu0 0.0
          %4149 = vmatprep.subr.mxu0 0.0
          %4150 = vmatpush2.xpose.msra.mxu0 0.0
          %4151 = vmatprep.subr.mxu0 0.0
          %4152 = vmatpush2.xpose.msra.mxu0 0.0
          %4153 = vmatprep.subr.mxu0 0.0
          %4154 = vmatpush2.xpose.msra.mxu0 0.0
          %4155 = vmatprep.subr.mxu0 0.0
          %4156 = vmatpush2.xpose.msra.mxu0 0.0
          %4157 = vmatprep.subr.mxu0 0.0
          %4158 = vmatpush2.xpose.msra.mxu0 0.0
          %4159 = vmatprep.subr.mxu0 0.0
          %4160 = vmatpush2.xpose.msra.mxu0 0.0
          %4161 = vmatprep.subr.mxu0 0.0
          %4162 = vmatpush2.xpose.msra.mxu0 0.0
          %4163 = vmatprep.subr.mxu0 0.0
          %4164 = vmatpush2.xpose.msra.mxu0 0.0
          %4165 = vmatprep.subr.mxu0 0.0
          %4166 = vmatpush2.xpose.msra.mxu0 0.0
          %4167 = vmatprep.subr.mxu0 0.0
          %4168 = vmatpush2.xpose.msra.mxu0 0.0
          %4169 = vmatprep.subr.mxu0 0.0
          %4170 = vmatpush2.xpose.msra.mxu0 0.0
          %4171 = vmatprep.subr.mxu0 0.0
          %4172 = vmatpush2.xpose.msra.mxu0 0.0
          %4173 = vmatprep.subr.mxu0 0.0
          %4174 = vmatpush2.xpose.msra.mxu0 0.0
          %4175 = vmatprep.subr.mxu0 0.0
          %4176 = vmatpush2.xpose.msra.mxu0 0.0
          %4177 = vmatprep.subr.mxu0 0.0
          %4178 = vmatpush2.xpose.msra.mxu0 0.0
          %4179 = vmatprep.mubr.f32.mxu0 0.0
          %4180 = vmatmul.mubr.f32.gmra.mxu0 %v4020
          %v4181 = vpop.f32.mrf.mxu0
          %v4182 = vadd.f32 0.0, %v4181
          %v4183 = vpop.f32.mrf.mxu0
          %4184 = vmatprep.mubr.f32.mxu0 0.0
          %4185 = vmatmul.mubr.f32.gmra.mxu0 %v4023
          %v4186 = vpop.f32.mrf.mxu0
          %v4187 = vadd.f32 0.0, %v4186
          %v4188 = vpop.f32.mrf.mxu0
          %4189 = vmatprep.mubr.f32.mxu0 0.0
          %4190 = vmatmul.mubr.f32.gmra.mxu0 %v4026
          %v4191 = vpop.f32.mrf.mxu0
          %v4192 = vadd.f32 0.0, %v4191
          %v4193 = vpop.f32.mrf.mxu0
          %4194 = vmatprep.mubr.f32.mxu0 0.0
          %4195 = vmatmul.mubr.f32.gmra.mxu0 %v4029
          %v4196 = vpop.f32.mrf.mxu0
          %v4197 = vadd.f32 0.0, %v4196
          %v4198 = vpop.f32.mrf.mxu0
          %4199 = vmatprep.mubr.f32.mxu0 0.0
          %4200 = vmatmul.mubr.f32.gmra.mxu0 %v4032
          %v4201 = vpop.f32.mrf.mxu0
          %v4202 = vadd.f32 0.0, %v4201
          %v4203 = vpop.f32.mrf.mxu0
          %4204 = vmatprep.mubr.f32.mxu0 0.0
          %4205 = vmatmul.mubr.f32.gmra.mxu0 %v4035
          %v4206 = vpop.f32.mrf.mxu0
          %v4207 = vadd.f32 0.0, %v4206
          %v4208 = vpop.f32.mrf.mxu0
          %4209 = vmatprep.mubr.f32.mxu0 0.0
          %4210 = vmatmul.mubr.f32.gmra.mxu0 %v4038
          %v4211 = vpop.f32.mrf.mxu0
          %v4212 = vadd.f32 0.0, %v4211
          %v4213 = vpop.f32.mrf.mxu0
          %4214 = vmatprep.mubr.f32.mxu0 0.0
          %4215 = vmatmul.mubr.f32.gmra.mxu0 %v4041
          %v4216 = vpop.f32.mrf.mxu0
          %v4217 = vadd.f32 0.0, %v4216
          %v4218 = vpop.f32.mrf.mxu0
          %4219 = vmatprep.mubr.f32.mxu0 0.0
          %4220 = vmatmul.mubr.f32.gmra.mxu0 %v4044
          %v4221 = vpop.f32.mrf.mxu0
          %v4222 = vadd.f32 0.0, %v4221
          %v4223 = vpop.f32.mrf.mxu0
          %4224 = vmatprep.mubr.f32.mxu0 0.0
          %4225 = vmatmul.mubr.f32.gmra.mxu0 %v4047
          %v4226 = vpop.f32.mrf.mxu0
          %v4227 = vadd.f32 0.0, %v4226
          %v4228 = vpop.f32.mrf.mxu0
          %4229 = vmatprep.mubr.f32.mxu0 0.0
          %4230 = vmatmul.mubr.f32.gmra.mxu0 %v4050
          %v4231 = vpop.f32.mrf.mxu0
          %v4232 = vadd.f32 0.0, %v4231
          %v4233 = vpop.f32.mrf.mxu0
          %4234 = vmatprep.mubr.f32.mxu0 0.0
          %4235 = vmatmul.mubr.f32.gmra.mxu0 %v4053
          %v4236 = vpop.f32.mrf.mxu0
          %v4237 = vadd.f32 0.0, %v4236
          %v4238 = vpop.f32.mrf.mxu0
          %4239 = vmatprep.mubr.f32.mxu0 0.0
          %4240 = vmatmul.mubr.f32.gmra.mxu0 %v4056
          %v4241 = vpop.f32.mrf.mxu0
          %v4242 = vadd.f32 0.0, %v4241
          %v4243 = vpop.f32.mrf.mxu0
          %4244 = vmatprep.mubr.f32.mxu0 0.0
          %4245 = vmatmul.mubr.f32.gmra.mxu0 %v4059
          %v4246 = vpop.f32.mrf.mxu0
          %v4247 = vadd.f32 0.0, %v4246
          %v4248 = vpop.f32.mrf.mxu0
          %4249 = vmatprep.mubr.f32.mxu0 0.0
          %4250 = vmatmul.mubr.f32.gmra.mxu0 %v4062
          %v4251 = vpop.f32.mrf.mxu0
          %v4252 = vadd.f32 0.0, %v4251
          %v4253 = vpop.f32.mrf.mxu0
          %4254 = vmatprep.mubr.f32.mxu0 0.0
          %4255 = vmatmul.mubr.f32.gmra.mxu0 %v4065
          %v4256 = vpop.f32.mrf.mxu0
          %v4257 = vadd.f32 0.0, %v4256
          %v4258 = vpop.f32.mrf.mxu0
          %4259 = vdwg.mxu0
          %v4261 = vsel %vm2639, %v3521, 0
          %v4264 = vsel %vm2639, %v3522, 0
          %v4267 = vsel %vm2639, %v3523, 0
          %v4270 = vsel %vm2639, %v3524, 0
          %v4273 = vsel %vm2639, %v3525, 0
          %v4276 = vsel %vm2639, %v3526, 0
          %v4279 = vsel %vm2639, %v3527, 0
          %v4282 = vsel %vm2639, %v3528, 0
          %v4285 = vsel %vm2639, %v3529, 0
          %v4288 = vsel %vm2639, %v3530, 0
          %v4291 = vsel %vm2639, %v3531, 0
          %v4294 = vsel %vm2639, %v3532, 0
          %v4297 = vsel %vm2639, %v3533, 0
          %v4300 = vsel %vm2639, %v3534, 0
          %v4303 = vsel %vm2639, %v3535, 0
          %v4306 = vsel %vm2639, %v3536, 0
          %v4309 = vsel %vm2639, %v3393, 0
          %v4312 = vsel %vm2639, %v3394, 0
          %v4315 = vsel %vm2639, %v3395, 0
          %v4318 = vsel %vm2639, %v3396, 0
          %v4321 = vsel %vm2639, %v3397, 0
          %v4324 = vsel %vm2639, %v3398, 0
          %v4327 = vsel %vm2639, %v3399, 0
          %v4330 = vsel %vm2639, %v3400, 0
          %v4333 = vsel %vm2639, %v3401, 0
          %v4336 = vsel %vm2639, %v3402, 0
          %v4339 = vsel %vm2639, %v3403, 0
          %v4342 = vsel %vm2639, %v3404, 0
          %v4345 = vsel %vm2639, %v3405, 0
          %v4348 = vsel %vm2639, %v3406, 0
          %v4351 = vsel %vm2639, %v3407, 0
          %v4354 = vsel %vm2639, %v3408, 0
          %4356 = vmatprep.subr.mxu0 0.0
          %4357 = vmatpush1.xpose.msra.mxu0 %v4354
          %4358 = vmatprep.subr.mxu0 0.0
          %4359 = vmatpush1.xpose.msra.mxu0 %v4351
          %4360 = vmatprep.subr.mxu0 0.0
          %4361 = vmatpush1.xpose.msra.mxu0 %v4348
          %4362 = vmatprep.subr.mxu0 0.0
          %4363 = vmatpush1.xpose.msra.mxu0 %v4345
          %4364 = vmatprep.subr.mxu0 0.0
          %4365 = vmatpush1.xpose.msra.mxu0 %v4342
          %4366 = vmatprep.subr.mxu0 0.0
          %4367 = vmatpush1.xpose.msra.mxu0 %v4339
          %4368 = vmatprep.subr.mxu0 0.0
          %4369 = vmatpush1.xpose.msra.mxu0 %v4336
          %4370 = vmatprep.subr.mxu0 0.0
          %4371 = vmatpush1.xpose.msra.mxu0 %v4333
          %4372 = vmatprep.subr.mxu0 0.0
          %4373 = vmatpush1.xpose.msra.mxu0 %v4330
          %4374 = vmatprep.subr.mxu0 0.0
          %4375 = vmatpush1.xpose.msra.mxu0 %v4327
          %4376 = vmatprep.subr.mxu0 0.0
          %4377 = vmatpush1.xpose.msra.mxu0 %v4324
          %4378 = vmatprep.subr.mxu0 0.0
          %4379 = vmatpush1.xpose.msra.mxu0 %v4321
          %4380 = vmatprep.subr.mxu0 0.0
          %4381 = vmatpush1.xpose.msra.mxu0 %v4318
          %4382 = vmatprep.subr.mxu0 0.0
          %4383 = vmatpush1.xpose.msra.mxu0 %v4315
          %4384 = vmatprep.subr.mxu0 0.0
          %4385 = vmatpush1.xpose.msra.mxu0 %v4312
          %4386 = vmatprep.subr.mxu0 0.0
          %4387 = vmatpush1.xpose.msra.mxu0 %v4309
          %4388 = vmatprep.subr.mxu0 0.0
          %4389 = vmatpush2.xpose.msra.mxu0 0.0
          %4390 = vmatprep.subr.mxu0 0.0
          %4391 = vmatpush2.xpose.msra.mxu0 0.0
          %4392 = vmatprep.subr.mxu0 0.0
          %4393 = vmatpush2.xpose.msra.mxu0 0.0
          %4394 = vmatprep.subr.mxu0 0.0
          %4395 = vmatpush2.xpose.msra.mxu0 0.0
          %4396 = vmatprep.subr.mxu0 0.0
          %4397 = vmatpush2.xpose.msra.mxu0 0.0
          %4398 = vmatprep.subr.mxu0 0.0
          %4399 = vmatpush2.xpose.msra.mxu0 0.0
          %4400 = vmatprep.subr.mxu0 0.0
          %4401 = vmatpush2.xpose.msra.mxu0 0.0
          %4402 = vmatprep.subr.mxu0 0.0
          %4403 = vmatpush2.xpose.msra.mxu0 0.0
          %4404 = vmatprep.subr.mxu0 0.0
          %4405 = vmatpush2.xpose.msra.mxu0 0.0
          %4406 = vmatprep.subr.mxu0 0.0
          %4407 = vmatpush2.xpose.msra.mxu0 0.0
          %4408 = vmatprep.subr.mxu0 0.0
          %4409 = vmatpush2.xpose.msra.mxu0 0.0
          %4410 = vmatprep.subr.mxu0 0.0
          %4411 = vmatpush2.xpose.msra.mxu0 0.0
          %4412 = vmatprep.subr.mxu0 0.0
          %4413 = vmatpush2.xpose.msra.mxu0 0.0
          %4414 = vmatprep.subr.mxu0 0.0
          %4415 = vmatpush2.xpose.msra.mxu0 0.0
          %4416 = vmatprep.subr.mxu0 0.0
          %4417 = vmatpush2.xpose.msra.mxu0 0.0
          %4418 = vmatprep.subr.mxu0 0.0
          %4419 = vmatpush2.xpose.msra.mxu0 0.0
          %4420 = vmatprep.mubr.f32.mxu0 0.0
          %4421 = vmatmul.mubr.f32.gmra.mxu0 %v4261
          %v4422 = vpop.f32.mrf.mxu0
          %v4423 = vadd.f32 0.0, %v4422
          %v4424 = vpop.f32.mrf.mxu0
          %4425 = vmatprep.mubr.f32.mxu0 0.0
          %4426 = vmatmul.mubr.f32.gmra.mxu0 %v4264
          %v4427 = vpop.f32.mrf.mxu0
          %v4428 = vadd.f32 0.0, %v4427
          %v4429 = vpop.f32.mrf.mxu0
          %4430 = vmatprep.mubr.f32.mxu0 0.0
          %4431 = vmatmul.mubr.f32.gmra.mxu0 %v4267
          %v4432 = vpop.f32.mrf.mxu0
          %v4433 = vadd.f32 0.0, %v4432
          %v4434 = vpop.f32.mrf.mxu0
          %4435 = vmatprep.mubr.f32.mxu0 0.0
          %4436 = vmatmul.mubr.f32.gmra.mxu0 %v4270
          %v4437 = vpop.f32.mrf.mxu0
          %v4438 = vadd.f32 0.0, %v4437
          %v4439 = vpop.f32.mrf.mxu0
          %4440 = vmatprep.mubr.f32.mxu0 0.0
          %4441 = vmatmul.mubr.f32.gmra.mxu0 %v4273
          %v4442 = vpop.f32.mrf.mxu0
          %v4443 = vadd.f32 0.0, %v4442
          %v4444 = vpop.f32.mrf.mxu0
          %4445 = vmatprep.mubr.f32.mxu0 0.0
          %4446 = vmatmul.mubr.f32.gmra.mxu0 %v4276
          %v4447 = vpop.f32.mrf.mxu0
          %v4448 = vadd.f32 0.0, %v4447
          %v4449 = vpop.f32.mrf.mxu0
          %4450 = vmatprep.mubr.f32.mxu0 0.0
          %4451 = vmatmul.mubr.f32.gmra.mxu0 %v4279
          %v4452 = vpop.f32.mrf.mxu0
          %v4453 = vadd.f32 0.0, %v4452
          %v4454 = vpop.f32.mrf.mxu0
          %4455 = vmatprep.mubr.f32.mxu0 0.0
          %4456 = vmatmul.mubr.f32.gmra.mxu0 %v4282
          %v4457 = vpop.f32.mrf.mxu0
          %v4458 = vadd.f32 0.0, %v4457
          %v4459 = vpop.f32.mrf.mxu0
          %4460 = vmatprep.mubr.f32.mxu0 0.0
          %4461 = vmatmul.mubr.f32.gmra.mxu0 %v4285
          %v4462 = vpop.f32.mrf.mxu0
          %v4463 = vadd.f32 0.0, %v4462
          %v4464 = vpop.f32.mrf.mxu0
          %4465 = vmatprep.mubr.f32.mxu0 0.0
          %4466 = vmatmul.mubr.f32.gmra.mxu0 %v4288
          %v4467 = vpop.f32.mrf.mxu0
          %v4468 = vadd.f32 0.0, %v4467
          %v4469 = vpop.f32.mrf.mxu0
          %4470 = vmatprep.mubr.f32.mxu0 0.0
          %4471 = vmatmul.mubr.f32.gmra.mxu0 %v4291
          %v4472 = vpop.f32.mrf.mxu0
          %v4473 = vadd.f32 0.0, %v4472
          %v4474 = vpop.f32.mrf.mxu0
          %4475 = vmatprep.mubr.f32.mxu0 0.0
          %4476 = vmatmul.mubr.f32.gmra.mxu0 %v4294
          %v4477 = vpop.f32.mrf.mxu0
          %v4478 = vadd.f32 0.0, %v4477
          %v4479 = vpop.f32.mrf.mxu0
          %4480 = vmatprep.mubr.f32.mxu0 0.0
          %4481 = vmatmul.mubr.f32.gmra.mxu0 %v4297
          %v4482 = vpop.f32.mrf.mxu0
          %v4483 = vadd.f32 0.0, %v4482
          %v4484 = vpop.f32.mrf.mxu0
          %4485 = vmatprep.mubr.f32.mxu0 0.0
          %4486 = vmatmul.mubr.f32.gmra.mxu0 %v4300
          %v4487 = vpop.f32.mrf.mxu0
          %v4488 = vadd.f32 0.0, %v4487
          %v4489 = vpop.f32.mrf.mxu0
          %4490 = vmatprep.mubr.f32.mxu0 0.0
          %4491 = vmatmul.mubr.f32.gmra.mxu0 %v4303
          %v4492 = vpop.f32.mrf.mxu0
          %v4493 = vadd.f32 0.0, %v4492
          %v4494 = vpop.f32.mrf.mxu0
          %4495 = vmatprep.mubr.f32.mxu0 0.0
          %4496 = vmatmul.mubr.f32.gmra.mxu0 %v4306
          %v4497 = vpop.f32.mrf.mxu0
          %v4498 = vadd.f32 0.0, %v4497
          %v4499 = vpop.f32.mrf.mxu0
          %4500 = vdwg.mxu0
          %v4501 = vlaneseq
          %v4502 = vshrl.u32 %v4501, 7
          %v4503 = vadd.s32 %v4502, 8
          %v4504 = vadd.s32 %v4502, 16
          %v4505 = vadd.s32 %v4502, 24
          %v4506 = vadd.s32 %v4502, 32
          %v4507 = vadd.s32 %v4502, 40
          %v4508 = vadd.s32 %v4502, 48
          %v4509 = vadd.s32 %v4502, 56
          %v4510 = vadd.s32 %v4502, 64
          %v4511 = vadd.s32 %v4502, 72
          %v4512 = vadd.s32 %v4502, 80
          %v4513 = vadd.s32 %v4502, 88
          %v4514 = vadd.s32 %v4502, 96
          %v4515 = vadd.s32 %v4502, 104
          %v4516 = vadd.s32 %v4502, 112
          %v4517 = vadd.s32 %v4502, 120
          %v4518 = vstv %s1329
          %v4519 = vadd.s32 %v4502, %v4518
          %v4520 = vadd.s32 %v4503, %v4518
          %v4521 = vadd.s32 %v4504, %v4518
          %v4522 = vadd.s32 %v4505, %v4518
          %v4523 = vadd.s32 %v4506, %v4518
          %v4524 = vadd.s32 %v4507, %v4518
          %v4525 = vadd.s32 %v4508, %v4518
          %v4526 = vadd.s32 %v4509, %v4518
          %v4527 = vadd.s32 %v4510, %v4518
          %v4528 = vadd.s32 %v4511, %v4518
          %v4529 = vadd.s32 %v4512, %v4518
          %v4530 = vadd.s32 %v4513, %v4518
          %v4531 = vadd.s32 %v4514, %v4518
          %v4532 = vadd.s32 %v4515, %v4518
          %v4533 = vadd.s32 %v4516, %v4518
          %v4534 = vadd.s32 %v4517, %v4518
          %v4535 = vlaneseq
          %v4536 = vand.u32 %v4535, 127
          %v4537 = vstv %s1330
          %v4538 = vadd.s32 %v4536, %v4537
          %vm4539 = vcmp.le.s32.totalorder %v4538, %v4519
          %vm4540 = vcmp.le.s32.totalorder %v4538, %v4520
          %vm4541 = vcmp.le.s32.totalorder %v4538, %v4521
          %vm4542 = vcmp.le.s32.totalorder %v4538, %v4522
          %vm4543 = vcmp.le.s32.totalorder %v4538, %v4523
          %vm4544 = vcmp.le.s32.totalorder %v4538, %v4524
          %vm4545 = vcmp.le.s32.totalorder %v4538, %v4525
          %vm4546 = vcmp.le.s32.totalorder %v4538, %v4526
          %vm4547 = vcmp.le.s32.totalorder %v4538, %v4527
          %vm4548 = vcmp.le.s32.totalorder %v4538, %v4528
          %vm4549 = vcmp.le.s32.totalorder %v4538, %v4529
          %vm4550 = vcmp.le.s32.totalorder %v4538, %v4530
          %vm4551 = vcmp.le.s32.totalorder %v4538, %v4531
          %vm4552 = vcmp.le.s32.totalorder %v4538, %v4532
          %vm4553 = vcmp.le.s32.totalorder %v4538, %v4533
          %vm4554 = vcmp.le.s32.totalorder %v4538, %v4534
          %v4555 = vsel %vm4539, 1, 0
          %v4556 = vsel %vm4540, 1, 0
          %v4557 = vsel %vm4541, 1, 0
          %v4558 = vsel %vm4542, 1, 0
          %v4559 = vsel %vm4543, 1, 0
          %v4560 = vsel %vm4544, 1, 0
          %v4561 = vsel %vm4545, 1, 0
          %v4562 = vsel %vm4546, 1, 0
          %v4563 = vsel %vm4547, 1, 0
          %v4564 = vsel %vm4548, 1, 0
          %v4565 = vsel %vm4549, 1, 0
          %v4566 = vsel %vm4550, 1, 0
          %v4567 = vsel %vm4551, 1, 0
          %v4568 = vsel %vm4552, 1, 0
          %v4569 = vsel %vm4553, 1, 0
          %v4570 = vsel %vm4554, 1, 0
          %vm4571 = vcmp.eq.s32.totalorder %v4555, 1
          %vm4572 = vcmp.eq.s32.totalorder %v4556, 1
          %vm4573 = vcmp.eq.s32.totalorder %v4557, 1
          %vm4574 = vcmp.eq.s32.totalorder %v4558, 1
          %vm4575 = vcmp.eq.s32.totalorder %v4559, 1
          %vm4576 = vcmp.eq.s32.totalorder %v4560, 1
          %vm4577 = vcmp.eq.s32.totalorder %v4561, 1
          %vm4578 = vcmp.eq.s32.totalorder %v4562, 1
          %vm4579 = vcmp.eq.s32.totalorder %v4563, 1
          %vm4580 = vcmp.eq.s32.totalorder %v4564, 1
          %vm4581 = vcmp.eq.s32.totalorder %v4565, 1
          %vm4582 = vcmp.eq.s32.totalorder %v4566, 1
          %vm4583 = vcmp.eq.s32.totalorder %v4567, 1
          %vm4584 = vcmp.eq.s32.totalorder %v4568, 1
          %vm4585 = vcmp.eq.s32.totalorder %v4569, 1
          %vm4586 = vcmp.eq.s32.totalorder %v4570, 1
          %v4587 = vsel %vm4571, %v3700, -1e+30
          %v4588 = vsel %vm4572, %v3705, -1e+30
          %v4589 = vsel %vm4573, %v3710, -1e+30
          %v4590 = vsel %vm4574, %v3715, -1e+30
          %v4591 = vsel %vm4575, %v3720, -1e+30
          %v4592 = vsel %vm4576, %v3725, -1e+30
          %v4593 = vsel %vm4577, %v3730, -1e+30
          %v4594 = vsel %vm4578, %v3735, -1e+30
          %v4595 = vsel %vm4579, %v3740, -1e+30
          %v4596 = vsel %vm4580, %v3745, -1e+30
          %v4597 = vsel %vm4581, %v3750, -1e+30
          %v4598 = vsel %vm4582, %v3755, -1e+30
          %v4599 = vsel %vm4583, %v3760, -1e+30
          %v4600 = vsel %vm4584, %v3765, -1e+30
          %v4601 = vsel %vm4585, %v3770, -1e+30
          %v4602 = vsel %vm4586, %v3775, -1e+30
          %v4603 = vsel %vm4571, %v3941, -1e+30
          %v4604 = vsel %vm4572, %v3946, -1e+30
          %v4605 = vsel %vm4573, %v3951, -1e+30
          %v4606 = vsel %vm4574, %v3956, -1e+30
          %v4607 = vsel %vm4575, %v3961, -1e+30
          %v4608 = vsel %vm4576, %v3966, -1e+30
          %v4609 = vsel %vm4577, %v3971, -1e+30
          %v4610 = vsel %vm4578, %v3976, -1e+30
          %v4611 = vsel %vm4579, %v3981, -1e+30
          %v4612 = vsel %vm4580, %v3986, -1e+30
          %v4613 = vsel %vm4581, %v3991, -1e+30
          %v4614 = vsel %vm4582, %v3996, -1e+30
          %v4615 = vsel %vm4583, %v4001, -1e+30
          %v4616 = vsel %vm4584, %v4006, -1e+30
          %v4617 = vsel %vm4585, %v4011, -1e+30
          %v4618 = vsel %vm4586, %v4016, -1e+30
          %v4619 = vsel %vm4571, %v4182, -1e+30
          %v4620 = vsel %vm4572, %v4187, -1e+30
          %v4621 = vsel %vm4573, %v4192, -1e+30
          %v4622 = vsel %vm4574, %v4197, -1e+30
          %v4623 = vsel %vm4575, %v4202, -1e+30
          %v4624 = vsel %vm4576, %v4207, -1e+30
          %v4625 = vsel %vm4577, %v4212, -1e+30
          %v4626 = vsel %vm4578, %v4217, -1e+30
          %v4627 = vsel %vm4579, %v4222, -1e+30
          %v4628 = vsel %vm4580, %v4227, -1e+30
          %v4629 = vsel %vm4581, %v4232, -1e+30
          %v4630 = vsel %vm4582, %v4237, -1e+30
          %v4631 = vsel %vm4583, %v4242, -1e+30
          %v4632 = vsel %vm4584, %v4247, -1e+30
          %v4633 = vsel %vm4585, %v4252, -1e+30
          %v4634 = vsel %vm4586, %v4257, -1e+30
          %v4635 = vsel %vm4571, %v4423, -1e+30
          %v4636 = vsel %vm4572, %v4428, -1e+30
          %v4637 = vsel %vm4573, %v4433, -1e+30
          %v4638 = vsel %vm4574, %v4438, -1e+30
          %v4639 = vsel %vm4575, %v4443, -1e+30
          %v4640 = vsel %vm4576, %v4448, -1e+30
          %v4641 = vsel %vm4577, %v4453, -1e+30
          %v4642 = vsel %vm4578, %v4458, -1e+30
          %v4643 = vsel %vm4579, %v4463, -1e+30
          %v4644 = vsel %vm4580, %v4468, -1e+30
          %v4645 = vsel %vm4581, %v4473, -1e+30
          %v4646 = vsel %vm4582, %v4478, -1e+30
          %v4647 = vsel %vm4583, %v4483, -1e+30
          %v4648 = vsel %vm4584, %v4488, -1e+30
          %v4649 = vsel %vm4585, %v4493, -1e+30
          %v4650 = vsel %vm4586, %v4498, -1e+30
          %v4651 = vld [vmem:[#allocation3] sm:$0xff]
          %v4652 = vld [vmem:[#allocation3 + $0x8] sm:$0xff]
          %v4653 = vld [vmem:[#allocation3 + $0x10] sm:$0xff]
          %v4654 = vld [vmem:[#allocation3 + $0x18] sm:$0xff]
          %v4655 = vld [vmem:[#allocation3 + $0x20] sm:$0xff]
          %v4656 = vld [vmem:[#allocation3 + $0x28] sm:$0xff]
          %v4657 = vld [vmem:[#allocation3 + $0x30] sm:$0xff]
          %v4658 = vld [vmem:[#allocation3 + $0x38] sm:$0xff]
          %v4659 = vld [vmem:[#allocation3 + $0x40] sm:$0xff]
          %v4660 = vld [vmem:[#allocation3 + $0x48] sm:$0xff]
          %v4661 = vld [vmem:[#allocation3 + $0x50] sm:$0xff]
          %v4662 = vld [vmem:[#allocation3 + $0x58] sm:$0xff]
          %v4663 = vld [vmem:[#allocation3 + $0x60] sm:$0xff]
          %v4664 = vld [vmem:[#allocation3 + $0x68] sm:$0xff]
          %v4665 = vld [vmem:[#allocation3 + $0x70] sm:$0xff]
          %v4666 = vld [vmem:[#allocation3 + $0x78] sm:$0xff]
          %v4667 = vld [vmem:[#allocation3 + $0x80] sm:$0xff]
          %v4668 = vld [vmem:[#allocation3 + $0x88] sm:$0xff]
          %v4669 = vld [vmem:[#allocation3 + $0x90] sm:$0xff]
          %v4670 = vld [vmem:[#allocation3 + $0x98] sm:$0xff]
          %v4671 = vld [vmem:[#allocation3 + $0xa0] sm:$0xff]
          %v4672 = vld [vmem:[#allocation3 + $0xa8] sm:$0xff]
          %v4673 = vld [vmem:[#allocation3 + $0xb0] sm:$0xff]
          %v4674 = vld [vmem:[#allocation3 + $0xb8] sm:$0xff]
          %v4675 = vld [vmem:[#allocation3 + $0xc0] sm:$0xff]
          %v4676 = vld [vmem:[#allocation3 + $0xc8] sm:$0xff]
          %v4677 = vld [vmem:[#allocation3 + $0xd0] sm:$0xff]
          %v4678 = vld [vmem:[#allocation3 + $0xd8] sm:$0xff]
          %v4679 = vld [vmem:[#allocation3 + $0xe0] sm:$0xff]
          %v4680 = vld [vmem:[#allocation3 + $0xe8] sm:$0xff]
          %v4681 = vld [vmem:[#allocation3 + $0xf0] sm:$0xff]
          %v4682 = vld [vmem:[#allocation3 + $0xf8] sm:$0xff]
          %v4683 = vld [vmem:[#allocation3 + $0x100] sm:$0xff]
          %v4684 = vld [vmem:[#allocation3 + $0x108] sm:$0xff]
          %v4685 = vld [vmem:[#allocation3 + $0x110] sm:$0xff]
          %v4686 = vld [vmem:[#allocation3 + $0x118] sm:$0xff]
          %v4687 = vld [vmem:[#allocation3 + $0x120] sm:$0xff]
          %v4688 = vld [vmem:[#allocation3 + $0x128] sm:$0xff]
          %v4689 = vld [vmem:[#allocation3 + $0x130] sm:$0xff]
          %v4690 = vld [vmem:[#allocation3 + $0x138] sm:$0xff]
          %v4691 = vld [vmem:[#allocation3 + $0x140] sm:$0xff]
          %v4692 = vld [vmem:[#allocation3 + $0x148] sm:$0xff]
          %v4693 = vld [vmem:[#allocation3 + $0x150] sm:$0xff]
          %v4694 = vld [vmem:[#allocation3 + $0x158] sm:$0xff]
          %v4695 = vld [vmem:[#allocation3 + $0x160] sm:$0xff]
          %v4696 = vld [vmem:[#allocation3 + $0x168] sm:$0xff]
          %v4697 = vld [vmem:[#allocation3 + $0x170] sm:$0xff]
          %v4698 = vld [vmem:[#allocation3 + $0x178] sm:$0xff]
          %v4699 = vld [vmem:[#allocation3 + $0x180] sm:$0xff]
          %v4700 = vld [vmem:[#allocation3 + $0x188] sm:$0xff]
          %v4701 = vld [vmem:[#allocation3 + $0x190] sm:$0xff]
          %v4702 = vld [vmem:[#allocation3 + $0x198] sm:$0xff]
          %v4703 = vld [vmem:[#allocation3 + $0x1a0] sm:$0xff]
          %v4704 = vld [vmem:[#allocation3 + $0x1a8] sm:$0xff]
          %v4705 = vld [vmem:[#allocation3 + $0x1b0] sm:$0xff]
          %v4706 = vld [vmem:[#allocation3 + $0x1b8] sm:$0xff]
          %v4707 = vld [vmem:[#allocation3 + $0x1c0] sm:$0xff]
          %v4708 = vld [vmem:[#allocation3 + $0x1c8] sm:$0xff]
          %v4709 = vld [vmem:[#allocation3 + $0x1d0] sm:$0xff]
          %v4710 = vld [vmem:[#allocation3 + $0x1d8] sm:$0xff]
          %v4711 = vld [vmem:[#allocation3 + $0x1e0] sm:$0xff]
          %v4712 = vld [vmem:[#allocation3 + $0x1e8] sm:$0xff]
          %v4713 = vld [vmem:[#allocation3 + $0x1f0] sm:$0xff]
          %v4714 = vld [vmem:[#allocation3 + $0x1f8] sm:$0xff]
          %4715 = vmax.xlane.f32.xlu0 %v4587
          %v4716 = vpop.xlane.xlu0 %4715
          %4717 = vmax.xlane.f32.xlu0 %v4588
          %v4718 = vpop.xlane.xlu0 %4717
          %4719 = vmax.xlane.f32.xlu0 %v4589
          %v4720 = vpop.xlane.xlu0 %4719
          %4721 = vmax.xlane.f32.xlu0 %v4590
          %v4722 = vpop.xlane.xlu0 %4721
          %4723 = vmax.xlane.f32.xlu0 %v4591
          %v4724 = vpop.xlane.xlu0 %4723
          %4725 = vmax.xlane.f32.xlu0 %v4592
          %v4726 = vpop.xlane.xlu0 %4725
          %4727 = vmax.xlane.f32.xlu0 %v4593
          %v4728 = vpop.xlane.xlu0 %4727
          %4729 = vmax.xlane.f32.xlu0 %v4594
          %v4730 = vpop.xlane.xlu0 %4729
          %4731 = vmax.xlane.f32.xlu0 %v4595
          %v4732 = vpop.xlane.xlu0 %4731
          %4733 = vmax.xlane.f32.xlu0 %v4596
          %v4734 = vpop.xlane.xlu0 %4733
          %4735 = vmax.xlane.f32.xlu0 %v4597
          %v4736 = vpop.xlane.xlu0 %4735
          %4737 = vmax.xlane.f32.xlu0 %v4598
          %v4738 = vpop.xlane.xlu0 %4737
          %4739 = vmax.xlane.f32.xlu0 %v4599
          %v4740 = vpop.xlane.xlu0 %4739
          %4741 = vmax.xlane.f32.xlu0 %v4600
          %v4742 = vpop.xlane.xlu0 %4741
          %4743 = vmax.xlane.f32.xlu0 %v4601
          %v4744 = vpop.xlane.xlu0 %4743
          %4745 = vmax.xlane.f32.xlu0 %v4602
          %v4746 = vpop.xlane.xlu0 %4745
          %4747 = vmax.xlane.f32.xlu0 %v4603
          %v4748 = vpop.xlane.xlu0 %4747
          %4749 = vmax.xlane.f32.xlu0 %v4604
          %v4750 = vpop.xlane.xlu0 %4749
          %4751 = vmax.xlane.f32.xlu0 %v4605
          %v4752 = vpop.xlane.xlu0 %4751
          %4753 = vmax.xlane.f32.xlu0 %v4606
          %v4754 = vpop.xlane.xlu0 %4753
          %4755 = vmax.xlane.f32.xlu0 %v4607
          %v4756 = vpop.xlane.xlu0 %4755
          %4757 = vmax.xlane.f32.xlu0 %v4608
          %v4758 = vpop.xlane.xlu0 %4757
          %4759 = vmax.xlane.f32.xlu0 %v4609
          %v4760 = vpop.xlane.xlu0 %4759
          %4761 = vmax.xlane.f32.xlu0 %v4610
          %v4762 = vpop.xlane.xlu0 %4761
          %4763 = vmax.xlane.f32.xlu0 %v4611
          %v4764 = vpop.xlane.xlu0 %4763
          %4765 = vmax.xlane.f32.xlu0 %v4612
          %v4766 = vpop.xlane.xlu0 %4765
          %4767 = vmax.xlane.f32.xlu0 %v4613
          %v4768 = vpop.xlane.xlu0 %4767
          %4769 = vmax.xlane.f32.xlu0 %v4614
          %v4770 = vpop.xlane.xlu0 %4769
          %4771 = vmax.xlane.f32.xlu0 %v4615
          %v4772 = vpop.xlane.xlu0 %4771
          %4773 = vmax.xlane.f32.xlu0 %v4616
          %v4774 = vpop.xlane.xlu0 %4773
          %4775 = vmax.xlane.f32.xlu0 %v4617
          %v4776 = vpop.xlane.xlu0 %4775
          %4777 = vmax.xlane.f32.xlu0 %v4618
          %v4778 = vpop.xlane.xlu0 %4777
          %4779 = vmax.xlane.f32.xlu0 %v4619
          %v4780 = vpop.xlane.xlu0 %4779
          %4781 = vmax.xlane.f32.xlu0 %v4620
          %v4782 = vpop.xlane.xlu0 %4781
          %4783 = vmax.xlane.f32.xlu0 %v4621
          %v4784 = vpop.xlane.xlu0 %4783
          %4785 = vmax.xlane.f32.xlu0 %v4622
          %v4786 = vpop.xlane.xlu0 %4785
          %4787 = vmax.xlane.f32.xlu0 %v4623
          %v4788 = vpop.xlane.xlu0 %4787
          %4789 = vmax.xlane.f32.xlu0 %v4624
          %v4790 = vpop.xlane.xlu0 %4789
          %4791 = vmax.xlane.f32.xlu0 %v4625
          %v4792 = vpop.xlane.xlu0 %4791
          %4793 = vmax.xlane.f32.xlu0 %v4626
          %v4794 = vpop.xlane.xlu0 %4793
          %4795 = vmax.xlane.f32.xlu0 %v4627
          %v4796 = vpop.xlane.xlu0 %4795
          %4797 = vmax.xlane.f32.xlu0 %v4628
          %v4798 = vpop.xlane.xlu0 %4797
          %4799 = vmax.xlane.f32.xlu0 %v4629
          %v4800 = vpop.xlane.xlu0 %4799
          %4801 = vmax.xlane.f32.xlu0 %v4630
          %v4802 = vpop.xlane.xlu0 %4801
          %4803 = vmax.xlane.f32.xlu0 %v4631
          %v4804 = vpop.xlane.xlu0 %4803
          %4805 = vmax.xlane.f32.xlu0 %v4632
          %v4806 = vpop.xlane.xlu0 %4805
          %4807 = vmax.xlane.f32.xlu0 %v4633
          %v4808 = vpop.xlane.xlu0 %4807
          %4809 = vmax.xlane.f32.xlu0 %v4634
          %v4810 = vpop.xlane.xlu0 %4809
          %4811 = vmax.xlane.f32.xlu0 %v4635
          %v4812 = vpop.xlane.xlu0 %4811
          %4813 = vmax.xlane.f32.xlu0 %v4636
          %v4814 = vpop.xlane.xlu0 %4813
          %4815 = vmax.xlane.f32.xlu0 %v4637
          %v4816 = vpop.xlane.xlu0 %4815
          %4817 = vmax.xlane.f32.xlu0 %v4638
          %v4818 = vpop.xlane.xlu0 %4817
          %4819 = vmax.xlane.f32.xlu0 %v4639
          %v4820 = vpop.xlane.xlu0 %4819
          %4821 = vmax.xlane.f32.xlu0 %v4640
          %v4822 = vpop.xlane.xlu0 %4821
          %4823 = vmax.xlane.f32.xlu0 %v4641
          %v4824 = vpop.xlane.xlu0 %4823
          %4825 = vmax.xlane.f32.xlu0 %v4642
          %v4826 = vpop.xlane.xlu0 %4825
          %4827 = vmax.xlane.f32.xlu0 %v4643
          %v4828 = vpop.xlane.xlu0 %4827
          %4829 = vmax.xlane.f32.xlu0 %v4644
          %v4830 = vpop.xlane.xlu0 %4829
          %4831 = vmax.xlane.f32.xlu0 %v4645
          %v4832 = vpop.xlane.xlu0 %4831
          %4833 = vmax.xlane.f32.xlu0 %v4646
          %v4834 = vpop.xlane.xlu0 %4833
          %4835 = vmax.xlane.f32.xlu0 %v4647
          %v4836 = vpop.xlane.xlu0 %4835
          %4837 = vmax.xlane.f32.xlu0 %v4648
          %v4838 = vpop.xlane.xlu0 %4837
          %4839 = vmax.xlane.f32.xlu0 %v4649
          %v4840 = vpop.xlane.xlu0 %4839
          %4841 = vmax.xlane.f32.xlu0 %v4650
          %v4842 = vpop.xlane.xlu0 %4841
          %v4843 = vmax.f32 %v4651, %v4716
          %v4844 = vmax.f32 %v4652, %v4718
          %v4845 = vmax.f32 %v4653, %v4720
          %v4846 = vmax.f32 %v4654, %v4722
          %v4847 = vmax.f32 %v4655, %v4724
          %v4848 = vmax.f32 %v4656, %v4726
          %v4849 = vmax.f32 %v4657, %v4728
          %v4850 = vmax.f32 %v4658, %v4730
          %v4851 = vmax.f32 %v4659, %v4732
          %v4852 = vmax.f32 %v4660, %v4734
          %v4853 = vmax.f32 %v4661, %v4736
          %v4854 = vmax.f32 %v4662, %v4738
          %v4855 = vmax.f32 %v4663, %v4740
          %v4856 = vmax.f32 %v4664, %v4742
          %v4857 = vmax.f32 %v4665, %v4744
          %v4858 = vmax.f32 %v4666, %v4746
          %v4859 = vmax.f32 %v4667, %v4748
          %v4860 = vmax.f32 %v4668, %v4750
          %v4861 = vmax.f32 %v4669, %v4752
          %v4862 = vmax.f32 %v4670, %v4754
          %v4863 = vmax.f32 %v4671, %v4756
          %v4864 = vmax.f32 %v4672, %v4758
          %v4865 = vmax.f32 %v4673, %v4760
          %v4866 = vmax.f32 %v4674, %v4762
          %v4867 = vmax.f32 %v4675, %v4764
          %v4868 = vmax.f32 %v4676, %v4766
          %v4869 = vmax.f32 %v4677, %v4768
          %v4870 = vmax.f32 %v4678, %v4770
          %v4871 = vmax.f32 %v4679, %v4772
          %v4872 = vmax.f32 %v4680, %v4774
          %v4873 = vmax.f32 %v4681, %v4776
          %v4874 = vmax.f32 %v4682, %v4778
          %v4875 = vmax.f32 %v4683, %v4780
          %v4876 = vmax.f32 %v4684, %v4782
          %v4877 = vmax.f32 %v4685, %v4784
          %v4878 = vmax.f32 %v4686, %v4786
          %v4879 = vmax.f32 %v4687, %v4788
          %v4880 = vmax.f32 %v4688, %v4790
          %v4881 = vmax.f32 %v4689, %v4792
          %v4882 = vmax.f32 %v4690, %v4794
          %v4883 = vmax.f32 %v4691, %v4796
          %v4884 = vmax.f32 %v4692, %v4798
          %v4885 = vmax.f32 %v4693, %v4800
          %v4886 = vmax.f32 %v4694, %v4802
          %v4887 = vmax.f32 %v4695, %v4804
          %v4888 = vmax.f32 %v4696, %v4806
          %v4889 = vmax.f32 %v4697, %v4808
          %v4890 = vmax.f32 %v4698, %v4810
          %v4891 = vmax.f32 %v4699, %v4812
          %v4892 = vmax.f32 %v4700, %v4814
          %v4893 = vmax.f32 %v4701, %v4816
          %v4894 = vmax.f32 %v4702, %v4818
          %v4895 = vmax.f32 %v4703, %v4820
          %v4896 = vmax.f32 %v4704, %v4822
          %v4897 = vmax.f32 %v4705, %v4824
          %v4898 = vmax.f32 %v4706, %v4826
          %v4899 = vmax.f32 %v4707, %v4828
          %v4900 = vmax.f32 %v4708, %v4830
          %v4901 = vmax.f32 %v4709, %v4832
          %v4902 = vmax.f32 %v4710, %v4834
          %v4903 = vmax.f32 %v4711, %v4836
          %v4904 = vmax.f32 %v4712, %v4838
          %v4905 = vmax.f32 %v4713, %v4840
          %v4906 = vmax.f32 %v4714, %v4842
          %v4907 = vsub.f32 %v4651, %v4843
          %v4908 = vsub.f32 %v4652, %v4844
          %v4909 = vsub.f32 %v4653, %v4845
          %v4910 = vsub.f32 %v4654, %v4846
          %v4911 = vsub.f32 %v4655, %v4847
          %v4912 = vsub.f32 %v4656, %v4848
          %v4913 = vsub.f32 %v4657, %v4849
          %v4914 = vsub.f32 %v4658, %v4850
          %v4915 = vsub.f32 %v4659, %v4851
          %v4916 = vsub.f32 %v4660, %v4852
          %v4917 = vsub.f32 %v4661, %v4853
          %v4918 = vsub.f32 %v4662, %v4854
          %v4919 = vsub.f32 %v4663, %v4855
          %v4920 = vsub.f32 %v4664, %v4856
          %v4921 = vsub.f32 %v4665, %v4857
          %v4922 = vsub.f32 %v4666, %v4858
          %v4923 = vsub.f32 %v4667, %v4859
          %v4924 = vsub.f32 %v4668, %v4860
          %v4925 = vsub.f32 %v4669, %v4861
          %v4926 = vsub.f32 %v4670, %v4862
          %v4927 = vsub.f32 %v4671, %v4863
          %v4928 = vsub.f32 %v4672, %v4864
          %v4929 = vsub.f32 %v4673, %v4865
          %v4930 = vsub.f32 %v4674, %v4866
          %v4931 = vsub.f32 %v4675, %v4867
          %v4932 = vsub.f32 %v4676, %v4868
          %v4933 = vsub.f32 %v4677, %v4869
          %v4934 = vsub.f32 %v4678, %v4870
          %v4935 = vsub.f32 %v4679, %v4871
          %v4936 = vsub.f32 %v4680, %v4872
          %v4937 = vsub.f32 %v4681, %v4873
          %v4938 = vsub.f32 %v4682, %v4874
          %v4939 = vsub.f32 %v4683, %v4875
          %v4940 = vsub.f32 %v4684, %v4876
          %v4941 = vsub.f32 %v4685, %v4877
          %v4942 = vsub.f32 %v4686, %v4878
          %v4943 = vsub.f32 %v4687, %v4879
          %v4944 = vsub.f32 %v4688, %v4880
          %v4945 = vsub.f32 %v4689, %v4881
          %v4946 = vsub.f32 %v4690, %v4882
          %v4947 = vsub.f32 %v4691, %v4883
          %v4948 = vsub.f32 %v4692, %v4884
          %v4949 = vsub.f32 %v4693, %v4885
          %v4950 = vsub.f32 %v4694, %v4886
          %v4951 = vsub.f32 %v4695, %v4887
          %v4952 = vsub.f32 %v4696, %v4888
          %v4953 = vsub.f32 %v4697, %v4889
          %v4954 = vsub.f32 %v4698, %v4890
          %v4955 = vsub.f32 %v4699, %v4891
          %v4956 = vsub.f32 %v4700, %v4892
          %v4957 = vsub.f32 %v4701, %v4893
          %v4958 = vsub.f32 %v4702, %v4894
          %v4959 = vsub.f32 %v4703, %v4895
          %v4960 = vsub.f32 %v4704, %v4896
          %v4961 = vsub.f32 %v4705, %v4897
          %v4962 = vsub.f32 %v4706, %v4898
          %v4963 = vsub.f32 %v4707, %v4899
          %v4964 = vsub.f32 %v4708, %v4900
          %v4965 = vsub.f32 %v4709, %v4901
          %v4966 = vsub.f32 %v4710, %v4902
          %v4967 = vsub.f32 %v4711, %v4903
          %v4968 = vsub.f32 %v4712, %v4904
          %v4969 = vsub.f32 %v4713, %v4905
          %v4970 = vsub.f32 %v4714, %v4906
          %v4971 = vmul.f32 %v4907, 1.442695
          %v4972 = vpow.pop %v4971
          %v4973 = vmul.f32 %v4908, 1.442695
          %v4974 = vpow.pop %v4973
          %v4975 = vmul.f32 %v4909, 1.442695
          %v4976 = vpow.pop %v4975
          %v4977 = vmul.f32 %v4910, 1.442695
          %v4978 = vpow.pop %v4977
          %v4979 = vmul.f32 %v4911, 1.442695
          %v4980 = vpow.pop %v4979
          %v4981 = vmul.f32 %v4912, 1.442695
          %v4982 = vpow.pop %v4981
          %v4983 = vmul.f32 %v4913, 1.442695
          %v4984 = vpow.pop %v4983
          %v4985 = vmul.f32 %v4914, 1.442695
          %v4986 = vpow.pop %v4985
          %v4987 = vmul.f32 %v4915, 1.442695
          %v4988 = vpow.pop %v4987
          %v4989 = vmul.f32 %v4916, 1.442695
          %v4990 = vpow.pop %v4989
          %v4991 = vmul.f32 %v4917, 1.442695
          %v4992 = vpow.pop %v4991
          %v4993 = vmul.f32 %v4918, 1.442695
          %v4994 = vpow.pop %v4993
          %v4995 = vmul.f32 %v4919, 1.442695
          %v4996 = vpow.pop %v4995
          %v4997 = vmul.f32 %v4920, 1.442695
          %v4998 = vpow.pop %v4997
          %v4999 = vmul.f32 %v4921, 1.442695
          %v5000 = vpow.pop %v4999
          %v5001 = vmul.f32 %v4922, 1.442695
          %v5002 = vpow.pop %v5001
          %v5003 = vmul.f32 %v4923, 1.442695
          %v5004 = vpow.pop %v5003
          %v5005 = vmul.f32 %v4924, 1.442695
          %v5006 = vpow.pop %v5005
          %v5007 = vmul.f32 %v4925, 1.442695
          %v5008 = vpow.pop %v5007
          %v5009 = vmul.f32 %v4926, 1.442695
          %v5010 = vpow.pop %v5009
          %v5011 = vmul.f32 %v4927, 1.442695
          %v5012 = vpow.pop %v5011
          %v5013 = vmul.f32 %v4928, 1.442695
          %v5014 = vpow.pop %v5013
          %v5015 = vmul.f32 %v4929, 1.442695
          %v5016 = vpow.pop %v5015
          %v5017 = vmul.f32 %v4930, 1.442695
          %v5018 = vpow.pop %v5017
          %v5019 = vmul.f32 %v4931, 1.442695
          %v5020 = vpow.pop %v5019
          %v5021 = vmul.f32 %v4932, 1.442695
          %v5022 = vpow.pop %v5021
          %v5023 = vmul.f32 %v4933, 1.442695
          %v5024 = vpow.pop %v5023
          %v5025 = vmul.f32 %v4934, 1.442695
          %v5026 = vpow.pop %v5025
          %v5027 = vmul.f32 %v4935, 1.442695
          %v5028 = vpow.pop %v5027
          %v5029 = vmul.f32 %v4936, 1.442695
          %v5030 = vpow.pop %v5029
          %v5031 = vmul.f32 %v4937, 1.442695
          %v5032 = vpow.pop %v5031
          %v5033 = vmul.f32 %v4938, 1.442695
          %v5034 = vpow.pop %v5033
          %v5035 = vmul.f32 %v4939, 1.442695
          %v5036 = vpow.pop %v5035
          %v5037 = vmul.f32 %v4940, 1.442695
          %v5038 = vpow.pop %v5037
          %v5039 = vmul.f32 %v4941, 1.442695
          %v5040 = vpow.pop %v5039
          %v5041 = vmul.f32 %v4942, 1.442695
          %v5042 = vpow.pop %v5041
          %v5043 = vmul.f32 %v4943, 1.442695
          %v5044 = vpow.pop %v5043
          %v5045 = vmul.f32 %v4944, 1.442695
          %v5046 = vpow.pop %v5045
          %v5047 = vmul.f32 %v4945, 1.442695
          %v5048 = vpow.pop %v5047
          %v5049 = vmul.f32 %v4946, 1.442695
          %v5050 = vpow.pop %v5049
          %v5051 = vmul.f32 %v4947, 1.442695
          %v5052 = vpow.pop %v5051
          %v5053 = vmul.f32 %v4948, 1.442695
          %v5054 = vpow.pop %v5053
          %v5055 = vmul.f32 %v4949, 1.442695
          %v5056 = vpow.pop %v5055
          %v5057 = vmul.f32 %v4950, 1.442695
          %v5058 = vpow.pop %v5057
          %v5059 = vmul.f32 %v4951, 1.442695
          %v5060 = vpow.pop %v5059
          %v5061 = vmul.f32 %v4952, 1.442695
          %v5062 = vpow.pop %v5061
          %v5063 = vmul.f32 %v4953, 1.442695
          %v5064 = vpow.pop %v5063
          %v5065 = vmul.f32 %v4954, 1.442695
          %v5066 = vpow.pop %v5065
          %v5067 = vmul.f32 %v4955, 1.442695
          %v5068 = vpow.pop %v5067
          %v5069 = vmul.f32 %v4956, 1.442695
          %v5070 = vpow.pop %v5069
          %v5071 = vmul.f32 %v4957, 1.442695
          %v5072 = vpow.pop %v5071
          %v5073 = vmul.f32 %v4958, 1.442695
          %v5074 = vpow.pop %v5073
          %v5075 = vmul.f32 %v4959, 1.442695
          %v5076 = vpow.pop %v5075
          %v5077 = vmul.f32 %v4960, 1.442695
          %v5078 = vpow.pop %v5077
          %v5079 = vmul.f32 %v4961, 1.442695
          %v5080 = vpow.pop %v5079
          %v5081 = vmul.f32 %v4962, 1.442695
          %v5082 = vpow.pop %v5081
          %v5083 = vmul.f32 %v4963, 1.442695
          %v5084 = vpow.pop %v5083
          %v5085 = vmul.f32 %v4964, 1.442695
          %v5086 = vpow.pop %v5085
          %v5087 = vmul.f32 %v4965, 1.442695
          %v5088 = vpow.pop %v5087
          %v5089 = vmul.f32 %v4966, 1.442695
          %v5090 = vpow.pop %v5089
          %v5091 = vmul.f32 %v4967, 1.442695
          %v5092 = vpow.pop %v5091
          %v5093 = vmul.f32 %v4968, 1.442695
          %v5094 = vpow.pop %v5093
          %v5095 = vmul.f32 %v4969, 1.442695
          %v5096 = vpow.pop %v5095
          %v5097 = vmul.f32 %v4970, 1.442695
          %v5098 = vpow.pop %v5097
          %5100 = vset.pattern.permute.xlu0 0
          %5101 = vperm.xlu0 %5100, %v4843
          %v5102 = vpop.permute.xlu0 %5101
          %5105 = vset.pattern.permute.xlu0 0
          %5106 = vperm.xlu0 %5105, %v4844
          %v5107 = vpop.permute.xlu0 %5106
          %5110 = vset.pattern.permute.xlu0 0
          %5111 = vperm.xlu0 %5110, %v4845
          %v5112 = vpop.permute.xlu0 %5111
          %5115 = vset.pattern.permute.xlu0 0
          %5116 = vperm.xlu0 %5115, %v4846
          %v5117 = vpop.permute.xlu0 %5116
          %5120 = vset.pattern.permute.xlu0 0
          %5121 = vperm.xlu0 %5120, %v4847
          %v5122 = vpop.permute.xlu0 %5121
          %5125 = vset.pattern.permute.xlu0 0
          %5126 = vperm.xlu0 %5125, %v4848
          %v5127 = vpop.permute.xlu0 %5126
          %5130 = vset.pattern.permute.xlu0 0
          %5131 = vperm.xlu0 %5130, %v4849
          %v5132 = vpop.permute.xlu0 %5131
          %5135 = vset.pattern.permute.xlu0 0
          %5136 = vperm.xlu0 %5135, %v4850
          %v5137 = vpop.permute.xlu0 %5136
          %5140 = vset.pattern.permute.xlu0 0
          %5141 = vperm.xlu0 %5140, %v4851
          %v5142 = vpop.permute.xlu0 %5141
          %5145 = vset.pattern.permute.xlu0 0
          %5146 = vperm.xlu0 %5145, %v4852
          %v5147 = vpop.permute.xlu0 %5146
          %5150 = vset.pattern.permute.xlu0 0
          %5151 = vperm.xlu0 %5150, %v4853
          %v5152 = vpop.permute.xlu0 %5151
          %5155 = vset.pattern.permute.xlu0 0
          %5156 = vperm.xlu0 %5155, %v4854
          %v5157 = vpop.permute.xlu0 %5156
          %5160 = vset.pattern.permute.xlu0 0
          %5161 = vperm.xlu0 %5160, %v4855
          %v5162 = vpop.permute.xlu0 %5161
          %5165 = vset.pattern.permute.xlu0 0
          %5166 = vperm.xlu0 %5165, %v4856
          %v5167 = vpop.permute.xlu0 %5166
          %5170 = vset.pattern.permute.xlu0 0
          %5171 = vperm.xlu0 %5170, %v4857
          %v5172 = vpop.permute.xlu0 %5171
          %5175 = vset.pattern.permute.xlu0 0
          %5176 = vperm.xlu0 %5175, %v4858
          %v5177 = vpop.permute.xlu0 %5176
          %5180 = vset.pattern.permute.xlu0 0
          %5181 = vperm.xlu0 %5180, %v4859
          %v5182 = vpop.permute.xlu0 %5181
          %5185 = vset.pattern.permute.xlu0 0
          %5186 = vperm.xlu0 %5185, %v4860
          %v5187 = vpop.permute.xlu0 %5186
          %5190 = vset.pattern.permute.xlu0 0
          %5191 = vperm.xlu0 %5190, %v4861
          %v5192 = vpop.permute.xlu0 %5191
          %5195 = vset.pattern.permute.xlu0 0
          %5196 = vperm.xlu0 %5195, %v4862
          %v5197 = vpop.permute.xlu0 %5196
          %5200 = vset.pattern.permute.xlu0 0
          %5201 = vperm.xlu0 %5200, %v4863
          %v5202 = vpop.permute.xlu0 %5201
          %5205 = vset.pattern.permute.xlu0 0
          %5206 = vperm.xlu0 %5205, %v4864
          %v5207 = vpop.permute.xlu0 %5206
          %5210 = vset.pattern.permute.xlu0 0
          %5211 = vperm.xlu0 %5210, %v4865
          %v5212 = vpop.permute.xlu0 %5211
          %5215 = vset.pattern.permute.xlu0 0
          %5216 = vperm.xlu0 %5215, %v4866
          %v5217 = vpop.permute.xlu0 %5216
          %5220 = vset.pattern.permute.xlu0 0
          %5221 = vperm.xlu0 %5220, %v4867
          %v5222 = vpop.permute.xlu0 %5221
          %5225 = vset.pattern.permute.xlu0 0
          %5226 = vperm.xlu0 %5225, %v4868
          %v5227 = vpop.permute.xlu0 %5226
          %5230 = vset.pattern.permute.xlu0 0
          %5231 = vperm.xlu0 %5230, %v4869
          %v5232 = vpop.permute.xlu0 %5231
          %5235 = vset.pattern.permute.xlu0 0
          %5236 = vperm.xlu0 %5235, %v4870
          %v5237 = vpop.permute.xlu0 %5236
          %5240 = vset.pattern.permute.xlu0 0
          %5241 = vperm.xlu0 %5240, %v4871
          %v5242 = vpop.permute.xlu0 %5241
          %5245 = vset.pattern.permute.xlu0 0
          %5246 = vperm.xlu0 %5245, %v4872
          %v5247 = vpop.permute.xlu0 %5246
          %5250 = vset.pattern.permute.xlu0 0
          %5251 = vperm.xlu0 %5250, %v4873
          %v5252 = vpop.permute.xlu0 %5251
          %5255 = vset.pattern.permute.xlu0 0
          %5256 = vperm.xlu0 %5255, %v4874
          %v5257 = vpop.permute.xlu0 %5256
          %5260 = vset.pattern.permute.xlu0 0
          %5261 = vperm.xlu0 %5260, %v4875
          %v5262 = vpop.permute.xlu0 %5261
          %5265 = vset.pattern.permute.xlu0 0
          %5266 = vperm.xlu0 %5265, %v4876
          %v5267 = vpop.permute.xlu0 %5266
          %5270 = vset.pattern.permute.xlu0 0
          %5271 = vperm.xlu0 %5270, %v4877
          %v5272 = vpop.permute.xlu0 %5271
          %5275 = vset.pattern.permute.xlu0 0
          %5276 = vperm.xlu0 %5275, %v4878
          %v5277 = vpop.permute.xlu0 %5276
          %5280 = vset.pattern.permute.xlu0 0
          %5281 = vperm.xlu0 %5280, %v4879
          %v5282 = vpop.permute.xlu0 %5281
          %5285 = vset.pattern.permute.xlu0 0
          %5286 = vperm.xlu0 %5285, %v4880
          %v5287 = vpop.permute.xlu0 %5286
          %5290 = vset.pattern.permute.xlu0 0
          %5291 = vperm.xlu0 %5290, %v4881
          %v5292 = vpop.permute.xlu0 %5291
          %5295 = vset.pattern.permute.xlu0 0
          %5296 = vperm.xlu0 %5295, %v4882
          %v5297 = vpop.permute.xlu0 %5296
          %5300 = vset.pattern.permute.xlu0 0
          %5301 = vperm.xlu0 %5300, %v4883
          %v5302 = vpop.permute.xlu0 %5301
          %5305 = vset.pattern.permute.xlu0 0
          %5306 = vperm.xlu0 %5305, %v4884
          %v5307 = vpop.permute.xlu0 %5306
          %5310 = vset.pattern.permute.xlu0 0
          %5311 = vperm.xlu0 %5310, %v4885
          %v5312 = vpop.permute.xlu0 %5311
          %5315 = vset.pattern.permute.xlu0 0
          %5316 = vperm.xlu0 %5315, %v4886
          %v5317 = vpop.permute.xlu0 %5316
          %5320 = vset.pattern.permute.xlu0 0
          %5321 = vperm.xlu0 %5320, %v4887
          %v5322 = vpop.permute.xlu0 %5321
          %5325 = vset.pattern.permute.xlu0 0
          %5326 = vperm.xlu0 %5325, %v4888
          %v5327 = vpop.permute.xlu0 %5326
          %5330 = vset.pattern.permute.xlu0 0
          %5331 = vperm.xlu0 %5330, %v4889
          %v5332 = vpop.permute.xlu0 %5331
          %5335 = vset.pattern.permute.xlu0 0
          %5336 = vperm.xlu0 %5335, %v4890
          %v5337 = vpop.permute.xlu0 %5336
          %5340 = vset.pattern.permute.xlu0 0
          %5341 = vperm.xlu0 %5340, %v4891
          %v5342 = vpop.permute.xlu0 %5341
          %5345 = vset.pattern.permute.xlu0 0
          %5346 = vperm.xlu0 %5345, %v4892
          %v5347 = vpop.permute.xlu0 %5346
          %5350 = vset.pattern.permute.xlu0 0
          %5351 = vperm.xlu0 %5350, %v4893
          %v5352 = vpop.permute.xlu0 %5351
          %5355 = vset.pattern.permute.xlu0 0
          %5356 = vperm.xlu0 %5355, %v4894
          %v5357 = vpop.permute.xlu0 %5356
          %5360 = vset.pattern.permute.xlu0 0
          %5361 = vperm.xlu0 %5360, %v4895
          %v5362 = vpop.permute.xlu0 %5361
          %5365 = vset.pattern.permute.xlu0 0
          %5366 = vperm.xlu0 %5365, %v4896
          %v5367 = vpop.permute.xlu0 %5366
          %5370 = vset.pattern.permute.xlu0 0
          %5371 = vperm.xlu0 %5370, %v4897
          %v5372 = vpop.permute.xlu0 %5371
          %5375 = vset.pattern.permute.xlu0 0
          %5376 = vperm.xlu0 %5375, %v4898
          %v5377 = vpop.permute.xlu0 %5376
          %5380 = vset.pattern.permute.xlu0 0
          %5381 = vperm.xlu0 %5380, %v4899
          %v5382 = vpop.permute.xlu0 %5381
          %5385 = vset.pattern.permute.xlu0 0
          %5386 = vperm.xlu0 %5385, %v4900
          %v5387 = vpop.permute.xlu0 %5386
          %5390 = vset.pattern.permute.xlu0 0
          %5391 = vperm.xlu0 %5390, %v4901
          %v5392 = vpop.permute.xlu0 %5391
          %5395 = vset.pattern.permute.xlu0 0
          %5396 = vperm.xlu0 %5395, %v4902
          %v5397 = vpop.permute.xlu0 %5396
          %5400 = vset.pattern.permute.xlu0 0
          %5401 = vperm.xlu0 %5400, %v4903
          %v5402 = vpop.permute.xlu0 %5401
          %5405 = vset.pattern.permute.xlu0 0
          %5406 = vperm.xlu0 %5405, %v4904
          %v5407 = vpop.permute.xlu0 %5406
          %5410 = vset.pattern.permute.xlu0 0
          %5411 = vperm.xlu0 %5410, %v4905
          %v5412 = vpop.permute.xlu0 %5411
          %5415 = vset.pattern.permute.xlu0 0
          %5416 = vperm.xlu0 %5415, %v4906
          %v5417 = vpop.permute.xlu0 %5416
          %v5419 = vsub.f32 %v4587, %v5102
          %v5420 = vsub.f32 %v4588, %v5107
          %v5421 = vsub.f32 %v4589, %v5112
          %v5422 = vsub.f32 %v4590, %v5117
          %v5423 = vsub.f32 %v4591, %v5122
          %v5424 = vsub.f32 %v4592, %v5127
          %v5425 = vsub.f32 %v4593, %v5132
          %v5426 = vsub.f32 %v4594, %v5137
          %v5427 = vsub.f32 %v4595, %v5142
          %v5428 = vsub.f32 %v4596, %v5147
          %v5429 = vsub.f32 %v4597, %v5152
          %v5430 = vsub.f32 %v4598, %v5157
          %v5431 = vsub.f32 %v4599, %v5162
          %v5432 = vsub.f32 %v4600, %v5167
          %v5433 = vsub.f32 %v4601, %v5172
          %v5434 = vsub.f32 %v4602, %v5177
          %v5435 = vsub.f32 %v4603, %v5182
          %v5436 = vsub.f32 %v4604, %v5187
          %v5437 = vsub.f32 %v4605, %v5192
          %v5438 = vsub.f32 %v4606, %v5197
          %v5439 = vsub.f32 %v4607, %v5202
          %v5440 = vsub.f32 %v4608, %v5207
          %v5441 = vsub.f32 %v4609, %v5212
          %v5442 = vsub.f32 %v4610, %v5217
          %v5443 = vsub.f32 %v4611, %v5222
          %v5444 = vsub.f32 %v4612, %v5227
          %v5445 = vsub.f32 %v4613, %v5232
          %v5446 = vsub.f32 %v4614, %v5237
          %v5447 = vsub.f32 %v4615, %v5242
          %v5448 = vsub.f32 %v4616, %v5247
          %v5449 = vsub.f32 %v4617, %v5252
          %v5450 = vsub.f32 %v4618, %v5257
          %v5451 = vsub.f32 %v4619, %v5262
          %v5452 = vsub.f32 %v4620, %v5267
          %v5453 = vsub.f32 %v4621, %v5272
          %v5454 = vsub.f32 %v4622, %v5277
          %v5455 = vsub.f32 %v4623, %v5282
          %v5456 = vsub.f32 %v4624, %v5287
          %v5457 = vsub.f32 %v4625, %v5292
          %v5458 = vsub.f32 %v4626, %v5297
          %v5459 = vsub.f32 %v4627, %v5302
          %v5460 = vsub.f32 %v4628, %v5307
          %v5461 = vsub.f32 %v4629, %v5312
          %v5462 = vsub.f32 %v4630, %v5317
          %v5463 = vsub.f32 %v4631, %v5322
          %v5464 = vsub.f32 %v4632, %v5327
          %v5465 = vsub.f32 %v4633, %v5332
          %v5466 = vsub.f32 %v4634, %v5337
          %v5467 = vsub.f32 %v4635, %v5342
          %v5468 = vsub.f32 %v4636, %v5347
          %v5469 = vsub.f32 %v4637, %v5352
          %v5470 = vsub.f32 %v4638, %v5357
          %v5471 = vsub.f32 %v4639, %v5362
          %v5472 = vsub.f32 %v4640, %v5367
          %v5473 = vsub.f32 %v4641, %v5372
          %v5474 = vsub.f32 %v4642, %v5377
          %v5475 = vsub.f32 %v4643, %v5382
          %v5476 = vsub.f32 %v4644, %v5387
          %v5477 = vsub.f32 %v4645, %v5392
          %v5478 = vsub.f32 %v4646, %v5397
          %v5479 = vsub.f32 %v4647, %v5402
          %v5480 = vsub.f32 %v4648, %v5407
          %v5481 = vsub.f32 %v4649, %v5412
          %v5482 = vsub.f32 %v4650, %v5417
          %v5483 = vmul.f32 %v5419, 1.442695
          %v5484 = vpow.pop %v5483
          %v5485 = vmul.f32 %v5420, 1.442695
          %v5486 = vpow.pop %v5485
          %v5487 = vmul.f32 %v5421, 1.442695
          %v5488 = vpow.pop %v5487
          %v5489 = vmul.f32 %v5422, 1.442695
          %v5490 = vpow.pop %v5489
          %v5491 = vmul.f32 %v5423, 1.442695
          %v5492 = vpow.pop %v5491
          %v5493 = vmul.f32 %v5424, 1.442695
          %v5494 = vpow.pop %v5493
          %v5495 = vmul.f32 %v5425, 1.442695
          %v5496 = vpow.pop %v5495
          %v5497 = vmul.f32 %v5426, 1.442695
          %v5498 = vpow.pop %v5497
          %v5499 = vmul.f32 %v5427, 1.442695
          %v5500 = vpow.pop %v5499
          %v5501 = vmul.f32 %v5428, 1.442695
          %v5502 = vpow.pop %v5501
          %v5503 = vmul.f32 %v5429, 1.442695
          %v5504 = vpow.pop %v5503
          %v5505 = vmul.f32 %v5430, 1.442695
          %v5506 = vpow.pop %v5505
          %v5507 = vmul.f32 %v5431, 1.442695
          %v5508 = vpow.pop %v5507
          %v5509 = vmul.f32 %v5432, 1.442695
          %v5510 = vpow.pop %v5509
          %v5511 = vmul.f32 %v5433, 1.442695
          %v5512 = vpow.pop %v5511
          %v5513 = vmul.f32 %v5434, 1.442695
          %v5514 = vpow.pop %v5513
          %v5515 = vmul.f32 %v5435, 1.442695
          %v5516 = vpow.pop %v5515
          %v5517 = vmul.f32 %v5436, 1.442695
          %v5518 = vpow.pop %v5517
          %v5519 = vmul.f32 %v5437, 1.442695
          %v5520 = vpow.pop %v5519
          %v5521 = vmul.f32 %v5438, 1.442695
          %v5522 = vpow.pop %v5521
          %v5523 = vmul.f32 %v5439, 1.442695
          %v5524 = vpow.pop %v5523
          %v5525 = vmul.f32 %v5440, 1.442695
          %v5526 = vpow.pop %v5525
          %v5527 = vmul.f32 %v5441, 1.442695
          %v5528 = vpow.pop %v5527
          %v5529 = vmul.f32 %v5442, 1.442695
          %v5530 = vpow.pop %v5529
          %v5531 = vmul.f32 %v5443, 1.442695
          %v5532 = vpow.pop %v5531
          %v5533 = vmul.f32 %v5444, 1.442695
          %v5534 = vpow.pop %v5533
          %v5535 = vmul.f32 %v5445, 1.442695
          %v5536 = vpow.pop %v5535
          %v5537 = vmul.f32 %v5446, 1.442695
          %v5538 = vpow.pop %v5537
          %v5539 = vmul.f32 %v5447, 1.442695
          %v5540 = vpow.pop %v5539
          %v5541 = vmul.f32 %v5448, 1.442695
          %v5542 = vpow.pop %v5541
          %v5543 = vmul.f32 %v5449, 1.442695
          %v5544 = vpow.pop %v5543
          %v5545 = vmul.f32 %v5450, 1.442695
          %v5546 = vpow.pop %v5545
          %v5547 = vmul.f32 %v5451, 1.442695
          %v5548 = vpow.pop %v5547
          %v5549 = vmul.f32 %v5452, 1.442695
          %v5550 = vpow.pop %v5549
          %v5551 = vmul.f32 %v5453, 1.442695
          %v5552 = vpow.pop %v5551
          %v5553 = vmul.f32 %v5454, 1.442695
          %v5554 = vpow.pop %v5553
          %v5555 = vmul.f32 %v5455, 1.442695
          %v5556 = vpow.pop %v5555
          %v5557 = vmul.f32 %v5456, 1.442695
          %v5558 = vpow.pop %v5557
          %v5559 = vmul.f32 %v5457, 1.442695
          %v5560 = vpow.pop %v5559
          %v5561 = vmul.f32 %v5458, 1.442695
          %v5562 = vpow.pop %v5561
          %v5563 = vmul.f32 %v5459, 1.442695
          %v5564 = vpow.pop %v5563
          %v5565 = vmul.f32 %v5460, 1.442695
          %v5566 = vpow.pop %v5565
          %v5567 = vmul.f32 %v5461, 1.442695
          %v5568 = vpow.pop %v5567
          %v5569 = vmul.f32 %v5462, 1.442695
          %v5570 = vpow.pop %v5569
          %v5571 = vmul.f32 %v5463, 1.442695
          %v5572 = vpow.pop %v5571
          %v5573 = vmul.f32 %v5464, 1.442695
          %v5574 = vpow.pop %v5573
          %v5575 = vmul.f32 %v5465, 1.442695
          %v5576 = vpow.pop %v5575
          %v5577 = vmul.f32 %v5466, 1.442695
          %v5578 = vpow.pop %v5577
          %v5579 = vmul.f32 %v5467, 1.442695
          %v5580 = vpow.pop %v5579
          %v5581 = vmul.f32 %v5468, 1.442695
          %v5582 = vpow.pop %v5581
          %v5583 = vmul.f32 %v5469, 1.442695
          %v5584 = vpow.pop %v5583
          %v5585 = vmul.f32 %v5470, 1.442695
          %v5586 = vpow.pop %v5585
          %v5587 = vmul.f32 %v5471, 1.442695
          %v5588 = vpow.pop %v5587
          %v5589 = vmul.f32 %v5472, 1.442695
          %v5590 = vpow.pop %v5589
          %v5591 = vmul.f32 %v5473, 1.442695
          %v5592 = vpow.pop %v5591
          %v5593 = vmul.f32 %v5474, 1.442695
          %v5594 = vpow.pop %v5593
          %v5595 = vmul.f32 %v5475, 1.442695
          %v5596 = vpow.pop %v5595
          %v5597 = vmul.f32 %v5476, 1.442695
          %v5598 = vpow.pop %v5597
          %v5599 = vmul.f32 %v5477, 1.442695
          %v5600 = vpow.pop %v5599
          %v5601 = vmul.f32 %v5478, 1.442695
          %v5602 = vpow.pop %v5601
          %v5603 = vmul.f32 %v5479, 1.442695
          %v5604 = vpow.pop %v5603
          %v5605 = vmul.f32 %v5480, 1.442695
          %v5606 = vpow.pop %v5605
          %v5607 = vmul.f32 %v5481, 1.442695
          %v5608 = vpow.pop %v5607
          %v5609 = vmul.f32 %v5482, 1.442695
          %v5610 = vpow.pop %v5609
          %v5611 = vld [vmem:[#allocation4] sm:$0xff]
          %v5612 = vld [vmem:[#allocation4 + $0x8] sm:$0xff]
          %v5613 = vld [vmem:[#allocation4 + $0x10] sm:$0xff]
          %v5614 = vld [vmem:[#allocation4 + $0x18] sm:$0xff]
          %v5615 = vld [vmem:[#allocation4 + $0x20] sm:$0xff]
          %v5616 = vld [vmem:[#allocation4 + $0x28] sm:$0xff]
          %v5617 = vld [vmem:[#allocation4 + $0x30] sm:$0xff]
          %v5618 = vld [vmem:[#allocation4 + $0x38] sm:$0xff]
          %v5619 = vld [vmem:[#allocation4 + $0x40] sm:$0xff]
          %v5620 = vld [vmem:[#allocation4 + $0x48] sm:$0xff]
          %v5621 = vld [vmem:[#allocation4 + $0x50] sm:$0xff]
          %v5622 = vld [vmem:[#allocation4 + $0x58] sm:$0xff]
          %v5623 = vld [vmem:[#allocation4 + $0x60] sm:$0xff]
          %v5624 = vld [vmem:[#allocation4 + $0x68] sm:$0xff]
          %v5625 = vld [vmem:[#allocation4 + $0x70] sm:$0xff]
          %v5626 = vld [vmem:[#allocation4 + $0x78] sm:$0xff]
          %v5627 = vld [vmem:[#allocation4 + $0x80] sm:$0xff]
          %v5628 = vld [vmem:[#allocation4 + $0x88] sm:$0xff]
          %v5629 = vld [vmem:[#allocation4 + $0x90] sm:$0xff]
          %v5630 = vld [vmem:[#allocation4 + $0x98] sm:$0xff]
          %v5631 = vld [vmem:[#allocation4 + $0xa0] sm:$0xff]
          %v5632 = vld [vmem:[#allocation4 + $0xa8] sm:$0xff]
          %v5633 = vld [vmem:[#allocation4 + $0xb0] sm:$0xff]
          %v5634 = vld [vmem:[#allocation4 + $0xb8] sm:$0xff]
          %v5635 = vld [vmem:[#allocation4 + $0xc0] sm:$0xff]
          %v5636 = vld [vmem:[#allocation4 + $0xc8] sm:$0xff]
          %v5637 = vld [vmem:[#allocation4 + $0xd0] sm:$0xff]
          %v5638 = vld [vmem:[#allocation4 + $0xd8] sm:$0xff]
          %v5639 = vld [vmem:[#allocation4 + $0xe0] sm:$0xff]
          %v5640 = vld [vmem:[#allocation4 + $0xe8] sm:$0xff]
          %v5641 = vld [vmem:[#allocation4 + $0xf0] sm:$0xff]
          %v5642 = vld [vmem:[#allocation4 + $0xf8] sm:$0xff]
          %v5643 = vld [vmem:[#allocation4 + $0x100] sm:$0xff]
          %v5644 = vld [vmem:[#allocation4 + $0x108] sm:$0xff]
          %v5645 = vld [vmem:[#allocation4 + $0x110] sm:$0xff]
          %v5646 = vld [vmem:[#allocation4 + $0x118] sm:$0xff]
          %v5647 = vld [vmem:[#allocation4 + $0x120] sm:$0xff]
          %v5648 = vld [vmem:[#allocation4 + $0x128] sm:$0xff]
          %v5649 = vld [vmem:[#allocation4 + $0x130] sm:$0xff]
          %v5650 = vld [vmem:[#allocation4 + $0x138] sm:$0xff]
          %v5651 = vld [vmem:[#allocation4 + $0x140] sm:$0xff]
          %v5652 = vld [vmem:[#allocation4 + $0x148] sm:$0xff]
          %v5653 = vld [vmem:[#allocation4 + $0x150] sm:$0xff]
          %v5654 = vld [vmem:[#allocation4 + $0x158] sm:$0xff]
          %v5655 = vld [vmem:[#allocation4 + $0x160] sm:$0xff]
          %v5656 = vld [vmem:[#allocation4 + $0x168] sm:$0xff]
          %v5657 = vld [vmem:[#allocation4 + $0x170] sm:$0xff]
          %v5658 = vld [vmem:[#allocation4 + $0x178] sm:$0xff]
          %v5659 = vld [vmem:[#allocation4 + $0x180] sm:$0xff]
          %v5660 = vld [vmem:[#allocation4 + $0x188] sm:$0xff]
          %v5661 = vld [vmem:[#allocation4 + $0x190] sm:$0xff]
          %v5662 = vld [vmem:[#allocation4 + $0x198] sm:$0xff]
          %v5663 = vld [vmem:[#allocation4 + $0x1a0] sm:$0xff]
          %v5664 = vld [vmem:[#allocation4 + $0x1a8] sm:$0xff]
          %v5665 = vld [vmem:[#allocation4 + $0x1b0] sm:$0xff]
          %v5666 = vld [vmem:[#allocation4 + $0x1b8] sm:$0xff]
          %v5667 = vld [vmem:[#allocation4 + $0x1c0] sm:$0xff]
          %v5668 = vld [vmem:[#allocation4 + $0x1c8] sm:$0xff]
          %v5669 = vld [vmem:[#allocation4 + $0x1d0] sm:$0xff]
          %v5670 = vld [vmem:[#allocation4 + $0x1d8] sm:$0xff]
          %v5671 = vld [vmem:[#allocation4 + $0x1e0] sm:$0xff]
          %v5672 = vld [vmem:[#allocation4 + $0x1e8] sm:$0xff]
          %v5673 = vld [vmem:[#allocation4 + $0x1f0] sm:$0xff]
          %v5674 = vld [vmem:[#allocation4 + $0x1f8] sm:$0xff]
          %v5675 = vmul.f32 %v4972, %v5611
          %v5676 = vmul.f32 %v4974, %v5612
          %v5677 = vmul.f32 %v4976, %v5613
          %v5678 = vmul.f32 %v4978, %v5614
          %v5679 = vmul.f32 %v4980, %v5615
          %v5680 = vmul.f32 %v4982, %v5616
          %v5681 = vmul.f32 %v4984, %v5617
          %v5682 = vmul.f32 %v4986, %v5618
          %v5683 = vmul.f32 %v4988, %v5619
          %v5684 = vmul.f32 %v4990, %v5620
          %v5685 = vmul.f32 %v4992, %v5621
          %v5686 = vmul.f32 %v4994, %v5622
          %v5687 = vmul.f32 %v4996, %v5623
          %v5688 = vmul.f32 %v4998, %v5624
          %v5689 = vmul.f32 %v5000, %v5625
          %v5690 = vmul.f32 %v5002, %v5626
          %v5691 = vmul.f32 %v5004, %v5627
          %v5692 = vmul.f32 %v5006, %v5628
          %v5693 = vmul.f32 %v5008, %v5629
          %v5694 = vmul.f32 %v5010, %v5630
          %v5695 = vmul.f32 %v5012, %v5631
          %v5696 = vmul.f32 %v5014, %v5632
          %v5697 = vmul.f32 %v5016, %v5633
          %v5698 = vmul.f32 %v5018, %v5634
          %v5699 = vmul.f32 %v5020, %v5635
          %v5700 = vmul.f32 %v5022, %v5636
          %v5701 = vmul.f32 %v5024, %v5637
          %v5702 = vmul.f32 %v5026, %v5638
          %v5703 = vmul.f32 %v5028, %v5639
          %v5704 = vmul.f32 %v5030, %v5640
          %v5705 = vmul.f32 %v5032, %v5641
          %v5706 = vmul.f32 %v5034, %v5642
          %v5707 = vmul.f32 %v5036, %v5643
          %v5708 = vmul.f32 %v5038, %v5644
          %v5709 = vmul.f32 %v5040, %v5645
          %v5710 = vmul.f32 %v5042, %v5646
          %v5711 = vmul.f32 %v5044, %v5647
          %v5712 = vmul.f32 %v5046, %v5648
          %v5713 = vmul.f32 %v5048, %v5649
          %v5714 = vmul.f32 %v5050, %v5650
          %v5715 = vmul.f32 %v5052, %v5651
          %v5716 = vmul.f32 %v5054, %v5652
          %v5717 = vmul.f32 %v5056, %v5653
          %v5718 = vmul.f32 %v5058, %v5654
          %v5719 = vmul.f32 %v5060, %v5655
          %v5720 = vmul.f32 %v5062, %v5656
          %v5721 = vmul.f32 %v5064, %v5657
          %v5722 = vmul.f32 %v5066, %v5658
          %v5723 = vmul.f32 %v5068, %v5659
          %v5724 = vmul.f32 %v5070, %v5660
          %v5725 = vmul.f32 %v5072, %v5661
          %v5726 = vmul.f32 %v5074, %v5662
          %v5727 = vmul.f32 %v5076, %v5663
          %v5728 = vmul.f32 %v5078, %v5664
          %v5729 = vmul.f32 %v5080, %v5665
          %v5730 = vmul.f32 %v5082, %v5666
          %v5731 = vmul.f32 %v5084, %v5667
          %v5732 = vmul.f32 %v5086, %v5668
          %v5733 = vmul.f32 %v5088, %v5669
          %v5734 = vmul.f32 %v5090, %v5670
          %v5735 = vmul.f32 %v5092, %v5671
          %v5736 = vmul.f32 %v5094, %v5672
          %v5737 = vmul.f32 %v5096, %v5673
          %v5738 = vmul.f32 %v5098, %v5674
          %5739 = vadd.xlane.f32.xlu0 %v5484
          %v5740 = vpop.xlane.xlu0 %5739
          %5741 = vadd.xlane.f32.xlu0 %v5486
          %v5742 = vpop.xlane.xlu0 %5741
          %5743 = vadd.xlane.f32.xlu0 %v5488
          %v5744 = vpop.xlane.xlu0 %5743
          %5745 = vadd.xlane.f32.xlu0 %v5490
          %v5746 = vpop.xlane.xlu0 %5745
          %5747 = vadd.xlane.f32.xlu0 %v5492
          %v5748 = vpop.xlane.xlu0 %5747
          %5749 = vadd.xlane.f32.xlu0 %v5494
          %v5750 = vpop.xlane.xlu0 %5749
          %5751 = vadd.xlane.f32.xlu0 %v5496
          %v5752 = vpop.xlane.xlu0 %5751
          %5753 = vadd.xlane.f32.xlu0 %v5498
          %v5754 = vpop.xlane.xlu0 %5753
          %5755 = vadd.xlane.f32.xlu0 %v5500
          %v5756 = vpop.xlane.xlu0 %5755
          %5757 = vadd.xlane.f32.xlu0 %v5502
          %v5758 = vpop.xlane.xlu0 %5757
          %5759 = vadd.xlane.f32.xlu0 %v5504
          %v5760 = vpop.xlane.xlu0 %5759
          %5761 = vadd.xlane.f32.xlu0 %v5506
          %v5762 = vpop.xlane.xlu0 %5761
          %5763 = vadd.xlane.f32.xlu0 %v5508
          %v5764 = vpop.xlane.xlu0 %5763
          %5765 = vadd.xlane.f32.xlu0 %v5510
          %v5766 = vpop.xlane.xlu0 %5765
          %5767 = vadd.xlane.f32.xlu0 %v5512
          %v5768 = vpop.xlane.xlu0 %5767
          %5769 = vadd.xlane.f32.xlu0 %v5514
          %v5770 = vpop.xlane.xlu0 %5769
          %5771 = vadd.xlane.f32.xlu0 %v5516
          %v5772 = vpop.xlane.xlu0 %5771
          %5773 = vadd.xlane.f32.xlu0 %v5518
          %v5774 = vpop.xlane.xlu0 %5773
          %5775 = vadd.xlane.f32.xlu0 %v5520
          %v5776 = vpop.xlane.xlu0 %5775
          %5777 = vadd.xlane.f32.xlu0 %v5522
          %v5778 = vpop.xlane.xlu0 %5777
          %5779 = vadd.xlane.f32.xlu0 %v5524
          %v5780 = vpop.xlane.xlu0 %5779
          %5781 = vadd.xlane.f32.xlu0 %v5526
          %v5782 = vpop.xlane.xlu0 %5781
          %5783 = vadd.xlane.f32.xlu0 %v5528
          %v5784 = vpop.xlane.xlu0 %5783
          %5785 = vadd.xlane.f32.xlu0 %v5530
          %v5786 = vpop.xlane.xlu0 %5785
          %5787 = vadd.xlane.f32.xlu0 %v5532
          %v5788 = vpop.xlane.xlu0 %5787
          %5789 = vadd.xlane.f32.xlu0 %v5534
          %v5790 = vpop.xlane.xlu0 %5789
          %5791 = vadd.xlane.f32.xlu0 %v5536
          %v5792 = vpop.xlane.xlu0 %5791
          %5793 = vadd.xlane.f32.xlu0 %v5538
          %v5794 = vpop.xlane.xlu0 %5793
          %5795 = vadd.xlane.f32.xlu0 %v5540
          %v5796 = vpop.xlane.xlu0 %5795
          %5797 = vadd.xlane.f32.xlu0 %v5542
          %v5798 = vpop.xlane.xlu0 %5797
          %5799 = vadd.xlane.f32.xlu0 %v5544
          %v5800 = vpop.xlane.xlu0 %5799
          %5801 = vadd.xlane.f32.xlu0 %v5546
          %v5802 = vpop.xlane.xlu0 %5801
          %5803 = vadd.xlane.f32.xlu0 %v5548
          %v5804 = vpop.xlane.xlu0 %5803
          %5805 = vadd.xlane.f32.xlu0 %v5550
          %v5806 = vpop.xlane.xlu0 %5805
          %5807 = vadd.xlane.f32.xlu0 %v5552
          %v5808 = vpop.xlane.xlu0 %5807
          %5809 = vadd.xlane.f32.xlu0 %v5554
          %v5810 = vpop.xlane.xlu0 %5809
          %5811 = vadd.xlane.f32.xlu0 %v5556
          %v5812 = vpop.xlane.xlu0 %5811
          %5813 = vadd.xlane.f32.xlu0 %v5558
          %v5814 = vpop.xlane.xlu0 %5813
          %5815 = vadd.xlane.f32.xlu0 %v5560
          %v5816 = vpop.xlane.xlu0 %5815
          %5817 = vadd.xlane.f32.xlu0 %v5562
          %v5818 = vpop.xlane.xlu0 %5817
          %5819 = vadd.xlane.f32.xlu0 %v5564
          %v5820 = vpop.xlane.xlu0 %5819
          %5821 = vadd.xlane.f32.xlu0 %v5566
          %v5822 = vpop.xlane.xlu0 %5821
          %5823 = vadd.xlane.f32.xlu0 %v5568
          %v5824 = vpop.xlane.xlu0 %5823
          %5825 = vadd.xlane.f32.xlu0 %v5570
          %v5826 = vpop.xlane.xlu0 %5825
          %5827 = vadd.xlane.f32.xlu0 %v5572
          %v5828 = vpop.xlane.xlu0 %5827
          %5829 = vadd.xlane.f32.xlu0 %v5574
          %v5830 = vpop.xlane.xlu0 %5829
          %5831 = vadd.xlane.f32.xlu0 %v5576
          %v5832 = vpop.xlane.xlu0 %5831
          %5833 = vadd.xlane.f32.xlu0 %v5578
          %v5834 = vpop.xlane.xlu0 %5833
          %5835 = vadd.xlane.f32.xlu0 %v5580
          %v5836 = vpop.xlane.xlu0 %5835
          %5837 = vadd.xlane.f32.xlu0 %v5582
          %v5838 = vpop.xlane.xlu0 %5837
          %5839 = vadd.xlane.f32.xlu0 %v5584
          %v5840 = vpop.xlane.xlu0 %5839
          %5841 = vadd.xlane.f32.xlu0 %v5586
          %v5842 = vpop.xlane.xlu0 %5841
          %5843 = vadd.xlane.f32.xlu0 %v5588
          %v5844 = vpop.xlane.xlu0 %5843
          %5845 = vadd.xlane.f32.xlu0 %v5590
          %v5846 = vpop.xlane.xlu0 %5845
          %5847 = vadd.xlane.f32.xlu0 %v5592
          %v5848 = vpop.xlane.xlu0 %5847
          %5849 = vadd.xlane.f32.xlu0 %v5594
          %v5850 = vpop.xlane.xlu0 %5849
          %5851 = vadd.xlane.f32.xlu0 %v5596
          %v5852 = vpop.xlane.xlu0 %5851
          %5853 = vadd.xlane.f32.xlu0 %v5598
          %v5854 = vpop.xlane.xlu0 %5853
          %5855 = vadd.xlane.f32.xlu0 %v5600
          %v5856 = vpop.xlane.xlu0 %5855
          %5857 = vadd.xlane.f32.xlu0 %v5602
          %v5858 = vpop.xlane.xlu0 %5857
          %5859 = vadd.xlane.f32.xlu0 %v5604
          %v5860 = vpop.xlane.xlu0 %5859
          %5861 = vadd.xlane.f32.xlu0 %v5606
          %v5862 = vpop.xlane.xlu0 %5861
          %5863 = vadd.xlane.f32.xlu0 %v5608
          %v5864 = vpop.xlane.xlu0 %5863
          %5865 = vadd.xlane.f32.xlu0 %v5610
          %v5866 = vpop.xlane.xlu0 %5865
          %v5867 = vadd.f32 %v5675, %v5740
          %v5868 = vadd.f32 %v5676, %v5742
          %v5869 = vadd.f32 %v5677, %v5744
          %v5870 = vadd.f32 %v5678, %v5746
          %v5871 = vadd.f32 %v5679, %v5748
          %v5872 = vadd.f32 %v5680, %v5750
          %v5873 = vadd.f32 %v5681, %v5752
          %v5874 = vadd.f32 %v5682, %v5754
          %v5875 = vadd.f32 %v5683, %v5756
          %v5876 = vadd.f32 %v5684, %v5758
          %v5877 = vadd.f32 %v5685, %v5760
          %v5878 = vadd.f32 %v5686, %v5762
          %v5879 = vadd.f32 %v5687, %v5764
          %v5880 = vadd.f32 %v5688, %v5766
          %v5881 = vadd.f32 %v5689, %v5768
          %v5882 = vadd.f32 %v5690, %v5770
          %v5883 = vadd.f32 %v5691, %v5772
          %v5884 = vadd.f32 %v5692, %v5774
          %v5885 = vadd.f32 %v5693, %v5776
          %v5886 = vadd.f32 %v5694, %v5778
          %v5887 = vadd.f32 %v5695, %v5780
          %v5888 = vadd.f32 %v5696, %v5782
          %v5889 = vadd.f32 %v5697, %v5784
          %v5890 = vadd.f32 %v5698, %v5786
          %v5891 = vadd.f32 %v5699, %v5788
          %v5892 = vadd.f32 %v5700, %v5790
          %v5893 = vadd.f32 %v5701, %v5792
          %v5894 = vadd.f32 %v5702, %v5794
          %v5895 = vadd.f32 %v5703, %v5796
          %v5896 = vadd.f32 %v5704, %v5798
          %v5897 = vadd.f32 %v5705, %v5800
          %v5898 = vadd.f32 %v5706, %v5802
          %v5899 = vadd.f32 %v5707, %v5804
          %v5900 = vadd.f32 %v5708, %v5806
          %v5901 = vadd.f32 %v5709, %v5808
          %v5902 = vadd.f32 %v5710, %v5810
          %v5903 = vadd.f32 %v5711, %v5812
          %v5904 = vadd.f32 %v5712, %v5814
          %v5905 = vadd.f32 %v5713, %v5816
          %v5906 = vadd.f32 %v5714, %v5818
          %v5907 = vadd.f32 %v5715, %v5820
          %v5908 = vadd.f32 %v5716, %v5822
          %v5909 = vadd.f32 %v5717, %v5824
          %v5910 = vadd.f32 %v5718, %v5826
          %v5911 = vadd.f32 %v5719, %v5828
          %v5912 = vadd.f32 %v5720, %v5830
          %v5913 = vadd.f32 %v5721, %v5832
          %v5914 = vadd.f32 %v5722, %v5834
          %v5915 = vadd.f32 %v5723, %v5836
          %v5916 = vadd.f32 %v5724, %v5838
          %v5917 = vadd.f32 %v5725, %v5840
          %v5918 = vadd.f32 %v5726, %v5842
          %v5919 = vadd.f32 %v5727, %v5844
          %v5920 = vadd.f32 %v5728, %v5846
          %v5921 = vadd.f32 %v5729, %v5848
          %v5922 = vadd.f32 %v5730, %v5850
          %v5923 = vadd.f32 %v5731, %v5852
          %v5924 = vadd.f32 %v5732, %v5854
          %v5925 = vadd.f32 %v5733, %v5856
          %v5926 = vadd.f32 %v5734, %v5858
          %v5927 = vadd.f32 %v5735, %v5860
          %v5928 = vadd.f32 %v5736, %v5862
          %v5929 = vadd.f32 %v5737, %v5864
          %v5930 = vadd.f32 %v5738, %v5866
          %vm5931 = vcmask 7168
          %5932 = vst.msk [vmem:[#allocation4] sm:$0xff] %vm5931, %v5867
          %5933 = vst.msk [vmem:[#allocation4 + $0x8] sm:$0xff] %vm5931, %v5868
          %5934 = vst.msk [vmem:[#allocation4 + $0x10] sm:$0xff] %vm5931, %v5869
          %5935 = vst.msk [vmem:[#allocation4 + $0x18] sm:$0xff] %vm5931, %v5870
          %5936 = vst.msk [vmem:[#allocation4 + $0x20] sm:$0xff] %vm5931, %v5871
          %5937 = vst.msk [vmem:[#allocation4 + $0x28] sm:$0xff] %vm5931, %v5872
          %5938 = vst.msk [vmem:[#allocation4 + $0x30] sm:$0xff] %vm5931, %v5873
          %5939 = vst.msk [vmem:[#allocation4 + $0x38] sm:$0xff] %vm5931, %v5874
          %5940 = vst.msk [vmem:[#allocation4 + $0x40] sm:$0xff] %vm5931, %v5875
          %5941 = vst.msk [vmem:[#allocation4 + $0x48] sm:$0xff] %vm5931, %v5876
          %5942 = vst.msk [vmem:[#allocation4 + $0x50] sm:$0xff] %vm5931, %v5877
          %5943 = vst.msk [vmem:[#allocation4 + $0x58] sm:$0xff] %vm5931, %v5878
          %5944 = vst.msk [vmem:[#allocation4 + $0x60] sm:$0xff] %vm5931, %v5879
          %5945 = vst.msk [vmem:[#allocation4 + $0x68] sm:$0xff] %vm5931, %v5880
          %5946 = vst.msk [vmem:[#allocation4 + $0x70] sm:$0xff] %vm5931, %v5881
          %5947 = vst.msk [vmem:[#allocation4 + $0x78] sm:$0xff] %vm5931, %v5882
          %5948 = vst.msk [vmem:[#allocation4 + $0x80] sm:$0xff] %vm5931, %v5883
          %5949 = vst.msk [vmem:[#allocation4 + $0x88] sm:$0xff] %vm5931, %v5884
          %5950 = vst.msk [vmem:[#allocation4 + $0x90] sm:$0xff] %vm5931, %v5885
          %5951 = vst.msk [vmem:[#allocation4 + $0x98] sm:$0xff] %vm5931, %v5886
          %5952 = vst.msk [vmem:[#allocation4 + $0xa0] sm:$0xff] %vm5931, %v5887
          %5953 = vst.msk [vmem:[#allocation4 + $0xa8] sm:$0xff] %vm5931, %v5888
          %5954 = vst.msk [vmem:[#allocation4 + $0xb0] sm:$0xff] %vm5931, %v5889
          %5955 = vst.msk [vmem:[#allocation4 + $0xb8] sm:$0xff] %vm5931, %v5890
          %5956 = vst.msk [vmem:[#allocation4 + $0xc0] sm:$0xff] %vm5931, %v5891
          %5957 = vst.msk [vmem:[#allocation4 + $0xc8] sm:$0xff] %vm5931, %v5892
          %5958 = vst.msk [vmem:[#allocation4 + $0xd0] sm:$0xff] %vm5931, %v5893
          %5959 = vst.msk [vmem:[#allocation4 + $0xd8] sm:$0xff] %vm5931, %v5894
          %5960 = vst.msk [vmem:[#allocation4 + $0xe0] sm:$0xff] %vm5931, %v5895
          %5961 = vst.msk [vmem:[#allocation4 + $0xe8] sm:$0xff] %vm5931, %v5896
          %5962 = vst.msk [vmem:[#allocation4 + $0xf0] sm:$0xff] %vm5931, %v5897
          %5963 = vst.msk [vmem:[#allocation4 + $0xf8] sm:$0xff] %vm5931, %v5898
          %5964 = vst.msk [vmem:[#allocation4 + $0x100] sm:$0xff] %vm5931, %v5899
          %5965 = vst.msk [vmem:[#allocation4 + $0x108] sm:$0xff] %vm5931, %v5900
          %5966 = vst.msk [vmem:[#allocation4 + $0x110] sm:$0xff] %vm5931, %v5901
          %5967 = vst.msk [vmem:[#allocation4 + $0x118] sm:$0xff] %vm5931, %v5902
          %5968 = vst.msk [vmem:[#allocation4 + $0x120] sm:$0xff] %vm5931, %v5903
          %5969 = vst.msk [vmem:[#allocation4 + $0x128] sm:$0xff] %vm5931, %v5904
          %5970 = vst.msk [vmem:[#allocation4 + $0x130] sm:$0xff] %vm5931, %v5905
          %5971 = vst.msk [vmem:[#allocation4 + $0x138] sm:$0xff] %vm5931, %v5906
          %5972 = vst.msk [vmem:[#allocation4 + $0x140] sm:$0xff] %vm5931, %v5907
          %5973 = vst.msk [vmem:[#allocation4 + $0x148] sm:$0xff] %vm5931, %v5908
          %5974 = vst.msk [vmem:[#allocation4 + $0x150] sm:$0xff] %vm5931, %v5909
          %5975 = vst.msk [vmem:[#allocation4 + $0x158] sm:$0xff] %vm5931, %v5910
          %5976 = vst.msk [vmem:[#allocation4 + $0x160] sm:$0xff] %vm5931, %v5911
          %5977 = vst.msk [vmem:[#allocation4 + $0x168] sm:$0xff] %vm5931, %v5912
          %5978 = vst.msk [vmem:[#allocation4 + $0x170] sm:$0xff] %vm5931, %v5913
          %5979 = vst.msk [vmem:[#allocation4 + $0x178] sm:$0xff] %vm5931, %v5914
          %5980 = vst.msk [vmem:[#allocation4 + $0x180] sm:$0xff] %vm5931, %v5915
          %5981 = vst.msk [vmem:[#allocation4 + $0x188] sm:$0xff] %vm5931, %v5916
          %5982 = vst.msk [vmem:[#allocation4 + $0x190] sm:$0xff] %vm5931, %v5917
          %5983 = vst.msk [vmem:[#allocation4 + $0x198] sm:$0xff] %vm5931, %v5918
          %5984 = vst.msk [vmem:[#allocation4 + $0x1a0] sm:$0xff] %vm5931, %v5919
          %5985 = vst.msk [vmem:[#allocation4 + $0x1a8] sm:$0xff] %vm5931, %v5920
          %5986 = vst.msk [vmem:[#allocation4 + $0x1b0] sm:$0xff] %vm5931, %v5921
          %5987 = vst.msk [vmem:[#allocation4 + $0x1b8] sm:$0xff] %vm5931, %v5922
          %5988 = vst.msk [vmem:[#allocation4 + $0x1c0] sm:$0xff] %vm5931, %v5923
          %5989 = vst.msk [vmem:[#allocation4 + $0x1c8] sm:$0xff] %vm5931, %v5924
          %5990 = vst.msk [vmem:[#allocation4 + $0x1d0] sm:$0xff] %vm5931, %v5925
          %5991 = vst.msk [vmem:[#allocation4 + $0x1d8] sm:$0xff] %vm5931, %v5926
          %5992 = vst.msk [vmem:[#allocation4 + $0x1e0] sm:$0xff] %vm5931, %v5927
          %5993 = vst.msk [vmem:[#allocation4 + $0x1e8] sm:$0xff] %vm5931, %v5928
          %5994 = vst.msk [vmem:[#allocation4 + $0x1f0] sm:$0xff] %vm5931, %v5929
          %5995 = vst.msk [vmem:[#allocation4 + $0x1f8] sm:$0xff] %vm5931, %v5930
          %v5996 = vld [vmem:[#allocation5] sm:$0xff]
          %v5997 = vld [vmem:[#allocation5 + $0x8] sm:$0xff]
          %v5998 = vld [vmem:[#allocation5 + $0x10] sm:$0xff]
          %v5999 = vld [vmem:[#allocation5 + $0x18] sm:$0xff]
          %v6000 = vld [vmem:[#allocation5 + $0x20] sm:$0xff]
          %v6001 = vld [vmem:[#allocation5 + $0x28] sm:$0xff]
          %v6002 = vld [vmem:[#allocation5 + $0x30] sm:$0xff]
          %v6003 = vld [vmem:[#allocation5 + $0x38] sm:$0xff]
          %v6004 = vld [vmem:[#allocation5 + $0x40] sm:$0xff]
          %v6005 = vld [vmem:[#allocation5 + $0x48] sm:$0xff]
          %v6006 = vld [vmem:[#allocation5 + $0x50] sm:$0xff]
          %v6007 = vld [vmem:[#allocation5 + $0x58] sm:$0xff]
          %v6008 = vld [vmem:[#allocation5 + $0x60] sm:$0xff]
          %v6009 = vld [vmem:[#allocation5 + $0x68] sm:$0xff]
          %v6010 = vld [vmem:[#allocation5 + $0x70] sm:$0xff]
          %v6011 = vld [vmem:[#allocation5 + $0x78] sm:$0xff]
          %v6012 = vld [vmem:[#allocation5 + $0x80] sm:$0xff]
          %v6013 = vld [vmem:[#allocation5 + $0x88] sm:$0xff]
          %v6014 = vld [vmem:[#allocation5 + $0x90] sm:$0xff]
          %v6015 = vld [vmem:[#allocation5 + $0x98] sm:$0xff]
          %v6016 = vld [vmem:[#allocation5 + $0xa0] sm:$0xff]
          %v6017 = vld [vmem:[#allocation5 + $0xa8] sm:$0xff]
          %v6018 = vld [vmem:[#allocation5 + $0xb0] sm:$0xff]
          %v6019 = vld [vmem:[#allocation5 + $0xb8] sm:$0xff]
          %v6020 = vld [vmem:[#allocation5 + $0xc0] sm:$0xff]
          %v6021 = vld [vmem:[#allocation5 + $0xc8] sm:$0xff]
          %v6022 = vld [vmem:[#allocation5 + $0xd0] sm:$0xff]
          %v6023 = vld [vmem:[#allocation5 + $0xd8] sm:$0xff]
          %v6024 = vld [vmem:[#allocation5 + $0xe0] sm:$0xff]
          %v6025 = vld [vmem:[#allocation5 + $0xe8] sm:$0xff]
          %v6026 = vld [vmem:[#allocation5 + $0xf0] sm:$0xff]
          %v6027 = vld [vmem:[#allocation5 + $0xf8] sm:$0xff]
          %v6028 = vld [vmem:[#allocation5 + $0x100] sm:$0xff]
          %v6029 = vld [vmem:[#allocation5 + $0x108] sm:$0xff]
          %v6030 = vld [vmem:[#allocation5 + $0x110] sm:$0xff]
          %v6031 = vld [vmem:[#allocation5 + $0x118] sm:$0xff]
          %v6032 = vld [vmem:[#allocation5 + $0x120] sm:$0xff]
          %v6033 = vld [vmem:[#allocation5 + $0x128] sm:$0xff]
          %v6034 = vld [vmem:[#allocation5 + $0x130] sm:$0xff]
          %v6035 = vld [vmem:[#allocation5 + $0x138] sm:$0xff]
          %v6036 = vld [vmem:[#allocation5 + $0x140] sm:$0xff]
          %v6037 = vld [vmem:[#allocation5 + $0x148] sm:$0xff]
          %v6038 = vld [vmem:[#allocation5 + $0x150] sm:$0xff]
          %v6039 = vld [vmem:[#allocation5 + $0x158] sm:$0xff]
          %v6040 = vld [vmem:[#allocation5 + $0x160] sm:$0xff]
          %v6041 = vld [vmem:[#allocation5 + $0x168] sm:$0xff]
          %v6042 = vld [vmem:[#allocation5 + $0x170] sm:$0xff]
          %v6043 = vld [vmem:[#allocation5 + $0x178] sm:$0xff]
          %v6044 = vld [vmem:[#allocation5 + $0x180] sm:$0xff]
          %v6045 = vld [vmem:[#allocation5 + $0x188] sm:$0xff]
          %v6046 = vld [vmem:[#allocation5 + $0x190] sm:$0xff]
          %v6047 = vld [vmem:[#allocation5 + $0x198] sm:$0xff]
          %v6048 = vld [vmem:[#allocation5 + $0x1a0] sm:$0xff]
          %v6049 = vld [vmem:[#allocation5 + $0x1a8] sm:$0xff]
          %v6050 = vld [vmem:[#allocation5 + $0x1b0] sm:$0xff]
          %v6051 = vld [vmem:[#allocation5 + $0x1b8] sm:$0xff]
          %v6052 = vld [vmem:[#allocation5 + $0x1c0] sm:$0xff]
          %v6053 = vld [vmem:[#allocation5 + $0x1c8] sm:$0xff]
          %v6054 = vld [vmem:[#allocation5 + $0x1d0] sm:$0xff]
          %v6055 = vld [vmem:[#allocation5 + $0x1d8] sm:$0xff]
          %v6056 = vld [vmem:[#allocation5 + $0x1e0] sm:$0xff]
          %v6057 = vld [vmem:[#allocation5 + $0x1e8] sm:$0xff]
          %v6058 = vld [vmem:[#allocation5 + $0x1f0] sm:$0xff]
          %v6059 = vld [vmem:[#allocation5 + $0x1f8] sm:$0xff]
          %6061 = vset.pattern.permute.xlu0 0
          %6062 = vperm.xlu0 %6061, %v4972
          %v6063 = vpop.permute.xlu0 %6062
          %6066 = vset.pattern.permute.xlu0 0
          %6067 = vperm.xlu0 %6066, %v4974
          %v6068 = vpop.permute.xlu0 %6067
          %6071 = vset.pattern.permute.xlu0 0
          %6072 = vperm.xlu0 %6071, %v4976
          %v6073 = vpop.permute.xlu0 %6072
          %6076 = vset.pattern.permute.xlu0 0
          %6077 = vperm.xlu0 %6076, %v4978
          %v6078 = vpop.permute.xlu0 %6077
          %6081 = vset.pattern.permute.xlu0 0
          %6082 = vperm.xlu0 %6081, %v4980
          %v6083 = vpop.permute.xlu0 %6082
          %6086 = vset.pattern.permute.xlu0 0
          %6087 = vperm.xlu0 %6086, %v4982
          %v6088 = vpop.permute.xlu0 %6087
          %6091 = vset.pattern.permute.xlu0 0
          %6092 = vperm.xlu0 %6091, %v4984
          %v6093 = vpop.permute.xlu0 %6092
          %6096 = vset.pattern.permute.xlu0 0
          %6097 = vperm.xlu0 %6096, %v4986
          %v6098 = vpop.permute.xlu0 %6097
          %6101 = vset.pattern.permute.xlu0 0
          %6102 = vperm.xlu0 %6101, %v4988
          %v6103 = vpop.permute.xlu0 %6102
          %6106 = vset.pattern.permute.xlu0 0
          %6107 = vperm.xlu0 %6106, %v4990
          %v6108 = vpop.permute.xlu0 %6107
          %6111 = vset.pattern.permute.xlu0 0
          %6112 = vperm.xlu0 %6111, %v4992
          %v6113 = vpop.permute.xlu0 %6112
          %6116 = vset.pattern.permute.xlu0 0
          %6117 = vperm.xlu0 %6116, %v4994
          %v6118 = vpop.permute.xlu0 %6117
          %6121 = vset.pattern.permute.xlu0 0
          %6122 = vperm.xlu0 %6121, %v4996
          %v6123 = vpop.permute.xlu0 %6122
          %6126 = vset.pattern.permute.xlu0 0
          %6127 = vperm.xlu0 %6126, %v4998
          %v6128 = vpop.permute.xlu0 %6127
          %6131 = vset.pattern.permute.xlu0 0
          %6132 = vperm.xlu0 %6131, %v5000
          %v6133 = vpop.permute.xlu0 %6132
          %6136 = vset.pattern.permute.xlu0 0
          %6137 = vperm.xlu0 %6136, %v5002
          %v6138 = vpop.permute.xlu0 %6137
          %6141 = vset.pattern.permute.xlu0 0
          %6142 = vperm.xlu0 %6141, %v5004
          %v6143 = vpop.permute.xlu0 %6142
          %6146 = vset.pattern.permute.xlu0 0
          %6147 = vperm.xlu0 %6146, %v5006
          %v6148 = vpop.permute.xlu0 %6147
          %6151 = vset.pattern.permute.xlu0 0
          %6152 = vperm.xlu0 %6151, %v5008
          %v6153 = vpop.permute.xlu0 %6152
          %6156 = vset.pattern.permute.xlu0 0
          %6157 = vperm.xlu0 %6156, %v5010
          %v6158 = vpop.permute.xlu0 %6157
          %6161 = vset.pattern.permute.xlu0 0
          %6162 = vperm.xlu0 %6161, %v5012
          %v6163 = vpop.permute.xlu0 %6162
          %6166 = vset.pattern.permute.xlu0 0
          %6167 = vperm.xlu0 %6166, %v5014
          %v6168 = vpop.permute.xlu0 %6167
          %6171 = vset.pattern.permute.xlu0 0
          %6172 = vperm.xlu0 %6171, %v5016
          %v6173 = vpop.permute.xlu0 %6172
          %6176 = vset.pattern.permute.xlu0 0
          %6177 = vperm.xlu0 %6176, %v5018
          %v6178 = vpop.permute.xlu0 %6177
          %6181 = vset.pattern.permute.xlu0 0
          %6182 = vperm.xlu0 %6181, %v5020
          %v6183 = vpop.permute.xlu0 %6182
          %6186 = vset.pattern.permute.xlu0 0
          %6187 = vperm.xlu0 %6186, %v5022
          %v6188 = vpop.permute.xlu0 %6187
          %6191 = vset.pattern.permute.xlu0 0
          %6192 = vperm.xlu0 %6191, %v5024
          %v6193 = vpop.permute.xlu0 %6192
          %6196 = vset.pattern.permute.xlu0 0
          %6197 = vperm.xlu0 %6196, %v5026
          %v6198 = vpop.permute.xlu0 %6197
          %6201 = vset.pattern.permute.xlu0 0
          %6202 = vperm.xlu0 %6201, %v5028
          %v6203 = vpop.permute.xlu0 %6202
          %6206 = vset.pattern.permute.xlu0 0
          %6207 = vperm.xlu0 %6206, %v5030
          %v6208 = vpop.permute.xlu0 %6207
          %6211 = vset.pattern.permute.xlu0 0
          %6212 = vperm.xlu0 %6211, %v5032
          %v6213 = vpop.permute.xlu0 %6212
          %6216 = vset.pattern.permute.xlu0 0
          %6217 = vperm.xlu0 %6216, %v5034
          %v6218 = vpop.permute.xlu0 %6217
          %6221 = vset.pattern.permute.xlu0 0
          %6222 = vperm.xlu0 %6221, %v5036
          %v6223 = vpop.permute.xlu0 %6222
          %6226 = vset.pattern.permute.xlu0 0
          %6227 = vperm.xlu0 %6226, %v5038
          %v6228 = vpop.permute.xlu0 %6227
          %6231 = vset.pattern.permute.xlu0 0
          %6232 = vperm.xlu0 %6231, %v5040
          %v6233 = vpop.permute.xlu0 %6232
          %6236 = vset.pattern.permute.xlu0 0
          %6237 = vperm.xlu0 %6236, %v5042
          %v6238 = vpop.permute.xlu0 %6237
          %6241 = vset.pattern.permute.xlu0 0
          %6242 = vperm.xlu0 %6241, %v5044
          %v6243 = vpop.permute.xlu0 %6242
          %6246 = vset.pattern.permute.xlu0 0
          %6247 = vperm.xlu0 %6246, %v5046
          %v6248 = vpop.permute.xlu0 %6247
          %6251 = vset.pattern.permute.xlu0 0
          %6252 = vperm.xlu0 %6251, %v5048
          %v6253 = vpop.permute.xlu0 %6252
          %6256 = vset.pattern.permute.xlu0 0
          %6257 = vperm.xlu0 %6256, %v5050
          %v6258 = vpop.permute.xlu0 %6257
          %6261 = vset.pattern.permute.xlu0 0
          %6262 = vperm.xlu0 %6261, %v5052
          %v6263 = vpop.permute.xlu0 %6262
          %6266 = vset.pattern.permute.xlu0 0
          %6267 = vperm.xlu0 %6266, %v5054
          %v6268 = vpop.permute.xlu0 %6267
          %6271 = vset.pattern.permute.xlu0 0
          %6272 = vperm.xlu0 %6271, %v5056
          %v6273 = vpop.permute.xlu0 %6272
          %6276 = vset.pattern.permute.xlu0 0
          %6277 = vperm.xlu0 %6276, %v5058
          %v6278 = vpop.permute.xlu0 %6277
          %6281 = vset.pattern.permute.xlu0 0
          %6282 = vperm.xlu0 %6281, %v5060
          %v6283 = vpop.permute.xlu0 %6282
          %6286 = vset.pattern.permute.xlu0 0
          %6287 = vperm.xlu0 %6286, %v5062
          %v6288 = vpop.permute.xlu0 %6287
          %6291 = vset.pattern.permute.xlu0 0
          %6292 = vperm.xlu0 %6291, %v5064
          %v6293 = vpop.permute.xlu0 %6292
          %6296 = vset.pattern.permute.xlu0 0
          %6297 = vperm.xlu0 %6296, %v5066
          %v6298 = vpop.permute.xlu0 %6297
          %6301 = vset.pattern.permute.xlu0 0
          %6302 = vperm.xlu0 %6301, %v5068
          %v6303 = vpop.permute.xlu0 %6302
          %6306 = vset.pattern.permute.xlu0 0
          %6307 = vperm.xlu0 %6306, %v5070
          %v6308 = vpop.permute.xlu0 %6307
          %6311 = vset.pattern.permute.xlu0 0
          %6312 = vperm.xlu0 %6311, %v5072
          %v6313 = vpop.permute.xlu0 %6312
          %6316 = vset.pattern.permute.xlu0 0
          %6317 = vperm.xlu0 %6316, %v5074
          %v6318 = vpop.permute.xlu0 %6317
          %6321 = vset.pattern.permute.xlu0 0
          %6322 = vperm.xlu0 %6321, %v5076
          %v6323 = vpop.permute.xlu0 %6322
          %6326 = vset.pattern.permute.xlu0 0
          %6327 = vperm.xlu0 %6326, %v5078
          %v6328 = vpop.permute.xlu0 %6327
          %6331 = vset.pattern.permute.xlu0 0
          %6332 = vperm.xlu0 %6331, %v5080
          %v6333 = vpop.permute.xlu0 %6332
          %6336 = vset.pattern.permute.xlu0 0
          %6337 = vperm.xlu0 %6336, %v5082
          %v6338 = vpop.permute.xlu0 %6337
          %6341 = vset.pattern.permute.xlu0 0
          %6342 = vperm.xlu0 %6341, %v5084
          %v6343 = vpop.permute.xlu0 %6342
          %6346 = vset.pattern.permute.xlu0 0
          %6347 = vperm.xlu0 %6346, %v5086
          %v6348 = vpop.permute.xlu0 %6347
          %6351 = vset.pattern.permute.xlu0 0
          %6352 = vperm.xlu0 %6351, %v5088
          %v6353 = vpop.permute.xlu0 %6352
          %6356 = vset.pattern.permute.xlu0 0
          %6357 = vperm.xlu0 %6356, %v5090
          %v6358 = vpop.permute.xlu0 %6357
          %6361 = vset.pattern.permute.xlu0 0
          %6362 = vperm.xlu0 %6361, %v5092
          %v6363 = vpop.permute.xlu0 %6362
          %6366 = vset.pattern.permute.xlu0 0
          %6367 = vperm.xlu0 %6366, %v5094
          %v6368 = vpop.permute.xlu0 %6367
          %6371 = vset.pattern.permute.xlu0 0
          %6372 = vperm.xlu0 %6371, %v5096
          %v6373 = vpop.permute.xlu0 %6372
          %6376 = vset.pattern.permute.xlu0 0
          %6377 = vperm.xlu0 %6376, %v5098
          %v6378 = vpop.permute.xlu0 %6377
          %v6380 = vmul.f32 %v6063, %v5996
          %v6381 = vmul.f32 %v6068, %v5997
          %v6382 = vmul.f32 %v6073, %v5998
          %v6383 = vmul.f32 %v6078, %v5999
          %v6384 = vmul.f32 %v6083, %v6000
          %v6385 = vmul.f32 %v6088, %v6001
          %v6386 = vmul.f32 %v6093, %v6002
          %v6387 = vmul.f32 %v6098, %v6003
          %v6388 = vmul.f32 %v6103, %v6004
          %v6389 = vmul.f32 %v6108, %v6005
          %v6390 = vmul.f32 %v6113, %v6006
          %v6391 = vmul.f32 %v6118, %v6007
          %v6392 = vmul.f32 %v6123, %v6008
          %v6393 = vmul.f32 %v6128, %v6009
          %v6394 = vmul.f32 %v6133, %v6010
          %v6395 = vmul.f32 %v6138, %v6011
          %v6396 = vmul.f32 %v6143, %v6012
          %v6397 = vmul.f32 %v6148, %v6013
          %v6398 = vmul.f32 %v6153, %v6014
          %v6399 = vmul.f32 %v6158, %v6015
          %v6400 = vmul.f32 %v6163, %v6016
          %v6401 = vmul.f32 %v6168, %v6017
          %v6402 = vmul.f32 %v6173, %v6018
          %v6403 = vmul.f32 %v6178, %v6019
          %v6404 = vmul.f32 %v6183, %v6020
          %v6405 = vmul.f32 %v6188, %v6021
          %v6406 = vmul.f32 %v6193, %v6022
          %v6407 = vmul.f32 %v6198, %v6023
          %v6408 = vmul.f32 %v6203, %v6024
          %v6409 = vmul.f32 %v6208, %v6025
          %v6410 = vmul.f32 %v6213, %v6026
          %v6411 = vmul.f32 %v6218, %v6027
          %v6412 = vmul.f32 %v6223, %v6028
          %v6413 = vmul.f32 %v6228, %v6029
          %v6414 = vmul.f32 %v6233, %v6030
          %v6415 = vmul.f32 %v6238, %v6031
          %v6416 = vmul.f32 %v6243, %v6032
          %v6417 = vmul.f32 %v6248, %v6033
          %v6418 = vmul.f32 %v6253, %v6034
          %v6419 = vmul.f32 %v6258, %v6035
          %v6420 = vmul.f32 %v6263, %v6036
          %v6421 = vmul.f32 %v6268, %v6037
          %v6422 = vmul.f32 %v6273, %v6038
          %v6423 = vmul.f32 %v6278, %v6039
          %v6424 = vmul.f32 %v6283, %v6040
          %v6425 = vmul.f32 %v6288, %v6041
          %v6426 = vmul.f32 %v6293, %v6042
          %v6427 = vmul.f32 %v6298, %v6043
          %v6428 = vmul.f32 %v6303, %v6044
          %v6429 = vmul.f32 %v6308, %v6045
          %v6430 = vmul.f32 %v6313, %v6046
          %v6431 = vmul.f32 %v6318, %v6047
          %v6432 = vmul.f32 %v6323, %v6048
          %v6433 = vmul.f32 %v6328, %v6049
          %v6434 = vmul.f32 %v6333, %v6050
          %v6435 = vmul.f32 %v6338, %v6051
          %v6436 = vmul.f32 %v6343, %v6052
          %v6437 = vmul.f32 %v6348, %v6053
          %v6438 = vmul.f32 %v6353, %v6054
          %v6439 = vmul.f32 %v6358, %v6055
          %v6440 = vmul.f32 %v6363, %v6056
          %v6441 = vmul.f32 %v6368, %v6057
          %v6442 = vmul.f32 %v6373, %v6058
          %v6443 = vmul.f32 %v6378, %v6059
          %6444 = vmatprep.subr.mxu0 0.0
          %6445 = vmatpush1.msra.mxu0 %v3424
          %6446 = vmatprep.subr.mxu0 0.0
          %6447 = vmatpush1.msra.mxu0 %v3423
          %6448 = vmatprep.subr.mxu0 0.0
          %6449 = vmatpush1.msra.mxu0 %v3422
          %6450 = vmatprep.subr.mxu0 0.0
          %6451 = vmatpush1.msra.mxu0 %v3421
          %6452 = vmatprep.subr.mxu0 0.0
          %6453 = vmatpush1.msra.mxu0 %v3420
          %6454 = vmatprep.subr.mxu0 0.0
          %6455 = vmatpush1.msra.mxu0 %v3419
          %6456 = vmatprep.subr.mxu0 0.0
          %6457 = vmatpush1.msra.mxu0 %v3418
          %6458 = vmatprep.subr.mxu0 0.0
          %6459 = vmatpush1.msra.mxu0 %v3417
          %6460 = vmatprep.subr.mxu0 0.0
          %6461 = vmatpush1.msra.mxu0 %v3416
          %6462 = vmatprep.subr.mxu0 0.0
          %6463 = vmatpush1.msra.mxu0 %v3415
          %6464 = vmatprep.subr.mxu0 0.0
          %6465 = vmatpush1.msra.mxu0 %v3414
          %6466 = vmatprep.subr.mxu0 0.0
          %6467 = vmatpush1.msra.mxu0 %v3413
          %6468 = vmatprep.subr.mxu0 0.0
          %6469 = vmatpush1.msra.mxu0 %v3412
          %6470 = vmatprep.subr.mxu0 0.0
          %6471 = vmatpush1.msra.mxu0 %v3411
          %6472 = vmatprep.subr.mxu0 0.0
          %6473 = vmatpush1.msra.mxu0 %v3410
          %6474 = vmatprep.subr.mxu0 0.0
          %6475 = vmatpush1.msra.mxu0 %v3409
          %6476 = vmatprep.subr.mxu0 0.0
          %6477 = vmatpush2.msra.mxu0 0.0
          %6478 = vmatprep.subr.mxu0 0.0
          %6479 = vmatpush2.msra.mxu0 0.0
          %6480 = vmatprep.subr.mxu0 0.0
          %6481 = vmatpush2.msra.mxu0 0.0
          %6482 = vmatprep.subr.mxu0 0.0
          %6483 = vmatpush2.msra.mxu0 0.0
          %6484 = vmatprep.subr.mxu0 0.0
          %6485 = vmatpush2.msra.mxu0 0.0
          %6486 = vmatprep.subr.mxu0 0.0
          %6487 = vmatpush2.msra.mxu0 0.0
          %6488 = vmatprep.subr.mxu0 0.0
          %6489 = vmatpush2.msra.mxu0 0.0
          %6490 = vmatprep.subr.mxu0 0.0
          %6491 = vmatpush2.msra.mxu0 0.0
          %6492 = vmatprep.subr.mxu0 0.0
          %6493 = vmatpush2.msra.mxu0 0.0
          %6494 = vmatprep.subr.mxu0 0.0
          %6495 = vmatpush2.msra.mxu0 0.0
          %6496 = vmatprep.subr.mxu0 0.0
          %6497 = vmatpush2.msra.mxu0 0.0
          %6498 = vmatprep.subr.mxu0 0.0
          %6499 = vmatpush2.msra.mxu0 0.0
          %6500 = vmatprep.subr.mxu0 0.0
          %6501 = vmatpush2.msra.mxu0 0.0
          %6502 = vmatprep.subr.mxu0 0.0
          %6503 = vmatpush2.msra.mxu0 0.0
          %6504 = vmatprep.subr.mxu0 0.0
          %6505 = vmatpush2.msra.mxu0 0.0
          %6506 = vmatprep.subr.mxu0 0.0
          %6507 = vmatpush2.msra.mxu0 0.0
          %6508 = vmatprep.mubr.f32.mxu0 0.0
          %6509 = vmatmul.mubr.f32.gmra.mxu0 %v5484
          %v6510 = vpop.f32.mrf.mxu0
          %v6511 = vadd.f32 0.0, %v6510
          %v6512 = vpop.f32.mrf.mxu0
          %6513 = vmatprep.mubr.f32.mxu0 0.0
          %6514 = vmatmul.mubr.f32.gmra.mxu0 %v5486
          %v6515 = vpop.f32.mrf.mxu0
          %v6516 = vadd.f32 0.0, %v6515
          %v6517 = vpop.f32.mrf.mxu0
          %6518 = vmatprep.mubr.f32.mxu0 0.0
          %6519 = vmatmul.mubr.f32.gmra.mxu0 %v5488
          %v6520 = vpop.f32.mrf.mxu0
          %v6521 = vadd.f32 0.0, %v6520
          %v6522 = vpop.f32.mrf.mxu0
          %6523 = vmatprep.mubr.f32.mxu0 0.0
          %6524 = vmatmul.mubr.f32.gmra.mxu0 %v5490
          %v6525 = vpop.f32.mrf.mxu0
          %v6526 = vadd.f32 0.0, %v6525
          %v6527 = vpop.f32.mrf.mxu0
          %6528 = vmatprep.mubr.f32.mxu0 0.0
          %6529 = vmatmul.mubr.f32.gmra.mxu0 %v5492
          %v6530 = vpop.f32.mrf.mxu0
          %v6531 = vadd.f32 0.0, %v6530
          %v6532 = vpop.f32.mrf.mxu0
          %6533 = vmatprep.mubr.f32.mxu0 0.0
          %6534 = vmatmul.mubr.f32.gmra.mxu0 %v5494
          %v6535 = vpop.f32.mrf.mxu0
          %v6536 = vadd.f32 0.0, %v6535
          %v6537 = vpop.f32.mrf.mxu0
          %6538 = vmatprep.mubr.f32.mxu0 0.0
          %6539 = vmatmul.mubr.f32.gmra.mxu0 %v5496
          %v6540 = vpop.f32.mrf.mxu0
          %v6541 = vadd.f32 0.0, %v6540
          %v6542 = vpop.f32.mrf.mxu0
          %6543 = vmatprep.mubr.f32.mxu0 0.0
          %6544 = vmatmul.mubr.f32.gmra.mxu0 %v5498
          %v6545 = vpop.f32.mrf.mxu0
          %v6546 = vadd.f32 0.0, %v6545
          %v6547 = vpop.f32.mrf.mxu0
          %6548 = vmatprep.mubr.f32.mxu0 0.0
          %6549 = vmatmul.mubr.f32.gmra.mxu0 %v5500
          %v6550 = vpop.f32.mrf.mxu0
          %v6551 = vadd.f32 0.0, %v6550
          %v6552 = vpop.f32.mrf.mxu0
          %6553 = vmatprep.mubr.f32.mxu0 0.0
          %6554 = vmatmul.mubr.f32.gmra.mxu0 %v5502
          %v6555 = vpop.f32.mrf.mxu0
          %v6556 = vadd.f32 0.0, %v6555
          %v6557 = vpop.f32.mrf.mxu0
          %6558 = vmatprep.mubr.f32.mxu0 0.0
          %6559 = vmatmul.mubr.f32.gmra.mxu0 %v5504
          %v6560 = vpop.f32.mrf.mxu0
          %v6561 = vadd.f32 0.0, %v6560
          %v6562 = vpop.f32.mrf.mxu0
          %6563 = vmatprep.mubr.f32.mxu0 0.0
          %6564 = vmatmul.mubr.f32.gmra.mxu0 %v5506
          %v6565 = vpop.f32.mrf.mxu0
          %v6566 = vadd.f32 0.0, %v6565
          %v6567 = vpop.f32.mrf.mxu0
          %6568 = vmatprep.mubr.f32.mxu0 0.0
          %6569 = vmatmul.mubr.f32.gmra.mxu0 %v5508
          %v6570 = vpop.f32.mrf.mxu0
          %v6571 = vadd.f32 0.0, %v6570
          %v6572 = vpop.f32.mrf.mxu0
          %6573 = vmatprep.mubr.f32.mxu0 0.0
          %6574 = vmatmul.mubr.f32.gmra.mxu0 %v5510
          %v6575 = vpop.f32.mrf.mxu0
          %v6576 = vadd.f32 0.0, %v6575
          %v6577 = vpop.f32.mrf.mxu0
          %6578 = vmatprep.mubr.f32.mxu0 0.0
          %6579 = vmatmul.mubr.f32.gmra.mxu0 %v5512
          %v6580 = vpop.f32.mrf.mxu0
          %v6581 = vadd.f32 0.0, %v6580
          %v6582 = vpop.f32.mrf.mxu0
          %6583 = vmatprep.mubr.f32.mxu0 0.0
          %6584 = vmatmul.mubr.f32.gmra.mxu0 %v5514
          %v6585 = vpop.f32.mrf.mxu0
          %v6586 = vadd.f32 0.0, %v6585
          %v6587 = vpop.f32.mrf.mxu0
          %6588 = vdwg.mxu0
          %6589 = vmatprep.subr.mxu0 0.0
          %6590 = vmatpush1.msra.mxu0 %v3440
          %6591 = vmatprep.subr.mxu0 0.0
          %6592 = vmatpush1.msra.mxu0 %v3439
          %6593 = vmatprep.subr.mxu0 0.0
          %6594 = vmatpush1.msra.mxu0 %v3438
          %6595 = vmatprep.subr.mxu0 0.0
          %6596 = vmatpush1.msra.mxu0 %v3437
          %6597 = vmatprep.subr.mxu0 0.0
          %6598 = vmatpush1.msra.mxu0 %v3436
          %6599 = vmatprep.subr.mxu0 0.0
          %6600 = vmatpush1.msra.mxu0 %v3435
          %6601 = vmatprep.subr.mxu0 0.0
          %6602 = vmatpush1.msra.mxu0 %v3434
          %6603 = vmatprep.subr.mxu0 0.0
          %6604 = vmatpush1.msra.mxu0 %v3433
          %6605 = vmatprep.subr.mxu0 0.0
          %6606 = vmatpush1.msra.mxu0 %v3432
          %6607 = vmatprep.subr.mxu0 0.0
          %6608 = vmatpush1.msra.mxu0 %v3431
          %6609 = vmatprep.subr.mxu0 0.0
          %6610 = vmatpush1.msra.mxu0 %v3430
          %6611 = vmatprep.subr.mxu0 0.0
          %6612 = vmatpush1.msra.mxu0 %v3429
          %6613 = vmatprep.subr.mxu0 0.0
          %6614 = vmatpush1.msra.mxu0 %v3428
          %6615 = vmatprep.subr.mxu0 0.0
          %6616 = vmatpush1.msra.mxu0 %v3427
          %6617 = vmatprep.subr.mxu0 0.0
          %6618 = vmatpush1.msra.mxu0 %v3426
          %6619 = vmatprep.subr.mxu0 0.0
          %6620 = vmatpush1.msra.mxu0 %v3425
          %6621 = vmatprep.subr.mxu0 0.0
          %6622 = vmatpush2.msra.mxu0 0.0
          %6623 = vmatprep.subr.mxu0 0.0
          %6624 = vmatpush2.msra.mxu0 0.0
          %6625 = vmatprep.subr.mxu0 0.0
          %6626 = vmatpush2.msra.mxu0 0.0
          %6627 = vmatprep.subr.mxu0 0.0
          %6628 = vmatpush2.msra.mxu0 0.0
          %6629 = vmatprep.subr.mxu0 0.0
          %6630 = vmatpush2.msra.mxu0 0.0
          %6631 = vmatprep.subr.mxu0 0.0
          %6632 = vmatpush2.msra.mxu0 0.0
          %6633 = vmatprep.subr.mxu0 0.0
          %6634 = vmatpush2.msra.mxu0 0.0
          %6635 = vmatprep.subr.mxu0 0.0
          %6636 = vmatpush2.msra.mxu0 0.0
          %6637 = vmatprep.subr.mxu0 0.0
          %6638 = vmatpush2.msra.mxu0 0.0
          %6639 = vmatprep.subr.mxu0 0.0
          %6640 = vmatpush2.msra.mxu0 0.0
          %6641 = vmatprep.subr.mxu0 0.0
          %6642 = vmatpush2.msra.mxu0 0.0
          %6643 = vmatprep.subr.mxu0 0.0
          %6644 = vmatpush2.msra.mxu0 0.0
          %6645 = vmatprep.subr.mxu0 0.0
          %6646 = vmatpush2.msra.mxu0 0.0
          %6647 = vmatprep.subr.mxu0 0.0
          %6648 = vmatpush2.msra.mxu0 0.0
          %6649 = vmatprep.subr.mxu0 0.0
          %6650 = vmatpush2.msra.mxu0 0.0
          %6651 = vmatprep.subr.mxu0 0.0
          %6652 = vmatpush2.msra.mxu0 0.0
          %6653 = vmatprep.mubr.f32.mxu0 0.0
          %6654 = vmatmul.mubr.f32.gmra.mxu0 %v5516
          %v6655 = vpop.f32.mrf.mxu0
          %v6656 = vadd.f32 0.0, %v6655
          %v6657 = vpop.f32.mrf.mxu0
          %6658 = vmatprep.mubr.f32.mxu0 0.0
          %6659 = vmatmul.mubr.f32.gmra.mxu0 %v5518
          %v6660 = vpop.f32.mrf.mxu0
          %v6661 = vadd.f32 0.0, %v6660
          %v6662 = vpop.f32.mrf.mxu0
          %6663 = vmatprep.mubr.f32.mxu0 0.0
          %6664 = vmatmul.mubr.f32.gmra.mxu0 %v5520
          %v6665 = vpop.f32.mrf.mxu0
          %v6666 = vadd.f32 0.0, %v6665
          %v6667 = vpop.f32.mrf.mxu0
          %6668 = vmatprep.mubr.f32.mxu0 0.0
          %6669 = vmatmul.mubr.f32.gmra.mxu0 %v5522
          %v6670 = vpop.f32.mrf.mxu0
          %v6671 = vadd.f32 0.0, %v6670
          %v6672 = vpop.f32.mrf.mxu0
          %6673 = vmatprep.mubr.f32.mxu0 0.0
          %6674 = vmatmul.mubr.f32.gmra.mxu0 %v5524
          %v6675 = vpop.f32.mrf.mxu0
          %v6676 = vadd.f32 0.0, %v6675
          %v6677 = vpop.f32.mrf.mxu0
          %6678 = vmatprep.mubr.f32.mxu0 0.0
          %6679 = vmatmul.mubr.f32.gmra.mxu0 %v5526
          %v6680 = vpop.f32.mrf.mxu0
          %v6681 = vadd.f32 0.0, %v6680
          %v6682 = vpop.f32.mrf.mxu0
          %6683 = vmatprep.mubr.f32.mxu0 0.0
          %6684 = vmatmul.mubr.f32.gmra.mxu0 %v5528
          %v6685 = vpop.f32.mrf.mxu0
          %v6686 = vadd.f32 0.0, %v6685
          %v6687 = vpop.f32.mrf.mxu0
          %6688 = vmatprep.mubr.f32.mxu0 0.0
          %6689 = vmatmul.mubr.f32.gmra.mxu0 %v5530
          %v6690 = vpop.f32.mrf.mxu0
          %v6691 = vadd.f32 0.0, %v6690
          %v6692 = vpop.f32.mrf.mxu0
          %6693 = vmatprep.mubr.f32.mxu0 0.0
          %6694 = vmatmul.mubr.f32.gmra.mxu0 %v5532
          %v6695 = vpop.f32.mrf.mxu0
          %v6696 = vadd.f32 0.0, %v6695
          %v6697 = vpop.f32.mrf.mxu0
          %6698 = vmatprep.mubr.f32.mxu0 0.0
          %6699 = vmatmul.mubr.f32.gmra.mxu0 %v5534
          %v6700 = vpop.f32.mrf.mxu0
          %v6701 = vadd.f32 0.0, %v6700
          %v6702 = vpop.f32.mrf.mxu0
          %6703 = vmatprep.mubr.f32.mxu0 0.0
          %6704 = vmatmul.mubr.f32.gmra.mxu0 %v5536
          %v6705 = vpop.f32.mrf.mxu0
          %v6706 = vadd.f32 0.0, %v6705
          %v6707 = vpop.f32.mrf.mxu0
          %6708 = vmatprep.mubr.f32.mxu0 0.0
          %6709 = vmatmul.mubr.f32.gmra.mxu0 %v5538
          %v6710 = vpop.f32.mrf.mxu0
          %v6711 = vadd.f32 0.0, %v6710
          %v6712 = vpop.f32.mrf.mxu0
          %6713 = vmatprep.mubr.f32.mxu0 0.0
          %6714 = vmatmul.mubr.f32.gmra.mxu0 %v5540
          %v6715 = vpop.f32.mrf.mxu0
          %v6716 = vadd.f32 0.0, %v6715
          %v6717 = vpop.f32.mrf.mxu0
          %6718 = vmatprep.mubr.f32.mxu0 0.0
          %6719 = vmatmul.mubr.f32.gmra.mxu0 %v5542
          %v6720 = vpop.f32.mrf.mxu0
          %v6721 = vadd.f32 0.0, %v6720
          %v6722 = vpop.f32.mrf.mxu0
          %6723 = vmatprep.mubr.f32.mxu0 0.0
          %6724 = vmatmul.mubr.f32.gmra.mxu0 %v5544
          %v6725 = vpop.f32.mrf.mxu0
          %v6726 = vadd.f32 0.0, %v6725
          %v6727 = vpop.f32.mrf.mxu0
          %6728 = vmatprep.mubr.f32.mxu0 0.0
          %6729 = vmatmul.mubr.f32.gmra.mxu0 %v5546
          %v6730 = vpop.f32.mrf.mxu0
          %v6731 = vadd.f32 0.0, %v6730
          %v6732 = vpop.f32.mrf.mxu0
          %6733 = vdwg.mxu0
          %6734 = vmatprep.subr.mxu0 0.0
          %6735 = vmatpush1.msra.mxu0 %v3456
          %6736 = vmatprep.subr.mxu0 0.0
          %6737 = vmatpush1.msra.mxu0 %v3455
          %6738 = vmatprep.subr.mxu0 0.0
          %6739 = vmatpush1.msra.mxu0 %v3454
          %6740 = vmatprep.subr.mxu0 0.0
          %6741 = vmatpush1.msra.mxu0 %v3453
          %6742 = vmatprep.subr.mxu0 0.0
          %6743 = vmatpush1.msra.mxu0 %v3452
          %6744 = vmatprep.subr.mxu0 0.0
          %6745 = vmatpush1.msra.mxu0 %v3451
          %6746 = vmatprep.subr.mxu0 0.0
          %6747 = vmatpush1.msra.mxu0 %v3450
          %6748 = vmatprep.subr.mxu0 0.0
          %6749 = vmatpush1.msra.mxu0 %v3449
          %6750 = vmatprep.subr.mxu0 0.0
          %6751 = vmatpush1.msra.mxu0 %v3448
          %6752 = vmatprep.subr.mxu0 0.0
          %6753 = vmatpush1.msra.mxu0 %v3447
          %6754 = vmatprep.subr.mxu0 0.0
          %6755 = vmatpush1.msra.mxu0 %v3446
          %6756 = vmatprep.subr.mxu0 0.0
          %6757 = vmatpush1.msra.mxu0 %v3445
          %6758 = vmatprep.subr.mxu0 0.0
          %6759 = vmatpush1.msra.mxu0 %v3444
          %6760 = vmatprep.subr.mxu0 0.0
          %6761 = vmatpush1.msra.mxu0 %v3443
          %6762 = vmatprep.subr.mxu0 0.0
          %6763 = vmatpush1.msra.mxu0 %v3442
          %6764 = vmatprep.subr.mxu0 0.0
          %6765 = vmatpush1.msra.mxu0 %v3441
          %6766 = vmatprep.subr.mxu0 0.0
          %6767 = vmatpush2.msra.mxu0 0.0
          %6768 = vmatprep.subr.mxu0 0.0
          %6769 = vmatpush2.msra.mxu0 0.0
          %6770 = vmatprep.subr.mxu0 0.0
          %6771 = vmatpush2.msra.mxu0 0.0
          %6772 = vmatprep.subr.mxu0 0.0
          %6773 = vmatpush2.msra.mxu0 0.0
          %6774 = vmatprep.subr.mxu0 0.0
          %6775 = vmatpush2.msra.mxu0 0.0
          %6776 = vmatprep.subr.mxu0 0.0
          %6777 = vmatpush2.msra.mxu0 0.0
          %6778 = vmatprep.subr.mxu0 0.0
          %6779 = vmatpush2.msra.mxu0 0.0
          %6780 = vmatprep.subr.mxu0 0.0
          %6781 = vmatpush2.msra.mxu0 0.0
          %6782 = vmatprep.subr.mxu0 0.0
          %6783 = vmatpush2.msra.mxu0 0.0
          %6784 = vmatprep.subr.mxu0 0.0
          %6785 = vmatpush2.msra.mxu0 0.0
          %6786 = vmatprep.subr.mxu0 0.0
          %6787 = vmatpush2.msra.mxu0 0.0
          %6788 = vmatprep.subr.mxu0 0.0
          %6789 = vmatpush2.msra.mxu0 0.0
          %6790 = vmatprep.subr.mxu0 0.0
          %6791 = vmatpush2.msra.mxu0 0.0
          %6792 = vmatprep.subr.mxu0 0.0
          %6793 = vmatpush2.msra.mxu0 0.0
          %6794 = vmatprep.subr.mxu0 0.0
          %6795 = vmatpush2.msra.mxu0 0.0
          %6796 = vmatprep.subr.mxu0 0.0
          %6797 = vmatpush2.msra.mxu0 0.0
          %6798 = vmatprep.mubr.f32.mxu0 0.0
          %6799 = vmatmul.mubr.f32.gmra.mxu0 %v5548
          %v6800 = vpop.f32.mrf.mxu0
          %v6801 = vadd.f32 0.0, %v6800
          %v6802 = vpop.f32.mrf.mxu0
          %6803 = vmatprep.mubr.f32.mxu0 0.0
          %6804 = vmatmul.mubr.f32.gmra.mxu0 %v5550
          %v6805 = vpop.f32.mrf.mxu0
          %v6806 = vadd.f32 0.0, %v6805
          %v6807 = vpop.f32.mrf.mxu0
          %6808 = vmatprep.mubr.f32.mxu0 0.0
          %6809 = vmatmul.mubr.f32.gmra.mxu0 %v5552
          %v6810 = vpop.f32.mrf.mxu0
          %v6811 = vadd.f32 0.0, %v6810
          %v6812 = vpop.f32.mrf.mxu0
          %6813 = vmatprep.mubr.f32.mxu0 0.0
          %6814 = vmatmul.mubr.f32.gmra.mxu0 %v5554
          %v6815 = vpop.f32.mrf.mxu0
          %v6816 = vadd.f32 0.0, %v6815
          %v6817 = vpop.f32.mrf.mxu0
          %6818 = vmatprep.mubr.f32.mxu0 0.0
          %6819 = vmatmul.mubr.f32.gmra.mxu0 %v5556
          %v6820 = vpop.f32.mrf.mxu0
          %v6821 = vadd.f32 0.0, %v6820
          %v6822 = vpop.f32.mrf.mxu0
          %6823 = vmatprep.mubr.f32.mxu0 0.0
          %6824 = vmatmul.mubr.f32.gmra.mxu0 %v5558
          %v6825 = vpop.f32.mrf.mxu0
          %v6826 = vadd.f32 0.0, %v6825
          %v6827 = vpop.f32.mrf.mxu0
          %6828 = vmatprep.mubr.f32.mxu0 0.0
          %6829 = vmatmul.mubr.f32.gmra.mxu0 %v5560
          %v6830 = vpop.f32.mrf.mxu0
          %v6831 = vadd.f32 0.0, %v6830
          %v6832 = vpop.f32.mrf.mxu0
          %6833 = vmatprep.mubr.f32.mxu0 0.0
          %6834 = vmatmul.mubr.f32.gmra.mxu0 %v5562
          %v6835 = vpop.f32.mrf.mxu0
          %v6836 = vadd.f32 0.0, %v6835
          %v6837 = vpop.f32.mrf.mxu0
          %6838 = vmatprep.mubr.f32.mxu0 0.0
          %6839 = vmatmul.mubr.f32.gmra.mxu0 %v5564
          %v6840 = vpop.f32.mrf.mxu0
          %v6841 = vadd.f32 0.0, %v6840
          %v6842 = vpop.f32.mrf.mxu0
          %6843 = vmatprep.mubr.f32.mxu0 0.0
          %6844 = vmatmul.mubr.f32.gmra.mxu0 %v5566
          %v6845 = vpop.f32.mrf.mxu0
          %v6846 = vadd.f32 0.0, %v6845
          %v6847 = vpop.f32.mrf.mxu0
          %6848 = vmatprep.mubr.f32.mxu0 0.0
          %6849 = vmatmul.mubr.f32.gmra.mxu0 %v5568
          %v6850 = vpop.f32.mrf.mxu0
          %v6851 = vadd.f32 0.0, %v6850
          %v6852 = vpop.f32.mrf.mxu0
          %6853 = vmatprep.mubr.f32.mxu0 0.0
          %6854 = vmatmul.mubr.f32.gmra.mxu0 %v5570
          %v6855 = vpop.f32.mrf.mxu0
          %v6856 = vadd.f32 0.0, %v6855
          %v6857 = vpop.f32.mrf.mxu0
          %6858 = vmatprep.mubr.f32.mxu0 0.0
          %6859 = vmatmul.mubr.f32.gmra.mxu0 %v5572
          %v6860 = vpop.f32.mrf.mxu0
          %v6861 = vadd.f32 0.0, %v6860
          %v6862 = vpop.f32.mrf.mxu0
          %6863 = vmatprep.mubr.f32.mxu0 0.0
          %6864 = vmatmul.mubr.f32.gmra.mxu0 %v5574
          %v6865 = vpop.f32.mrf.mxu0
          %v6866 = vadd.f32 0.0, %v6865
          %v6867 = vpop.f32.mrf.mxu0
          %6868 = vmatprep.mubr.f32.mxu0 0.0
          %6869 = vmatmul.mubr.f32.gmra.mxu0 %v5576
          %v6870 = vpop.f32.mrf.mxu0
          %v6871 = vadd.f32 0.0, %v6870
          %v6872 = vpop.f32.mrf.mxu0
          %6873 = vmatprep.mubr.f32.mxu0 0.0
          %6874 = vmatmul.mubr.f32.gmra.mxu0 %v5578
          %v6875 = vpop.f32.mrf.mxu0
          %v6876 = vadd.f32 0.0, %v6875
          %v6877 = vpop.f32.mrf.mxu0
          %6878 = vdwg.mxu0
          %6879 = vmatprep.subr.mxu0 0.0
          %6880 = vmatpush1.msra.mxu0 %v3472
          %6881 = vmatprep.subr.mxu0 0.0
          %6882 = vmatpush1.msra.mxu0 %v3471
          %6883 = vmatprep.subr.mxu0 0.0
          %6884 = vmatpush1.msra.mxu0 %v3470
          %6885 = vmatprep.subr.mxu0 0.0
          %6886 = vmatpush1.msra.mxu0 %v3469
          %6887 = vmatprep.subr.mxu0 0.0
          %6888 = vmatpush1.msra.mxu0 %v3468
          %6889 = vmatprep.subr.mxu0 0.0
          %6890 = vmatpush1.msra.mxu0 %v3467
          %6891 = vmatprep.subr.mxu0 0.0
          %6892 = vmatpush1.msra.mxu0 %v3466
          %6893 = vmatprep.subr.mxu0 0.0
          %6894 = vmatpush1.msra.mxu0 %v3465
          %6895 = vmatprep.subr.mxu0 0.0
          %6896 = vmatpush1.msra.mxu0 %v3464
          %6897 = vmatprep.subr.mxu0 0.0
          %6898 = vmatpush1.msra.mxu0 %v3463
          %6899 = vmatprep.subr.mxu0 0.0
          %6900 = vmatpush1.msra.mxu0 %v3462
          %6901 = vmatprep.subr.mxu0 0.0
          %6902 = vmatpush1.msra.mxu0 %v3461
          %6903 = vmatprep.subr.mxu0 0.0
          %6904 = vmatpush1.msra.mxu0 %v3460
          %6905 = vmatprep.subr.mxu0 0.0
          %6906 = vmatpush1.msra.mxu0 %v3459
          %6907 = vmatprep.subr.mxu0 0.0
          %6908 = vmatpush1.msra.mxu0 %v3458
          %6909 = vmatprep.subr.mxu0 0.0
          %6910 = vmatpush1.msra.mxu0 %v3457
          %6911 = vmatprep.subr.mxu0 0.0
          %6912 = vmatpush2.msra.mxu0 0.0
          %6913 = vmatprep.subr.mxu0 0.0
          %6914 = vmatpush2.msra.mxu0 0.0
          %6915 = vmatprep.subr.mxu0 0.0
          %6916 = vmatpush2.msra.mxu0 0.0
          %6917 = vmatprep.subr.mxu0 0.0
          %6918 = vmatpush2.msra.mxu0 0.0
          %6919 = vmatprep.subr.mxu0 0.0
          %6920 = vmatpush2.msra.mxu0 0.0
          %6921 = vmatprep.subr.mxu0 0.0
          %6922 = vmatpush2.msra.mxu0 0.0
          %6923 = vmatprep.subr.mxu0 0.0
          %6924 = vmatpush2.msra.mxu0 0.0
          %6925 = vmatprep.subr.mxu0 0.0
          %6926 = vmatpush2.msra.mxu0 0.0
          %6927 = vmatprep.subr.mxu0 0.0
          %6928 = vmatpush2.msra.mxu0 0.0
          %6929 = vmatprep.subr.mxu0 0.0
          %6930 = vmatpush2.msra.mxu0 0.0
          %6931 = vmatprep.subr.mxu0 0.0
          %6932 = vmatpush2.msra.mxu0 0.0
          %6933 = vmatprep.subr.mxu0 0.0
          %6934 = vmatpush2.msra.mxu0 0.0
          %6935 = vmatprep.subr.mxu0 0.0
          %6936 = vmatpush2.msra.mxu0 0.0
          %6937 = vmatprep.subr.mxu0 0.0
          %6938 = vmatpush2.msra.mxu0 0.0
          %6939 = vmatprep.subr.mxu0 0.0
          %6940 = vmatpush2.msra.mxu0 0.0
          %6941 = vmatprep.subr.mxu0 0.0
          %6942 = vmatpush2.msra.mxu0 0.0
          %6943 = vmatprep.mubr.f32.mxu0 0.0
          %6944 = vmatmul.mubr.f32.gmra.mxu0 %v5580
          %v6945 = vpop.f32.mrf.mxu0
          %v6946 = vadd.f32 0.0, %v6945
          %v6947 = vpop.f32.mrf.mxu0
          %6948 = vmatprep.mubr.f32.mxu0 0.0
          %6949 = vmatmul.mubr.f32.gmra.mxu0 %v5582
          %v6950 = vpop.f32.mrf.mxu0
          %v6951 = vadd.f32 0.0, %v6950
          %v6952 = vpop.f32.mrf.mxu0
          %6953 = vmatprep.mubr.f32.mxu0 0.0
          %6954 = vmatmul.mubr.f32.gmra.mxu0 %v5584
          %v6955 = vpop.f32.mrf.mxu0
          %v6956 = vadd.f32 0.0, %v6955
          %v6957 = vpop.f32.mrf.mxu0
          %6958 = vmatprep.mubr.f32.mxu0 0.0
          %6959 = vmatmul.mubr.f32.gmra.mxu0 %v5586
          %v6960 = vpop.f32.mrf.mxu0
          %v6961 = vadd.f32 0.0, %v6960
          %v6962 = vpop.f32.mrf.mxu0
          %6963 = vmatprep.mubr.f32.mxu0 0.0
          %6964 = vmatmul.mubr.f32.gmra.mxu0 %v5588
          %v6965 = vpop.f32.mrf.mxu0
          %v6966 = vadd.f32 0.0, %v6965
          %v6967 = vpop.f32.mrf.mxu0
          %6968 = vmatprep.mubr.f32.mxu0 0.0
          %6969 = vmatmul.mubr.f32.gmra.mxu0 %v5590
          %v6970 = vpop.f32.mrf.mxu0
          %v6971 = vadd.f32 0.0, %v6970
          %v6972 = vpop.f32.mrf.mxu0
          %6973 = vmatprep.mubr.f32.mxu0 0.0
          %6974 = vmatmul.mubr.f32.gmra.mxu0 %v5592
          %v6975 = vpop.f32.mrf.mxu0
          %v6976 = vadd.f32 0.0, %v6975
          %v6977 = vpop.f32.mrf.mxu0
          %6978 = vmatprep.mubr.f32.mxu0 0.0
          %6979 = vmatmul.mubr.f32.gmra.mxu0 %v5594
          %v6980 = vpop.f32.mrf.mxu0
          %v6981 = vadd.f32 0.0, %v6980
          %v6982 = vpop.f32.mrf.mxu0
          %6983 = vmatprep.mubr.f32.mxu0 0.0
          %6984 = vmatmul.mubr.f32.gmra.mxu0 %v5596
          %v6985 = vpop.f32.mrf.mxu0
          %v6986 = vadd.f32 0.0, %v6985
          %v6987 = vpop.f32.mrf.mxu0
          %6988 = vmatprep.mubr.f32.mxu0 0.0
          %6989 = vmatmul.mubr.f32.gmra.mxu0 %v5598
          %v6990 = vpop.f32.mrf.mxu0
          %v6991 = vadd.f32 0.0, %v6990
          %v6992 = vpop.f32.mrf.mxu0
          %6993 = vmatprep.mubr.f32.mxu0 0.0
          %6994 = vmatmul.mubr.f32.gmra.mxu0 %v5600
          %v6995 = vpop.f32.mrf.mxu0
          %v6996 = vadd.f32 0.0, %v6995
          %v6997 = vpop.f32.mrf.mxu0
          %6998 = vmatprep.mubr.f32.mxu0 0.0
          %6999 = vmatmul.mubr.f32.gmra.mxu0 %v5602
          %v7000 = vpop.f32.mrf.mxu0
          %v7001 = vadd.f32 0.0, %v7000
          %v7002 = vpop.f32.mrf.mxu0
          %7003 = vmatprep.mubr.f32.mxu0 0.0
          %7004 = vmatmul.mubr.f32.gmra.mxu0 %v5604
          %v7005 = vpop.f32.mrf.mxu0
          %v7006 = vadd.f32 0.0, %v7005
          %v7007 = vpop.f32.mrf.mxu0
          %7008 = vmatprep.mubr.f32.mxu0 0.0
          %7009 = vmatmul.mubr.f32.gmra.mxu0 %v5606
          %v7010 = vpop.f32.mrf.mxu0
          %v7011 = vadd.f32 0.0, %v7010
          %v7012 = vpop.f32.mrf.mxu0
          %7013 = vmatprep.mubr.f32.mxu0 0.0
          %7014 = vmatmul.mubr.f32.gmra.mxu0 %v5608
          %v7015 = vpop.f32.mrf.mxu0
          %v7016 = vadd.f32 0.0, %v7015
          %v7017 = vpop.f32.mrf.mxu0
          %7018 = vmatprep.mubr.f32.mxu0 0.0
          %7019 = vmatmul.mubr.f32.gmra.mxu0 %v5610
          %v7020 = vpop.f32.mrf.mxu0
          %v7021 = vadd.f32 0.0, %v7020
          %v7022 = vpop.f32.mrf.mxu0
          %7023 = vdwg.mxu0
          %v7024 = vadd.f32 %v6380, %v6511
          %v7025 = vadd.f32 %v6381, %v6516
          %v7026 = vadd.f32 %v6382, %v6521
          %v7027 = vadd.f32 %v6383, %v6526
          %v7028 = vadd.f32 %v6384, %v6531
          %v7029 = vadd.f32 %v6385, %v6536
          %v7030 = vadd.f32 %v6386, %v6541
          %v7031 = vadd.f32 %v6387, %v6546
          %v7032 = vadd.f32 %v6388, %v6551
          %v7033 = vadd.f32 %v6389, %v6556
          %v7034 = vadd.f32 %v6390, %v6561
          %v7035 = vadd.f32 %v6391, %v6566
          %v7036 = vadd.f32 %v6392, %v6571
          %v7037 = vadd.f32 %v6393, %v6576
          %v7038 = vadd.f32 %v6394, %v6581
          %v7039 = vadd.f32 %v6395, %v6586
          %v7040 = vadd.f32 %v6396, %v6656
          %v7041 = vadd.f32 %v6397, %v6661
          %v7042 = vadd.f32 %v6398, %v6666
          %v7043 = vadd.f32 %v6399, %v6671
          %v7044 = vadd.f32 %v6400, %v6676
          %v7045 = vadd.f32 %v6401, %v6681
          %v7046 = vadd.f32 %v6402, %v6686
          %v7047 = vadd.f32 %v6403, %v6691
          %v7048 = vadd.f32 %v6404, %v6696
          %v7049 = vadd.f32 %v6405, %v6701
          %v7050 = vadd.f32 %v6406, %v6706
          %v7051 = vadd.f32 %v6407, %v6711
          %v7052 = vadd.f32 %v6408, %v6716
          %v7053 = vadd.f32 %v6409, %v6721
          %v7054 = vadd.f32 %v6410, %v6726
          %v7055 = vadd.f32 %v6411, %v6731
          %v7056 = vadd.f32 %v6412, %v6801
          %v7057 = vadd.f32 %v6413, %v6806
          %v7058 = vadd.f32 %v6414, %v6811
          %v7059 = vadd.f32 %v6415, %v6816
          %v7060 = vadd.f32 %v6416, %v6821
          %v7061 = vadd.f32 %v6417, %v6826
          %v7062 = vadd.f32 %v6418, %v6831
          %v7063 = vadd.f32 %v6419, %v6836
          %v7064 = vadd.f32 %v6420, %v6841
          %v7065 = vadd.f32 %v6421, %v6846
          %v7066 = vadd.f32 %v6422, %v6851
          %v7067 = vadd.f32 %v6423, %v6856
          %v7068 = vadd.f32 %v6424, %v6861
          %v7069 = vadd.f32 %v6425, %v6866
          %v7070 = vadd.f32 %v6426, %v6871
          %v7071 = vadd.f32 %v6427, %v6876
          %v7072 = vadd.f32 %v6428, %v6946
          %v7073 = vadd.f32 %v6429, %v6951
          %v7074 = vadd.f32 %v6430, %v6956
          %v7075 = vadd.f32 %v6431, %v6961
          %v7076 = vadd.f32 %v6432, %v6966
          %v7077 = vadd.f32 %v6433, %v6971
          %v7078 = vadd.f32 %v6434, %v6976
          %v7079 = vadd.f32 %v6435, %v6981
          %v7080 = vadd.f32 %v6436, %v6986
          %v7081 = vadd.f32 %v6437, %v6991
          %v7082 = vadd.f32 %v6438, %v6996
          %v7083 = vadd.f32 %v6439, %v7001
          %v7084 = vadd.f32 %v6440, %v7006
          %v7085 = vadd.f32 %v6441, %v7011
          %v7086 = vadd.f32 %v6442, %v7016
          %v7087 = vadd.f32 %v6443, %v7021
          %7088 = vst.msk [vmem:[#allocation5] sm:$0xff] %vm2639, %v7024
          %7089 = vst.msk [vmem:[#allocation5 + $0x8] sm:$0xff] %vm2639, %v7025
          %7090 = vst.msk [vmem:[#allocation5 + $0x10] sm:$0xff] %vm2639, %v7026
          %7091 = vst.msk [vmem:[#allocation5 + $0x18] sm:$0xff] %vm2639, %v7027
          %7092 = vst.msk [vmem:[#allocation5 + $0x20] sm:$0xff] %vm2639, %v7028
          %7093 = vst.msk [vmem:[#allocation5 + $0x28] sm:$0xff] %vm2639, %v7029
          %7094 = vst.msk [vmem:[#allocation5 + $0x30] sm:$0xff] %vm2639, %v7030
          %7095 = vst.msk [vmem:[#allocation5 + $0x38] sm:$0xff] %vm2639, %v7031
          %7096 = vst.msk [vmem:[#allocation5 + $0x40] sm:$0xff] %vm2639, %v7032
          %7097 = vst.msk [vmem:[#allocation5 + $0x48] sm:$0xff] %vm2639, %v7033
          %7098 = vst.msk [vmem:[#allocation5 + $0x50] sm:$0xff] %vm2639, %v7034
          %7099 = vst.msk [vmem:[#allocation5 + $0x58] sm:$0xff] %vm2639, %v7035
          %7100 = vst.msk [vmem:[#allocation5 + $0x60] sm:$0xff] %vm2639, %v7036
          %7101 = vst.msk [vmem:[#allocation5 + $0x68] sm:$0xff] %vm2639, %v7037
          %7102 = vst.msk [vmem:[#allocation5 + $0x70] sm:$0xff] %vm2639, %v7038
          %7103 = vst.msk [vmem:[#allocation5 + $0x78] sm:$0xff] %vm2639, %v7039
          %7104 = vst.msk [vmem:[#allocation5 + $0x80] sm:$0xff] %vm2639, %v7040
          %7105 = vst.msk [vmem:[#allocation5 + $0x88] sm:$0xff] %vm2639, %v7041
          %7106 = vst.msk [vmem:[#allocation5 + $0x90] sm:$0xff] %vm2639, %v7042
          %7107 = vst.msk [vmem:[#allocation5 + $0x98] sm:$0xff] %vm2639, %v7043
          %7108 = vst.msk [vmem:[#allocation5 + $0xa0] sm:$0xff] %vm2639, %v7044
          %7109 = vst.msk [vmem:[#allocation5 + $0xa8] sm:$0xff] %vm2639, %v7045
          %7110 = vst.msk [vmem:[#allocation5 + $0xb0] sm:$0xff] %vm2639, %v7046
          %7111 = vst.msk [vmem:[#allocation5 + $0xb8] sm:$0xff] %vm2639, %v7047
          %7112 = vst.msk [vmem:[#allocation5 + $0xc0] sm:$0xff] %vm2639, %v7048
          %7113 = vst.msk [vmem:[#allocation5 + $0xc8] sm:$0xff] %vm2639, %v7049
          %7114 = vst.msk [vmem:[#allocation5 + $0xd0] sm:$0xff] %vm2639, %v7050
          %7115 = vst.msk [vmem:[#allocation5 + $0xd8] sm:$0xff] %vm2639, %v7051
          %7116 = vst.msk [vmem:[#allocation5 + $0xe0] sm:$0xff] %vm2639, %v7052
          %7117 = vst.msk [vmem:[#allocation5 + $0xe8] sm:$0xff] %vm2639, %v7053
          %7118 = vst.msk [vmem:[#allocation5 + $0xf0] sm:$0xff] %vm2639, %v7054
          %7119 = vst.msk [vmem:[#allocation5 + $0xf8] sm:$0xff] %vm2639, %v7055
          %7120 = vst.msk [vmem:[#allocation5 + $0x100] sm:$0xff] %vm2639, %v7056
          %7121 = vst.msk [vmem:[#allocation5 + $0x108] sm:$0xff] %vm2639, %v7057
          %7122 = vst.msk [vmem:[#allocation5 + $0x110] sm:$0xff] %vm2639, %v7058
          %7123 = vst.msk [vmem:[#allocation5 + $0x118] sm:$0xff] %vm2639, %v7059
          %7124 = vst.msk [vmem:[#allocation5 + $0x120] sm:$0xff] %vm2639, %v7060
          %7125 = vst.msk [vmem:[#allocation5 + $0x128] sm:$0xff] %vm2639, %v7061
          %7126 = vst.msk [vmem:[#allocation5 + $0x130] sm:$0xff] %vm2639, %v7062
          %7127 = vst.msk [vmem:[#allocation5 + $0x138] sm:$0xff] %vm2639, %v7063
          %7128 = vst.msk [vmem:[#allocation5 + $0x140] sm:$0xff] %vm2639, %v7064
          %7129 = vst.msk [vmem:[#allocation5 + $0x148] sm:$0xff] %vm2639, %v7065
          %7130 = vst.msk [vmem:[#allocation5 + $0x150] sm:$0xff] %vm2639, %v7066
          %7131 = vst.msk [vmem:[#allocation5 + $0x158] sm:$0xff] %vm2639, %v7067
          %7132 = vst.msk [vmem:[#allocation5 + $0x160] sm:$0xff] %vm2639, %v7068
          %7133 = vst.msk [vmem:[#allocation5 + $0x168] sm:$0xff] %vm2639, %v7069
          %7134 = vst.msk [vmem:[#allocation5 + $0x170] sm:$0xff] %vm2639, %v7070
          %7135 = vst.msk [vmem:[#allocation5 + $0x178] sm:$0xff] %vm2639, %v7071
          %7136 = vst.msk [vmem:[#allocation5 + $0x180] sm:$0xff] %vm2639, %v7072
          %7137 = vst.msk [vmem:[#allocation5 + $0x188] sm:$0xff] %vm2639, %v7073
          %7138 = vst.msk [vmem:[#allocation5 + $0x190] sm:$0xff] %vm2639, %v7074
          %7139 = vst.msk [vmem:[#allocation5 + $0x198] sm:$0xff] %vm2639, %v7075
          %7140 = vst.msk [vmem:[#allocation5 + $0x1a0] sm:$0xff] %vm2639, %v7076
          %7141 = vst.msk [vmem:[#allocation5 + $0x1a8] sm:$0xff] %vm2639, %v7077
          %7142 = vst.msk [vmem:[#allocation5 + $0x1b0] sm:$0xff] %vm2639, %v7078
          %7143 = vst.msk [vmem:[#allocation5 + $0x1b8] sm:$0xff] %vm2639, %v7079
          %7144 = vst.msk [vmem:[#allocation5 + $0x1c0] sm:$0xff] %vm2639, %v7080
          %7145 = vst.msk [vmem:[#allocation5 + $0x1c8] sm:$0xff] %vm2639, %v7081
          %7146 = vst.msk [vmem:[#allocation5 + $0x1d0] sm:$0xff] %vm2639, %v7082
          %7147 = vst.msk [vmem:[#allocation5 + $0x1d8] sm:$0xff] %vm2639, %v7083
          %7148 = vst.msk [vmem:[#allocation5 + $0x1e0] sm:$0xff] %vm2639, %v7084
          %7149 = vst.msk [vmem:[#allocation5 + $0x1e8] sm:$0xff] %vm2639, %v7085
          %7150 = vst.msk [vmem:[#allocation5 + $0x1f0] sm:$0xff] %vm2639, %v7086
          %7151 = vst.msk [vmem:[#allocation5 + $0x1f8] sm:$0xff] %vm2639, %v7087
          %7152 = vst.msk [vmem:[#allocation3] sm:$0xff] %vm5931, %v4843
          %7153 = vst.msk [vmem:[#allocation3 + $0x8] sm:$0xff] %vm5931, %v4844
          %7154 = vst.msk [vmem:[#allocation3 + $0x10] sm:$0xff] %vm5931, %v4845
          %7155 = vst.msk [vmem:[#allocation3 + $0x18] sm:$0xff] %vm5931, %v4846
          %7156 = vst.msk [vmem:[#allocation3 + $0x20] sm:$0xff] %vm5931, %v4847
          %7157 = vst.msk [vmem:[#allocation3 + $0x28] sm:$0xff] %vm5931, %v4848
          %7158 = vst.msk [vmem:[#allocation3 + $0x30] sm:$0xff] %vm5931, %v4849
          %7159 = vst.msk [vmem:[#allocation3 + $0x38] sm:$0xff] %vm5931, %v4850
          %7160 = vst.msk [vmem:[#allocation3 + $0x40] sm:$0xff] %vm5931, %v4851
          %7161 = vst.msk [vmem:[#allocation3 + $0x48] sm:$0xff] %vm5931, %v4852
          %7162 = vst.msk [vmem:[#allocation3 + $0x50] sm:$0xff] %vm5931, %v4853
          %7163 = vst.msk [vmem:[#allocation3 + $0x58] sm:$0xff] %vm5931, %v4854
          %7164 = vst.msk [vmem:[#allocation3 + $0x60] sm:$0xff] %vm5931, %v4855
          %7165 = vst.msk [vmem:[#allocation3 + $0x68] sm:$0xff] %vm5931, %v4856
          %7166 = vst.msk [vmem:[#allocation3 + $0x70] sm:$0xff] %vm5931, %v4857
          %7167 = vst.msk [vmem:[#allocation3 + $0x78] sm:$0xff] %vm5931, %v4858
          %7168 = vst.msk [vmem:[#allocation3 + $0x80] sm:$0xff] %vm5931, %v4859
          %7169 = vst.msk [vmem:[#allocation3 + $0x88] sm:$0xff] %vm5931, %v4860
          %7170 = vst.msk [vmem:[#allocation3 + $0x90] sm:$0xff] %vm5931, %v4861
          %7171 = vst.msk [vmem:[#allocation3 + $0x98] sm:$0xff] %vm5931, %v4862
          %7172 = vst.msk [vmem:[#allocation3 + $0xa0] sm:$0xff] %vm5931, %v4863
          %7173 = vst.msk [vmem:[#allocation3 + $0xa8] sm:$0xff] %vm5931, %v4864
          %7174 = vst.msk [vmem:[#allocation3 + $0xb0] sm:$0xff] %vm5931, %v4865
          %7175 = vst.msk [vmem:[#allocation3 + $0xb8] sm:$0xff] %vm5931, %v4866
          %7176 = vst.msk [vmem:[#allocation3 + $0xc0] sm:$0xff] %vm5931, %v4867
          %7177 = vst.msk [vmem:[#allocation3 + $0xc8] sm:$0xff] %vm5931, %v4868
          %7178 = vst.msk [vmem:[#allocation3 + $0xd0] sm:$0xff] %vm5931, %v4869
          %7179 = vst.msk [vmem:[#allocation3 + $0xd8] sm:$0xff] %vm5931, %v4870
          %7180 = vst.msk [vmem:[#allocation3 + $0xe0] sm:$0xff] %vm5931, %v4871
          %7181 = vst.msk [vmem:[#allocation3 + $0xe8] sm:$0xff] %vm5931, %v4872
          %7182 = vst.msk [vmem:[#allocation3 + $0xf0] sm:$0xff] %vm5931, %v4873
          %7183 = vst.msk [vmem:[#allocation3 + $0xf8] sm:$0xff] %vm5931, %v4874
          %7184 = vst.msk [vmem:[#allocation3 + $0x100] sm:$0xff] %vm5931, %v4875
          %7185 = vst.msk [vmem:[#allocation3 + $0x108] sm:$0xff] %vm5931, %v4876
          %7186 = vst.msk [vmem:[#allocation3 + $0x110] sm:$0xff] %vm5931, %v4877
          %7187 = vst.msk [vmem:[#allocation3 + $0x118] sm:$0xff] %vm5931, %v4878
          %7188 = vst.msk [vmem:[#allocation3 + $0x120] sm:$0xff] %vm5931, %v4879
          %7189 = vst.msk [vmem:[#allocation3 + $0x128] sm:$0xff] %vm5931, %v4880
          %7190 = vst.msk [vmem:[#allocation3 + $0x130] sm:$0xff] %vm5931, %v4881
          %7191 = vst.msk [vmem:[#allocation3 + $0x138] sm:$0xff] %vm5931, %v4882
          %7192 = vst.msk [vmem:[#allocation3 + $0x140] sm:$0xff] %vm5931, %v4883
          %7193 = vst.msk [vmem:[#allocation3 + $0x148] sm:$0xff] %vm5931, %v4884
          %7194 = vst.msk [vmem:[#allocation3 + $0x150] sm:$0xff] %vm5931, %v4885
          %7195 = vst.msk [vmem:[#allocation3 + $0x158] sm:$0xff] %vm5931, %v4886
          %7196 = vst.msk [vmem:[#allocation3 + $0x160] sm:$0xff] %vm5931, %v4887
          %7197 = vst.msk [vmem:[#allocation3 + $0x168] sm:$0xff] %vm5931, %v4888
          %7198 = vst.msk [vmem:[#allocation3 + $0x170] sm:$0xff] %vm5931, %v4889
          %7199 = vst.msk [vmem:[#allocation3 + $0x178] sm:$0xff] %vm5931, %v4890
          %7200 = vst.msk [vmem:[#allocation3 + $0x180] sm:$0xff] %vm5931, %v4891
          %7201 = vst.msk [vmem:[#allocation3 + $0x188] sm:$0xff] %vm5931, %v4892
          %7202 = vst.msk [vmem:[#allocation3 + $0x190] sm:$0xff] %vm5931, %v4893
          %7203 = vst.msk [vmem:[#allocation3 + $0x198] sm:$0xff] %vm5931, %v4894
          %7204 = vst.msk [vmem:[#allocation3 + $0x1a0] sm:$0xff] %vm5931, %v4895
          %7205 = vst.msk [vmem:[#allocation3 + $0x1a8] sm:$0xff] %vm5931, %v4896
          %7206 = vst.msk [vmem:[#allocation3 + $0x1b0] sm:$0xff] %vm5931, %v4897
          %7207 = vst.msk [vmem:[#allocation3 + $0x1b8] sm:$0xff] %vm5931, %v4898
          %7208 = vst.msk [vmem:[#allocation3 + $0x1c0] sm:$0xff] %vm5931, %v4899
          %7209 = vst.msk [vmem:[#allocation3 + $0x1c8] sm:$0xff] %vm5931, %v4900
          %7210 = vst.msk [vmem:[#allocation3 + $0x1d0] sm:$0xff] %vm5931, %v4901
          %7211 = vst.msk [vmem:[#allocation3 + $0x1d8] sm:$0xff] %vm5931, %v4902
          %7212 = vst.msk [vmem:[#allocation3 + $0x1e0] sm:$0xff] %vm5931, %v4903
          %7213 = vst.msk [vmem:[#allocation3 + $0x1e8] sm:$0xff] %vm5931, %v4904
          %7214 = vst.msk [vmem:[#allocation3 + $0x1f0] sm:$0xff] %vm5931, %v4905
          %7215 = vst.msk [vmem:[#allocation3 + $0x1f8] sm:$0xff] %vm5931, %v4906
        $region174: #{multi_head_attention.4} parent=153 // pred_fallthru
          _
        %p7216 = scmp.eq.s32.totalorder %s26, 1
        // Predicated region
        $region175: #{multi_head_attention.4} parent=153 // pred_check
          %p7217 = pneg %p7216
        $region176: #{multi_head_attention.4} parent=153 // pred_check_branch
          %7219 = sbr.rel (%p7217) target = $region178
        $region177: #{multi_head_attention.4} parent=153 // pred_region
          %v7220 = vld [vmem:[#allocation4] sm:$0xff]
          %v7221 = vld [vmem:[#allocation4 + $0x8] sm:$0xff]
          %v7222 = vld [vmem:[#allocation4 + $0x10] sm:$0xff]
          %v7223 = vld [vmem:[#allocation4 + $0x18] sm:$0xff]
          %v7224 = vld [vmem:[#allocation4 + $0x20] sm:$0xff]
          %v7225 = vld [vmem:[#allocation4 + $0x28] sm:$0xff]
          %v7226 = vld [vmem:[#allocation4 + $0x30] sm:$0xff]
          %v7227 = vld [vmem:[#allocation4 + $0x38] sm:$0xff]
          %v7228 = vld [vmem:[#allocation4 + $0x40] sm:$0xff]
          %v7229 = vld [vmem:[#allocation4 + $0x48] sm:$0xff]
          %v7230 = vld [vmem:[#allocation4 + $0x50] sm:$0xff]
          %v7231 = vld [vmem:[#allocation4 + $0x58] sm:$0xff]
          %v7232 = vld [vmem:[#allocation4 + $0x60] sm:$0xff]
          %v7233 = vld [vmem:[#allocation4 + $0x68] sm:$0xff]
          %v7234 = vld [vmem:[#allocation4 + $0x70] sm:$0xff]
          %v7235 = vld [vmem:[#allocation4 + $0x78] sm:$0xff]
          %v7236 = vld [vmem:[#allocation4 + $0x80] sm:$0xff]
          %v7237 = vld [vmem:[#allocation4 + $0x88] sm:$0xff]
          %v7238 = vld [vmem:[#allocation4 + $0x90] sm:$0xff]
          %v7239 = vld [vmem:[#allocation4 + $0x98] sm:$0xff]
          %v7240 = vld [vmem:[#allocation4 + $0xa0] sm:$0xff]
          %v7241 = vld [vmem:[#allocation4 + $0xa8] sm:$0xff]
          %v7242 = vld [vmem:[#allocation4 + $0xb0] sm:$0xff]
          %v7243 = vld [vmem:[#allocation4 + $0xb8] sm:$0xff]
          %v7244 = vld [vmem:[#allocation4 + $0xc0] sm:$0xff]
          %v7245 = vld [vmem:[#allocation4 + $0xc8] sm:$0xff]
          %v7246 = vld [vmem:[#allocation4 + $0xd0] sm:$0xff]
          %v7247 = vld [vmem:[#allocation4 + $0xd8] sm:$0xff]
          %v7248 = vld [vmem:[#allocation4 + $0xe0] sm:$0xff]
          %v7249 = vld [vmem:[#allocation4 + $0xe8] sm:$0xff]
          %v7250 = vld [vmem:[#allocation4 + $0xf0] sm:$0xff]
          %v7251 = vld [vmem:[#allocation4 + $0xf8] sm:$0xff]
          %v7252 = vld [vmem:[#allocation4 + $0x100] sm:$0xff]
          %v7253 = vld [vmem:[#allocation4 + $0x108] sm:$0xff]
          %v7254 = vld [vmem:[#allocation4 + $0x110] sm:$0xff]
          %v7255 = vld [vmem:[#allocation4 + $0x118] sm:$0xff]
          %v7256 = vld [vmem:[#allocation4 + $0x120] sm:$0xff]
          %v7257 = vld [vmem:[#allocation4 + $0x128] sm:$0xff]
          %v7258 = vld [vmem:[#allocation4 + $0x130] sm:$0xff]
          %v7259 = vld [vmem:[#allocation4 + $0x138] sm:$0xff]
          %v7260 = vld [vmem:[#allocation4 + $0x140] sm:$0xff]
          %v7261 = vld [vmem:[#allocation4 + $0x148] sm:$0xff]
          %v7262 = vld [vmem:[#allocation4 + $0x150] sm:$0xff]
          %v7263 = vld [vmem:[#allocation4 + $0x158] sm:$0xff]
          %v7264 = vld [vmem:[#allocation4 + $0x160] sm:$0xff]
          %v7265 = vld [vmem:[#allocation4 + $0x168] sm:$0xff]
          %v7266 = vld [vmem:[#allocation4 + $0x170] sm:$0xff]
          %v7267 = vld [vmem:[#allocation4 + $0x178] sm:$0xff]
          %v7268 = vld [vmem:[#allocation4 + $0x180] sm:$0xff]
          %v7269 = vld [vmem:[#allocation4 + $0x188] sm:$0xff]
          %v7270 = vld [vmem:[#allocation4 + $0x190] sm:$0xff]
          %v7271 = vld [vmem:[#allocation4 + $0x198] sm:$0xff]
          %v7272 = vld [vmem:[#allocation4 + $0x1a0] sm:$0xff]
          %v7273 = vld [vmem:[#allocation4 + $0x1a8] sm:$0xff]
          %v7274 = vld [vmem:[#allocation4 + $0x1b0] sm:$0xff]
          %v7275 = vld [vmem:[#allocation4 + $0x1b8] sm:$0xff]
          %v7276 = vld [vmem:[#allocation4 + $0x1c0] sm:$0xff]
          %v7277 = vld [vmem:[#allocation4 + $0x1c8] sm:$0xff]
          %v7278 = vld [vmem:[#allocation4 + $0x1d0] sm:$0xff]
          %v7279 = vld [vmem:[#allocation4 + $0x1d8] sm:$0xff]
          %v7280 = vld [vmem:[#allocation4 + $0x1e0] sm:$0xff]
          %v7281 = vld [vmem:[#allocation4 + $0x1e8] sm:$0xff]
          %v7282 = vld [vmem:[#allocation4 + $0x1f0] sm:$0xff]
          %v7283 = vld [vmem:[#allocation4 + $0x1f8] sm:$0xff]
          %v7284 = vrcp.pop %v7220
          %v7285 = vrcp.pop %v7221
          %v7286 = vrcp.pop %v7222
          %v7287 = vrcp.pop %v7223
          %v7288 = vrcp.pop %v7224
          %v7289 = vrcp.pop %v7225
          %v7290 = vrcp.pop %v7226
          %v7291 = vrcp.pop %v7227
          %v7292 = vrcp.pop %v7228
          %v7293 = vrcp.pop %v7229
          %v7294 = vrcp.pop %v7230
          %v7295 = vrcp.pop %v7231
          %v7296 = vrcp.pop %v7232
          %v7297 = vrcp.pop %v7233
          %v7298 = vrcp.pop %v7234
          %v7299 = vrcp.pop %v7235
          %v7300 = vrcp.pop %v7236
          %v7301 = vrcp.pop %v7237
          %v7302 = vrcp.pop %v7238
          %v7303 = vrcp.pop %v7239
          %v7304 = vrcp.pop %v7240
          %v7305 = vrcp.pop %v7241
          %v7306 = vrcp.pop %v7242
          %v7307 = vrcp.pop %v7243
          %v7308 = vrcp.pop %v7244
          %v7309 = vrcp.pop %v7245
          %v7310 = vrcp.pop %v7246
          %v7311 = vrcp.pop %v7247
          %v7312 = vrcp.pop %v7248
          %v7313 = vrcp.pop %v7249
          %v7314 = vrcp.pop %v7250
          %v7315 = vrcp.pop %v7251
          %v7316 = vrcp.pop %v7252
          %v7317 = vrcp.pop %v7253
          %v7318 = vrcp.pop %v7254
          %v7319 = vrcp.pop %v7255
          %v7320 = vrcp.pop %v7256
          %v7321 = vrcp.pop %v7257
          %v7322 = vrcp.pop %v7258
          %v7323 = vrcp.pop %v7259
          %v7324 = vrcp.pop %v7260
          %v7325 = vrcp.pop %v7261
          %v7326 = vrcp.pop %v7262
          %v7327 = vrcp.pop %v7263
          %v7328 = vrcp.pop %v7264
          %v7329 = vrcp.pop %v7265
          %v7330 = vrcp.pop %v7266
          %v7331 = vrcp.pop %v7267
          %v7332 = vrcp.pop %v7268
          %v7333 = vrcp.pop %v7269
          %v7334 = vrcp.pop %v7270
          %v7335 = vrcp.pop %v7271
          %v7336 = vrcp.pop %v7272
          %v7337 = vrcp.pop %v7273
          %v7338 = vrcp.pop %v7274
          %v7339 = vrcp.pop %v7275
          %v7340 = vrcp.pop %v7276
          %v7341 = vrcp.pop %v7277
          %v7342 = vrcp.pop %v7278
          %v7343 = vrcp.pop %v7279
          %v7344 = vrcp.pop %v7280
          %v7345 = vrcp.pop %v7281
          %v7346 = vrcp.pop %v7282
          %v7347 = vrcp.pop %v7283
          %v7348 = vld [vmem:[#allocation5] sm:$0xff]
          %v7349 = vld [vmem:[#allocation5 + $0x8] sm:$0xff]
          %v7350 = vld [vmem:[#allocation5 + $0x10] sm:$0xff]
          %v7351 = vld [vmem:[#allocation5 + $0x18] sm:$0xff]
          %v7352 = vld [vmem:[#allocation5 + $0x20] sm:$0xff]
          %v7353 = vld [vmem:[#allocation5 + $0x28] sm:$0xff]
          %v7354 = vld [vmem:[#allocation5 + $0x30] sm:$0xff]
          %v7355 = vld [vmem:[#allocation5 + $0x38] sm:$0xff]
          %v7356 = vld [vmem:[#allocation5 + $0x40] sm:$0xff]
          %v7357 = vld [vmem:[#allocation5 + $0x48] sm:$0xff]
          %v7358 = vld [vmem:[#allocation5 + $0x50] sm:$0xff]
          %v7359 = vld [vmem:[#allocation5 + $0x58] sm:$0xff]
          %v7360 = vld [vmem:[#allocation5 + $0x60] sm:$0xff]
          %v7361 = vld [vmem:[#allocation5 + $0x68] sm:$0xff]
          %v7362 = vld [vmem:[#allocation5 + $0x70] sm:$0xff]
          %v7363 = vld [vmem:[#allocation5 + $0x78] sm:$0xff]
          %v7364 = vld [vmem:[#allocation5 + $0x80] sm:$0xff]
          %v7365 = vld [vmem:[#allocation5 + $0x88] sm:$0xff]
          %v7366 = vld [vmem:[#allocation5 + $0x90] sm:$0xff]
          %v7367 = vld [vmem:[#allocation5 + $0x98] sm:$0xff]
          %v7368 = vld [vmem:[#allocation5 + $0xa0] sm:$0xff]
          %v7369 = vld [vmem:[#allocation5 + $0xa8] sm:$0xff]
          %v7370 = vld [vmem:[#allocation5 + $0xb0] sm:$0xff]
          %v7371 = vld [vmem:[#allocation5 + $0xb8] sm:$0xff]
          %v7372 = vld [vmem:[#allocation5 + $0xc0] sm:$0xff]
          %v7373 = vld [vmem:[#allocation5 + $0xc8] sm:$0xff]
          %v7374 = vld [vmem:[#allocation5 + $0xd0] sm:$0xff]
          %v7375 = vld [vmem:[#allocation5 + $0xd8] sm:$0xff]
          %v7376 = vld [vmem:[#allocation5 + $0xe0] sm:$0xff]
          %v7377 = vld [vmem:[#allocation5 + $0xe8] sm:$0xff]
          %v7378 = vld [vmem:[#allocation5 + $0xf0] sm:$0xff]
          %v7379 = vld [vmem:[#allocation5 + $0xf8] sm:$0xff]
          %v7380 = vld [vmem:[#allocation5 + $0x100] sm:$0xff]
          %v7381 = vld [vmem:[#allocation5 + $0x108] sm:$0xff]
          %v7382 = vld [vmem:[#allocation5 + $0x110] sm:$0xff]
          %v7383 = vld [vmem:[#allocation5 + $0x118] sm:$0xff]
          %v7384 = vld [vmem:[#allocation5 + $0x120] sm:$0xff]
          %v7385 = vld [vmem:[#allocation5 + $0x128] sm:$0xff]
          %v7386 = vld [vmem:[#allocation5 + $0x130] sm:$0xff]
          %v7387 = vld [vmem:[#allocation5 + $0x138] sm:$0xff]
          %v7388 = vld [vmem:[#allocation5 + $0x140] sm:$0xff]
          %v7389 = vld [vmem:[#allocation5 + $0x148] sm:$0xff]
          %v7390 = vld [vmem:[#allocation5 + $0x150] sm:$0xff]
          %v7391 = vld [vmem:[#allocation5 + $0x158] sm:$0xff]
          %v7392 = vld [vmem:[#allocation5 + $0x160] sm:$0xff]
          %v7393 = vld [vmem:[#allocation5 + $0x168] sm:$0xff]
          %v7394 = vld [vmem:[#allocation5 + $0x170] sm:$0xff]
          %v7395 = vld [vmem:[#allocation5 + $0x178] sm:$0xff]
          %v7396 = vld [vmem:[#allocation5 + $0x180] sm:$0xff]
          %v7397 = vld [vmem:[#allocation5 + $0x188] sm:$0xff]
          %v7398 = vld [vmem:[#allocation5 + $0x190] sm:$0xff]
          %v7399 = vld [vmem:[#allocation5 + $0x198] sm:$0xff]
          %v7400 = vld [vmem:[#allocation5 + $0x1a0] sm:$0xff]
          %v7401 = vld [vmem:[#allocation5 + $0x1a8] sm:$0xff]
          %v7402 = vld [vmem:[#allocation5 + $0x1b0] sm:$0xff]
          %v7403 = vld [vmem:[#allocation5 + $0x1b8] sm:$0xff]
          %v7404 = vld [vmem:[#allocation5 + $0x1c0] sm:$0xff]
          %v7405 = vld [vmem:[#allocation5 + $0x1c8] sm:$0xff]
          %v7406 = vld [vmem:[#allocation5 + $0x1d0] sm:$0xff]
          %v7407 = vld [vmem:[#allocation5 + $0x1d8] sm:$0xff]
          %v7408 = vld [vmem:[#allocation5 + $0x1e0] sm:$0xff]
          %v7409 = vld [vmem:[#allocation5 + $0x1e8] sm:$0xff]
          %v7410 = vld [vmem:[#allocation5 + $0x1f0] sm:$0xff]
          %v7411 = vld [vmem:[#allocation5 + $0x1f8] sm:$0xff]
          %7413 = vset.pattern.permute.xlu0 0
          %7414 = vperm.xlu0 %7413, %v7284
          %v7415 = vpop.permute.xlu0 %7414
          %7418 = vset.pattern.permute.xlu0 0
          %7419 = vperm.xlu0 %7418, %v7285
          %v7420 = vpop.permute.xlu0 %7419
          %7423 = vset.pattern.permute.xlu0 0
          %7424 = vperm.xlu0 %7423, %v7286
          %v7425 = vpop.permute.xlu0 %7424
          %7428 = vset.pattern.permute.xlu0 0
          %7429 = vperm.xlu0 %7428, %v7287
          %v7430 = vpop.permute.xlu0 %7429
          %7433 = vset.pattern.permute.xlu0 0
          %7434 = vperm.xlu0 %7433, %v7288
          %v7435 = vpop.permute.xlu0 %7434
          %7438 = vset.pattern.permute.xlu0 0
          %7439 = vperm.xlu0 %7438, %v7289
          %v7440 = vpop.permute.xlu0 %7439
          %7443 = vset.pattern.permute.xlu0 0
          %7444 = vperm.xlu0 %7443, %v7290
          %v7445 = vpop.permute.xlu0 %7444
          %7448 = vset.pattern.permute.xlu0 0
          %7449 = vperm.xlu0 %7448, %v7291
          %v7450 = vpop.permute.xlu0 %7449
          %7453 = vset.pattern.permute.xlu0 0
          %7454 = vperm.xlu0 %7453, %v7292
          %v7455 = vpop.permute.xlu0 %7454
          %7458 = vset.pattern.permute.xlu0 0
          %7459 = vperm.xlu0 %7458, %v7293
          %v7460 = vpop.permute.xlu0 %7459
          %7463 = vset.pattern.permute.xlu0 0
          %7464 = vperm.xlu0 %7463, %v7294
          %v7465 = vpop.permute.xlu0 %7464
          %7468 = vset.pattern.permute.xlu0 0
          %7469 = vperm.xlu0 %7468, %v7295
          %v7470 = vpop.permute.xlu0 %7469
          %7473 = vset.pattern.permute.xlu0 0
          %7474 = vperm.xlu0 %7473, %v7296
          %v7475 = vpop.permute.xlu0 %7474
          %7478 = vset.pattern.permute.xlu0 0
          %7479 = vperm.xlu0 %7478, %v7297
          %v7480 = vpop.permute.xlu0 %7479
          %7483 = vset.pattern.permute.xlu0 0
          %7484 = vperm.xlu0 %7483, %v7298
          %v7485 = vpop.permute.xlu0 %7484
          %7488 = vset.pattern.permute.xlu0 0
          %7489 = vperm.xlu0 %7488, %v7299
          %v7490 = vpop.permute.xlu0 %7489
          %7493 = vset.pattern.permute.xlu0 0
          %7494 = vperm.xlu0 %7493, %v7300
          %v7495 = vpop.permute.xlu0 %7494
          %7498 = vset.pattern.permute.xlu0 0
          %7499 = vperm.xlu0 %7498, %v7301
          %v7500 = vpop.permute.xlu0 %7499
          %7503 = vset.pattern.permute.xlu0 0
          %7504 = vperm.xlu0 %7503, %v7302
          %v7505 = vpop.permute.xlu0 %7504
          %7508 = vset.pattern.permute.xlu0 0
          %7509 = vperm.xlu0 %7508, %v7303
          %v7510 = vpop.permute.xlu0 %7509
          %7513 = vset.pattern.permute.xlu0 0
          %7514 = vperm.xlu0 %7513, %v7304
          %v7515 = vpop.permute.xlu0 %7514
          %7518 = vset.pattern.permute.xlu0 0
          %7519 = vperm.xlu0 %7518, %v7305
          %v7520 = vpop.permute.xlu0 %7519
          %7523 = vset.pattern.permute.xlu0 0
          %7524 = vperm.xlu0 %7523, %v7306
          %v7525 = vpop.permute.xlu0 %7524
          %7528 = vset.pattern.permute.xlu0 0
          %7529 = vperm.xlu0 %7528, %v7307
          %v7530 = vpop.permute.xlu0 %7529
          %7533 = vset.pattern.permute.xlu0 0
          %7534 = vperm.xlu0 %7533, %v7308
          %v7535 = vpop.permute.xlu0 %7534
          %7538 = vset.pattern.permute.xlu0 0
          %7539 = vperm.xlu0 %7538, %v7309
          %v7540 = vpop.permute.xlu0 %7539
          %7543 = vset.pattern.permute.xlu0 0
          %7544 = vperm.xlu0 %7543, %v7310
          %v7545 = vpop.permute.xlu0 %7544
          %7548 = vset.pattern.permute.xlu0 0
          %7549 = vperm.xlu0 %7548, %v7311
          %v7550 = vpop.permute.xlu0 %7549
          %7553 = vset.pattern.permute.xlu0 0
          %7554 = vperm.xlu0 %7553, %v7312
          %v7555 = vpop.permute.xlu0 %7554
          %7558 = vset.pattern.permute.xlu0 0
          %7559 = vperm.xlu0 %7558, %v7313
          %v7560 = vpop.permute.xlu0 %7559
          %7563 = vset.pattern.permute.xlu0 0
          %7564 = vperm.xlu0 %7563, %v7314
          %v7565 = vpop.permute.xlu0 %7564
          %7568 = vset.pattern.permute.xlu0 0
          %7569 = vperm.xlu0 %7568, %v7315
          %v7570 = vpop.permute.xlu0 %7569
          %7573 = vset.pattern.permute.xlu0 0
          %7574 = vperm.xlu0 %7573, %v7316
          %v7575 = vpop.permute.xlu0 %7574
          %7578 = vset.pattern.permute.xlu0 0
          %7579 = vperm.xlu0 %7578, %v7317
          %v7580 = vpop.permute.xlu0 %7579
          %7583 = vset.pattern.permute.xlu0 0
          %7584 = vperm.xlu0 %7583, %v7318
          %v7585 = vpop.permute.xlu0 %7584
          %7588 = vset.pattern.permute.xlu0 0
          %7589 = vperm.xlu0 %7588, %v7319
          %v7590 = vpop.permute.xlu0 %7589
          %7593 = vset.pattern.permute.xlu0 0
          %7594 = vperm.xlu0 %7593, %v7320
          %v7595 = vpop.permute.xlu0 %7594
          %7598 = vset.pattern.permute.xlu0 0
          %7599 = vperm.xlu0 %7598, %v7321
          %v7600 = vpop.permute.xlu0 %7599
          %7603 = vset.pattern.permute.xlu0 0
          %7604 = vperm.xlu0 %7603, %v7322
          %v7605 = vpop.permute.xlu0 %7604
          %7608 = vset.pattern.permute.xlu0 0
          %7609 = vperm.xlu0 %7608, %v7323
          %v7610 = vpop.permute.xlu0 %7609
          %7613 = vset.pattern.permute.xlu0 0
          %7614 = vperm.xlu0 %7613, %v7324
          %v7615 = vpop.permute.xlu0 %7614
          %7618 = vset.pattern.permute.xlu0 0
          %7619 = vperm.xlu0 %7618, %v7325
          %v7620 = vpop.permute.xlu0 %7619
          %7623 = vset.pattern.permute.xlu0 0
          %7624 = vperm.xlu0 %7623, %v7326
          %v7625 = vpop.permute.xlu0 %7624
          %7628 = vset.pattern.permute.xlu0 0
          %7629 = vperm.xlu0 %7628, %v7327
          %v7630 = vpop.permute.xlu0 %7629
          %7633 = vset.pattern.permute.xlu0 0
          %7634 = vperm.xlu0 %7633, %v7328
          %v7635 = vpop.permute.xlu0 %7634
          %7638 = vset.pattern.permute.xlu0 0
          %7639 = vperm.xlu0 %7638, %v7329
          %v7640 = vpop.permute.xlu0 %7639
          %7643 = vset.pattern.permute.xlu0 0
          %7644 = vperm.xlu0 %7643, %v7330
          %v7645 = vpop.permute.xlu0 %7644
          %7648 = vset.pattern.permute.xlu0 0
          %7649 = vperm.xlu0 %7648, %v7331
          %v7650 = vpop.permute.xlu0 %7649
          %7653 = vset.pattern.permute.xlu0 0
          %7654 = vperm.xlu0 %7653, %v7332
          %v7655 = vpop.permute.xlu0 %7654
          %7658 = vset.pattern.permute.xlu0 0
          %7659 = vperm.xlu0 %7658, %v7333
          %v7660 = vpop.permute.xlu0 %7659
          %7663 = vset.pattern.permute.xlu0 0
          %7664 = vperm.xlu0 %7663, %v7334
          %v7665 = vpop.permute.xlu0 %7664
          %7668 = vset.pattern.permute.xlu0 0
          %7669 = vperm.xlu0 %7668, %v7335
          %v7670 = vpop.permute.xlu0 %7669
          %7673 = vset.pattern.permute.xlu0 0
          %7674 = vperm.xlu0 %7673, %v7336
          %v7675 = vpop.permute.xlu0 %7674
          %7678 = vset.pattern.permute.xlu0 0
          %7679 = vperm.xlu0 %7678, %v7337
          %v7680 = vpop.permute.xlu0 %7679
          %7683 = vset.pattern.permute.xlu0 0
          %7684 = vperm.xlu0 %7683, %v7338
          %v7685 = vpop.permute.xlu0 %7684
          %7688 = vset.pattern.permute.xlu0 0
          %7689 = vperm.xlu0 %7688, %v7339
          %v7690 = vpop.permute.xlu0 %7689
          %7693 = vset.pattern.permute.xlu0 0
          %7694 = vperm.xlu0 %7693, %v7340
          %v7695 = vpop.permute.xlu0 %7694
          %7698 = vset.pattern.permute.xlu0 0
          %7699 = vperm.xlu0 %7698, %v7341
          %v7700 = vpop.permute.xlu0 %7699
          %7703 = vset.pattern.permute.xlu0 0
          %7704 = vperm.xlu0 %7703, %v7342
          %v7705 = vpop.permute.xlu0 %7704
          %7708 = vset.pattern.permute.xlu0 0
          %7709 = vperm.xlu0 %7708, %v7343
          %v7710 = vpop.permute.xlu0 %7709
          %7713 = vset.pattern.permute.xlu0 0
          %7714 = vperm.xlu0 %7713, %v7344
          %v7715 = vpop.permute.xlu0 %7714
          %7718 = vset.pattern.permute.xlu0 0
          %7719 = vperm.xlu0 %7718, %v7345
          %v7720 = vpop.permute.xlu0 %7719
          %7723 = vset.pattern.permute.xlu0 0
          %7724 = vperm.xlu0 %7723, %v7346
          %v7725 = vpop.permute.xlu0 %7724
          %7728 = vset.pattern.permute.xlu0 0
          %7729 = vperm.xlu0 %7728, %v7347
          %v7730 = vpop.permute.xlu0 %7729
          %v7732 = vmul.f32 %v7348, %v7415
          %v7733 = vmul.f32 %v7349, %v7420
          %v7734 = vmul.f32 %v7350, %v7425
          %v7735 = vmul.f32 %v7351, %v7430
          %v7736 = vmul.f32 %v7352, %v7435
          %v7737 = vmul.f32 %v7353, %v7440
          %v7738 = vmul.f32 %v7354, %v7445
          %v7739 = vmul.f32 %v7355, %v7450
          %v7740 = vmul.f32 %v7356, %v7455
          %v7741 = vmul.f32 %v7357, %v7460
          %v7742 = vmul.f32 %v7358, %v7465
          %v7743 = vmul.f32 %v7359, %v7470
          %v7744 = vmul.f32 %v7360, %v7475
          %v7745 = vmul.f32 %v7361, %v7480
          %v7746 = vmul.f32 %v7362, %v7485
          %v7747 = vmul.f32 %v7363, %v7490
          %v7748 = vmul.f32 %v7364, %v7495
          %v7749 = vmul.f32 %v7365, %v7500
          %v7750 = vmul.f32 %v7366, %v7505
          %v7751 = vmul.f32 %v7367, %v7510
          %v7752 = vmul.f32 %v7368, %v7515
          %v7753 = vmul.f32 %v7369, %v7520
          %v7754 = vmul.f32 %v7370, %v7525
          %v7755 = vmul.f32 %v7371, %v7530
          %v7756 = vmul.f32 %v7372, %v7535
          %v7757 = vmul.f32 %v7373, %v7540
          %v7758 = vmul.f32 %v7374, %v7545
          %v7759 = vmul.f32 %v7375, %v7550
          %v7760 = vmul.f32 %v7376, %v7555
          %v7761 = vmul.f32 %v7377, %v7560
          %v7762 = vmul.f32 %v7378, %v7565
          %v7763 = vmul.f32 %v7379, %v7570
          %v7764 = vmul.f32 %v7380, %v7575
          %v7765 = vmul.f32 %v7381, %v7580
          %v7766 = vmul.f32 %v7382, %v7585
          %v7767 = vmul.f32 %v7383, %v7590
          %v7768 = vmul.f32 %v7384, %v7595
          %v7769 = vmul.f32 %v7385, %v7600
          %v7770 = vmul.f32 %v7386, %v7605
          %v7771 = vmul.f32 %v7387, %v7610
          %v7772 = vmul.f32 %v7388, %v7615
          %v7773 = vmul.f32 %v7389, %v7620
          %v7774 = vmul.f32 %v7390, %v7625
          %v7775 = vmul.f32 %v7391, %v7630
          %v7776 = vmul.f32 %v7392, %v7635
          %v7777 = vmul.f32 %v7393, %v7640
          %v7778 = vmul.f32 %v7394, %v7645
          %v7779 = vmul.f32 %v7395, %v7650
          %v7780 = vmul.f32 %v7396, %v7655
          %v7781 = vmul.f32 %v7397, %v7660
          %v7782 = vmul.f32 %v7398, %v7665
          %v7783 = vmul.f32 %v7399, %v7670
          %v7784 = vmul.f32 %v7400, %v7675
          %v7785 = vmul.f32 %v7401, %v7680
          %v7786 = vmul.f32 %v7402, %v7685
          %v7787 = vmul.f32 %v7403, %v7690
          %v7788 = vmul.f32 %v7404, %v7695
          %v7789 = vmul.f32 %v7405, %v7700
          %v7790 = vmul.f32 %v7406, %v7705
          %v7791 = vmul.f32 %v7407, %v7710
          %v7792 = vmul.f32 %v7408, %v7715
          %v7793 = vmul.f32 %v7409, %v7720
          %v7794 = vmul.f32 %v7410, %v7725
          %v7795 = vmul.f32 %v7411, %v7730
          %vm7796 = vcmask 523264
          %7797 = vst.msk [vmem:[%s1300] sm:$0xff] %vm7796, %v7732
          %7798 = vst.msk [vmem:[%s1300 + $0x8] sm:$0xff] %vm7796, %v7733
          %7799 = vst.msk [vmem:[%s1300 + $0x10] sm:$0xff] %vm7796, %v7734
          %7800 = vst.msk [vmem:[%s1300 + $0x18] sm:$0xff] %vm7796, %v7735
          %7801 = vst.msk [vmem:[%s1300 + $0x20] sm:$0xff] %vm7796, %v7736
          %7802 = vst.msk [vmem:[%s1300 + $0x28] sm:$0xff] %vm7796, %v7737
          %7803 = vst.msk [vmem:[%s1300 + $0x30] sm:$0xff] %vm7796, %v7738
          %7804 = vst.msk [vmem:[%s1300 + $0x38] sm:$0xff] %vm7796, %v7739
          %7805 = vst.msk [vmem:[%s1300 + $0x40] sm:$0xff] %vm7796, %v7740
          %7806 = vst.msk [vmem:[%s1300 + $0x48] sm:$0xff] %vm7796, %v7741
          %7807 = vst.msk [vmem:[%s1300 + $0x50] sm:$0xff] %vm7796, %v7742
          %7808 = vst.msk [vmem:[%s1300 + $0x58] sm:$0xff] %vm7796, %v7743
          %7809 = vst.msk [vmem:[%s1300 + $0x60] sm:$0xff] %vm7796, %v7744
          %7810 = vst.msk [vmem:[%s1300 + $0x68] sm:$0xff] %vm7796, %v7745
          %7811 = vst.msk [vmem:[%s1300 + $0x70] sm:$0xff] %vm7796, %v7746
          %7812 = vst.msk [vmem:[%s1300 + $0x78] sm:$0xff] %vm7796, %v7747
          %7813 = vst.msk [vmem:[%s1300 + $0x80] sm:$0xff] %vm7796, %v7748
          %7814 = vst.msk [vmem:[%s1300 + $0x88] sm:$0xff] %vm7796, %v7749
          %7815 = vst.msk [vmem:[%s1300 + $0x90] sm:$0xff] %vm7796, %v7750
          %7816 = vst.msk [vmem:[%s1300 + $0x98] sm:$0xff] %vm7796, %v7751
          %7817 = vst.msk [vmem:[%s1300 + $0xa0] sm:$0xff] %vm7796, %v7752
          %7818 = vst.msk [vmem:[%s1300 + $0xa8] sm:$0xff] %vm7796, %v7753
          %7819 = vst.msk [vmem:[%s1300 + $0xb0] sm:$0xff] %vm7796, %v7754
          %7820 = vst.msk [vmem:[%s1300 + $0xb8] sm:$0xff] %vm7796, %v7755
          %7821 = vst.msk [vmem:[%s1300 + $0xc0] sm:$0xff] %vm7796, %v7756
          %7822 = vst.msk [vmem:[%s1300 + $0xc8] sm:$0xff] %vm7796, %v7757
          %7823 = vst.msk [vmem:[%s1300 + $0xd0] sm:$0xff] %vm7796, %v7758
          %7824 = vst.msk [vmem:[%s1300 + $0xd8] sm:$0xff] %vm7796, %v7759
          %7825 = vst.msk [vmem:[%s1300 + $0xe0] sm:$0xff] %vm7796, %v7760
          %7826 = vst.msk [vmem:[%s1300 + $0xe8] sm:$0xff] %vm7796, %v7761
          %7827 = vst.msk [vmem:[%s1300 + $0xf0] sm:$0xff] %vm7796, %v7762
          %7828 = vst.msk [vmem:[%s1300 + $0xf8] sm:$0xff] %vm7796, %v7763
          %7829 = vst.msk [vmem:[%s1300 + $0x100] sm:$0xff] %vm7796, %v7764
          %7830 = vst.msk [vmem:[%s1300 + $0x108] sm:$0xff] %vm7796, %v7765
          %7831 = vst.msk [vmem:[%s1300 + $0x110] sm:$0xff] %vm7796, %v7766
          %7832 = vst.msk [vmem:[%s1300 + $0x118] sm:$0xff] %vm7796, %v7767
          %7833 = vst.msk [vmem:[%s1300 + $0x120] sm:$0xff] %vm7796, %v7768
          %7834 = vst.msk [vmem:[%s1300 + $0x128] sm:$0xff] %vm7796, %v7769
          %7835 = vst.msk [vmem:[%s1300 + $0x130] sm:$0xff] %vm7796, %v7770
          %7836 = vst.msk [vmem:[%s1300 + $0x138] sm:$0xff] %vm7796, %v7771
          %7837 = vst.msk [vmem:[%s1300 + $0x140] sm:$0xff] %vm7796, %v7772
          %7838 = vst.msk [vmem:[%s1300 + $0x148] sm:$0xff] %vm7796, %v7773
          %7839 = vst.msk [vmem:[%s1300 + $0x150] sm:$0xff] %vm7796, %v7774
          %7840 = vst.msk [vmem:[%s1300 + $0x158] sm:$0xff] %vm7796, %v7775
          %7841 = vst.msk [vmem:[%s1300 + $0x160] sm:$0xff] %vm7796, %v7776
          %7842 = vst.msk [vmem:[%s1300 + $0x168] sm:$0xff] %vm7796, %v7777
          %7843 = vst.msk [vmem:[%s1300 + $0x170] sm:$0xff] %vm7796, %v7778
          %7844 = vst.msk [vmem:[%s1300 + $0x178] sm:$0xff] %vm7796, %v7779
          %7845 = vst.msk [vmem:[%s1300 + $0x180] sm:$0xff] %vm7796, %v7780
          %7846 = vst.msk [vmem:[%s1300 + $0x188] sm:$0xff] %vm7796, %v7781
          %7847 = vst.msk [vmem:[%s1300 + $0x190] sm:$0xff] %vm7796, %v7782
          %7848 = vst.msk [vmem:[%s1300 + $0x198] sm:$0xff] %vm7796, %v7783
          %7849 = vst.msk [vmem:[%s1300 + $0x1a0] sm:$0xff] %vm7796, %v7784
          %7850 = vst.msk [vmem:[%s1300 + $0x1a8] sm:$0xff] %vm7796, %v7785
          %7851 = vst.msk [vmem:[%s1300 + $0x1b0] sm:$0xff] %vm7796, %v7786
          %7852 = vst.msk [vmem:[%s1300 + $0x1b8] sm:$0xff] %vm7796, %v7787
          %7853 = vst.msk [vmem:[%s1300 + $0x1c0] sm:$0xff] %vm7796, %v7788
          %7854 = vst.msk [vmem:[%s1300 + $0x1c8] sm:$0xff] %vm7796, %v7789
          %7855 = vst.msk [vmem:[%s1300 + $0x1d0] sm:$0xff] %vm7796, %v7790
          %7856 = vst.msk [vmem:[%s1300 + $0x1d8] sm:$0xff] %vm7796, %v7791
          %7857 = vst.msk [vmem:[%s1300 + $0x1e0] sm:$0xff] %vm7796, %v7792
          %7858 = vst.msk [vmem:[%s1300 + $0x1e8] sm:$0xff] %vm7796, %v7793
          %7859 = vst.msk [vmem:[%s1300 + $0x1f0] sm:$0xff] %vm7796, %v7794
          %7860 = vst.msk [vmem:[%s1300 + $0x1f8] sm:$0xff] %vm7796, %v7795
        $region178: #{multi_head_attention.4} parent=153 // pred_fallthru
          _
        %s7861 = sand.u32 %s257, 1
        %s7862 = sand.u32 %s257, 1
        %s7863 = smul.addr %s7862, 512
        %s7864 = scalar_lea.vmem [#allocation9], %s7863
        // Predicated region
        $region179: #{multi_head_attention.4} parent=153 // pred_check
          %p7865 = pneg %p267
        $region180: #{multi_head_attention.4} parent=153 // pred_check_branch
          %7867 = sbr.rel (%p7865) target = $region182
        $region181: #{multi_head_attention.4} parent=153 // pred_region
          %s7868 = smul.u32 16, %s25
          %s7869 = smul.addr %s24, 128
          %s7870 = sadd.s32 %s7868, %s7869
          %s7871 = smul.addr %s7870, 8
          %s7872 = scalar_lea.vmem %s8, %s7871
          // Predicated region
          $region183: #{multi_head_attention.4} parent=181 // pred_check
            _
          $region184: #{multi_head_attention.4} parent=181 // pred_check_branch
            %7874 = sbr.rel (0) target = $region186
          $region185: #{multi_head_attention.4} parent=181 // pred_region
            // Predicated region
            $region187: #{multi_head_attention.4} parent=185 // pred_check
              _
            $region188: #{multi_head_attention.4} parent=185 // pred_check_branch
              %7876 = sbr.rel (0) target = $region190
            $region189: #{multi_head_attention.4} parent=185 // pred_region
              // Predicated region
              $region202: #{multi_head_attention.4} parent=189 // pred_check
                _
              $region203: #{multi_head_attention.4} parent=189 // pred_check_branch
                %8018 = sbr.rel (0) target = $region205
              $region204: #{multi_head_attention.4} parent=189 // pred_region
                loop: start=0, step=1, limit=1
                $region206: #{multi_head_attention.4} parent=204 // loop_pre_header
                  _
                $region207: #{multi_head_attention.4} parent=204 // loop_header
                  %s8020 = sphi 0, %s8024
                  %p8021 = scmp.ge.s32.totalorder %s8020, 1
                  %s8025 = sphi %s7864, %s7864
                  %s8026 = sphi %s7872, %s7872
                $region208: #{multi_head_attention.4} parent=204 // loop_header_branch
                  %8023 = sbr.rel (%p8021) target = $region212
                $region209: #{multi_head_attention.4} parent=204 // loop_body
                  %v8027 = vld [vmem:[%s8025] sm:$0xff]
                  %8028 = vst [vmem:[%s8026] sm:$0xff] %v8027
                  %v8029 = vld [vmem:[%s8025 + $0x8] sm:$0xff]
                  %8030 = vst [vmem:[%s8026 + $0x8] sm:$0xff] %v8029
                  %v8031 = vld [vmem:[%s8025 + $0x10] sm:$0xff]
                  %8032 = vst [vmem:[%s8026 + $0x10] sm:$0xff] %v8031
                  %v8033 = vld [vmem:[%s8025 + $0x18] sm:$0xff]
                  %8034 = vst [vmem:[%s8026 + $0x18] sm:$0xff] %v8033
                  %v8035 = vld [vmem:[%s8025 + $0x20] sm:$0xff]
                  %8036 = vst [vmem:[%s8026 + $0x20] sm:$0xff] %v8035
                  %v8037 = vld [vmem:[%s8025 + $0x28] sm:$0xff]
                  %8038 = vst [vmem:[%s8026 + $0x28] sm:$0xff] %v8037
                  %v8039 = vld [vmem:[%s8025 + $0x30] sm:$0xff]
                  %8040 = vst [vmem:[%s8026 + $0x30] sm:$0xff] %v8039
                  %v8041 = vld [vmem:[%s8025 + $0x38] sm:$0xff]
                  %8042 = vst [vmem:[%s8026 + $0x38] sm:$0xff] %v8041
                  %v8043 = vld [vmem:[%s8025 + $0x40] sm:$0xff]
                  %8044 = vst [vmem:[%s8026 + $0x40] sm:$0xff] %v8043
                  %v8045 = vld [vmem:[%s8025 + $0x48] sm:$0xff]
                  %8046 = vst [vmem:[%s8026 + $0x48] sm:$0xff] %v8045
                  %v8047 = vld [vmem:[%s8025 + $0x50] sm:$0xff]
                  %8048 = vst [vmem:[%s8026 + $0x50] sm:$0xff] %v8047
                  %v8049 = vld [vmem:[%s8025 + $0x58] sm:$0xff]
                  %8050 = vst [vmem:[%s8026 + $0x58] sm:$0xff] %v8049
                  %v8051 = vld [vmem:[%s8025 + $0x60] sm:$0xff]
                  %8052 = vst [vmem:[%s8026 + $0x60] sm:$0xff] %v8051
                  %v8053 = vld [vmem:[%s8025 + $0x68] sm:$0xff]
                  %8054 = vst [vmem:[%s8026 + $0x68] sm:$0xff] %v8053
                  %v8055 = vld [vmem:[%s8025 + $0x70] sm:$0xff]
                  %8056 = vst [vmem:[%s8026 + $0x70] sm:$0xff] %v8055
                  %v8057 = vld [vmem:[%s8025 + $0x78] sm:$0xff]
                  %8058 = vst [vmem:[%s8026 + $0x78] sm:$0xff] %v8057
                  %v8059 = vld [vmem:[%s8025 + $0x80] sm:$0xff]
                  %8060 = vst [vmem:[%s8026 + $0x100] sm:$0xff] %v8059
                  %v8061 = vld [vmem:[%s8025 + $0x88] sm:$0xff]
                  %8062 = vst [vmem:[%s8026 + $0x108] sm:$0xff] %v8061
                  %v8063 = vld [vmem:[%s8025 + $0x90] sm:$0xff]
                  %8064 = vst [vmem:[%s8026 + $0x110] sm:$0xff] %v8063
                  %v8065 = vld [vmem:[%s8025 + $0x98] sm:$0xff]
                  %8066 = vst [vmem:[%s8026 + $0x118] sm:$0xff] %v8065
                  %v8067 = vld [vmem:[%s8025 + $0xa0] sm:$0xff]
                  %8068 = vst [vmem:[%s8026 + $0x120] sm:$0xff] %v8067
                  %v8069 = vld [vmem:[%s8025 + $0xa8] sm:$0xff]
                  %8070 = vst [vmem:[%s8026 + $0x128] sm:$0xff] %v8069
                  %v8071 = vld [vmem:[%s8025 + $0xb0] sm:$0xff]
                  %8072 = vst [vmem:[%s8026 + $0x130] sm:$0xff] %v8071
                  %v8073 = vld [vmem:[%s8025 + $0xb8] sm:$0xff]
                  %8074 = vst [vmem:[%s8026 + $0x138] sm:$0xff] %v8073
                  %v8075 = vld [vmem:[%s8025 + $0xc0] sm:$0xff]
                  %8076 = vst [vmem:[%s8026 + $0x140] sm:$0xff] %v8075
                  %v8077 = vld [vmem:[%s8025 + $0xc8] sm:$0xff]
                  %8078 = vst [vmem:[%s8026 + $0x148] sm:$0xff] %v8077
                  %v8079 = vld [vmem:[%s8025 + $0xd0] sm:$0xff]
                  %8080 = vst [vmem:[%s8026 + $0x150] sm:$0xff] %v8079
                  %v8081 = vld [vmem:[%s8025 + $0xd8] sm:$0xff]
                  %8082 = vst [vmem:[%s8026 + $0x158] sm:$0xff] %v8081
                  %v8083 = vld [vmem:[%s8025 + $0xe0] sm:$0xff]
                  %8084 = vst [vmem:[%s8026 + $0x160] sm:$0xff] %v8083
                  %v8085 = vld [vmem:[%s8025 + $0xe8] sm:$0xff]
                  %8086 = vst [vmem:[%s8026 + $0x168] sm:$0xff] %v8085
                  %v8087 = vld [vmem:[%s8025 + $0xf0] sm:$0xff]
                  %8088 = vst [vmem:[%s8026 + $0x170] sm:$0xff] %v8087
                  %v8089 = vld [vmem:[%s8025 + $0xf8] sm:$0xff]
                  %8090 = vst [vmem:[%s8026 + $0x178] sm:$0xff] %v8089
                  %v8091 = vld [vmem:[%s8025 + $0x100] sm:$0xff]
                  %8092 = vst [vmem:[%s8026 + $0x200] sm:$0xff] %v8091
                  %v8093 = vld [vmem:[%s8025 + $0x108] sm:$0xff]
                  %8094 = vst [vmem:[%s8026 + $0x208] sm:$0xff] %v8093
                  %v8095 = vld [vmem:[%s8025 + $0x110] sm:$0xff]
                  %8096 = vst [vmem:[%s8026 + $0x210] sm:$0xff] %v8095
                  %v8097 = vld [vmem:[%s8025 + $0x118] sm:$0xff]
                  %8098 = vst [vmem:[%s8026 + $0x218] sm:$0xff] %v8097
                  %v8099 = vld [vmem:[%s8025 + $0x120] sm:$0xff]
                  %8100 = vst [vmem:[%s8026 + $0x220] sm:$0xff] %v8099
                  %v8101 = vld [vmem:[%s8025 + $0x128] sm:$0xff]
                  %8102 = vst [vmem:[%s8026 + $0x228] sm:$0xff] %v8101
                  %v8103 = vld [vmem:[%s8025 + $0x130] sm:$0xff]
                  %8104 = vst [vmem:[%s8026 + $0x230] sm:$0xff] %v8103
                  %v8105 = vld [vmem:[%s8025 + $0x138] sm:$0xff]
                  %8106 = vst [vmem:[%s8026 + $0x238] sm:$0xff] %v8105
                  %v8107 = vld [vmem:[%s8025 + $0x140] sm:$0xff]
                  %8108 = vst [vmem:[%s8026 + $0x240] sm:$0xff] %v8107
                  %v8109 = vld [vmem:[%s8025 + $0x148] sm:$0xff]
                  %8110 = vst [vmem:[%s8026 + $0x248] sm:$0xff] %v8109
                  %v8111 = vld [vmem:[%s8025 + $0x150] sm:$0xff]
                  %8112 = vst [vmem:[%s8026 + $0x250] sm:$0xff] %v8111
                  %v8113 = vld [vmem:[%s8025 + $0x158] sm:$0xff]
                  %8114 = vst [vmem:[%s8026 + $0x258] sm:$0xff] %v8113
                  %v8115 = vld [vmem:[%s8025 + $0x160] sm:$0xff]
                  %8116 = vst [vmem:[%s8026 + $0x260] sm:$0xff] %v8115
                  %v8117 = vld [vmem:[%s8025 + $0x168] sm:$0xff]
                  %8118 = vst [vmem:[%s8026 + $0x268] sm:$0xff] %v8117
                  %v8119 = vld [vmem:[%s8025 + $0x170] sm:$0xff]
                  %8120 = vst [vmem:[%s8026 + $0x270] sm:$0xff] %v8119
                  %v8121 = vld [vmem:[%s8025 + $0x178] sm:$0xff]
                  %8122 = vst [vmem:[%s8026 + $0x278] sm:$0xff] %v8121
                  %v8123 = vld [vmem:[%s8025 + $0x180] sm:$0xff]
                  %8124 = vst [vmem:[%s8026 + $0x300] sm:$0xff] %v8123
                  %v8125 = vld [vmem:[%s8025 + $0x188] sm:$0xff]
                  %8126 = vst [vmem:[%s8026 + $0x308] sm:$0xff] %v8125
                  %v8127 = vld [vmem:[%s8025 + $0x190] sm:$0xff]
                  %8128 = vst [vmem:[%s8026 + $0x310] sm:$0xff] %v8127
                  %v8129 = vld [vmem:[%s8025 + $0x198] sm:$0xff]
                  %8130 = vst [vmem:[%s8026 + $0x318] sm:$0xff] %v8129
                  %v8131 = vld [vmem:[%s8025 + $0x1a0] sm:$0xff]
                  %8132 = vst [vmem:[%s8026 + $0x320] sm:$0xff] %v8131
                  %v8133 = vld [vmem:[%s8025 + $0x1a8] sm:$0xff]
                  %8134 = vst [vmem:[%s8026 + $0x328] sm:$0xff] %v8133
                  %v8135 = vld [vmem:[%s8025 + $0x1b0] sm:$0xff]
                  %8136 = vst [vmem:[%s8026 + $0x330] sm:$0xff] %v8135
                  %v8137 = vld [vmem:[%s8025 + $0x1b8] sm:$0xff]
                  %8138 = vst [vmem:[%s8026 + $0x338] sm:$0xff] %v8137
                  %v8139 = vld [vmem:[%s8025 + $0x1c0] sm:$0xff]
                  %8140 = vst [vmem:[%s8026 + $0x340] sm:$0xff] %v8139
                  %v8141 = vld [vmem:[%s8025 + $0x1c8] sm:$0xff]
                  %8142 = vst [vmem:[%s8026 + $0x348] sm:$0xff] %v8141
                  %v8143 = vld [vmem:[%s8025 + $0x1d0] sm:$0xff]
                  %8144 = vst [vmem:[%s8026 + $0x350] sm:$0xff] %v8143
                  %v8145 = vld [vmem:[%s8025 + $0x1d8] sm:$0xff]
                  %8146 = vst [vmem:[%s8026 + $0x358] sm:$0xff] %v8145
                  %v8147 = vld [vmem:[%s8025 + $0x1e0] sm:$0xff]
                  %8148 = vst [vmem:[%s8026 + $0x360] sm:$0xff] %v8147
                  %v8149 = vld [vmem:[%s8025 + $0x1e8] sm:$0xff]
                  %8150 = vst [vmem:[%s8026 + $0x368] sm:$0xff] %v8149
                  %v8151 = vld [vmem:[%s8025 + $0x1f0] sm:$0xff]
                  %8152 = vst [vmem:[%s8026 + $0x370] sm:$0xff] %v8151
                  %v8153 = vld [vmem:[%s8025 + $0x1f8] sm:$0xff]
                  %8154 = vst [vmem:[%s8026 + $0x378] sm:$0xff] %v8153
                $region210: #{multi_head_attention.4} parent=204 // loop_footer
                  %s8024 = sadd.s32 1, %s8020
                $region211: #{multi_head_attention.4} parent=204 // loop_footer_branch
                  %8019 = sbr.rel target = $region207
                $region212: #{multi_head_attention.4} parent=204 // loop_exit
                  _
              $region205: #{multi_head_attention.4} parent=189 // pred_fallthru
                _
              // Predicated region
              $region213: #{multi_head_attention.4} parent=189 // pred_check
                _
              $region214: #{multi_head_attention.4} parent=189 // pred_check_branch
                %8156 = sbr.rel target = $region216
              $region215: #{multi_head_attention.4} parent=189 // pred_region
                _
              $region216: #{multi_head_attention.4} parent=189 // pred_fallthru
                _
            $region190: #{multi_head_attention.4} parent=185 // pred_fallthru
              _
            // Predicated region
            $region191: #{multi_head_attention.4} parent=185 // pred_check
              _
            $region192: #{multi_head_attention.4} parent=185 // pred_check_branch
              %7878 = sbr.rel target = $region194
            $region193: #{multi_head_attention.4} parent=185 // pred_region
              %s7880 = ssub.s32 256, 1
              loop: start=0, step=1, limit=1
              $region195: #{multi_head_attention.4} parent=193 // loop_pre_header
                _
              $region196: #{multi_head_attention.4} parent=193 // loop_header
                %s7882 = sphi 0, %s7886
                %p7883 = scmp.ge.s32.totalorder %s7882, 1
                %s7887 = sphi %s7864, %s7864
                %s7888 = sphi %s7872, %s7872
              $region197: #{multi_head_attention.4} parent=193 // loop_header_branch
                %7885 = sbr.rel (%p7883) target = $region201
              $region198: #{multi_head_attention.4} parent=193 // loop_body
                %v7889 = vld [vmem:[%s7887] sm:%s7880]
                %7890 = vst [vmem:[%s7888] sm:%s7880] %v7889
                %v7891 = vld [vmem:[%s7887 + $0x8] sm:%s7880]
                %7892 = vst [vmem:[%s7888 + $0x8] sm:%s7880] %v7891
                %v7893 = vld [vmem:[%s7887 + $0x10] sm:%s7880]
                %7894 = vst [vmem:[%s7888 + $0x10] sm:%s7880] %v7893
                %v7895 = vld [vmem:[%s7887 + $0x18] sm:%s7880]
                %7896 = vst [vmem:[%s7888 + $0x18] sm:%s7880] %v7895
                %v7897 = vld [vmem:[%s7887 + $0x20] sm:%s7880]
                %7898 = vst [vmem:[%s7888 + $0x20] sm:%s7880] %v7897
                %v7899 = vld [vmem:[%s7887 + $0x28] sm:%s7880]
                %7900 = vst [vmem:[%s7888 + $0x28] sm:%s7880] %v7899
                %v7901 = vld [vmem:[%s7887 + $0x30] sm:%s7880]
                %7902 = vst [vmem:[%s7888 + $0x30] sm:%s7880] %v7901
                %v7903 = vld [vmem:[%s7887 + $0x38] sm:%s7880]
                %7904 = vst [vmem:[%s7888 + $0x38] sm:%s7880] %v7903
                %v7905 = vld [vmem:[%s7887 + $0x40] sm:%s7880]
                %7906 = vst [vmem:[%s7888 + $0x40] sm:%s7880] %v7905
                %v7907 = vld [vmem:[%s7887 + $0x48] sm:%s7880]
                %7908 = vst [vmem:[%s7888 + $0x48] sm:%s7880] %v7907
                %v7909 = vld [vmem:[%s7887 + $0x50] sm:%s7880]
                %7910 = vst [vmem:[%s7888 + $0x50] sm:%s7880] %v7909
                %v7911 = vld [vmem:[%s7887 + $0x58] sm:%s7880]
                %7912 = vst [vmem:[%s7888 + $0x58] sm:%s7880] %v7911
                %v7913 = vld [vmem:[%s7887 + $0x60] sm:%s7880]
                %7914 = vst [vmem:[%s7888 + $0x60] sm:%s7880] %v7913
                %v7915 = vld [vmem:[%s7887 + $0x68] sm:%s7880]
                %7916 = vst [vmem:[%s7888 + $0x68] sm:%s7880] %v7915
                %v7917 = vld [vmem:[%s7887 + $0x70] sm:%s7880]
                %7918 = vst [vmem:[%s7888 + $0x70] sm:%s7880] %v7917
                %v7919 = vld [vmem:[%s7887 + $0x78] sm:%s7880]
                %7920 = vst [vmem:[%s7888 + $0x78] sm:%s7880] %v7919
                %v7921 = vld [vmem:[%s7887 + $0x80] sm:%s7880]
                %7922 = vst [vmem:[%s7888 + $0x100] sm:%s7880] %v7921
                %v7923 = vld [vmem:[%s7887 + $0x88] sm:%s7880]
                %7924 = vst [vmem:[%s7888 + $0x108] sm:%s7880] %v7923
                %v7925 = vld [vmem:[%s7887 + $0x90] sm:%s7880]
                %7926 = vst [vmem:[%s7888 + $0x110] sm:%s7880] %v7925
                %v7927 = vld [vmem:[%s7887 + $0x98] sm:%s7880]
                %7928 = vst [vmem:[%s7888 + $0x118] sm:%s7880] %v7927
                %v7929 = vld [vmem:[%s7887 + $0xa0] sm:%s7880]
                %7930 = vst [vmem:[%s7888 + $0x120] sm:%s7880] %v7929
                %v7931 = vld [vmem:[%s7887 + $0xa8] sm:%s7880]
                %7932 = vst [vmem:[%s7888 + $0x128] sm:%s7880] %v7931
                %v7933 = vld [vmem:[%s7887 + $0xb0] sm:%s7880]
                %7934 = vst [vmem:[%s7888 + $0x130] sm:%s7880] %v7933
                %v7935 = vld [vmem:[%s7887 + $0xb8] sm:%s7880]
                %7936 = vst [vmem:[%s7888 + $0x138] sm:%s7880] %v7935
                %v7937 = vld [vmem:[%s7887 + $0xc0] sm:%s7880]
                %7938 = vst [vmem:[%s7888 + $0x140] sm:%s7880] %v7937
                %v7939 = vld [vmem:[%s7887 + $0xc8] sm:%s7880]
                %7940 = vst [vmem:[%s7888 + $0x148] sm:%s7880] %v7939
                %v7941 = vld [vmem:[%s7887 + $0xd0] sm:%s7880]
                %7942 = vst [vmem:[%s7888 + $0x150] sm:%s7880] %v7941
                %v7943 = vld [vmem:[%s7887 + $0xd8] sm:%s7880]
                %7944 = vst [vmem:[%s7888 + $0x158] sm:%s7880] %v7943
                %v7945 = vld [vmem:[%s7887 + $0xe0] sm:%s7880]
                %7946 = vst [vmem:[%s7888 + $0x160] sm:%s7880] %v7945
                %v7947 = vld [vmem:[%s7887 + $0xe8] sm:%s7880]
                %7948 = vst [vmem:[%s7888 + $0x168] sm:%s7880] %v7947
                %v7949 = vld [vmem:[%s7887 + $0xf0] sm:%s7880]
                %7950 = vst [vmem:[%s7888 + $0x170] sm:%s7880] %v7949
                %v7951 = vld [vmem:[%s7887 + $0xf8] sm:%s7880]
                %7952 = vst [vmem:[%s7888 + $0x178] sm:%s7880] %v7951
                %v7953 = vld [vmem:[%s7887 + $0x100] sm:%s7880]
                %7954 = vst [vmem:[%s7888 + $0x200] sm:%s7880] %v7953
                %v7955 = vld [vmem:[%s7887 + $0x108] sm:%s7880]
                %7956 = vst [vmem:[%s7888 + $0x208] sm:%s7880] %v7955
                %v7957 = vld [vmem:[%s7887 + $0x110] sm:%s7880]
                %7958 = vst [vmem:[%s7888 + $0x210] sm:%s7880] %v7957
                %v7959 = vld [vmem:[%s7887 + $0x118] sm:%s7880]
                %7960 = vst [vmem:[%s7888 + $0x218] sm:%s7880] %v7959
                %v7961 = vld [vmem:[%s7887 + $0x120] sm:%s7880]
                %7962 = vst [vmem:[%s7888 + $0x220] sm:%s7880] %v7961
                %v7963 = vld [vmem:[%s7887 + $0x128] sm:%s7880]
                %7964 = vst [vmem:[%s7888 + $0x228] sm:%s7880] %v7963
                %v7965 = vld [vmem:[%s7887 + $0x130] sm:%s7880]
                %7966 = vst [vmem:[%s7888 + $0x230] sm:%s7880] %v7965
                %v7967 = vld [vmem:[%s7887 + $0x138] sm:%s7880]
                %7968 = vst [vmem:[%s7888 + $0x238] sm:%s7880] %v7967
                %v7969 = vld [vmem:[%s7887 + $0x140] sm:%s7880]
                %7970 = vst [vmem:[%s7888 + $0x240] sm:%s7880] %v7969
                %v7971 = vld [vmem:[%s7887 + $0x148] sm:%s7880]
                %7972 = vst [vmem:[%s7888 + $0x248] sm:%s7880] %v7971
                %v7973 = vld [vmem:[%s7887 + $0x150] sm:%s7880]
                %7974 = vst [vmem:[%s7888 + $0x250] sm:%s7880] %v7973
                %v7975 = vld [vmem:[%s7887 + $0x158] sm:%s7880]
                %7976 = vst [vmem:[%s7888 + $0x258] sm:%s7880] %v7975
                %v7977 = vld [vmem:[%s7887 + $0x160] sm:%s7880]
                %7978 = vst [vmem:[%s7888 + $0x260] sm:%s7880] %v7977
                %v7979 = vld [vmem:[%s7887 + $0x168] sm:%s7880]
                %7980 = vst [vmem:[%s7888 + $0x268] sm:%s7880] %v7979
                %v7981 = vld [vmem:[%s7887 + $0x170] sm:%s7880]
                %7982 = vst [vmem:[%s7888 + $0x270] sm:%s7880] %v7981
                %v7983 = vld [vmem:[%s7887 + $0x178] sm:%s7880]
                %7984 = vst [vmem:[%s7888 + $0x278] sm:%s7880] %v7983
                %v7985 = vld [vmem:[%s7887 + $0x180] sm:%s7880]
                %7986 = vst [vmem:[%s7888 + $0x300] sm:%s7880] %v7985
                %v7987 = vld [vmem:[%s7887 + $0x188] sm:%s7880]
                %7988 = vst [vmem:[%s7888 + $0x308] sm:%s7880] %v7987
                %v7989 = vld [vmem:[%s7887 + $0x190] sm:%s7880]
                %7990 = vst [vmem:[%s7888 + $0x310] sm:%s7880] %v7989
                %v7991 = vld [vmem:[%s7887 + $0x198] sm:%s7880]
                %7992 = vst [vmem:[%s7888 + $0x318] sm:%s7880] %v7991
                %v7993 = vld [vmem:[%s7887 + $0x1a0] sm:%s7880]
                %7994 = vst [vmem:[%s7888 + $0x320] sm:%s7880] %v7993
                %v7995 = vld [vmem:[%s7887 + $0x1a8] sm:%s7880]
                %7996 = vst [vmem:[%s7888 + $0x328] sm:%s7880] %v7995
                %v7997 = vld [vmem:[%s7887 + $0x1b0] sm:%s7880]
                %7998 = vst [vmem:[%s7888 + $0x330] sm:%s7880] %v7997
                %v7999 = vld [vmem:[%s7887 + $0x1b8] sm:%s7880]
                %8000 = vst [vmem:[%s7888 + $0x338] sm:%s7880] %v7999
                %v8001 = vld [vmem:[%s7887 + $0x1c0] sm:%s7880]
                %8002 = vst [vmem:[%s7888 + $0x340] sm:%s7880] %v8001
                %v8003 = vld [vmem:[%s7887 + $0x1c8] sm:%s7880]
                %8004 = vst [vmem:[%s7888 + $0x348] sm:%s7880] %v8003
                %v8005 = vld [vmem:[%s7887 + $0x1d0] sm:%s7880]
                %8006 = vst [vmem:[%s7888 + $0x350] sm:%s7880] %v8005
                %v8007 = vld [vmem:[%s7887 + $0x1d8] sm:%s7880]
                %8008 = vst [vmem:[%s7888 + $0x358] sm:%s7880] %v8007
                %v8009 = vld [vmem:[%s7887 + $0x1e0] sm:%s7880]
                %8010 = vst [vmem:[%s7888 + $0x360] sm:%s7880] %v8009
                %v8011 = vld [vmem:[%s7887 + $0x1e8] sm:%s7880]
                %8012 = vst [vmem:[%s7888 + $0x368] sm:%s7880] %v8011
                %v8013 = vld [vmem:[%s7887 + $0x1f0] sm:%s7880]
                %8014 = vst [vmem:[%s7888 + $0x370] sm:%s7880] %v8013
                %v8015 = vld [vmem:[%s7887 + $0x1f8] sm:%s7880]
                %8016 = vst [vmem:[%s7888 + $0x378] sm:%s7880] %v8015
              $region199: #{multi_head_attention.4} parent=193 // loop_footer
                %s7886 = sadd.s32 1, %s7882
              $region200: #{multi_head_attention.4} parent=193 // loop_footer_branch
                %7881 = sbr.rel target = $region196
              $region201: #{multi_head_attention.4} parent=193 // loop_exit
                _
            $region194: #{multi_head_attention.4} parent=185 // pred_fallthru
              _
          $region186: #{multi_head_attention.4} parent=181 // pred_fallthru
            _
          %8157 = vnop
        $region182: #{multi_head_attention.4} parent=153 // pred_fallthru
          _
      $region154: #{multi_head_attention.4} parent=5 // pred_fallthru
        _
      %p8158 = scmp.le.s32.totalorder 2, %s14
      // Predicated region
      $region217: #{multi_head_attention.4} parent=5 // pred_check
        %p8159 = pneg %p8158
      $region218: #{multi_head_attention.4} parent=5 // pred_check_branch
        %8161 = sbr.rel (%p8159) target = $region220
      $region219: #{multi_head_attention.4} parent=5 // pred_region
        %s8162 = ssub.s32 %s14, 2
        // Predicated region
        $region221: #{multi_head_attention.4} parent=219 // pred_check
          %p8163 = pneg %p273
        $region222: #{multi_head_attention.4} parent=219 // pred_check_branch
          %8165 = sbr.rel (%p8163) target = $region224
        $region223: #{multi_head_attention.4} parent=219 // pred_region
          %s8166 = sand.u32 %s258, 1
          %s8167 = sand.u32 %s258, 1
          %s8168 = smul.addr %s8167, 512
          %s8169 = scalar_lea.vmem [#allocation9], %s8168
        $region224: #{multi_head_attention.4} parent=219 // pred_fallthru
          _
      $region220: #{multi_head_attention.4} parent=5 // pred_fallthru
        _
    $region6: #{multi_head_attention.4} parent=1 // loop_footer
      %s18 = sadd.s32 1, %s14
    $region7: #{multi_head_attention.4} parent=1 // loop_footer_branch
      %13 = sbr.rel target = $region3
    $region8: #{multi_head_attention.4} parent=1 // loop_exit
      _

</llo_original>
